<compile_context>
chip_gen: v5e
topology: v5e:2x2
jax: 0.10.0
libtpu: 0.0.40
codegen_flags: <defaults>
</compile_context>

<pallas_src>
import functools

import jax
import jax.numpy as jnp
from jax import lax
from jax.experimental import pallas as pl
from jax.experimental.pallas import tpu as pltpu


# --------------------------- fused Pallas kernel (hot path) ---------------------------

def _make_deform_conv_kernel(ic, ih, iw, f_h, f_w, f_oc):
    """Fused grid-sample + stride==kernel conv for one batch element per grid step.

    Refs (in order):
      x_ref    : (1, ic, ih, iw)        input planes (all channels of one batch elem)
      hall_ref : (f_h, ih, iw)          width-direction bilinear weights Hall[p, h, w']
      wall_ref : (f_w, ih, iw)          height-direction bilinear weights Wall[q, h', w]
      wsel_ref : (f_h*f_w*f_oc*ic,)     conv weights, SMEM scalars, (p,q,oc,c) row-major
      bias_ref : (f_oc,)                conv bias, SMEM scalars
      out_ref  : (1, f_oc, ih, iw)      NCHW output block
    """

    def kernel(x_ref, hall_ref, wall_ref, wsel_ref, bias_ref, out_ref):
        cdt = x_ref.dtype
        x = x_ref[0]                                           # (ic, ih, iw)
        acc = [jnp.zeros((ih, iw), jnp.float32) for _ in range(f_oc)]

        for p in range(f_h):                                   # static unroll (small)
            # width interpolation, batched over channel planes (MXU):
            # tp[c, h, h'] = sum_{w'} Hall[p, h, w'] * x[c, h', w']
            hp = jnp.broadcast_to(hall_ref[p][None], (ic, ih, iw))
            tp = jnp.einsum('caw,chw->cah', hp, x,
                            preferred_element_type=jnp.float32).astype(cdt)
            for q in range(f_w):                               # static unroll (small)
                # height interpolation, batched over channel planes (MXU):
                # z[c, h, w] = sum_{h'} tp[c, h, h'] * Wall[q, h', w]
                #            = sample_feature[c, h*f_h + p, w*f_w + q]
                wq = jnp.broadcast_to(wall_ref[q][None], (ic, ih, iw))
                z = jnp.einsum('cah,chw->caw', tp, wq,
                               preferred_element_type=jnp.float32)

                # fused stride==kernel conv: contract (c, p, q) with the conv
                # weight right here (sample_feature never leaves VMEM).
                # NOTE: the channel/tap contraction is done with f32 SMEM-scalar
                # FMAs on the VPU -- ideal for small ic*f_oc; for large channel
                # counts this contraction should be moved onto the MXU instead.
                base = (p * f_w + q) * f_oc * ic
                for o in range(f_oc):
                    for c in range(ic):
                        w_scalar = wsel_ref[base + o * ic + c]
                        acc[o] = acc[o] + w_scalar * z[c]

        for o in range(f_oc):
            out_ref[0, o, :, :] = (acc[o] + bias_ref[o]).astype(out_ref.dtype)

    return kernel


# ------------------------------- glue / wrapper -------------------------------

def _bilinear_rows(coord_vals, size):
    """Rows of bilinear-interpolation weights replicating torch grid_sample
    (mode='bilinear', padding_mode='zeros', align_corners=False) when the raw
    values `coord_vals` are used as normalized coords over `size`."""
    pix = ((coord_vals + 1.0) * size - 1.0) * 0.5
    i0 = jnp.floor(pix)
    fr = pix - i0
    i0i = i0.astype(jnp.int32)
    cols = jnp.arange(size, dtype=jnp.int32)[None, :]
    # out-of-range corners never match a column -> weight 0 (zeros padding)
    w0 = jnp.where(i0i[:, None] == cols, (1.0 - fr)[:, None], 0.0)
    w1 = jnp.where((i0i + 1)[:, None] == cols, fr[:, None], 0.0)
    return (w0 + w1).astype(jnp.float32)


def deform_conv_forward(x, params, *, o_h, o_w, f_h, f_w,
                        compute_dtype=jnp.float32,
                        with_dead_offset_branch=False):
    b, ic, ih, iw = x.shape
    assert f_h == f_w, "original meshgrid/view trick is identity only for square filters"
    f_oc = params["conv_w"].shape[0]

    if with_dead_offset_branch:
        # Structural fidelity only: the original forward computes offset_map and
        # NEVER adds it to the sampling grid, so the output does not depend on it.
        # Dropped by default per the performance review (pure wasted HBM/FLOPs).
        wl = (o_w - 1) // 2
        wr = o_w - 1 - wl
        ht = (o_h - 1) // 2
        hb = o_h - 1 - ht
        x_pad = jnp.pad(x, ((0, 0), (0, 0), (ht, hb), (wl, wr)))
        offset_map = lax.conv_general_dilated(
            x_pad, params["offset_w"], window_strides=(1, 1), padding="VALID",
            dimension_numbers=("NCHW", "OIHW", "NCHW"),
        ) + params["offset_b"][None, :, None, None]
        del offset_map

    # ---- grid-invariant interpolation tables (data-independent sampling grid) ----
    # coord_h(h, p) = clamp(h + p) is grid_sample's x/width coordinate (size iw)
    hcoord = jnp.clip(jnp.arange(ih, dtype=jnp.int32)[None, :]
                      + jnp.arange(f_h, dtype=jnp.int32)[:, None], 0, ih - 1
                      ).astype(jnp.float32)                                   # (f_h, ih)
    hall = _bilinear_rows(hcoord.reshape(-1), iw).reshape(f_h, ih, iw)        # [p, h, w']
    # coord_w(w, q) = clamp(w + q) is grid_sample's y/height coordinate (size ih)
    wcoord = jnp.clip(jnp.arange(iw, dtype=jnp.int32)[None, :]
                      + jnp.arange(f_w, dtype=jnp.int32)[:, None], 0, iw - 1
                      ).astype(jnp.float32)                                   # (f_w, iw)
    wall = (_bilinear_rows(wcoord.reshape(-1), ih)
            .reshape(f_w, iw, ih).transpose(0, 2, 1))                         # [q, h', w]

    # conv weight as SMEM scalars, (p, q, oc, c) row-major; bias as SMEM scalars
    wsel = params["conv_w"].transpose(2, 3, 0, 1).reshape(-1).astype(jnp.float32)
    bias = params["conv_b"].astype(jnp.float32)

    kernel = _make_deform_conv_kernel(ic, ih, iw, f_h, f_w, f_oc)

    out = pl.pallas_call(
        kernel,
        out_shape=jax.ShapeDtypeStruct((b, f_oc, ih, iw), jnp.float32),
        grid=(b,),
        in_specs=[
            pl.BlockSpec((1, ic, ih, iw), lambda n: (n, 0, 0, 0)),
            pl.BlockSpec((f_h, ih, iw), lambda n: (0, 0, 0)),    # grid-invariant
            pl.BlockSpec((f_w, ih, iw), lambda n: (0, 0, 0)),    # grid-invariant
            pl.BlockSpec(memory_space=pltpu.MemorySpace.SMEM),   # conv weights
            pl.BlockSpec(memory_space=pltpu.MemorySpace.SMEM),   # conv bias
        ],
        out_specs=pl.BlockSpec((1, f_oc, ih, iw), lambda n: (n, 0, 0, 0)),
        compiler_params=pltpu.CompilerParams(
            dimension_semantics=("parallel",),        # megacore / 2 TCs on v7x
            vmem_limit_bytes=32 * 1024 * 1024,        # ample; within all gens' limits
        ),
    )(x.astype(compute_dtype), hall.astype(compute_dtype),
      wall.astype(compute_dtype), wsel, bias)

    return out  # already NCHW: (b, f_oc, ih, iw)


# ------------------------- independent pure-JAX reference -------------------------

def ref_forward(x, conv_w, conv_b, f_h, f_w):
    """Direct (gather-based) replication of the torch forward, for checking."""
    b, ic, ih, iw = x.shape
    hh = jnp.arange(ih)
    ww = jnp.arange(iw)
    pp = jnp.arange(f_h)
    qq = jnp.arange(f_w)
    ch = jnp.clip(hh[:, None, None, None] + pp[None, None, :, None], 0, ih - 1)
    cw = jnp.clip(ww[None, :, None, None] + qq[None, None, None, :], 0, iw - 1)
    gx = jnp.broadcast_to(ch, (ih, iw, f_h, f_w)).astype(jnp.float32)  # grid[...,0]
    gy = jnp.broadcast_to(cw, (ih, iw, f_h, f_w)).astype(jnp.float32)  # grid[...,1]
    ix = ((gx + 1.0) * iw - 1.0) * 0.5
    iy = ((gy + 1.0) * ih - 1.0) * 0.5
    ix0 = jnp.floor(ix)
    iy0 = jnp.floor(iy)
    wx1 = ix - ix0
    wx0 = 1.0 - wx1
    wy1 = iy - iy0
    wy0 = 1.0 - wy1

    def gather(img, yi, xi):
        yin = (yi >= 0) & (yi < ih)
        xin = (xi >= 0) & (xi < iw)
        yc = jnp.clip(yi, 0, ih - 1).astype(jnp.int32)
        xc = jnp.clip(xi, 0, iw - 1).astype(jnp.int32)
        return jnp.where(yin & xin, img[yc, xc], 0.0)

    def sample_plane(img):
        return (wy0 * wx0 * gather(img, iy0, ix0)
                + wy0 * wx1 * gather(img, iy0, ix0 + 1)
                + wy1 * wx0 * gather(img, iy0 + 1, ix0)
                + wy1 * wx1 * gather(img, iy0 + 1, ix0 + 1))

    s = jax.vmap(jax.vmap(sample_plane))(x)                      # (b, ic, ih, iw, f_h, f_w)
    sf = s.transpose(0, 1, 2, 4, 3, 5).reshape(b, ic, ih * f_h, iw * f_w)
    patches = (sf.reshape(b, ic, ih, f_h, iw, f_w)
                 .transpose(0, 2, 4, 1, 3, 5)
                 .reshape(b * ih * iw, ic * f_h * f_w))
    f_oc = conv_w.shape[0]
    out = patches @ conv_w.reshape(f_oc, -1).T + conv_b[None, :]
    return out.reshape(b, ih, iw, f_oc).transpose(0, 3, 1, 2)


# ------------------------------------- main -------------------------------------

if __name__ == "__main__":
    b, ic, ih, iw = 2, 4, 16, 16
    f_h = f_w = 3
    f_oc = 8
    o_h = o_w = 3
    o_oc = 2 * f_h * f_w  # module assertion: o_oc == 2 * f_h * f_w

    key = jax.random.PRNGKey(0)
    k1, k2, k3, k4, k5 = jax.random.split(key, 5)

    def _uniform(k, shape, fan_in):
        bound = 1.0 / (fan_in ** 0.5)
        return jax.random.uniform(k, shape, jnp.float32, -bound, bound)

    x = jax.random.normal(k1, (b, ic, ih, iw), jnp.float32)
    params = {
        # offset_conv = Conv2d(ic, o_oc, (o_h, o_w), stride=1)  (dead code in forward)
        "offset_w": _uniform(k2, (o_oc, ic, o_h, o_w), ic * o_h * o_w),
        "offset_b": _uniform(k3, (o_oc,), ic * o_h * o_w),
        # conv = Conv2d(ic, f_oc, kernel=(f_h, f_w), stride=(f_h, f_w))
        "conv_w": _uniform(k4, (f_oc, ic, f_h, f_w), ic * f_h * f_w),
        "conv_b": _uniform(k5, (f_oc,), ic * f_h * f_w),
    }

    ref = ref_forward(x, params["conv_w"], params["conv_b"], f_h, f_w)

    # f32 path: exact-semantics check against the gather-based reference.
    fwd32 = jax.jit(functools.partial(deform_conv_forward, o_h=o_h, o_w=o_w,
                                      f_h=f_h, f_w=f_w,
                                      compute_dtype=jnp.float32))
    res32 = fwd32(x, params)
    jax.block_until_ready(res32)
    assert res32.shape == (b, f_oc, ih, iw), res32.shape
    assert jnp.allclose(res32, ref, atol=2e-4, rtol=2e-4), \
        float(jnp.max(jnp.abs(res32 - ref)))

    # bf16 MXU path (v6e/v7x fast path); looser tolerance vs. the f32 reference.
    fwd16 = jax.jit(functools.partial(deform_conv_forward, o_h=o_h, o_w=o_w,
                                      f_h=f_h, f_w=f_w,
                                      compute_dtype=jnp.bfloat16))
    res16 = fwd16(x, params)
    jax.block_until_ready(res16)
    assert res16.shape == (b, f_oc, ih, iw), res16.shape
    assert jnp.allclose(res16, ref, atol=1e-1, rtol=1e-1), \
        float(jnp.max(jnp.abs(res16 - ref)))

    print("KERNEL_OK")
</pallas_src>

<mosaic_0001>
module attributes {stable_mosaic.version = 11 : i64} {
  func.func @kernel(%arg0: i32, %arg1: memref<1x4x16x16xf32, #tpu.memory_space<vmem>>, %arg2: memref<3x16x16xf32, #tpu.memory_space<vmem>>, %arg3: memref<3x16x16xf32, #tpu.memory_space<vmem>>, %arg4: memref<288xf32, #tpu.memory_space<smem>>, %arg5: memref<8xf32, #tpu.memory_space<smem>>, %arg6: memref<1x8x16x16xf32, #tpu.memory_space<vmem>>) attributes {dimension_semantics = [#tpu.dimension_semantics<parallel>], iteration_bounds = array<i64: 2>, scalar_prefetch = 0 : i64, scratch_operands = 0 : i64, tpu.core_type = #tpu.core_type<tc>, window_params = [{transform_indices = @transform_0, window_bounds = array<i64: 1, 4, 16, 16>}, {pipeline_mode = #tpu.pipeline_mode<synchronous>, transform_indices = @transform_1, window_bounds = array<i64: 3, 16, 16>}, {pipeline_mode = #tpu.pipeline_mode<synchronous>, transform_indices = @transform_2, window_bounds = array<i64: 3, 16, 16>}, {transform_indices = @transform_3, window_bounds = array<i64: 288>}, {transform_indices = @transform_4, window_bounds = array<i64: 8>}, {transform_indices = @transform_5, window_bounds = array<i64: 1, 8, 16, 16>}]} {
    %c0 = arith.constant 0 : index
    %c0_0 = arith.constant 0 : index
    %c0_1 = arith.constant 0 : index
    %c0_2 = arith.constant 0 : index
    %0 = vector.load %arg1[%c0, %c0_0, %c0_1, %c0_2] : memref<1x4x16x16xf32, #tpu.memory_space<vmem>>, vector<1x4x16x16xf32>
    %1 = vector.shape_cast %0 : vector<1x4x16x16xf32> to vector<4x16x16xf32>
    %cst = arith.constant 0.000000e+00 : f32
    %2 = vector.broadcast %cst : f32 to vector<16x16xf32>
    %cst_3 = arith.constant 0.000000e+00 : f32
    %3 = vector.broadcast %cst_3 : f32 to vector<16x16xf32>
    %cst_4 = arith.constant 0.000000e+00 : f32
    %4 = vector.broadcast %cst_4 : f32 to vector<16x16xf32>
    %cst_5 = arith.constant 0.000000e+00 : f32
    %5 = vector.broadcast %cst_5 : f32 to vector<16x16xf32>
    %cst_6 = arith.constant 0.000000e+00 : f32
    %6 = vector.broadcast %cst_6 : f32 to vector<16x16xf32>
    %cst_7 = arith.constant 0.000000e+00 : f32
    %7 = vector.broadcast %cst_7 : f32 to vector<16x16xf32>
    %cst_8 = arith.constant 0.000000e+00 : f32
    %8 = vector.broadcast %cst_8 : f32 to vector<16x16xf32>
    %cst_9 = arith.constant 0.000000e+00 : f32
    %9 = vector.broadcast %cst_9 : f32 to vector<16x16xf32>
    %c0_10 = arith.constant 0 : index
    %c0_11 = arith.constant 0 : index
    %c0_12 = arith.constant 0 : index
    %10 = vector.load %arg2[%c0_10, %c0_11, %c0_12] : memref<3x16x16xf32, #tpu.memory_space<vmem>>, vector<1x16x16xf32>
    %11 = vector.shape_cast %10 : vector<1x16x16xf32> to vector<16x16xf32>
    %12 = vector.shape_cast %11 : vector<16x16xf32> to vector<1x16x16xf32>
    %13 = vector.shape_cast %12 : vector<1x16x16xf32> to vector<1x16x16xf32>
    %14 = vector.broadcast %13 : vector<1x16x16xf32> to vector<4x16x16xf32>
    "tpu.trace_start"() <{level = 10 : i32, message = "caw,chw->cah"}> : () -> ()
    %cst_13 = arith.constant dense<0.000000e+00> : vector<4x16x16xf32>
    %15 = tpu.matmul %14, %1, %cst_13 {dimension_numbers = #tpu.dot_dimension_numbers<[2], [2], [1], [1], [0, 0, 0, 1, 1, 1], [0], [0]>} : vector<4x16x16xf32>, vector<4x16x16xf32>, vector<4x16x16xf32> -> vector<4x16x16xf32>
    "tpu.trace_stop"() : () -> ()
    %c0_14 = arith.constant 0 : index
    %c0_15 = arith.constant 0 : index
    %c0_16 = arith.constant 0 : index
    %16 = vector.load %arg3[%c0_14, %c0_15, %c0_16] : memref<3x16x16xf32, #tpu.memory_space<vmem>>, vector<1x16x16xf32>
    %17 = vector.shape_cast %16 : vector<1x16x16xf32> to vector<16x16xf32>
    %18 = vector.shape_cast %17 : vector<16x16xf32> to vector<1x16x16xf32>
    %19 = vector.shape_cast %18 : vector<1x16x16xf32> to vector<1x16x16xf32>
    %20 = vector.broadcast %19 : vector<1x16x16xf32> to vector<4x16x16xf32>
    "tpu.trace_start"() <{level = 10 : i32, message = "cah,chw->caw"}> : () -> ()
    %cst_17 = arith.constant dense<0.000000e+00> : vector<4x16x16xf32>
    %21 = tpu.matmul %15, %20, %cst_17 {dimension_numbers = #tpu.dot_dimension_numbers<[2], [1], [1], [2], [0, 0, 0, 1, 1, 2], [0], [0]>} : vector<4x16x16xf32>, vector<4x16x16xf32>, vector<4x16x16xf32> -> vector<4x16x16xf32>
    "tpu.trace_stop"() : () -> ()
    %c0_18 = arith.constant 0 : index
    %22 = memref.load %arg4[%c0_18] : memref<288xf32, #tpu.memory_space<smem>>
    %23 = vector.extract_strided_slice %21 {offsets = [0, 0, 0], sizes = [1, 16, 16], strides = [1, 1, 1]} : vector<4x16x16xf32> to vector<1x16x16xf32>
    %24 = vector.shape_cast %23 : vector<1x16x16xf32> to vector<16x16xf32>
    %25 = vector.broadcast %22 : f32 to vector<16x16xf32>
    %26 = arith.mulf %25, %24 : vector<16x16xf32>
    %27 = arith.addf %2, %26 : vector<16x16xf32>
    %c1 = arith.constant 1 : index
    %28 = memref.load %arg4[%c1] : memref<288xf32, #tpu.memory_space<smem>>
    %29 = vector.extract_strided_slice %21 {offsets = [1, 0, 0], sizes = [1, 16, 16], strides = [1, 1, 1]} : vector<4x16x16xf32> to vector<1x16x16xf32>
    %30 = vector.shape_cast %29 : vector<1x16x16xf32> to vector<16x16xf32>
    %31 = vector.broadcast %28 : f32 to vector<16x16xf32>
    %32 = arith.mulf %31, %30 : vector<16x16xf32>
    %33 = arith.addf %27, %32 : vector<16x16xf32>
    %c2 = arith.constant 2 : index
    %34 = memref.load %arg4[%c2] : memref<288xf32, #tpu.memory_space<smem>>
    %35 = vector.extract_strided_slice %21 {offsets = [2, 0, 0], sizes = [1, 16, 16], strides = [1, 1, 1]} : vector<4x16x16xf32> to vector<1x16x16xf32>
    %36 = vector.shape_cast %35 : vector<1x16x16xf32> to vector<16x16xf32>
    %37 = vector.broadcast %34 : f32 to vector<16x16xf32>
    %38 = arith.mulf %37, %36 : vector<16x16xf32>
    %39 = arith.addf %33, %38 : vector<16x16xf32>
    %c3 = arith.constant 3 : index
    %40 = memref.load %arg4[%c3] : memref<288xf32, #tpu.memory_space<smem>>
    %41 = vector.extract_strided_slice %21 {offsets = [3, 0, 0], sizes = [1, 16, 16], strides = [1, 1, 1]} : vector<4x16x16xf32> to vector<1x16x16xf32>
    %42 = vector.shape_cast %41 : vector<1x16x16xf32> to vector<16x16xf32>
    %43 = vector.broadcast %40 : f32 to vector<16x16xf32>
    %44 = arith.mulf %43, %42 : vector<16x16xf32>
    %45 = arith.addf %39, %44 : vector<16x16xf32>
    %c4 = arith.constant 4 : index
    %46 = memref.load %arg4[%c4] : memref<288xf32, #tpu.memory_space<smem>>
    %47 = vector.extract_strided_slice %21 {offsets = [0, 0, 0], sizes = [1, 16, 16], strides = [1, 1, 1]} : vector<4x16x16xf32> to vector<1x16x16xf32>
    %48 = vector.shape_cast %47 : vector<1x16x16xf32> to vector<16x16xf32>
    %49 = vector.broadcast %46 : f32 to vector<16x16xf32>
    %50 = arith.mulf %49, %48 : vector<16x16xf32>
    %51 = arith.addf %3, %50 : vector<16x16xf32>
    %c5 = arith.constant 5 : index
    %52 = memref.load %arg4[%c5] : memref<288xf32, #tpu.memory_space<smem>>
    %53 = vector.extract_strided_slice %21 {offsets = [1, 0, 0], sizes = [1, 16, 16], strides = [1, 1, 1]} : vector<4x16x16xf32> to vector<1x16x16xf32>
    %54 = vector.shape_cast %53 : vector<1x16x16xf32> to vector<16x16xf32>
    %55 = vector.broadcast %52 : f32 to vector<16x16xf32>
    %56 = arith.mulf %55, %54 : vector<16x16xf32>
    %57 = arith.addf %51, %56 : vector<16x16xf32>
    %c6 = arith.constant 6 : index
    %58 = memref.load %arg4[%c6] : memref<288xf32, #tpu.memory_space<smem>>
    %59 = vector.extract_strided_slice %21 {offsets = [2, 0, 0], sizes = [1, 16, 16], strides = [1, 1, 1]} : vector<4x16x16xf32> to vector<1x16x16xf32>
    %60 = vector.shape_cast %59 : vector<1x16x16xf32> to vector<16x16xf32>
    %61 = vector.broadcast %58 : f32 to vector<16x16xf32>
    %62 = arith.mulf %61, %60 : vector<16x16xf32>
    %63 = arith.addf %57, %62 : vector<16x16xf32>
    %c7 = arith.constant 7 : index
    %64 = memref.load %arg4[%c7] : memref<288xf32, #tpu.memory_space<smem>>
    %65 = vector.extract_strided_slice %21 {offsets = [3, 0, 0], sizes = [1, 16, 16], strides = [1, 1, 1]} : vector<4x16x16xf32> to vector<1x16x16xf32>
    %66 = vector.shape_cast %65 : vector<1x16x16xf32> to vector<16x16xf32>
    %67 = vector.broadcast %64 : f32 to vector<16x16xf32>
    %68 = arith.mulf %67, %66 : vector<16x16xf32>
    %69 = arith.addf %63, %68 : vector<16x16xf32>
    %c8 = arith.constant 8 : index
    %70 = memref.load %arg4[%c8] : memref<288xf32, #tpu.memory_space<smem>>
    %71 = vector.extract_strided_slice %21 {offsets = [0, 0, 0], sizes = [1, 16, 16], strides = [1, 1, 1]} : vector<4x16x16xf32> to vector<1x16x16xf32>
    %72 = vector.shape_cast %71 : vector<1x16x16xf32> to vector<16x16xf32>
    %73 = vector.broadcast %70 : f32 to vector<16x16xf32>
    %74 = arith.mulf %73, %72 : vector<16x16xf32>
    %75 = arith.addf %4, %74 : vector<16x16xf32>
    %c9 = arith.constant 9 : index
    %76 = memref.load %arg4[%c9] : memref<288xf32, #tpu.memory_space<smem>>
    %77 = vector.extract_strided_slice %21 {offsets = [1, 0, 0], sizes = [1, 16, 16], strides = [1, 1, 1]} : vector<4x16x16xf32> to vector<1x16x16xf32>
    %78 = vector.shape_cast %77 : vector<1x16x16xf32> to vector<16x16xf32>
    %79 = vector.broadcast %76 : f32 to vector<16x16xf32>
    %80 = arith.mulf %79, %78 : vector<16x16xf32>
    %81 = arith.addf %75, %80 : vector<16x16xf32>
    %c10 = arith.constant 10 : index
    %82 = memref.load %arg4[%c10] : memref<288xf32, #tpu.memory_space<smem>>
    %83 = vector.extract_strided_slice %21 {offsets = [2, 0, 0], sizes = [1, 16, 16], strides = [1, 1, 1]} : vector<4x16x16xf32> to vector<1x16x16xf32>
    %84 = vector.shape_cast %83 : vector<1x16x16xf32> to vector<16x16xf32>
    %85 = vector.broadcast %82 : f32 to vector<16x16xf32>
    %86 = arith.mulf %85, %84 : vector<16x16xf32>
    %87 = arith.addf %81, %86 : vector<16x16xf32>
    %c11 = arith.constant 11 : index
    %88 = memref.load %arg4[%c11] : memref<288xf32, #tpu.memory_space<smem>>
    %89 = vector.extract_strided_slice %21 {offsets = [3, 0, 0], sizes = [1, 16, 16], strides = [1, 1, 1]} : vector<4x16x16xf32> to vector<1x16x16xf32>
    %90 = vector.shape_cast %89 : vector<1x16x16xf32> to vector<16x16xf32>
    %91 = vector.broadcast %88 : f32 to vector<16x16xf32>
    %92 = arith.mulf %91, %90 : vector<16x16xf32>
    %93 = arith.addf %87, %92 : vector<16x16xf32>
    %c12 = arith.constant 12 : index
    %94 = memref.load %arg4[%c12] : memref<288xf32, #tpu.memory_space<smem>>
    %95 = vector.extract_strided_slice %21 {offsets = [0, 0, 0], sizes = [1, 16, 16], strides = [1, 1, 1]} : vector<4x16x16xf32> to vector<1x16x16xf32>
    %96 = vector.shape_cast %95 : vector<1x16x16xf32> to vector<16x16xf32>
    %97 = vector.broadcast %94 : f32 to vector<16x16xf32>
    %98 = arith.mulf %97, %96 : vector<16x16xf32>
    %99 = arith.addf %5, %98 : vector<16x16xf32>
    %c13 = arith.constant 13 : index
    %100 = memref.load %arg4[%c13] : memref<288xf32, #tpu.memory_space<smem>>
    %101 = vector.extract_strided_slice %21 {offsets = [1, 0, 0], sizes = [1, 16, 16], strides = [1, 1, 1]} : vector<4x16x16xf32> to vector<1x16x16xf32>
    %102 = vector.shape_cast %101 : vector<1x16x16xf32> to vector<16x16xf32>
    %103 = vector.broadcast %100 : f32 to vector<16x16xf32>
    %104 = arith.mulf %103, %102 : vector<16x16xf32>
    %105 = arith.addf %99, %104 : vector<16x16xf32>
    %c14 = arith.constant 14 : index
    %106 = memref.load %arg4[%c14] : memref<288xf32, #tpu.memory_space<smem>>
    %107 = vector.extract_strided_slice %21 {offsets = [2, 0, 0], sizes = [1, 16, 16], strides = [1, 1, 1]} : vector<4x16x16xf32> to vector<1x16x16xf32>
    %108 = vector.shape_cast %107 : vector<1x16x16xf32> to vector<16x16xf32>
    %109 = vector.broadcast %106 : f32 to vector<16x16xf32>
    %110 = arith.mulf %109, %108 : vector<16x16xf32>
    %111 = arith.addf %105, %110 : vector<16x16xf32>
    %c15 = arith.constant 15 : index
    %112 = memref.load %arg4[%c15] : memref<288xf32, #tpu.memory_space<smem>>
    %113 = vector.extract_strided_slice %21 {offsets = [3, 0, 0], sizes = [1, 16, 16], strides = [1, 1, 1]} : vector<4x16x16xf32> to vector<1x16x16xf32>
    %114 = vector.shape_cast %113 : vector<1x16x16xf32> to vector<16x16xf32>
    %115 = vector.broadcast %112 : f32 to vector<16x16xf32>
    %116 = arith.mulf %115, %114 : vector<16x16xf32>
    %117 = arith.addf %111, %116 : vector<16x16xf32>
    %c16 = arith.constant 16 : index
    %118 = memref.load %arg4[%c16] : memref<288xf32, #tpu.memory_space<smem>>
    %119 = vector.extract_strided_slice %21 {offsets = [0, 0, 0], sizes = [1, 16, 16], strides = [1, 1, 1]} : vector<4x16x16xf32> to vector<1x16x16xf32>
    %120 = vector.shape_cast %119 : vector<1x16x16xf32> to vector<16x16xf32>
    %121 = vector.broadcast %118 : f32 to vector<16x16xf32>
    %122 = arith.mulf %121, %120 : vector<16x16xf32>
    %123 = arith.addf %6, %122 : vector<16x16xf32>
    %c17 = arith.constant 17 : index
    %124 = memref.load %arg4[%c17] : memref<288xf32, #tpu.memory_space<smem>>
    %125 = vector.extract_strided_slice %21 {offsets = [1, 0, 0], sizes = [1, 16, 16], strides = [1, 1, 1]} : vector<4x16x16xf32> to vector<1x16x16xf32>
    %126 = vector.shape_cast %125 : vector<1x16x16xf32> to vector<16x16xf32>
    %127 = vector.broadcast %124 : f32 to vector<16x16xf32>
    %128 = arith.mulf %127, %126 : vector<16x16xf32>
    %129 = arith.addf %123, %128 : vector<16x16xf32>
    %c18 = arith.constant 18 : index
    %130 = memref.load %arg4[%c18] : memref<288xf32, #tpu.memory_space<smem>>
    %131 = vector.extract_strided_slice %21 {offsets = [2, 0, 0], sizes = [1, 16, 16], strides = [1, 1, 1]} : vector<4x16x16xf32> to vector<1x16x16xf32>
    %132 = vector.shape_cast %131 : vector<1x16x16xf32> to vector<16x16xf32>
    %133 = vector.broadcast %130 : f32 to vector<16x16xf32>
    %134 = arith.mulf %133, %132 : vector<16x16xf32>
    %135 = arith.addf %129, %134 : vector<16x16xf32>
    %c19 = arith.constant 19 : index
    %136 = memref.load %arg4[%c19] : memref<288xf32, #tpu.memory_space<smem>>
    %137 = vector.extract_strided_slice %21 {offsets = [3, 0, 0], sizes = [1, 16, 16], strides = [1, 1, 1]} : vector<4x16x16xf32> to vector<1x16x16xf32>
    %138 = vector.shape_cast %137 : vector<1x16x16xf32> to vector<16x16xf32>
    %139 = vector.broadcast %136 : f32 to vector<16x16xf32>
    %140 = arith.mulf %139, %138 : vector<16x16xf32>
    %141 = arith.addf %135, %140 : vector<16x16xf32>
    %c20 = arith.constant 20 : index
    %142 = memref.load %arg4[%c20] : memref<288xf32, #tpu.memory_space<smem>>
    %143 = vector.extract_strided_slice %21 {offsets = [0, 0, 0], sizes = [1, 16, 16], strides = [1, 1, 1]} : vector<4x16x16xf32> to vector<1x16x16xf32>
    %144 = vector.shape_cast %143 : vector<1x16x16xf32> to vector<16x16xf32>
    %145 = vector.broadcast %142 : f32 to vector<16x16xf32>
    %146 = arith.mulf %145, %144 : vector<16x16xf32>
    %147 = arith.addf %7, %146 : vector<16x16xf32>
    %c21 = arith.constant 21 : index
    %148 = memref.load %arg4[%c21] : memref<288xf32, #tpu.memory_space<smem>>
    %149 = vector.extract_strided_slice %21 {offsets = [1, 0, 0], sizes = [1, 16, 16], strides = [1, 1, 1]} : vector<4x16x16xf32> to vector<1x16x16xf32>
    %150 = vector.shape_cast %149 : vector<1x16x16xf32> to vector<16x16xf32>
    %151 = vector.broadcast %148 : f32 to vector<16x16xf32>
    %152 = arith.mulf %151, %150 : vector<16x16xf32>
    %153 = arith.addf %147, %152 : vector<16x16xf32>
    %c22 = arith.constant 22 : index
    %154 = memref.load %arg4[%c22] : memref<288xf32, #tpu.memory_space<smem>>
    %155 = vector.extract_strided_slice %21 {offsets = [2, 0, 0], sizes = [1, 16, 16], strides = [1, 1, 1]} : vector<4x16x16xf32> to vector<1x16x16xf32>
    %156 = vector.shape_cast %155 : vector<1x16x16xf32> to vector<16x16xf32>
    %157 = vector.broadcast %154 : f32 to vector<16x16xf32>
    %158 = arith.mulf %157, %156 : vector<16x16xf32>
    %159 = arith.addf %153, %158 : vector<16x16xf32>
    %c23 = arith.constant 23 : index
    %160 = memref.load %arg4[%c23] : memref<288xf32, #tpu.memory_space<smem>>
    %161 = vector.extract_strided_slice %21 {offsets = [3, 0, 0], sizes = [1, 16, 16], strides = [1, 1, 1]} : vector<4x16x16xf32> to vector<1x16x16xf32>
    %162 = vector.shape_cast %161 : vector<1x16x16xf32> to vector<16x16xf32>
    %163 = vector.broadcast %160 : f32 to vector<16x16xf32>
    %164 = arith.mulf %163, %162 : vector<16x16xf32>
    %165 = arith.addf %159, %164 : vector<16x16xf32>
    %c24 = arith.constant 24 : index
    %166 = memref.load %arg4[%c24] : memref<288xf32, #tpu.memory_space<smem>>
    %167 = vector.extract_strided_slice %21 {offsets = [0, 0, 0], sizes = [1, 16, 16], strides = [1, 1, 1]} : vector<4x16x16xf32> to vector<1x16x16xf32>
    %168 = vector.shape_cast %167 : vector<1x16x16xf32> to vector<16x16xf32>
    %169 = vector.broadcast %166 : f32 to vector<16x16xf32>
    %170 = arith.mulf %169, %168 : vector<16x16xf32>
    %171 = arith.addf %8, %170 : vector<16x16xf32>
    %c25 = arith.constant 25 : index
    %172 = memref.load %arg4[%c25] : memref<288xf32, #tpu.memory_space<smem>>
    %173 = vector.extract_strided_slice %21 {offsets = [1, 0, 0], sizes = [1, 16, 16], strides = [1, 1, 1]} : vector<4x16x16xf32> to vector<1x16x16xf32>
    %174 = vector.shape_cast %173 : vector<1x16x16xf32> to vector<16x16xf32>
    %175 = vector.broadcast %172 : f32 to vector<16x16xf32>
    %176 = arith.mulf %175, %174 : vector<16x16xf32>
    %177 = arith.addf %171, %176 : vector<16x16xf32>
    %c26 = arith.constant 26 : index
    %178 = memref.load %arg4[%c26] : memref<288xf32, #tpu.memory_space<smem>>
    %179 = vector.extract_strided_slice %21 {offsets = [2, 0, 0], sizes = [1, 16, 16], strides = [1, 1, 1]} : vector<4x16x16xf32> to vector<1x16x16xf32>
    %180 = vector.shape_cast %179 : vector<1x16x16xf32> to vector<16x16xf32>
    %181 = vector.broadcast %178 : f32 to vector<16x16xf32>
    %182 = arith.mulf %181, %180 : vector<16x16xf32>
    %183 = arith.addf %177, %182 : vector<16x16xf32>
    %c27 = arith.constant 27 : index
    %184 = memref.load %arg4[%c27] : memref<288xf32, #tpu.memory_space<smem>>
    %185 = vector.extract_strided_slice %21 {offsets = [3, 0, 0], sizes = [1, 16, 16], strides = [1, 1, 1]} : vector<4x16x16xf32> to vector<1x16x16xf32>
    %186 = vector.shape_cast %185 : vector<1x16x16xf32> to vector<16x16xf32>
    %187 = vector.broadcast %184 : f32 to vector<16x16xf32>
    %188 = arith.mulf %187, %186 : vector<16x16xf32>
    %189 = arith.addf %183, %188 : vector<16x16xf32>
    %c28 = arith.constant 28 : index
    %190 = memref.load %arg4[%c28] : memref<288xf32, #tpu.memory_space<smem>>
    %191 = vector.extract_strided_slice %21 {offsets = [0, 0, 0], sizes = [1, 16, 16], strides = [1, 1, 1]} : vector<4x16x16xf32> to vector<1x16x16xf32>
    %192 = vector.shape_cast %191 : vector<1x16x16xf32> to vector<16x16xf32>
    %193 = vector.broadcast %190 : f32 to vector<16x16xf32>
    %194 = arith.mulf %193, %192 : vector<16x16xf32>
    %195 = arith.addf %9, %194 : vector<16x16xf32>
    %c29 = arith.constant 29 : index
    %196 = memref.load %arg4[%c29] : memref<288xf32, #tpu.memory_space<smem>>
    %197 = vector.extract_strided_slice %21 {offsets = [1, 0, 0], sizes = [1, 16, 16], strides = [1, 1, 1]} : vector<4x16x16xf32> to vector<1x16x16xf32>
    %198 = vector.shape_cast %197 : vector<1x16x16xf32> to vector<16x16xf32>
    %199 = vector.broadcast %196 : f32 to vector<16x16xf32>
    %200 = arith.mulf %199, %198 : vector<16x16xf32>
    %201 = arith.addf %195, %200 : vector<16x16xf32>
    %c30 = arith.constant 30 : index
    %202 = memref.load %arg4[%c30] : memref<288xf32, #tpu.memory_space<smem>>
    %203 = vector.extract_strided_slice %21 {offsets = [2, 0, 0], sizes = [1, 16, 16], strides = [1, 1, 1]} : vector<4x16x16xf32> to vector<1x16x16xf32>
    %204 = vector.shape_cast %203 : vector<1x16x16xf32> to vector<16x16xf32>
    %205 = vector.broadcast %202 : f32 to vector<16x16xf32>
    %206 = arith.mulf %205, %204 : vector<16x16xf32>
    %207 = arith.addf %201, %206 : vector<16x16xf32>
    %c31 = arith.constant 31 : index
    %208 = memref.load %arg4[%c31] : memref<288xf32, #tpu.memory_space<smem>>
    %209 = vector.extract_strided_slice %21 {offsets = [3, 0, 0], sizes = [1, 16, 16], strides = [1, 1, 1]} : vector<4x16x16xf32> to vector<1x16x16xf32>
    %210 = vector.shape_cast %209 : vector<1x16x16xf32> to vector<16x16xf32>
    %211 = vector.broadcast %208 : f32 to vector<16x16xf32>
    %212 = arith.mulf %211, %210 : vector<16x16xf32>
    %213 = arith.addf %207, %212 : vector<16x16xf32>
    %c1_19 = arith.constant 1 : index
    %c0_20 = arith.constant 0 : index
    %c0_21 = arith.constant 0 : index
    %214 = vector.load %arg3[%c1_19, %c0_20, %c0_21] : memref<3x16x16xf32, #tpu.memory_space<vmem>>, vector<1x16x16xf32>
    %215 = vector.shape_cast %214 : vector<1x16x16xf32> to vector<16x16xf32>
    %216 = vector.shape_cast %215 : vector<16x16xf32> to vector<1x16x16xf32>
    %217 = vector.shape_cast %216 : vector<1x16x16xf32> to vector<1x16x16xf32>
    %218 = vector.broadcast %217 : vector<1x16x16xf32> to vector<4x16x16xf32>
    "tpu.trace_start"() <{level = 10 : i32, message = "cah,chw->caw"}> : () -> ()
    %cst_22 = arith.constant dense<0.000000e+00> : vector<4x16x16xf32>
    %219 = tpu.matmul %15, %218, %cst_22 {dimension_numbers = #tpu.dot_dimension_numbers<[2], [1], [1], [2], [0, 0, 0, 1, 1, 2], [0], [0]>} : vector<4x16x16xf32>, vector<4x16x16xf32>, vector<4x16x16xf32> -> vector<4x16x16xf32>
    "tpu.trace_stop"() : () -> ()
    %c32 = arith.constant 32 : index
    %220 = memref.load %arg4[%c32] : memref<288xf32, #tpu.memory_space<smem>>
    %221 = vector.extract_strided_slice %219 {offsets = [0, 0, 0], sizes = [1, 16, 16], strides = [1, 1, 1]} : vector<4x16x16xf32> to vector<1x16x16xf32>
    %222 = vector.shape_cast %221 : vector<1x16x16xf32> to vector<16x16xf32>
    %223 = vector.broadcast %220 : f32 to vector<16x16xf32>
    %224 = arith.mulf %223, %222 : vector<16x16xf32>
    %225 = arith.addf %45, %224 : vector<16x16xf32>
    %c33 = arith.constant 33 : index
    %226 = memref.load %arg4[%c33] : memref<288xf32, #tpu.memory_space<smem>>
    %227 = vector.extract_strided_slice %219 {offsets = [1, 0, 0], sizes = [1, 16, 16], strides = [1, 1, 1]} : vector<4x16x16xf32> to vector<1x16x16xf32>
    %228 = vector.shape_cast %227 : vector<1x16x16xf32> to vector<16x16xf32>
    %229 = vector.broadcast %226 : f32 to vector<16x16xf32>
    %230 = arith.mulf %229, %228 : vector<16x16xf32>
    %231 = arith.addf %225, %230 : vector<16x16xf32>
    %c34 = arith.constant 34 : index
    %232 = memref.load %arg4[%c34] : memref<288xf32, #tpu.memory_space<smem>>
    %233 = vector.extract_strided_slice %219 {offsets = [2, 0, 0], sizes = [1, 16, 16], strides = [1, 1, 1]} : vector<4x16x16xf32> to vector<1x16x16xf32>
    %234 = vector.shape_cast %233 : vector<1x16x16xf32> to vector<16x16xf32>
    %235 = vector.broadcast %232 : f32 to vector<16x16xf32>
    %236 = arith.mulf %235, %234 : vector<16x16xf32>
    %237 = arith.addf %231, %236 : vector<16x16xf32>
    %c35 = arith.constant 35 : index
    %238 = memref.load %arg4[%c35] : memref<288xf32, #tpu.memory_space<smem>>
    %239 = vector.extract_strided_slice %219 {offsets = [3, 0, 0], sizes = [1, 16, 16], strides = [1, 1, 1]} : vector<4x16x16xf32> to vector<1x16x16xf32>
    %240 = vector.shape_cast %239 : vector<1x16x16xf32> to vector<16x16xf32>
    %241 = vector.broadcast %238 : f32 to vector<16x16xf32>
    %242 = arith.mulf %241, %240 : vector<16x16xf32>
    %243 = arith.addf %237, %242 : vector<16x16xf32>
    %c36 = arith.constant 36 : index
    %244 = memref.load %arg4[%c36] : memref<288xf32, #tpu.memory_space<smem>>
    %245 = vector.extract_strided_slice %219 {offsets = [0, 0, 0], sizes = [1, 16, 16], strides = [1, 1, 1]} : vector<4x16x16xf32> to vector<1x16x16xf32>
    %246 = vector.shape_cast %245 : vector<1x16x16xf32> to vector<16x16xf32>
    %247 = vector.broadcast %244 : f32 to vector<16x16xf32>
    %248 = arith.mulf %247, %246 : vector<16x16xf32>
    %249 = arith.addf %69, %248 : vector<16x16xf32>
    %c37 = arith.constant 37 : index
    %250 = memref.load %arg4[%c37] : memref<288xf32, #tpu.memory_space<smem>>
    %251 = vector.extract_strided_slice %219 {offsets = [1, 0, 0], sizes = [1, 16, 16], strides = [1, 1, 1]} : vector<4x16x16xf32> to vector<1x16x16xf32>
    %252 = vector.shape_cast %251 : vector<1x16x16xf32> to vector<16x16xf32>
    %253 = vector.broadcast %250 : f32 to vector<16x16xf32>
    %254 = arith.mulf %253, %252 : vector<16x16xf32>
    %255 = arith.addf %249, %254 : vector<16x16xf32>
    %c38 = arith.constant 38 : index
    %256 = memref.load %arg4[%c38] : memref<288xf32, #tpu.memory_space<smem>>
    %257 = vector.extract_strided_slice %219 {offsets = [2, 0, 0], sizes = [1, 16, 16], strides = [1, 1, 1]} : vector<4x16x16xf32> to vector<1x16x16xf32>
    %258 = vector.shape_cast %257 : vector<1x16x16xf32> to vector<16x16xf32>
    %259 = vector.broadcast %256 : f32 to vector<16x16xf32>
    %260 = arith.mulf %259, %258 : vector<16x16xf32>
    %261 = arith.addf %255, %260 : vector<16x16xf32>
    %c39 = arith.constant 39 : index
    %262 = memref.load %arg4[%c39] : memref<288xf32, #tpu.memory_space<smem>>
    %263 = vector.extract_strided_slice %219 {offsets = [3, 0, 0], sizes = [1, 16, 16], strides = [1, 1, 1]} : vector<4x16x16xf32> to vector<1x16x16xf32>
    %264 = vector.shape_cast %263 : vector<1x16x16xf32> to vector<16x16xf32>
    %265 = vector.broadcast %262 : f32 to vector<16x16xf32>
    %266 = arith.mulf %265, %264 : vector<16x16xf32>
    %267 = arith.addf %261, %266 : vector<16x16xf32>
    %c40 = arith.constant 40 : index
    %268 = memref.load %arg4[%c40] : memref<288xf32, #tpu.memory_space<smem>>
    %269 = vector.extract_strided_slice %219 {offsets = [0, 0, 0], sizes = [1, 16, 16], strides = [1, 1, 1]} : vector<4x16x16xf32> to vector<1x16x16xf32>
    %270 = vector.shape_cast %269 : vector<1x16x16xf32> to vector<16x16xf32>
    %271 = vector.broadcast %268 : f32 to vector<16x16xf32>
    %272 = arith.mulf %271, %270 : vector<16x16xf32>
    %273 = arith.addf %93, %272 : vector<16x16xf32>
    %c41 = arith.constant 41 : index
    %274 = memref.load %arg4[%c41] : memref<288xf32, #tpu.memory_space<smem>>
    %275 = vector.extract_strided_slice %219 {offsets = [1, 0, 0], sizes = [1, 16, 16], strides = [1, 1, 1]} : vector<4x16x16xf32> to vector<1x16x16xf32>
    %276 = vector.shape_cast %275 : vector<1x16x16xf32> to vector<16x16xf32>
    %277 = vector.broadcast %274 : f32 to vector<16x16xf32>
    %278 = arith.mulf %277, %276 : vector<16x16xf32>
    %279 = arith.addf %273, %278 : vector<16x16xf32>
    %c42 = arith.constant 42 : index
    %280 = memref.load %arg4[%c42] : memref<288xf32, #tpu.memory_space<smem>>
    %281 = vector.extract_strided_slice %219 {offsets = [2, 0, 0], sizes = [1, 16, 16], strides = [1, 1, 1]} : vector<4x16x16xf32> to vector<1x16x16xf32>
    %282 = vector.shape_cast %281 : vector<1x16x16xf32> to vector<16x16xf32>
    %283 = vector.broadcast %280 : f32 to vector<16x16xf32>
    %284 = arith.mulf %283, %282 : vector<16x16xf32>
    %285 = arith.addf %279, %284 : vector<16x16xf32>
    %c43 = arith.constant 43 : index
    %286 = memref.load %arg4[%c43] : memref<288xf32, #tpu.memory_space<smem>>
    %287 = vector.extract_strided_slice %219 {offsets = [3, 0, 0], sizes = [1, 16, 16], strides = [1, 1, 1]} : vector<4x16x16xf32> to vector<1x16x16xf32>
    %288 = vector.shape_cast %287 : vector<1x16x16xf32> to vector<16x16xf32>
    %289 = vector.broadcast %286 : f32 to vector<16x16xf32>
    %290 = arith.mulf %289, %288 : vector<16x16xf32>
    %291 = arith.addf %285, %290 : vector<16x16xf32>
    %c44 = arith.constant 44 : index
    %292 = memref.load %arg4[%c44] : memref<288xf32, #tpu.memory_space<smem>>
    %293 = vector.extract_strided_slice %219 {offsets = [0, 0, 0], sizes = [1, 16, 16], strides = [1, 1, 1]} : vector<4x16x16xf32> to vector<1x16x16xf32>
    %294 = vector.shape_cast %293 : vector<1x16x16xf32> to vector<16x16xf32>
    %295 = vector.broadcast %292 : f32 to vector<16x16xf32>
    %296 = arith.mulf %295, %294 : vector<16x16xf32>
    %297 = arith.addf %117, %296 : vector<16x16xf32>
    %c45 = arith.constant 45 : index
    %298 = memref.load %arg4[%c45] : memref<288xf32, #tpu.memory_space<smem>>
    %299 = vector.extract_strided_slice %219 {offsets = [1, 0, 0], sizes = [1, 16, 16], strides = [1, 1, 1]} : vector<4x16x16xf32> to vector<1x16x16xf32>
    %300 = vector.shape_cast %299 : vector<1x16x16xf32> to vector<16x16xf32>
    %301 = vector.broadcast %298 : f32 to vector<16x16xf32>
    %302 = arith.mulf %301, %300 : vector<16x16xf32>
    %303 = arith.addf %297, %302 : vector<16x16xf32>
    %c46 = arith.constant 46 : index
    %304 = memref.load %arg4[%c46] : memref<288xf32, #tpu.memory_space<smem>>
    %305 = vector.extract_strided_slice %219 {offsets = [2, 0, 0], sizes = [1, 16, 16], strides = [1, 1, 1]} : vector<4x16x16xf32> to vector<1x16x16xf32>
    %306 = vector.shape_cast %305 : vector<1x16x16xf32> to vector<16x16xf32>
    %307 = vector.broadcast %304 : f32 to vector<16x16xf32>
    %308 = arith.mulf %307, %306 : vector<16x16xf32>
    %309 = arith.addf %303, %308 : vector<16x16xf32>
    %c47 = arith.constant 47 : index
    %310 = memref.load %arg4[%c47] : memref<288xf32, #tpu.memory_space<smem>>
    %311 = vector.extract_strided_slice %219 {offsets = [3, 0, 0], sizes = [1, 16, 16], strides = [1, 1, 1]} : vector<4x16x16xf32> to vector<1x16x16xf32>
    %312 = vector.shape_cast %311 : vector<1x16x16xf32> to vector<16x16xf32>
    %313 = vector.broadcast %310 : f32 to vector<16x16xf32>
    %314 = arith.mulf %313, %312 : vector<16x16xf32>
    %315 = arith.addf %309, %314 : vector<16x16xf32>
    %c48 = arith.constant 48 : index
    %316 = memref.load %arg4[%c48] : memref<288xf32, #tpu.memory_space<smem>>
    %317 = vector.extract_strided_slice %219 {offsets = [0, 0, 0], sizes = [1, 16, 16], strides = [1, 1, 1]} : vector<4x16x16xf32> to vector<1x16x16xf32>
    %318 = vector.shape_cast %317 : vector<1x16x16xf32> to vector<16x16xf32>
    %319 = vector.broadcast %316 : f32 to vector<16x16xf32>
    %320 = arith.mulf %319, %318 : vector<16x16xf32>
    %321 = arith.addf %141, %320 : vector<16x16xf32>
    %c49 = arith.constant 49 : index
    %322 = memref.load %arg4[%c49] : memref<288xf32, #tpu.memory_space<smem>>
    %323 = vector.extract_strided_slice %219 {offsets = [1, 0, 0], sizes = [1, 16, 16], strides = [1, 1, 1]} : vector<4x16x16xf32> to vector<1x16x16xf32>
    %324 = vector.shape_cast %323 : vector<1x16x16xf32> to vector<16x16xf32>
    %325 = vector.broadcast %322 : f32 to vector<16x16xf32>
    %326 = arith.mulf %325, %324 : vector<16x16xf32>
    %327 = arith.addf %321, %326 : vector<16x16xf32>
    %c50 = arith.constant 50 : index
    %328 = memref.load %arg4[%c50] : memref<288xf32, #tpu.memory_space<smem>>
    %329 = vector.extract_strided_slice %219 {offsets = [2, 0, 0], sizes = [1, 16, 16], strides = [1, 1, 1]} : vector<4x16x16xf32> to vector<1x16x16xf32>
    %330 = vector.shape_cast %329 : vector<1x16x16xf32> to vector<16x16xf32>
    %331 = vector.broadcast %328 : f32 to vector<16x16xf32>
    %332 = arith.mulf %331, %330 : vector<16x16xf32>
    %333 = arith.addf %327, %332 : vector<16x16xf32>
    %c51 = arith.constant 51 : index
    %334 = memref.load %arg4[%c51] : memref<288xf32, #tpu.memory_space<smem>>
    %335 = vector.extract_strided_slice %219 {offsets = [3, 0, 0], sizes = [1, 16, 16], strides = [1, 1, 1]} : vector<4x16x16xf32> to vector<1x16x16xf32>
    %336 = vector.shape_cast %335 : vector<1x16x16xf32> to vector<16x16xf32>
    %337 = vector.broadcast %334 : f32 to vector<16x16xf32>
    %338 = arith.mulf %337, %336 : vector<16x16xf32>
    %339 = arith.addf %333, %338 : vector<16x16xf32>
    %c52 = arith.constant 52 : index
    %340 = memref.load %arg4[%c52] : memref<288xf32, #tpu.memory_space<smem>>
    %341 = vector.extract_strided_slice %219 {offsets = [0, 0, 0], sizes = [1, 16, 16], strides = [1, 1, 1]} : vector<4x16x16xf32> to vector<1x16x16xf32>
    %342 = vector.shape_cast %341 : vector<1x16x16xf32> to vector<16x16xf32>
    %343 = vector.broadcast %340 : f32 to vector<16x16xf32>
    %344 = arith.mulf %343, %342 : vector<16x16xf32>
    %345 = arith.addf %165, %344 : vector<16x16xf32>
    %c53 = arith.constant 53 : index
    %346 = memref.load %arg4[%c53] : memref<288xf32, #tpu.memory_space<smem>>
    %347 = vector.extract_strided_slice %219 {offsets = [1, 0, 0], sizes = [1, 16, 16], strides = [1, 1, 1]} : vector<4x16x16xf32> to vector<1x16x16xf32>
    %348 = vector.shape_cast %347 : vector<1x16x16xf32> to vector<16x16xf32>
    %349 = vector.broadcast %346 : f32 to vector<16x16xf32>
    %350 = arith.mulf %349, %348 : vector<16x16xf32>
    %351 = arith.addf %345, %350 : vector<16x16xf32>
    %c54 = arith.constant 54 : index
    %352 = memref.load %arg4[%c54] : memref<288xf32, #tpu.memory_space<smem>>
    %353 = vector.extract_strided_slice %219 {offsets = [2, 0, 0], sizes = [1, 16, 16], strides = [1, 1, 1]} : vector<4x16x16xf32> to vector<1x16x16xf32>
    %354 = vector.shape_cast %353 : vector<1x16x16xf32> to vector<16x16xf32>
    %355 = vector.broadcast %352 : f32 to vector<16x16xf32>
    %356 = arith.mulf %355, %354 : vector<16x16xf32>
    %357 = arith.addf %351, %356 : vector<16x16xf32>
    %c55 = arith.constant 55 : index
    %358 = memref.load %arg4[%c55] : memref<288xf32, #tpu.memory_space<smem>>
    %359 = vector.extract_strided_slice %219 {offsets = [3, 0, 0], sizes = [1, 16, 16], strides = [1, 1, 1]} : vector<4x16x16xf32> to vector<1x16x16xf32>
    %360 = vector.shape_cast %359 : vector<1x16x16xf32> to vector<16x16xf32>
    %361 = vector.broadcast %358 : f32 to vector<16x16xf32>
    %362 = arith.mulf %361, %360 : vector<16x16xf32>
    %363 = arith.addf %357, %362 : vector<16x16xf32>
    %c56 = arith.constant 56 : index
    %364 = memref.load %arg4[%c56] : memref<288xf32, #tpu.memory_space<smem>>
    %365 = vector.extract_strided_slice %219 {offsets = [0, 0, 0], sizes = [1, 16, 16], strides = [1, 1, 1]} : vector<4x16x16xf32> to vector<1x16x16xf32>
    %366 = vector.shape_cast %365 : vector<1x16x16xf32> to vector<16x16xf32>
    %367 = vector.broadcast %364 : f32 to vector<16x16xf32>
    %368 = arith.mulf %367, %366 : vector<16x16xf32>
    %369 = arith.addf %189, %368 : vector<16x16xf32>
    %c57 = arith.constant 57 : index
    %370 = memref.load %arg4[%c57] : memref<288xf32, #tpu.memory_space<smem>>
    %371 = vector.extract_strided_slice %219 {offsets = [1, 0, 0], sizes = [1, 16, 16], strides = [1, 1, 1]} : vector<4x16x16xf32> to vector<1x16x16xf32>
    %372 = vector.shape_cast %371 : vector<1x16x16xf32> to vector<16x16xf32>
    %373 = vector.broadcast %370 : f32 to vector<16x16xf32>
    %374 = arith.mulf %373, %372 : vector<16x16xf32>
    %375 = arith.addf %369, %374 : vector<16x16xf32>
    %c58 = arith.constant 58 : index
    %376 = memref.load %arg4[%c58] : memref<288xf32, #tpu.memory_space<smem>>
    %377 = vector.extract_strided_slice %219 {offsets = [2, 0, 0], sizes = [1, 16, 16], strides = [1, 1, 1]} : vector<4x16x16xf32> to vector<1x16x16xf32>
    %378 = vector.shape_cast %377 : vector<1x16x16xf32> to vector<16x16xf32>
    %379 = vector.broadcast %376 : f32 to vector<16x16xf32>
    %380 = arith.mulf %379, %378 : vector<16x16xf32>
    %381 = arith.addf %375, %380 : vector<16x16xf32>
    %c59 = arith.constant 59 : index
    %382 = memref.load %arg4[%c59] : memref<288xf32, #tpu.memory_space<smem>>
    %383 = vector.extract_strided_slice %219 {offsets = [3, 0, 0], sizes = [1, 16, 16], strides = [1, 1, 1]} : vector<4x16x16xf32> to vector<1x16x16xf32>
    %384 = vector.shape_cast %383 : vector<1x16x16xf32> to vector<16x16xf32>
    %385 = vector.broadcast %382 : f32 to vector<16x16xf32>
    %386 = arith.mulf %385, %384 : vector<16x16xf32>
    %387 = arith.addf %381, %386 : vector<16x16xf32>
    %c60 = arith.constant 60 : index
    %388 = memref.load %arg4[%c60] : memref<288xf32, #tpu.memory_space<smem>>
    %389 = vector.extract_strided_slice %219 {offsets = [0, 0, 0], sizes = [1, 16, 16], strides = [1, 1, 1]} : vector<4x16x16xf32> to vector<1x16x16xf32>
    %390 = vector.shape_cast %389 : vector<1x16x16xf32> to vector<16x16xf32>
    %391 = vector.broadcast %388 : f32 to vector<16x16xf32>
    %392 = arith.mulf %391, %390 : vector<16x16xf32>
    %393 = arith.addf %213, %392 : vector<16x16xf32>
    %c61 = arith.constant 61 : index
    %394 = memref.load %arg4[%c61] : memref<288xf32, #tpu.memory_space<smem>>
    %395 = vector.extract_strided_slice %219 {offsets = [1, 0, 0], sizes = [1, 16, 16], strides = [1, 1, 1]} : vector<4x16x16xf32> to vector<1x16x16xf32>
    %396 = vector.shape_cast %395 : vector<1x16x16xf32> to vector<16x16xf32>
    %397 = vector.broadcast %394 : f32 to vector<16x16xf32>
    %398 = arith.mulf %397, %396 : vector<16x16xf32>
    %399 = arith.addf %393, %398 : vector<16x16xf32>
    %c62 = arith.constant 62 : index
    %400 = memref.load %arg4[%c62] : memref<288xf32, #tpu.memory_space<smem>>
    %401 = vector.extract_strided_slice %219 {offsets = [2, 0, 0], sizes = [1, 16, 16], strides = [1, 1, 1]} : vector<4x16x16xf32> to vector<1x16x16xf32>
    %402 = vector.shape_cast %401 : vector<1x16x16xf32> to vector<16x16xf32>
    %403 = vector.broadcast %400 : f32 to vector<16x16xf32>
    %404 = arith.mulf %403, %402 : vector<16x16xf32>
    %405 = arith.addf %399, %404 : vector<16x16xf32>
    %c63 = arith.constant 63 : index
    %406 = memref.load %arg4[%c63] : memref<288xf32, #tpu.memory_space<smem>>
    %407 = vector.extract_strided_slice %219 {offsets = [3, 0, 0], sizes = [1, 16, 16], strides = [1, 1, 1]} : vector<4x16x16xf32> to vector<1x16x16xf32>
    %408 = vector.shape_cast %407 : vector<1x16x16xf32> to vector<16x16xf32>
    %409 = vector.broadcast %406 : f32 to vector<16x16xf32>
    %410 = arith.mulf %409, %408 : vector<16x16xf32>
    %411 = arith.addf %405, %410 : vector<16x16xf32>
    %c2_23 = arith.constant 2 : index
    %c0_24 = arith.constant 0 : index
    %c0_25 = arith.constant 0 : index
    %412 = vector.load %arg3[%c2_23, %c0_24, %c0_25] : memref<3x16x16xf32, #tpu.memory_space<vmem>>, vector<1x16x16xf32>
    %413 = vector.shape_cast %412 : vector<1x16x16xf32> to vector<16x16xf32>
    %414 = vector.shape_cast %413 : vector<16x16xf32> to vector<1x16x16xf32>
    %415 = vector.shape_cast %414 : vector<1x16x16xf32> to vector<1x16x16xf32>
    %416 = vector.broadcast %415 : vector<1x16x16xf32> to vector<4x16x16xf32>
    "tpu.trace_start"() <{level = 10 : i32, message = "cah,chw->caw"}> : () -> ()
    %cst_26 = arith.constant dense<0.000000e+00> : vector<4x16x16xf32>
    %417 = tpu.matmul %15, %416, %cst_26 {dimension_numbers = #tpu.dot_dimension_numbers<[2], [1], [1], [2], [0, 0, 0, 1, 1, 2], [0], [0]>} : vector<4x16x16xf32>, vector<4x16x16xf32>, vector<4x16x16xf32> -> vector<4x16x16xf32>
    "tpu.trace_stop"() : () -> ()
    %c64 = arith.constant 64 : index
    %418 = memref.load %arg4[%c64] : memref<288xf32, #tpu.memory_space<smem>>
    %419 = vector.extract_strided_slice %417 {offsets = [0, 0, 0], sizes = [1, 16, 16], strides = [1, 1, 1]} : vector<4x16x16xf32> to vector<1x16x16xf32>
    %420 = vector.shape_cast %419 : vector<1x16x16xf32> to vector<16x16xf32>
    %421 = vector.broadcast %418 : f32 to vector<16x16xf32>
    %422 = arith.mulf %421, %420 : vector<16x16xf32>
    %423 = arith.addf %243, %422 : vector<16x16xf32>
    %c65 = arith.constant 65 : index
    %424 = memref.load %arg4[%c65] : memref<288xf32, #tpu.memory_space<smem>>
    %425 = vector.extract_strided_slice %417 {offsets = [1, 0, 0], sizes = [1, 16, 16], strides = [1, 1, 1]} : vector<4x16x16xf32> to vector<1x16x16xf32>
    %426 = vector.shape_cast %425 : vector<1x16x16xf32> to vector<16x16xf32>
    %427 = vector.broadcast %424 : f32 to vector<16x16xf32>
    %428 = arith.mulf %427, %426 : vector<16x16xf32>
    %429 = arith.addf %423, %428 : vector<16x16xf32>
    %c66 = arith.constant 66 : index
    %430 = memref.load %arg4[%c66] : memref<288xf32, #tpu.memory_space<smem>>
    %431 = vector.extract_strided_slice %417 {offsets = [2, 0, 0], sizes = [1, 16, 16], strides = [1, 1, 1]} : vector<4x16x16xf32> to vector<1x16x16xf32>
    %432 = vector.shape_cast %431 : vector<1x16x16xf32> to vector<16x16xf32>
    %433 = vector.broadcast %430 : f32 to vector<16x16xf32>
    %434 = arith.mulf %433, %432 : vector<16x16xf32>
    %435 = arith.addf %429, %434 : vector<16x16xf32>
    %c67 = arith.constant 67 : index
    %436 = memref.load %arg4[%c67] : memref<288xf32, #tpu.memory_space<smem>>
    %437 = vector.extract_strided_slice %417 {offsets = [3, 0, 0], sizes = [1, 16, 16], strides = [1, 1, 1]} : vector<4x16x16xf32> to vector<1x16x16xf32>
    %438 = vector.shape_cast %437 : vector<1x16x16xf32> to vector<16x16xf32>
    %439 = vector.broadcast %436 : f32 to vector<16x16xf32>
    %440 = arith.mulf %439, %438 : vector<16x16xf32>
    %441 = arith.addf %435, %440 : vector<16x16xf32>
    %c68 = arith.constant 68 : index
    %442 = memref.load %arg4[%c68] : memref<288xf32, #tpu.memory_space<smem>>
    %443 = vector.extract_strided_slice %417 {offsets = [0, 0, 0], sizes = [1, 16, 16], strides = [1, 1, 1]} : vector<4x16x16xf32> to vector<1x16x16xf32>
    %444 = vector.shape_cast %443 : vector<1x16x16xf32> to vector<16x16xf32>
    %445 = vector.broadcast %442 : f32 to vector<16x16xf32>
    %446 = arith.mulf %445, %444 : vector<16x16xf32>
    %447 = arith.addf %267, %446 : vector<16x16xf32>
    %c69 = arith.constant 69 : index
    %448 = memref.load %arg4[%c69] : memref<288xf32, #tpu.memory_space<smem>>
    %449 = vector.extract_strided_slice %417 {offsets = [1, 0, 0], sizes = [1, 16, 16], strides = [1, 1, 1]} : vector<4x16x16xf32> to vector<1x16x16xf32>
    %450 = vector.shape_cast %449 : vector<1x16x16xf32> to vector<16x16xf32>
    %451 = vector.broadcast %448 : f32 to vector<16x16xf32>
    %452 = arith.mulf %451, %450 : vector<16x16xf32>
    %453 = arith.addf %447, %452 : vector<16x16xf32>
    %c70 = arith.constant 70 : index
    %454 = memref.load %arg4[%c70] : memref<288xf32, #tpu.memory_space<smem>>
    %455 = vector.extract_strided_slice %417 {offsets = [2, 0, 0], sizes = [1, 16, 16], strides = [1, 1, 1]} : vector<4x16x16xf32> to vector<1x16x16xf32>
    %456 = vector.shape_cast %455 : vector<1x16x16xf32> to vector<16x16xf32>
    %457 = vector.broadcast %454 : f32 to vector<16x16xf32>
    %458 = arith.mulf %457, %456 : vector<16x16xf32>
    %459 = arith.addf %453, %458 : vector<16x16xf32>
    %c71 = arith.constant 71 : index
    %460 = memref.load %arg4[%c71] : memref<288xf32, #tpu.memory_space<smem>>
    %461 = vector.extract_strided_slice %417 {offsets = [3, 0, 0], sizes = [1, 16, 16], strides = [1, 1, 1]} : vector<4x16x16xf32> to vector<1x16x16xf32>
    %462 = vector.shape_cast %461 : vector<1x16x16xf32> to vector<16x16xf32>
    %463 = vector.broadcast %460 : f32 to vector<16x16xf32>
    %464 = arith.mulf %463, %462 : vector<16x16xf32>
    %465 = arith.addf %459, %464 : vector<16x16xf32>
    %c72 = arith.constant 72 : index
    %466 = memref.load %arg4[%c72] : memref<288xf32, #tpu.memory_space<smem>>
    %467 = vector.extract_strided_slice %417 {offsets = [0, 0, 0], sizes = [1, 16, 16], strides = [1, 1, 1]} : vector<4x16x16xf32> to vector<1x16x16xf32>
    %468 = vector.shape_cast %467 : vector<1x16x16xf32> to vector<16x16xf32>
    %469 = vector.broadcast %466 : f32 to vector<16x16xf32>
    %470 = arith.mulf %469, %468 : vector<16x16xf32>
    %471 = arith.addf %291, %470 : vector<16x16xf32>
    %c73 = arith.constant 73 : index
    %472 = memref.load %arg4[%c73] : memref<288xf32, #tpu.memory_space<smem>>
    %473 = vector.extract_strided_slice %417 {offsets = [1, 0, 0], sizes = [1, 16, 16], strides = [1, 1, 1]} : vector<4x16x16xf32> to vector<1x16x16xf32>
    %474 = vector.shape_cast %473 : vector<1x16x16xf32> to vector<16x16xf32>
    %475 = vector.broadcast %472 : f32 to vector<16x16xf32>
    %476 = arith.mulf %475, %474 : vector<16x16xf32>
    %477 = arith.addf %471, %476 : vector<16x16xf32>
    %c74 = arith.constant 74 : index
    %478 = memref.load %arg4[%c74] : memref<288xf32, #tpu.memory_space<smem>>
    %479 = vector.extract_strided_slice %417 {offsets = [2, 0, 0], sizes = [1, 16, 16], strides = [1, 1, 1]} : vector<4x16x16xf32> to vector<1x16x16xf32>
    %480 = vector.shape_cast %479 : vector<1x16x16xf32> to vector<16x16xf32>
    %481 = vector.broadcast %478 : f32 to vector<16x16xf32>
    %482 = arith.mulf %481, %480 : vector<16x16xf32>
    %483 = arith.addf %477, %482 : vector<16x16xf32>
    %c75 = arith.constant 75 : index
    %484 = memref.load %arg4[%c75] : memref<288xf32, #tpu.memory_space<smem>>
    %485 = vector.extract_strided_slice %417 {offsets = [3, 0, 0], sizes = [1, 16, 16], strides = [1, 1, 1]} : vector<4x16x16xf32> to vector<1x16x16xf32>
    %486 = vector.shape_cast %485 : vector<1x16x16xf32> to vector<16x16xf32>
    %487 = vector.broadcast %484 : f32 to vector<16x16xf32>
    %488 = arith.mulf %487, %486 : vector<16x16xf32>
    %489 = arith.addf %483, %488 : vector<16x16xf32>
    %c76 = arith.constant 76 : index
    %490 = memref.load %arg4[%c76] : memref<288xf32, #tpu.memory_space<smem>>
    %491 = vector.extract_strided_slice %417 {offsets = [0, 0, 0], sizes = [1, 16, 16], strides = [1, 1, 1]} : vector<4x16x16xf32> to vector<1x16x16xf32>
    %492 = vector.shape_cast %491 : vector<1x16x16xf32> to vector<16x16xf32>
    %493 = vector.broadcast %490 : f32 to vector<16x16xf32>
    %494 = arith.mulf %493, %492 : vector<16x16xf32>
    %495 = arith.addf %315, %494 : vector<16x16xf32>
    %c77 = arith.constant 77 : index
    %496 = memref.load %arg4[%c77] : memref<288xf32, #tpu.memory_space<smem>>
    %497 = vector.extract_strided_slice %417 {offsets = [1, 0, 0], sizes = [1, 16, 16], strides = [1, 1, 1]} : vector<4x16x16xf32> to vector<1x16x16xf32>
    %498 = vector.shape_cast %497 : vector<1x16x16xf32> to vector<16x16xf32>
    %499 = vector.broadcast %496 : f32 to vector<16x16xf32>
    %500 = arith.mulf %499, %498 : vector<16x16xf32>
    %501 = arith.addf %495, %500 : vector<16x16xf32>
    %c78 = arith.constant 78 : index
    %502 = memref.load %arg4[%c78] : memref<288xf32, #tpu.memory_space<smem>>
    %503 = vector.extract_strided_slice %417 {offsets = [2, 0, 0], sizes = [1, 16, 16], strides = [1, 1, 1]} : vector<4x16x16xf32> to vector<1x16x16xf32>
    %504 = vector.shape_cast %503 : vector<1x16x16xf32> to vector<16x16xf32>
    %505 = vector.broadcast %502 : f32 to vector<16x16xf32>
    %506 = arith.mulf %505, %504 : vector<16x16xf32>
    %507 = arith.addf %501, %506 : vector<16x16xf32>
    %c79 = arith.constant 79 : index
    %508 = memref.load %arg4[%c79] : memref<288xf32, #tpu.memory_space<smem>>
    %509 = vector.extract_strided_slice %417 {offsets = [3, 0, 0], sizes = [1, 16, 16], strides = [1, 1, 1]} : vector<4x16x16xf32> to vector<1x16x16xf32>
    %510 = vector.shape_cast %509 : vector<1x16x16xf32> to vector<16x16xf32>
    %511 = vector.broadcast %508 : f32 to vector<16x16xf32>
    %512 = arith.mulf %511, %510 : vector<16x16xf32>
    %513 = arith.addf %507, %512 : vector<16x16xf32>
    %c80 = arith.constant 80 : index
    %514 = memref.load %arg4[%c80] : memref<288xf32, #tpu.memory_space<smem>>
    %515 = vector.extract_strided_slice %417 {offsets = [0, 0, 0], sizes = [1, 16, 16], strides = [1, 1, 1]} : vector<4x16x16xf32> to vector<1x16x16xf32>
    %516 = vector.shape_cast %515 : vector<1x16x16xf32> to vector<16x16xf32>
    %517 = vector.broadcast %514 : f32 to vector<16x16xf32>
    %518 = arith.mulf %517, %516 : vector<16x16xf32>
    %519 = arith.addf %339, %518 : vector<16x16xf32>
    %c81 = arith.constant 81 : index
    %520 = memref.load %arg4[%c81] : memref<288xf32, #tpu.memory_space<smem>>
    %521 = vector.extract_strided_slice %417 {offsets = [1, 0, 0], sizes = [1, 16, 16], strides = [1, 1, 1]} : vector<4x16x16xf32> to vector<1x16x16xf32>
    %522 = vector.shape_cast %521 : vector<1x16x16xf32> to vector<16x16xf32>
    %523 = vector.broadcast %520 : f32 to vector<16x16xf32>
    %524 = arith.mulf %523, %522 : vector<16x16xf32>
    %525 = arith.addf %519, %524 : vector<16x16xf32>
    %c82 = arith.constant 82 : index
    %526 = memref.load %arg4[%c82] : memref<288xf32, #tpu.memory_space<smem>>
    %527 = vector.extract_strided_slice %417 {offsets = [2, 0, 0], sizes = [1, 16, 16], strides = [1, 1, 1]} : vector<4x16x16xf32> to vector<1x16x16xf32>
    %528 = vector.shape_cast %527 : vector<1x16x16xf32> to vector<16x16xf32>
    %529 = vector.broadcast %526 : f32 to vector<16x16xf32>
    %530 = arith.mulf %529, %528 : vector<16x16xf32>
    %531 = arith.addf %525, %530 : vector<16x16xf32>
    %c83 = arith.constant 83 : index
    %532 = memref.load %arg4[%c83] : memref<288xf32, #tpu.memory_space<smem>>
    %533 = vector.extract_strided_slice %417 {offsets = [3, 0, 0], sizes = [1, 16, 16], strides = [1, 1, 1]} : vector<4x16x16xf32> to vector<1x16x16xf32>
    %534 = vector.shape_cast %533 : vector<1x16x16xf32> to vector<16x16xf32>
    %535 = vector.broadcast %532 : f32 to vector<16x16xf32>
    %536 = arith.mulf %535, %534 : vector<16x16xf32>
    %537 = arith.addf %531, %536 : vector<16x16xf32>
    %c84 = arith.constant 84 : index
    %538 = memref.load %arg4[%c84] : memref<288xf32, #tpu.memory_space<smem>>
    %539 = vector.extract_strided_slice %417 {offsets = [0, 0, 0], sizes = [1, 16, 16], strides = [1, 1, 1]} : vector<4x16x16xf32> to vector<1x16x16xf32>
    %540 = vector.shape_cast %539 : vector<1x16x16xf32> to vector<16x16xf32>
    %541 = vector.broadcast %538 : f32 to vector<16x16xf32>
    %542 = arith.mulf %541, %540 : vector<16x16xf32>
    %543 = arith.addf %363, %542 : vector<16x16xf32>
    %c85 = arith.constant 85 : index
    %544 = memref.load %arg4[%c85] : memref<288xf32, #tpu.memory_space<smem>>
    %545 = vector.extract_strided_slice %417 {offsets = [1, 0, 0], sizes = [1, 16, 16], strides = [1, 1, 1]} : vector<4x16x16xf32> to vector<1x16x16xf32>
    %546 = vector.shape_cast %545 : vector<1x16x16xf32> to vector<16x16xf32>
    %547 = vector.broadcast %544 : f32 to vector<16x16xf32>
    %548 = arith.mulf %547, %546 : vector<16x16xf32>
    %549 = arith.addf %543, %548 : vector<16x16xf32>
    %c86 = arith.constant 86 : index
    %550 = memref.load %arg4[%c86] : memref<288xf32, #tpu.memory_space<smem>>
    %551 = vector.extract_strided_slice %417 {offsets = [2, 0, 0], sizes = [1, 16, 16], strides = [1, 1, 1]} : vector<4x16x16xf32> to vector<1x16x16xf32>
    %552 = vector.shape_cast %551 : vector<1x16x16xf32> to vector<16x16xf32>
    %553 = vector.broadcast %550 : f32 to vector<16x16xf32>
    %554 = arith.mulf %553, %552 : vector<16x16xf32>
    %555 = arith.addf %549, %554 : vector<16x16xf32>
    %c87 = arith.constant 87 : index
    %556 = memref.load %arg4[%c87] : memref<288xf32, #tpu.memory_space<smem>>
    %557 = vector.extract_strided_slice %417 {offsets = [3, 0, 0], sizes = [1, 16, 16], strides = [1, 1, 1]} : vector<4x16x16xf32> to vector<1x16x16xf32>
    %558 = vector.shape_cast %557 : vector<1x16x16xf32> to vector<16x16xf32>
    %559 = vector.broadcast %556 : f32 to vector<16x16xf32>
    %560 = arith.mulf %559, %558 : vector<16x16xf32>
    %561 = arith.addf %555, %560 : vector<16x16xf32>
    %c88 = arith.constant 88 : index
    %562 = memref.load %arg4[%c88] : memref<288xf32, #tpu.memory_space<smem>>
    %563 = vector.extract_strided_slice %417 {offsets = [0, 0, 0], sizes = [1, 16, 16], strides = [1, 1, 1]} : vector<4x16x16xf32> to vector<1x16x16xf32>
    %564 = vector.shape_cast %563 : vector<1x16x16xf32> to vector<16x16xf32>
    %565 = vector.broadcast %562 : f32 to vector<16x16xf32>
    %566 = arith.mulf %565, %564 : vector<16x16xf32>
    %567 = arith.addf %387, %566 : vector<16x16xf32>
    %c89 = arith.constant 89 : index
    %568 = memref.load %arg4[%c89] : memref<288xf32, #tpu.memory_space<smem>>
    %569 = vector.extract_strided_slice %417 {offsets = [1, 0, 0], sizes = [1, 16, 16], strides = [1, 1, 1]} : vector<4x16x16xf32> to vector<1x16x16xf32>
    %570 = vector.shape_cast %569 : vector<1x16x16xf32> to vector<16x16xf32>
    %571 = vector.broadcast %568 : f32 to vector<16x16xf32>
    %572 = arith.mulf %571, %570 : vector<16x16xf32>
    %573 = arith.addf %567, %572 : vector<16x16xf32>
    %c90 = arith.constant 90 : index
    %574 = memref.load %arg4[%c90] : memref<288xf32, #tpu.memory_space<smem>>
    %575 = vector.extract_strided_slice %417 {offsets = [2, 0, 0], sizes = [1, 16, 16], strides = [1, 1, 1]} : vector<4x16x16xf32> to vector<1x16x16xf32>
    %576 = vector.shape_cast %575 : vector<1x16x16xf32> to vector<16x16xf32>
    %577 = vector.broadcast %574 : f32 to vector<16x16xf32>
    %578 = arith.mulf %577, %576 : vector<16x16xf32>
    %579 = arith.addf %573, %578 : vector<16x16xf32>
    %c91 = arith.constant 91 : index
    %580 = memref.load %arg4[%c91] : memref<288xf32, #tpu.memory_space<smem>>
    %581 = vector.extract_strided_slice %417 {offsets = [3, 0, 0], sizes = [1, 16, 16], strides = [1, 1, 1]} : vector<4x16x16xf32> to vector<1x16x16xf32>
    %582 = vector.shape_cast %581 : vector<1x16x16xf32> to vector<16x16xf32>
    %583 = vector.broadcast %580 : f32 to vector<16x16xf32>
    %584 = arith.mulf %583, %582 : vector<16x16xf32>
    %585 = arith.addf %579, %584 : vector<16x16xf32>
    %c92 = arith.constant 92 : index
    %586 = memref.load %arg4[%c92] : memref<288xf32, #tpu.memory_space<smem>>
    %587 = vector.extract_strided_slice %417 {offsets = [0, 0, 0], sizes = [1, 16, 16], strides = [1, 1, 1]} : vector<4x16x16xf32> to vector<1x16x16xf32>
    %588 = vector.shape_cast %587 : vector<1x16x16xf32> to vector<16x16xf32>
    %589 = vector.broadcast %586 : f32 to vector<16x16xf32>
    %590 = arith.mulf %589, %588 : vector<16x16xf32>
    %591 = arith.addf %411, %590 : vector<16x16xf32>
    %c93 = arith.constant 93 : index
    %592 = memref.load %arg4[%c93] : memref<288xf32, #tpu.memory_space<smem>>
    %593 = vector.extract_strided_slice %417 {offsets = [1, 0, 0], sizes = [1, 16, 16], strides = [1, 1, 1]} : vector<4x16x16xf32> to vector<1x16x16xf32>
    %594 = vector.shape_cast %593 : vector<1x16x16xf32> to vector<16x16xf32>
    %595 = vector.broadcast %592 : f32 to vector<16x16xf32>
    %596 = arith.mulf %595, %594 : vector<16x16xf32>
    %597 = arith.addf %591, %596 : vector<16x16xf32>
    %c94 = arith.constant 94 : index
    %598 = memref.load %arg4[%c94] : memref<288xf32, #tpu.memory_space<smem>>
    %599 = vector.extract_strided_slice %417 {offsets = [2, 0, 0], sizes = [1, 16, 16], strides = [1, 1, 1]} : vector<4x16x16xf32> to vector<1x16x16xf32>
    %600 = vector.shape_cast %599 : vector<1x16x16xf32> to vector<16x16xf32>
    %601 = vector.broadcast %598 : f32 to vector<16x16xf32>
    %602 = arith.mulf %601, %600 : vector<16x16xf32>
    %603 = arith.addf %597, %602 : vector<16x16xf32>
    %c95 = arith.constant 95 : index
    %604 = memref.load %arg4[%c95] : memref<288xf32, #tpu.memory_space<smem>>
    %605 = vector.extract_strided_slice %417 {offsets = [3, 0, 0], sizes = [1, 16, 16], strides = [1, 1, 1]} : vector<4x16x16xf32> to vector<1x16x16xf32>
    %606 = vector.shape_cast %605 : vector<1x16x16xf32> to vector<16x16xf32>
    %607 = vector.broadcast %604 : f32 to vector<16x16xf32>
    %608 = arith.mulf %607, %606 : vector<16x16xf32>
    %609 = arith.addf %603, %608 : vector<16x16xf32>
    %c1_27 = arith.constant 1 : index
    %c0_28 = arith.constant 0 : index
    %c0_29 = arith.constant 0 : index
    %610 = vector.load %arg2[%c1_27, %c0_28, %c0_29] : memref<3x16x16xf32, #tpu.memory_space<vmem>>, vector<1x16x16xf32>
    %611 = vector.shape_cast %610 : vector<1x16x16xf32> to vector<16x16xf32>
    %612 = vector.shape_cast %611 : vector<16x16xf32> to vector<1x16x16xf32>
    %613 = vector.shape_cast %612 : vector<1x16x16xf32> to vector<1x16x16xf32>
    %614 = vector.broadcast %613 : vector<1x16x16xf32> to vector<4x16x16xf32>
    "tpu.trace_start"() <{level = 10 : i32, message = "caw,chw->cah"}> : () -> ()
    %cst_30 = arith.constant dense<0.000000e+00> : vector<4x16x16xf32>
    %615 = tpu.matmul %614, %1, %cst_30 {dimension_numbers = #tpu.dot_dimension_numbers<[2], [2], [1], [1], [0, 0, 0, 1, 1, 1], [0], [0]>} : vector<4x16x16xf32>, vector<4x16x16xf32>, vector<4x16x16xf32> -> vector<4x16x16xf32>
    "tpu.trace_stop"() : () -> ()
    %c0_31 = arith.constant 0 : index
    %c0_32 = arith.constant 0 : index
    %c0_33 = arith.constant 0 : index
    %616 = vector.load %arg3[%c0_31, %c0_32, %c0_33] : memref<3x16x16xf32, #tpu.memory_space<vmem>>, vector<1x16x16xf32>
    %617 = vector.shape_cast %616 : vector<1x16x16xf32> to vector<16x16xf32>
    %618 = vector.shape_cast %617 : vector<16x16xf32> to vector<1x16x16xf32>
    %619 = vector.shape_cast %618 : vector<1x16x16xf32> to vector<1x16x16xf32>
    %620 = vector.broadcast %619 : vector<1x16x16xf32> to vector<4x16x16xf32>
    "tpu.trace_start"() <{level = 10 : i32, message = "cah,chw->caw"}> : () -> ()
    %cst_34 = arith.constant dense<0.000000e+00> : vector<4x16x16xf32>
    %621 = tpu.matmul %615, %620, %cst_34 {dimension_numbers = #tpu.dot_dimension_numbers<[2], [1], [1], [2], [0, 0, 0, 1, 1, 2], [0], [0]>} : vector<4x16x16xf32>, vector<4x16x16xf32>, vector<4x16x16xf32> -> vector<4x16x16xf32>
    "tpu.trace_stop"() : () -> ()
    %c96 = arith.constant 96 : index
    %622 = memref.load %arg4[%c96] : memref<288xf32, #tpu.memory_space<smem>>
    %623 = vector.extract_strided_slice %621 {offsets = [0, 0, 0], sizes = [1, 16, 16], strides = [1, 1, 1]} : vector<4x16x16xf32> to vector<1x16x16xf32>
    %624 = vector.shape_cast %623 : vector<1x16x16xf32> to vector<16x16xf32>
    %625 = vector.broadcast %622 : f32 to vector<16x16xf32>
    %626 = arith.mulf %625, %624 : vector<16x16xf32>
    %627 = arith.addf %441, %626 : vector<16x16xf32>
    %c97 = arith.constant 97 : index
    %628 = memref.load %arg4[%c97] : memref<288xf32, #tpu.memory_space<smem>>
    %629 = vector.extract_strided_slice %621 {offsets = [1, 0, 0], sizes = [1, 16, 16], strides = [1, 1, 1]} : vector<4x16x16xf32> to vector<1x16x16xf32>
    %630 = vector.shape_cast %629 : vector<1x16x16xf32> to vector<16x16xf32>
    %631 = vector.broadcast %628 : f32 to vector<16x16xf32>
    %632 = arith.mulf %631, %630 : vector<16x16xf32>
    %633 = arith.addf %627, %632 : vector<16x16xf32>
    %c98 = arith.constant 98 : index
    %634 = memref.load %arg4[%c98] : memref<288xf32, #tpu.memory_space<smem>>
    %635 = vector.extract_strided_slice %621 {offsets = [2, 0, 0], sizes = [1, 16, 16], strides = [1, 1, 1]} : vector<4x16x16xf32> to vector<1x16x16xf32>
    %636 = vector.shape_cast %635 : vector<1x16x16xf32> to vector<16x16xf32>
    %637 = vector.broadcast %634 : f32 to vector<16x16xf32>
    %638 = arith.mulf %637, %636 : vector<16x16xf32>
    %639 = arith.addf %633, %638 : vector<16x16xf32>
    %c99 = arith.constant 99 : index
    %640 = memref.load %arg4[%c99] : memref<288xf32, #tpu.memory_space<smem>>
    %641 = vector.extract_strided_slice %621 {offsets = [3, 0, 0], sizes = [1, 16, 16], strides = [1, 1, 1]} : vector<4x16x16xf32> to vector<1x16x16xf32>
    %642 = vector.shape_cast %641 : vector<1x16x16xf32> to vector<16x16xf32>
    %643 = vector.broadcast %640 : f32 to vector<16x16xf32>
    %644 = arith.mulf %643, %642 : vector<16x16xf32>
    %645 = arith.addf %639, %644 : vector<16x16xf32>
    %c100 = arith.constant 100 : index
    %646 = memref.load %arg4[%c100] : memref<288xf32, #tpu.memory_space<smem>>
    %647 = vector.extract_strided_slice %621 {offsets = [0, 0, 0], sizes = [1, 16, 16], strides = [1, 1, 1]} : vector<4x16x16xf32> to vector<1x16x16xf32>
    %648 = vector.shape_cast %647 : vector<1x16x16xf32> to vector<16x16xf32>
    %649 = vector.broadcast %646 : f32 to vector<16x16xf32>
    %650 = arith.mulf %649, %648 : vector<16x16xf32>
    %651 = arith.addf %465, %650 : vector<16x16xf32>
    %c101 = arith.constant 101 : index
    %652 = memref.load %arg4[%c101] : memref<288xf32, #tpu.memory_space<smem>>
    %653 = vector.extract_strided_slice %621 {offsets = [1, 0, 0], sizes = [1, 16, 16], strides = [1, 1, 1]} : vector<4x16x16xf32> to vector<1x16x16xf32>
    %654 = vector.shape_cast %653 : vector<1x16x16xf32> to vector<16x16xf32>
    %655 = vector.broadcast %652 : f32 to vector<16x16xf32>
    %656 = arith.mulf %655, %654 : vector<16x16xf32>
    %657 = arith.addf %651, %656 : vector<16x16xf32>
    %c102 = arith.constant 102 : index
    %658 = memref.load %arg4[%c102] : memref<288xf32, #tpu.memory_space<smem>>
    %659 = vector.extract_strided_slice %621 {offsets = [2, 0, 0], sizes = [1, 16, 16], strides = [1, 1, 1]} : vector<4x16x16xf32> to vector<1x16x16xf32>
    %660 = vector.shape_cast %659 : vector<1x16x16xf32> to vector<16x16xf32>
    %661 = vector.broadcast %658 : f32 to vector<16x16xf32>
    %662 = arith.mulf %661, %660 : vector<16x16xf32>
    %663 = arith.addf %657, %662 : vector<16x16xf32>
    %c103 = arith.constant 103 : index
    %664 = memref.load %arg4[%c103] : memref<288xf32, #tpu.memory_space<smem>>
    %665 = vector.extract_strided_slice %621 {offsets = [3, 0, 0], sizes = [1, 16, 16], strides = [1, 1, 1]} : vector<4x16x16xf32> to vector<1x16x16xf32>
    %666 = vector.shape_cast %665 : vector<1x16x16xf32> to vector<16x16xf32>
    %667 = vector.broadcast %664 : f32 to vector<16x16xf32>
    %668 = arith.mulf %667, %666 : vector<16x16xf32>
    %669 = arith.addf %663, %668 : vector<16x16xf32>
    %c104 = arith.constant 104 : index
    %670 = memref.load %arg4[%c104] : memref<288xf32, #tpu.memory_space<smem>>
    %671 = vector.extract_strided_slice %621 {offsets = [0, 0, 0], sizes = [1, 16, 16], strides = [1, 1, 1]} : vector<4x16x16xf32> to vector<1x16x16xf32>
    %672 = vector.shape_cast %671 : vector<1x16x16xf32> to vector<16x16xf32>
    %673 = vector.broadcast %670 : f32 to vector<16x16xf32>
    %674 = arith.mulf %673, %672 : vector<16x16xf32>
    %675 = arith.addf %489, %674 : vector<16x16xf32>
    %c105 = arith.constant 105 : index
    %676 = memref.load %arg4[%c105] : memref<288xf32, #tpu.memory_space<smem>>
    %677 = vector.extract_strided_slice %621 {offsets = [1, 0, 0], sizes = [1, 16, 16], strides = [1, 1, 1]} : vector<4x16x16xf32> to vector<1x16x16xf32>
    %678 = vector.shape_cast %677 : vector<1x16x16xf32> to vector<16x16xf32>
    %679 = vector.broadcast %676 : f32 to vector<16x16xf32>
    %680 = arith.mulf %679, %678 : vector<16x16xf32>
    %681 = arith.addf %675, %680 : vector<16x16xf32>
    %c106 = arith.constant 106 : index
    %682 = memref.load %arg4[%c106] : memref<288xf32, #tpu.memory_space<smem>>
    %683 = vector.extract_strided_slice %621 {offsets = [2, 0, 0], sizes = [1, 16, 16], strides = [1, 1, 1]} : vector<4x16x16xf32> to vector<1x16x16xf32>
    %684 = vector.shape_cast %683 : vector<1x16x16xf32> to vector<16x16xf32>
    %685 = vector.broadcast %682 : f32 to vector<16x16xf32>
    %686 = arith.mulf %685, %684 : vector<16x16xf32>
    %687 = arith.addf %681, %686 : vector<16x16xf32>
    %c107 = arith.constant 107 : index
    %688 = memref.load %arg4[%c107] : memref<288xf32, #tpu.memory_space<smem>>
    %689 = vector.extract_strided_slice %621 {offsets = [3, 0, 0], sizes = [1, 16, 16], strides = [1, 1, 1]} : vector<4x16x16xf32> to vector<1x16x16xf32>
    %690 = vector.shape_cast %689 : vector<1x16x16xf32> to vector<16x16xf32>
    %691 = vector.broadcast %688 : f32 to vector<16x16xf32>
    %692 = arith.mulf %691, %690 : vector<16x16xf32>
    %693 = arith.addf %687, %692 : vector<16x16xf32>
    %c108 = arith.constant 108 : index
    %694 = memref.load %arg4[%c108] : memref<288xf32, #tpu.memory_space<smem>>
    %695 = vector.extract_strided_slice %621 {offsets = [0, 0, 0], sizes = [1, 16, 16], strides = [1, 1, 1]} : vector<4x16x16xf32> to vector<1x16x16xf32>
    %696 = vector.shape_cast %695 : vector<1x16x16xf32> to vector<16x16xf32>
    %697 = vector.broadcast %694 : f32 to vector<16x16xf32>
    %698 = arith.mulf %697, %696 : vector<16x16xf32>
    %699 = arith.addf %513, %698 : vector<16x16xf32>
    %c109 = arith.constant 109 : index
    %700 = memref.load %arg4[%c109] : memref<288xf32, #tpu.memory_space<smem>>
    %701 = vector.extract_strided_slice %621 {offsets = [1, 0, 0], sizes = [1, 16, 16], strides = [1, 1, 1]} : vector<4x16x16xf32> to vector<1x16x16xf32>
    %702 = vector.shape_cast %701 : vector<1x16x16xf32> to vector<16x16xf32>
    %703 = vector.broadcast %700 : f32 to vector<16x16xf32>
    %704 = arith.mulf %703, %702 : vector<16x16xf32>
    %705 = arith.addf %699, %704 : vector<16x16xf32>
    %c110 = arith.constant 110 : index
    %706 = memref.load %arg4[%c110] : memref<288xf32, #tpu.memory_space<smem>>
    %707 = vector.extract_strided_slice %621 {offsets = [2, 0, 0], sizes = [1, 16, 16], strides = [1, 1, 1]} : vector<4x16x16xf32> to vector<1x16x16xf32>
    %708 = vector.shape_cast %707 : vector<1x16x16xf32> to vector<16x16xf32>
    %709 = vector.broadcast %706 : f32 to vector<16x16xf32>
    %710 = arith.mulf %709, %708 : vector<16x16xf32>
    %711 = arith.addf %705, %710 : vector<16x16xf32>
    %c111 = arith.constant 111 : index
    %712 = memref.load %arg4[%c111] : memref<288xf32, #tpu.memory_space<smem>>
    %713 = vector.extract_strided_slice %621 {offsets = [3, 0, 0], sizes = [1, 16, 16], strides = [1, 1, 1]} : vector<4x16x16xf32> to vector<1x16x16xf32>
    %714 = vector.shape_cast %713 : vector<1x16x16xf32> to vector<16x16xf32>
    %715 = vector.broadcast %712 : f32 to vector<16x16xf32>
    %716 = arith.mulf %715, %714 : vector<16x16xf32>
    %717 = arith.addf %711, %716 : vector<16x16xf32>
    %c112 = arith.constant 112 : index
    %718 = memref.load %arg4[%c112] : memref<288xf32, #tpu.memory_space<smem>>
    %719 = vector.extract_strided_slice %621 {offsets = [0, 0, 0], sizes = [1, 16, 16], strides = [1, 1, 1]} : vector<4x16x16xf32> to vector<1x16x16xf32>
    %720 = vector.shape_cast %719 : vector<1x16x16xf32> to vector<16x16xf32>
    %721 = vector.broadcast %718 : f32 to vector<16x16xf32>
    %722 = arith.mulf %721, %720 : vector<16x16xf32>
    %723 = arith.addf %537, %722 : vector<16x16xf32>
    %c113 = arith.constant 113 : index
    %724 = memref.load %arg4[%c113] : memref<288xf32, #tpu.memory_space<smem>>
    %725 = vector.extract_strided_slice %621 {offsets = [1, 0, 0], sizes = [1, 16, 16], strides = [1, 1, 1]} : vector<4x16x16xf32> to vector<1x16x16xf32>
    %726 = vector.shape_cast %725 : vector<1x16x16xf32> to vector<16x16xf32>
    %727 = vector.broadcast %724 : f32 to vector<16x16xf32>
    %728 = arith.mulf %727, %726 : vector<16x16xf32>
    %729 = arith.addf %723, %728 : vector<16x16xf32>
    %c114 = arith.constant 114 : index
    %730 = memref.load %arg4[%c114] : memref<288xf32, #tpu.memory_space<smem>>
    %731 = vector.extract_strided_slice %621 {offsets = [2, 0, 0], sizes = [1, 16, 16], strides = [1, 1, 1]} : vector<4x16x16xf32> to vector<1x16x16xf32>
    %732 = vector.shape_cast %731 : vector<1x16x16xf32> to vector<16x16xf32>
    %733 = vector.broadcast %730 : f32 to vector<16x16xf32>
    %734 = arith.mulf %733, %732 : vector<16x16xf32>
    %735 = arith.addf %729, %734 : vector<16x16xf32>
    %c115 = arith.constant 115 : index
    %736 = memref.load %arg4[%c115] : memref<288xf32, #tpu.memory_space<smem>>
    %737 = vector.extract_strided_slice %621 {offsets = [3, 0, 0], sizes = [1, 16, 16], strides = [1, 1, 1]} : vector<4x16x16xf32> to vector<1x16x16xf32>
    %738 = vector.shape_cast %737 : vector<1x16x16xf32> to vector<16x16xf32>
    %739 = vector.broadcast %736 : f32 to vector<16x16xf32>
    %740 = arith.mulf %739, %738 : vector<16x16xf32>
    %741 = arith.addf %735, %740 : vector<16x16xf32>
    %c116 = arith.constant 116 : index
    %742 = memref.load %arg4[%c116] : memref<288xf32, #tpu.memory_space<smem>>
    %743 = vector.extract_strided_slice %621 {offsets = [0, 0, 0], sizes = [1, 16, 16], strides = [1, 1, 1]} : vector<4x16x16xf32> to vector<1x16x16xf32>
    %744 = vector.shape_cast %743 : vector<1x16x16xf32> to vector<16x16xf32>
    %745 = vector.broadcast %742 : f32 to vector<16x16xf32>
    %746 = arith.mulf %745, %744 : vector<16x16xf32>
    %747 = arith.addf %561, %746 : vector<16x16xf32>
    %c117 = arith.constant 117 : index
    %748 = memref.load %arg4[%c117] : memref<288xf32, #tpu.memory_space<smem>>
    %749 = vector.extract_strided_slice %621 {offsets = [1, 0, 0], sizes = [1, 16, 16], strides = [1, 1, 1]} : vector<4x16x16xf32> to vector<1x16x16xf32>
    %750 = vector.shape_cast %749 : vector<1x16x16xf32> to vector<16x16xf32>
    %751 = vector.broadcast %748 : f32 to vector<16x16xf32>
    %752 = arith.mulf %751, %750 : vector<16x16xf32>
    %753 = arith.addf %747, %752 : vector<16x16xf32>
    %c118 = arith.constant 118 : index
    %754 = memref.load %arg4[%c118] : memref<288xf32, #tpu.memory_space<smem>>
    %755 = vector.extract_strided_slice %621 {offsets = [2, 0, 0], sizes = [1, 16, 16], strides = [1, 1, 1]} : vector<4x16x16xf32> to vector<1x16x16xf32>
    %756 = vector.shape_cast %755 : vector<1x16x16xf32> to vector<16x16xf32>
    %757 = vector.broadcast %754 : f32 to vector<16x16xf32>
    %758 = arith.mulf %757, %756 : vector<16x16xf32>
    %759 = arith.addf %753, %758 : vector<16x16xf32>
    %c119 = arith.constant 119 : index
    %760 = memref.load %arg4[%c119] : memref<288xf32, #tpu.memory_space<smem>>
    %761 = vector.extract_strided_slice %621 {offsets = [3, 0, 0], sizes = [1, 16, 16], strides = [1, 1, 1]} : vector<4x16x16xf32> to vector<1x16x16xf32>
    %762 = vector.shape_cast %761 : vector<1x16x16xf32> to vector<16x16xf32>
    %763 = vector.broadcast %760 : f32 to vector<16x16xf32>
    %764 = arith.mulf %763, %762 : vector<16x16xf32>
    %765 = arith.addf %759, %764 : vector<16x16xf32>
    %c120 = arith.constant 120 : index
    %766 = memref.load %arg4[%c120] : memref<288xf32, #tpu.memory_space<smem>>
    %767 = vector.extract_strided_slice %621 {offsets = [0, 0, 0], sizes = [1, 16, 16], strides = [1, 1, 1]} : vector<4x16x16xf32> to vector<1x16x16xf32>
    %768 = vector.shape_cast %767 : vector<1x16x16xf32> to vector<16x16xf32>
    %769 = vector.broadcast %766 : f32 to vector<16x16xf32>
    %770 = arith.mulf %769, %768 : vector<16x16xf32>
    %771 = arith.addf %585, %770 : vector<16x16xf32>
    %c121 = arith.constant 121 : index
    %772 = memref.load %arg4[%c121] : memref<288xf32, #tpu.memory_space<smem>>
    %773 = vector.extract_strided_slice %621 {offsets = [1, 0, 0], sizes = [1, 16, 16], strides = [1, 1, 1]} : vector<4x16x16xf32> to vector<1x16x16xf32>
    %774 = vector.shape_cast %773 : vector<1x16x16xf32> to vector<16x16xf32>
    %775 = vector.broadcast %772 : f32 to vector<16x16xf32>
    %776 = arith.mulf %775, %774 : vector<16x16xf32>
    %777 = arith.addf %771, %776 : vector<16x16xf32>
    %c122 = arith.constant 122 : index
    %778 = memref.load %arg4[%c122] : memref<288xf32, #tpu.memory_space<smem>>
    %779 = vector.extract_strided_slice %621 {offsets = [2, 0, 0], sizes = [1, 16, 16], strides = [1, 1, 1]} : vector<4x16x16xf32> to vector<1x16x16xf32>
    %780 = vector.shape_cast %779 : vector<1x16x16xf32> to vector<16x16xf32>
    %781 = vector.broadcast %778 : f32 to vector<16x16xf32>
    %782 = arith.mulf %781, %780 : vector<16x16xf32>
    %783 = arith.addf %777, %782 : vector<16x16xf32>
    %c123 = arith.constant 123 : index
    %784 = memref.load %arg4[%c123] : memref<288xf32, #tpu.memory_space<smem>>
    %785 = vector.extract_strided_slice %621 {offsets = [3, 0, 0], sizes = [1, 16, 16], strides = [1, 1, 1]} : vector<4x16x16xf32> to vector<1x16x16xf32>
    %786 = vector.shape_cast %785 : vector<1x16x16xf32> to vector<16x16xf32>
    %787 = vector.broadcast %784 : f32 to vector<16x16xf32>
    %788 = arith.mulf %787, %786 : vector<16x16xf32>
    %789 = arith.addf %783, %788 : vector<16x16xf32>
    %c124 = arith.constant 124 : index
    %790 = memref.load %arg4[%c124] : memref<288xf32, #tpu.memory_space<smem>>
    %791 = vector.extract_strided_slice %621 {offsets = [0, 0, 0], sizes = [1, 16, 16], strides = [1, 1, 1]} : vector<4x16x16xf32> to vector<1x16x16xf32>
    %792 = vector.shape_cast %791 : vector<1x16x16xf32> to vector<16x16xf32>
    %793 = vector.broadcast %790 : f32 to vector<16x16xf32>
    %794 = arith.mulf %793, %792 : vector<16x16xf32>
    %795 = arith.addf %609, %794 : vector<16x16xf32>
    %c125 = arith.constant 125 : index
    %796 = memref.load %arg4[%c125] : memref<288xf32, #tpu.memory_space<smem>>
    %797 = vector.extract_strided_slice %621 {offsets = [1, 0, 0], sizes = [1, 16, 16], strides = [1, 1, 1]} : vector<4x16x16xf32> to vector<1x16x16xf32>
    %798 = vector.shape_cast %797 : vector<1x16x16xf32> to vector<16x16xf32>
    %799 = vector.broadcast %796 : f32 to vector<16x16xf32>
    %800 = arith.mulf %799, %798 : vector<16x16xf32>
    %801 = arith.addf %795, %800 : vector<16x16xf32>
    %c126 = arith.constant 126 : index
    %802 = memref.load %arg4[%c126] : memref<288xf32, #tpu.memory_space<smem>>
    %803 = vector.extract_strided_slice %621 {offsets = [2, 0, 0], sizes = [1, 16, 16], strides = [1, 1, 1]} : vector<4x16x16xf32> to vector<1x16x16xf32>
    %804 = vector.shape_cast %803 : vector<1x16x16xf32> to vector<16x16xf32>
    %805 = vector.broadcast %802 : f32 to vector<16x16xf32>
    %806 = arith.mulf %805, %804 : vector<16x16xf32>
    %807 = arith.addf %801, %806 : vector<16x16xf32>
    %c127 = arith.constant 127 : index
    %808 = memref.load %arg4[%c127] : memref<288xf32, #tpu.memory_space<smem>>
    %809 = vector.extract_strided_slice %621 {offsets = [3, 0, 0], sizes = [1, 16, 16], strides = [1, 1, 1]} : vector<4x16x16xf32> to vector<1x16x16xf32>
    %810 = vector.shape_cast %809 : vector<1x16x16xf32> to vector<16x16xf32>
    %811 = vector.broadcast %808 : f32 to vector<16x16xf32>
    %812 = arith.mulf %811, %810 : vector<16x16xf32>
    %813 = arith.addf %807, %812 : vector<16x16xf32>
    %c1_35 = arith.constant 1 : index
    %c0_36 = arith.constant 0 : index
    %c0_37 = arith.constant 0 : index
    %814 = vector.load %arg3[%c1_35, %c0_36, %c0_37] : memref<3x16x16xf32, #tpu.memory_space<vmem>>, vector<1x16x16xf32>
    %815 = vector.shape_cast %814 : vector<1x16x16xf32> to vector<16x16xf32>
    %816 = vector.shape_cast %815 : vector<16x16xf32> to vector<1x16x16xf32>
    %817 = vector.shape_cast %816 : vector<1x16x16xf32> to vector<1x16x16xf32>
    %818 = vector.broadcast %817 : vector<1x16x16xf32> to vector<4x16x16xf32>
    "tpu.trace_start"() <{level = 10 : i32, message = "cah,chw->caw"}> : () -> ()
    %cst_38 = arith.constant dense<0.000000e+00> : vector<4x16x16xf32>
    %819 = tpu.matmul %615, %818, %cst_38 {dimension_numbers = #tpu.dot_dimension_numbers<[2], [1], [1], [2], [0, 0, 0, 1, 1, 2], [0], [0]>} : vector<4x16x16xf32>, vector<4x16x16xf32>, vector<4x16x16xf32> -> vector<4x16x16xf32>
    "tpu.trace_stop"() : () -> ()
    %c128 = arith.constant 128 : index
    %820 = memref.load %arg4[%c128] : memref<288xf32, #tpu.memory_space<smem>>
    %821 = vector.extract_strided_slice %819 {offsets = [0, 0, 0], sizes = [1, 16, 16], strides = [1, 1, 1]} : vector<4x16x16xf32> to vector<1x16x16xf32>
    %822 = vector.shape_cast %821 : vector<1x16x16xf32> to vector<16x16xf32>
    %823 = vector.broadcast %820 : f32 to vector<16x16xf32>
    %824 = arith.mulf %823, %822 : vector<16x16xf32>
    %825 = arith.addf %645, %824 : vector<16x16xf32>
    %c129 = arith.constant 129 : index
    %826 = memref.load %arg4[%c129] : memref<288xf32, #tpu.memory_space<smem>>
    %827 = vector.extract_strided_slice %819 {offsets = [1, 0, 0], sizes = [1, 16, 16], strides = [1, 1, 1]} : vector<4x16x16xf32> to vector<1x16x16xf32>
    %828 = vector.shape_cast %827 : vector<1x16x16xf32> to vector<16x16xf32>
    %829 = vector.broadcast %826 : f32 to vector<16x16xf32>
    %830 = arith.mulf %829, %828 : vector<16x16xf32>
    %831 = arith.addf %825, %830 : vector<16x16xf32>
    %c130 = arith.constant 130 : index
    %832 = memref.load %arg4[%c130] : memref<288xf32, #tpu.memory_space<smem>>
    %833 = vector.extract_strided_slice %819 {offsets = [2, 0, 0], sizes = [1, 16, 16], strides = [1, 1, 1]} : vector<4x16x16xf32> to vector<1x16x16xf32>
    %834 = vector.shape_cast %833 : vector<1x16x16xf32> to vector<16x16xf32>
    %835 = vector.broadcast %832 : f32 to vector<16x16xf32>
    %836 = arith.mulf %835, %834 : vector<16x16xf32>
    %837 = arith.addf %831, %836 : vector<16x16xf32>
    %c131 = arith.constant 131 : index
    %838 = memref.load %arg4[%c131] : memref<288xf32, #tpu.memory_space<smem>>
    %839 = vector.extract_strided_slice %819 {offsets = [3, 0, 0], sizes = [1, 16, 16], strides = [1, 1, 1]} : vector<4x16x16xf32> to vector<1x16x16xf32>
    %840 = vector.shape_cast %839 : vector<1x16x16xf32> to vector<16x16xf32>
    %841 = vector.broadcast %838 : f32 to vector<16x16xf32>
    %842 = arith.mulf %841, %840 : vector<16x16xf32>
    %843 = arith.addf %837, %842 : vector<16x16xf32>
    %c132 = arith.constant 132 : index
    %844 = memref.load %arg4[%c132] : memref<288xf32, #tpu.memory_space<smem>>
    %845 = vector.extract_strided_slice %819 {offsets = [0, 0, 0], sizes = [1, 16, 16], strides = [1, 1, 1]} : vector<4x16x16xf32> to vector<1x16x16xf32>
    %846 = vector.shape_cast %845 : vector<1x16x16xf32> to vector<16x16xf32>
    %847 = vector.broadcast %844 : f32 to vector<16x16xf32>
    %848 = arith.mulf %847, %846 : vector<16x16xf32>
    %849 = arith.addf %669, %848 : vector<16x16xf32>
    %c133 = arith.constant 133 : index
    %850 = memref.load %arg4[%c133] : memref<288xf32, #tpu.memory_space<smem>>
    %851 = vector.extract_strided_slice %819 {offsets = [1, 0, 0], sizes = [1, 16, 16], strides = [1, 1, 1]} : vector<4x16x16xf32> to vector<1x16x16xf32>
    %852 = vector.shape_cast %851 : vector<1x16x16xf32> to vector<16x16xf32>
    %853 = vector.broadcast %850 : f32 to vector<16x16xf32>
    %854 = arith.mulf %853, %852 : vector<16x16xf32>
    %855 = arith.addf %849, %854 : vector<16x16xf32>
    %c134 = arith.constant 134 : index
    %856 = memref.load %arg4[%c134] : memref<288xf32, #tpu.memory_space<smem>>
    %857 = vector.extract_strided_slice %819 {offsets = [2, 0, 0], sizes = [1, 16, 16], strides = [1, 1, 1]} : vector<4x16x16xf32> to vector<1x16x16xf32>
    %858 = vector.shape_cast %857 : vector<1x16x16xf32> to vector<16x16xf32>
    %859 = vector.broadcast %856 : f32 to vector<16x16xf32>
    %860 = arith.mulf %859, %858 : vector<16x16xf32>
    %861 = arith.addf %855, %860 : vector<16x16xf32>
    %c135 = arith.constant 135 : index
    %862 = memref.load %arg4[%c135] : memref<288xf32, #tpu.memory_space<smem>>
    %863 = vector.extract_strided_slice %819 {offsets = [3, 0, 0], sizes = [1, 16, 16], strides = [1, 1, 1]} : vector<4x16x16xf32> to vector<1x16x16xf32>
    %864 = vector.shape_cast %863 : vector<1x16x16xf32> to vector<16x16xf32>
    %865 = vector.broadcast %862 : f32 to vector<16x16xf32>
    %866 = arith.mulf %865, %864 : vector<16x16xf32>
    %867 = arith.addf %861, %866 : vector<16x16xf32>
    %c136 = arith.constant 136 : index
    %868 = memref.load %arg4[%c136] : memref<288xf32, #tpu.memory_space<smem>>
    %869 = vector.extract_strided_slice %819 {offsets = [0, 0, 0], sizes = [1, 16, 16], strides = [1, 1, 1]} : vector<4x16x16xf32> to vector<1x16x16xf32>
    %870 = vector.shape_cast %869 : vector<1x16x16xf32> to vector<16x16xf32>
    %871 = vector.broadcast %868 : f32 to vector<16x16xf32>
    %872 = arith.mulf %871, %870 : vector<16x16xf32>
    %873 = arith.addf %693, %872 : vector<16x16xf32>
    %c137 = arith.constant 137 : index
    %874 = memref.load %arg4[%c137] : memref<288xf32, #tpu.memory_space<smem>>
    %875 = vector.extract_strided_slice %819 {offsets = [1, 0, 0], sizes = [1, 16, 16], strides = [1, 1, 1]} : vector<4x16x16xf32> to vector<1x16x16xf32>
    %876 = vector.shape_cast %875 : vector<1x16x16xf32> to vector<16x16xf32>
    %877 = vector.broadcast %874 : f32 to vector<16x16xf32>
    %878 = arith.mulf %877, %876 : vector<16x16xf32>
    %879 = arith.addf %873, %878 : vector<16x16xf32>
    %c138 = arith.constant 138 : index
    %880 = memref.load %arg4[%c138] : memref<288xf32, #tpu.memory_space<smem>>
    %881 = vector.extract_strided_slice %819 {offsets = [2, 0, 0], sizes = [1, 16, 16], strides = [1, 1, 1]} : vector<4x16x16xf32> to vector<1x16x16xf32>
    %882 = vector.shape_cast %881 : vector<1x16x16xf32> to vector<16x16xf32>
    %883 = vector.broadcast %880 : f32 to vector<16x16xf32>
    %884 = arith.mulf %883, %882 : vector<16x16xf32>
    %885 = arith.addf %879, %884 : vector<16x16xf32>
    %c139 = arith.constant 139 : index
    %886 = memref.load %arg4[%c139] : memref<288xf32, #tpu.memory_space<smem>>
    %887 = vector.extract_strided_slice %819 {offsets = [3, 0, 0], sizes = [1, 16, 16], strides = [1, 1, 1]} : vector<4x16x16xf32> to vector<1x16x16xf32>
    %888 = vector.shape_cast %887 : vector<1x16x16xf32> to vector<16x16xf32>
    %889 = vector.broadcast %886 : f32 to vector<16x16xf32>
    %890 = arith.mulf %889, %888 : vector<16x16xf32>
    %891 = arith.addf %885, %890 : vector<16x16xf32>
    %c140 = arith.constant 140 : index
    %892 = memref.load %arg4[%c140] : memref<288xf32, #tpu.memory_space<smem>>
    %893 = vector.extract_strided_slice %819 {offsets = [0, 0, 0], sizes = [1, 16, 16], strides = [1, 1, 1]} : vector<4x16x16xf32> to vector<1x16x16xf32>
    %894 = vector.shape_cast %893 : vector<1x16x16xf32> to vector<16x16xf32>
    %895 = vector.broadcast %892 : f32 to vector<16x16xf32>
    %896 = arith.mulf %895, %894 : vector<16x16xf32>
    %897 = arith.addf %717, %896 : vector<16x16xf32>
    %c141 = arith.constant 141 : index
    %898 = memref.load %arg4[%c141] : memref<288xf32, #tpu.memory_space<smem>>
    %899 = vector.extract_strided_slice %819 {offsets = [1, 0, 0], sizes = [1, 16, 16], strides = [1, 1, 1]} : vector<4x16x16xf32> to vector<1x16x16xf32>
    %900 = vector.shape_cast %899 : vector<1x16x16xf32> to vector<16x16xf32>
    %901 = vector.broadcast %898 : f32 to vector<16x16xf32>
    %902 = arith.mulf %901, %900 : vector<16x16xf32>
    %903 = arith.addf %897, %902 : vector<16x16xf32>
    %c142 = arith.constant 142 : index
    %904 = memref.load %arg4[%c142] : memref<288xf32, #tpu.memory_space<smem>>
    %905 = vector.extract_strided_slice %819 {offsets = [2, 0, 0], sizes = [1, 16, 16], strides = [1, 1, 1]} : vector<4x16x16xf32> to vector<1x16x16xf32>
    %906 = vector.shape_cast %905 : vector<1x16x16xf32> to vector<16x16xf32>
    %907 = vector.broadcast %904 : f32 to vector<16x16xf32>
    %908 = arith.mulf %907, %906 : vector<16x16xf32>
    %909 = arith.addf %903, %908 : vector<16x16xf32>
    %c143 = arith.constant 143 : index
    %910 = memref.load %arg4[%c143] : memref<288xf32, #tpu.memory_space<smem>>
    %911 = vector.extract_strided_slice %819 {offsets = [3, 0, 0], sizes = [1, 16, 16], strides = [1, 1, 1]} : vector<4x16x16xf32> to vector<1x16x16xf32>
    %912 = vector.shape_cast %911 : vector<1x16x16xf32> to vector<16x16xf32>
    %913 = vector.broadcast %910 : f32 to vector<16x16xf32>
    %914 = arith.mulf %913, %912 : vector<16x16xf32>
    %915 = arith.addf %909, %914 : vector<16x16xf32>
    %c144 = arith.constant 144 : index
    %916 = memref.load %arg4[%c144] : memref<288xf32, #tpu.memory_space<smem>>
    %917 = vector.extract_strided_slice %819 {offsets = [0, 0, 0], sizes = [1, 16, 16], strides = [1, 1, 1]} : vector<4x16x16xf32> to vector<1x16x16xf32>
    %918 = vector.shape_cast %917 : vector<1x16x16xf32> to vector<16x16xf32>
    %919 = vector.broadcast %916 : f32 to vector<16x16xf32>
    %920 = arith.mulf %919, %918 : vector<16x16xf32>
    %921 = arith.addf %741, %920 : vector<16x16xf32>
    %c145 = arith.constant 145 : index
    %922 = memref.load %arg4[%c145] : memref<288xf32, #tpu.memory_space<smem>>
    %923 = vector.extract_strided_slice %819 {offsets = [1, 0, 0], sizes = [1, 16, 16], strides = [1, 1, 1]} : vector<4x16x16xf32> to vector<1x16x16xf32>
    %924 = vector.shape_cast %923 : vector<1x16x16xf32> to vector<16x16xf32>
    %925 = vector.broadcast %922 : f32 to vector<16x16xf32>
    %926 = arith.mulf %925, %924 : vector<16x16xf32>
    %927 = arith.addf %921, %926 : vector<16x16xf32>
    %c146 = arith.constant 146 : index
    %928 = memref.load %arg4[%c146] : memref<288xf32, #tpu.memory_space<smem>>
    %929 = vector.extract_strided_slice %819 {offsets = [2, 0, 0], sizes = [1, 16, 16], strides = [1, 1, 1]} : vector<4x16x16xf32> to vector<1x16x16xf32>
    %930 = vector.shape_cast %929 : vector<1x16x16xf32> to vector<16x16xf32>
    %931 = vector.broadcast %928 : f32 to vector<16x16xf32>
    %932 = arith.mulf %931, %930 : vector<16x16xf32>
    %933 = arith.addf %927, %932 : vector<16x16xf32>
    %c147 = arith.constant 147 : index
    %934 = memref.load %arg4[%c147] : memref<288xf32, #tpu.memory_space<smem>>
    %935 = vector.extract_strided_slice %819 {offsets = [3, 0, 0], sizes = [1, 16, 16], strides = [1, 1, 1]} : vector<4x16x16xf32> to vector<1x16x16xf32>
    %936 = vector.shape_cast %935 : vector<1x16x16xf32> to vector<16x16xf32>
    %937 = vector.broadcast %934 : f32 to vector<16x16xf32>
    %938 = arith.mulf %937, %936 : vector<16x16xf32>
    %939 = arith.addf %933, %938 : vector<16x16xf32>
    %c148 = arith.constant 148 : index
    %940 = memref.load %arg4[%c148] : memref<288xf32, #tpu.memory_space<smem>>
    %941 = vector.extract_strided_slice %819 {offsets = [0, 0, 0], sizes = [1, 16, 16], strides = [1, 1, 1]} : vector<4x16x16xf32> to vector<1x16x16xf32>
    %942 = vector.shape_cast %941 : vector<1x16x16xf32> to vector<16x16xf32>
    %943 = vector.broadcast %940 : f32 to vector<16x16xf32>
    %944 = arith.mulf %943, %942 : vector<16x16xf32>
    %945 = arith.addf %765, %944 : vector<16x16xf32>
    %c149 = arith.constant 149 : index
    %946 = memref.load %arg4[%c149] : memref<288xf32, #tpu.memory_space<smem>>
    %947 = vector.extract_strided_slice %819 {offsets = [1, 0, 0], sizes = [1, 16, 16], strides = [1, 1, 1]} : vector<4x16x16xf32> to vector<1x16x16xf32>
    %948 = vector.shape_cast %947 : vector<1x16x16xf32> to vector<16x16xf32>
    %949 = vector.broadcast %946 : f32 to vector<16x16xf32>
    %950 = arith.mulf %949, %948 : vector<16x16xf32>
    %951 = arith.addf %945, %950 : vector<16x16xf32>
    %c150 = arith.constant 150 : index
    %952 = memref.load %arg4[%c150] : memref<288xf32, #tpu.memory_space<smem>>
    %953 = vector.extract_strided_slice %819 {offsets = [2, 0, 0], sizes = [1, 16, 16], strides = [1, 1, 1]} : vector<4x16x16xf32> to vector<1x16x16xf32>
    %954 = vector.shape_cast %953 : vector<1x16x16xf32> to vector<16x16xf32>
    %955 = vector.broadcast %952 : f32 to vector<16x16xf32>
    %956 = arith.mulf %955, %954 : vector<16x16xf32>
    %957 = arith.addf %951, %956 : vector<16x16xf32>
    %c151 = arith.constant 151 : index
    %958 = memref.load %arg4[%c151] : memref<288xf32, #tpu.memory_space<smem>>
    %959 = vector.extract_strided_slice %819 {offsets = [3, 0, 0], sizes = [1, 16, 16], strides = [1, 1, 1]} : vector<4x16x16xf32> to vector<1x16x16xf32>
    %960 = vector.shape_cast %959 : vector<1x16x16xf32> to vector<16x16xf32>
    %961 = vector.broadcast %958 : f32 to vector<16x16xf32>
    %962 = arith.mulf %961, %960 : vector<16x16xf32>
    %963 = arith.addf %957, %962 : vector<16x16xf32>
    %c152 = arith.constant 152 : index
    %964 = memref.load %arg4[%c152] : memref<288xf32, #tpu.memory_space<smem>>
    %965 = vector.extract_strided_slice %819 {offsets = [0, 0, 0], sizes = [1, 16, 16], strides = [1, 1, 1]} : vector<4x16x16xf32> to vector<1x16x16xf32>
    %966 = vector.shape_cast %965 : vector<1x16x16xf32> to vector<16x16xf32>
    %967 = vector.broadcast %964 : f32 to vector<16x16xf32>
    %968 = arith.mulf %967, %966 : vector<16x16xf32>
    %969 = arith.addf %789, %968 : vector<16x16xf32>
    %c153 = arith.constant 153 : index
    %970 = memref.load %arg4[%c153] : memref<288xf32, #tpu.memory_space<smem>>
    %971 = vector.extract_strided_slice %819 {offsets = [1, 0, 0], sizes = [1, 16, 16], strides = [1, 1, 1]} : vector<4x16x16xf32> to vector<1x16x16xf32>
    %972 = vector.shape_cast %971 : vector<1x16x16xf32> to vector<16x16xf32>
    %973 = vector.broadcast %970 : f32 to vector<16x16xf32>
    %974 = arith.mulf %973, %972 : vector<16x16xf32>
    %975 = arith.addf %969, %974 : vector<16x16xf32>
    %c154 = arith.constant 154 : index
    %976 = memref.load %arg4[%c154] : memref<288xf32, #tpu.memory_space<smem>>
    %977 = vector.extract_strided_slice %819 {offsets = [2, 0, 0], sizes = [1, 16, 16], strides = [1, 1, 1]} : vector<4x16x16xf32> to vector<1x16x16xf32>
    %978 = vector.shape_cast %977 : vector<1x16x16xf32> to vector<16x16xf32>
    %979 = vector.broadcast %976 : f32 to vector<16x16xf32>
    %980 = arith.mulf %979, %978 : vector<16x16xf32>
    %981 = arith.addf %975, %980 : vector<16x16xf32>
    %c155 = arith.constant 155 : index
    %982 = memref.load %arg4[%c155] : memref<288xf32, #tpu.memory_space<smem>>
    %983 = vector.extract_strided_slice %819 {offsets = [3, 0, 0], sizes = [1, 16, 16], strides = [1, 1, 1]} : vector<4x16x16xf32> to vector<1x16x16xf32>
    %984 = vector.shape_cast %983 : vector<1x16x16xf32> to vector<16x16xf32>
    %985 = vector.broadcast %982 : f32 to vector<16x16xf32>
    %986 = arith.mulf %985, %984 : vector<16x16xf32>
    %987 = arith.addf %981, %986 : vector<16x16xf32>
    %c156 = arith.constant 156 : index
    %988 = memref.load %arg4[%c156] : memref<288xf32, #tpu.memory_space<smem>>
    %989 = vector.extract_strided_slice %819 {offsets = [0, 0, 0], sizes = [1, 16, 16], strides = [1, 1, 1]} : vector<4x16x16xf32> to vector<1x16x16xf32>
    %990 = vector.shape_cast %989 : vector<1x16x16xf32> to vector<16x16xf32>
    %991 = vector.broadcast %988 : f32 to vector<16x16xf32>
    %992 = arith.mulf %991, %990 : vector<16x16xf32>
    %993 = arith.addf %813, %992 : vector<16x16xf32>
    %c157 = arith.constant 157 : index
    %994 = memref.load %arg4[%c157] : memref<288xf32, #tpu.memory_space<smem>>
    %995 = vector.extract_strided_slice %819 {offsets = [1, 0, 0], sizes = [1, 16, 16], strides = [1, 1, 1]} : vector<4x16x16xf32> to vector<1x16x16xf32>
    %996 = vector.shape_cast %995 : vector<1x16x16xf32> to vector<16x16xf32>
    %997 = vector.broadcast %994 : f32 to vector<16x16xf32>
    %998 = arith.mulf %997, %996 : vector<16x16xf32>
    %999 = arith.addf %993, %998 : vector<16x16xf32>
    %c158 = arith.constant 158 : index
    %1000 = memref.load %arg4[%c158] : memref<288xf32, #tpu.memory_space<smem>>
    %1001 = vector.extract_strided_slice %819 {offsets = [2, 0, 0], sizes = [1, 16, 16], strides = [1, 1, 1]} : vector<4x16x16xf32> to vector<1x16x16xf32>
    %1002 = vector.shape_cast %1001 : vector<1x16x16xf32> to vector<16x16xf32>
    %1003 = vector.broadcast %1000 : f32 to vector<16x16xf32>
    %1004 = arith.mulf %1003, %1002 : vector<16x16xf32>
    %1005 = arith.addf %999, %1004 : vector<16x16xf32>
    %c159 = arith.constant 159 : index
    %1006 = memref.load %arg4[%c159] : memref<288xf32, #tpu.memory_space<smem>>
    %1007 = vector.extract_strided_slice %819 {offsets = [3, 0, 0], sizes = [1, 16, 16], strides = [1, 1, 1]} : vector<4x16x16xf32> to vector<1x16x16xf32>
    %1008 = vector.shape_cast %1007 : vector<1x16x16xf32> to vector<16x16xf32>
    %1009 = vector.broadcast %1006 : f32 to vector<16x16xf32>
    %1010 = arith.mulf %1009, %1008 : vector<16x16xf32>
    %1011 = arith.addf %1005, %1010 : vector<16x16xf32>
    %c2_39 = arith.constant 2 : index
    %c0_40 = arith.constant 0 : index
    %c0_41 = arith.constant 0 : index
    %1012 = vector.load %arg3[%c2_39, %c0_40, %c0_41] : memref<3x16x16xf32, #tpu.memory_space<vmem>>, vector<1x16x16xf32>
    %1013 = vector.shape_cast %1012 : vector<1x16x16xf32> to vector<16x16xf32>
    %1014 = vector.shape_cast %1013 : vector<16x16xf32> to vector<1x16x16xf32>
    %1015 = vector.shape_cast %1014 : vector<1x16x16xf32> to vector<1x16x16xf32>
    %1016 = vector.broadcast %1015 : vector<1x16x16xf32> to vector<4x16x16xf32>
    "tpu.trace_start"() <{level = 10 : i32, message = "cah,chw->caw"}> : () -> ()
    %cst_42 = arith.constant dense<0.000000e+00> : vector<4x16x16xf32>
    %1017 = tpu.matmul %615, %1016, %cst_42 {dimension_numbers = #tpu.dot_dimension_numbers<[2], [1], [1], [2], [0, 0, 0, 1, 1, 2], [0], [0]>} : vector<4x16x16xf32>, vector<4x16x16xf32>, vector<4x16x16xf32> -> vector<4x16x16xf32>
    "tpu.trace_stop"() : () -> ()
    %c160 = arith.constant 160 : index
    %1018 = memref.load %arg4[%c160] : memref<288xf32, #tpu.memory_space<smem>>
    %1019 = vector.extract_strided_slice %1017 {offsets = [0, 0, 0], sizes = [1, 16, 16], strides = [1, 1, 1]} : vector<4x16x16xf32> to vector<1x16x16xf32>
    %1020 = vector.shape_cast %1019 : vector<1x16x16xf32> to vector<16x16xf32>
    %1021 = vector.broadcast %1018 : f32 to vector<16x16xf32>
    %1022 = arith.mulf %1021, %1020 : vector<16x16xf32>
    %1023 = arith.addf %843, %1022 : vector<16x16xf32>
    %c161 = arith.constant 161 : index
    %1024 = memref.load %arg4[%c161] : memref<288xf32, #tpu.memory_space<smem>>
    %1025 = vector.extract_strided_slice %1017 {offsets = [1, 0, 0], sizes = [1, 16, 16], strides = [1, 1, 1]} : vector<4x16x16xf32> to vector<1x16x16xf32>
    %1026 = vector.shape_cast %1025 : vector<1x16x16xf32> to vector<16x16xf32>
    %1027 = vector.broadcast %1024 : f32 to vector<16x16xf32>
    %1028 = arith.mulf %1027, %1026 : vector<16x16xf32>
    %1029 = arith.addf %1023, %1028 : vector<16x16xf32>
    %c162 = arith.constant 162 : index
    %1030 = memref.load %arg4[%c162] : memref<288xf32, #tpu.memory_space<smem>>
    %1031 = vector.extract_strided_slice %1017 {offsets = [2, 0, 0], sizes = [1, 16, 16], strides = [1, 1, 1]} : vector<4x16x16xf32> to vector<1x16x16xf32>
    %1032 = vector.shape_cast %1031 : vector<1x16x16xf32> to vector<16x16xf32>
    %1033 = vector.broadcast %1030 : f32 to vector<16x16xf32>
    %1034 = arith.mulf %1033, %1032 : vector<16x16xf32>
    %1035 = arith.addf %1029, %1034 : vector<16x16xf32>
    %c163 = arith.constant 163 : index
    %1036 = memref.load %arg4[%c163] : memref<288xf32, #tpu.memory_space<smem>>
    %1037 = vector.extract_strided_slice %1017 {offsets = [3, 0, 0], sizes = [1, 16, 16], strides = [1, 1, 1]} : vector<4x16x16xf32> to vector<1x16x16xf32>
    %1038 = vector.shape_cast %1037 : vector<1x16x16xf32> to vector<16x16xf32>
    %1039 = vector.broadcast %1036 : f32 to vector<16x16xf32>
    %1040 = arith.mulf %1039, %1038 : vector<16x16xf32>
    %1041 = arith.addf %1035, %1040 : vector<16x16xf32>
    %c164 = arith.constant 164 : index
    %1042 = memref.load %arg4[%c164] : memref<288xf32, #tpu.memory_space<smem>>
    %1043 = vector.extract_strided_slice %1017 {offsets = [0, 0, 0], sizes = [1, 16, 16], strides = [1, 1, 1]} : vector<4x16x16xf32> to vector<1x16x16xf32>
    %1044 = vector.shape_cast %1043 : vector<1x16x16xf32> to vector<16x16xf32>
    %1045 = vector.broadcast %1042 : f32 to vector<16x16xf32>
    %1046 = arith.mulf %1045, %1044 : vector<16x16xf32>
    %1047 = arith.addf %867, %1046 : vector<16x16xf32>
    %c165 = arith.constant 165 : index
    %1048 = memref.load %arg4[%c165] : memref<288xf32, #tpu.memory_space<smem>>
    %1049 = vector.extract_strided_slice %1017 {offsets = [1, 0, 0], sizes = [1, 16, 16], strides = [1, 1, 1]} : vector<4x16x16xf32> to vector<1x16x16xf32>
    %1050 = vector.shape_cast %1049 : vector<1x16x16xf32> to vector<16x16xf32>
    %1051 = vector.broadcast %1048 : f32 to vector<16x16xf32>
    %1052 = arith.mulf %1051, %1050 : vector<16x16xf32>
    %1053 = arith.addf %1047, %1052 : vector<16x16xf32>
    %c166 = arith.constant 166 : index
    %1054 = memref.load %arg4[%c166] : memref<288xf32, #tpu.memory_space<smem>>
    %1055 = vector.extract_strided_slice %1017 {offsets = [2, 0, 0], sizes = [1, 16, 16], strides = [1, 1, 1]} : vector<4x16x16xf32> to vector<1x16x16xf32>
    %1056 = vector.shape_cast %1055 : vector<1x16x16xf32> to vector<16x16xf32>
    %1057 = vector.broadcast %1054 : f32 to vector<16x16xf32>
    %1058 = arith.mulf %1057, %1056 : vector<16x16xf32>
    %1059 = arith.addf %1053, %1058 : vector<16x16xf32>
    %c167 = arith.constant 167 : index
    %1060 = memref.load %arg4[%c167] : memref<288xf32, #tpu.memory_space<smem>>
    %1061 = vector.extract_strided_slice %1017 {offsets = [3, 0, 0], sizes = [1, 16, 16], strides = [1, 1, 1]} : vector<4x16x16xf32> to vector<1x16x16xf32>
    %1062 = vector.shape_cast %1061 : vector<1x16x16xf32> to vector<16x16xf32>
    %1063 = vector.broadcast %1060 : f32 to vector<16x16xf32>
    %1064 = arith.mulf %1063, %1062 : vector<16x16xf32>
    %1065 = arith.addf %1059, %1064 : vector<16x16xf32>
    %c168 = arith.constant 168 : index
    %1066 = memref.load %arg4[%c168] : memref<288xf32, #tpu.memory_space<smem>>
    %1067 = vector.extract_strided_slice %1017 {offsets = [0, 0, 0], sizes = [1, 16, 16], strides = [1, 1, 1]} : vector<4x16x16xf32> to vector<1x16x16xf32>
    %1068 = vector.shape_cast %1067 : vector<1x16x16xf32> to vector<16x16xf32>
    %1069 = vector.broadcast %1066 : f32 to vector<16x16xf32>
    %1070 = arith.mulf %1069, %1068 : vector<16x16xf32>
    %1071 = arith.addf %891, %1070 : vector<16x16xf32>
    %c169 = arith.constant 169 : index
    %1072 = memref.load %arg4[%c169] : memref<288xf32, #tpu.memory_space<smem>>
    %1073 = vector.extract_strided_slice %1017 {offsets = [1, 0, 0], sizes = [1, 16, 16], strides = [1, 1, 1]} : vector<4x16x16xf32> to vector<1x16x16xf32>
    %1074 = vector.shape_cast %1073 : vector<1x16x16xf32> to vector<16x16xf32>
    %1075 = vector.broadcast %1072 : f32 to vector<16x16xf32>
    %1076 = arith.mulf %1075, %1074 : vector<16x16xf32>
    %1077 = arith.addf %1071, %1076 : vector<16x16xf32>
    %c170 = arith.constant 170 : index
    %1078 = memref.load %arg4[%c170] : memref<288xf32, #tpu.memory_space<smem>>
    %1079 = vector.extract_strided_slice %1017 {offsets = [2, 0, 0], sizes = [1, 16, 16], strides = [1, 1, 1]} : vector<4x16x16xf32> to vector<1x16x16xf32>
    %1080 = vector.shape_cast %1079 : vector<1x16x16xf32> to vector<16x16xf32>
    %1081 = vector.broadcast %1078 : f32 to vector<16x16xf32>
    %1082 = arith.mulf %1081, %1080 : vector<16x16xf32>
    %1083 = arith.addf %1077, %1082 : vector<16x16xf32>
    %c171 = arith.constant 171 : index
    %1084 = memref.load %arg4[%c171] : memref<288xf32, #tpu.memory_space<smem>>
    %1085 = vector.extract_strided_slice %1017 {offsets = [3, 0, 0], sizes = [1, 16, 16], strides = [1, 1, 1]} : vector<4x16x16xf32> to vector<1x16x16xf32>
    %1086 = vector.shape_cast %1085 : vector<1x16x16xf32> to vector<16x16xf32>
    %1087 = vector.broadcast %1084 : f32 to vector<16x16xf32>
    %1088 = arith.mulf %1087, %1086 : vector<16x16xf32>
    %1089 = arith.addf %1083, %1088 : vector<16x16xf32>
    %c172 = arith.constant 172 : index
    %1090 = memref.load %arg4[%c172] : memref<288xf32, #tpu.memory_space<smem>>
    %1091 = vector.extract_strided_slice %1017 {offsets = [0, 0, 0], sizes = [1, 16, 16], strides = [1, 1, 1]} : vector<4x16x16xf32> to vector<1x16x16xf32>
    %1092 = vector.shape_cast %1091 : vector<1x16x16xf32> to vector<16x16xf32>
    %1093 = vector.broadcast %1090 : f32 to vector<16x16xf32>
    %1094 = arith.mulf %1093, %1092 : vector<16x16xf32>
    %1095 = arith.addf %915, %1094 : vector<16x16xf32>
    %c173 = arith.constant 173 : index
    %1096 = memref.load %arg4[%c173] : memref<288xf32, #tpu.memory_space<smem>>
    %1097 = vector.extract_strided_slice %1017 {offsets = [1, 0, 0], sizes = [1, 16, 16], strides = [1, 1, 1]} : vector<4x16x16xf32> to vector<1x16x16xf32>
    %1098 = vector.shape_cast %1097 : vector<1x16x16xf32> to vector<16x16xf32>
    %1099 = vector.broadcast %1096 : f32 to vector<16x16xf32>
    %1100 = arith.mulf %1099, %1098 : vector<16x16xf32>
    %1101 = arith.addf %1095, %1100 : vector<16x16xf32>
    %c174 = arith.constant 174 : index
    %1102 = memref.load %arg4[%c174] : memref<288xf32, #tpu.memory_space<smem>>
    %1103 = vector.extract_strided_slice %1017 {offsets = [2, 0, 0], sizes = [1, 16, 16], strides = [1, 1, 1]} : vector<4x16x16xf32> to vector<1x16x16xf32>
    %1104 = vector.shape_cast %1103 : vector<1x16x16xf32> to vector<16x16xf32>
    %1105 = vector.broadcast %1102 : f32 to vector<16x16xf32>
    %1106 = arith.mulf %1105, %1104 : vector<16x16xf32>
    %1107 = arith.addf %1101, %1106 : vector<16x16xf32>
    %c175 = arith.constant 175 : index
    %1108 = memref.load %arg4[%c175] : memref<288xf32, #tpu.memory_space<smem>>
    %1109 = vector.extract_strided_slice %1017 {offsets = [3, 0, 0], sizes = [1, 16, 16], strides = [1, 1, 1]} : vector<4x16x16xf32> to vector<1x16x16xf32>
    %1110 = vector.shape_cast %1109 : vector<1x16x16xf32> to vector<16x16xf32>
    %1111 = vector.broadcast %1108 : f32 to vector<16x16xf32>
    %1112 = arith.mulf %1111, %1110 : vector<16x16xf32>
    %1113 = arith.addf %1107, %1112 : vector<16x16xf32>
    %c176 = arith.constant 176 : index
    %1114 = memref.load %arg4[%c176] : memref<288xf32, #tpu.memory_space<smem>>
    %1115 = vector.extract_strided_slice %1017 {offsets = [0, 0, 0], sizes = [1, 16, 16], strides = [1, 1, 1]} : vector<4x16x16xf32> to vector<1x16x16xf32>
    %1116 = vector.shape_cast %1115 : vector<1x16x16xf32> to vector<16x16xf32>
    %1117 = vector.broadcast %1114 : f32 to vector<16x16xf32>
    %1118 = arith.mulf %1117, %1116 : vector<16x16xf32>
    %1119 = arith.addf %939, %1118 : vector<16x16xf32>
    %c177 = arith.constant 177 : index
    %1120 = memref.load %arg4[%c177] : memref<288xf32, #tpu.memory_space<smem>>
    %1121 = vector.extract_strided_slice %1017 {offsets = [1, 0, 0], sizes = [1, 16, 16], strides = [1, 1, 1]} : vector<4x16x16xf32> to vector<1x16x16xf32>
    %1122 = vector.shape_cast %1121 : vector<1x16x16xf32> to vector<16x16xf32>
    %1123 = vector.broadcast %1120 : f32 to vector<16x16xf32>
    %1124 = arith.mulf %1123, %1122 : vector<16x16xf32>
    %1125 = arith.addf %1119, %1124 : vector<16x16xf32>
    %c178 = arith.constant 178 : index
    %1126 = memref.load %arg4[%c178] : memref<288xf32, #tpu.memory_space<smem>>
    %1127 = vector.extract_strided_slice %1017 {offsets = [2, 0, 0], sizes = [1, 16, 16], strides = [1, 1, 1]} : vector<4x16x16xf32> to vector<1x16x16xf32>
    %1128 = vector.shape_cast %1127 : vector<1x16x16xf32> to vector<16x16xf32>
    %1129 = vector.broadcast %1126 : f32 to vector<16x16xf32>
    %1130 = arith.mulf %1129, %1128 : vector<16x16xf32>
    %1131 = arith.addf %1125, %1130 : vector<16x16xf32>
    %c179 = arith.constant 179 : index
    %1132 = memref.load %arg4[%c179] : memref<288xf32, #tpu.memory_space<smem>>
    %1133 = vector.extract_strided_slice %1017 {offsets = [3, 0, 0], sizes = [1, 16, 16], strides = [1, 1, 1]} : vector<4x16x16xf32> to vector<1x16x16xf32>
    %1134 = vector.shape_cast %1133 : vector<1x16x16xf32> to vector<16x16xf32>
    %1135 = vector.broadcast %1132 : f32 to vector<16x16xf32>
    %1136 = arith.mulf %1135, %1134 : vector<16x16xf32>
    %1137 = arith.addf %1131, %1136 : vector<16x16xf32>
    %c180 = arith.constant 180 : index
    %1138 = memref.load %arg4[%c180] : memref<288xf32, #tpu.memory_space<smem>>
    %1139 = vector.extract_strided_slice %1017 {offsets = [0, 0, 0], sizes = [1, 16, 16], strides = [1, 1, 1]} : vector<4x16x16xf32> to vector<1x16x16xf32>
    %1140 = vector.shape_cast %1139 : vector<1x16x16xf32> to vector<16x16xf32>
    %1141 = vector.broadcast %1138 : f32 to vector<16x16xf32>
    %1142 = arith.mulf %1141, %1140 : vector<16x16xf32>
    %1143 = arith.addf %963, %1142 : vector<16x16xf32>
    %c181 = arith.constant 181 : index
    %1144 = memref.load %arg4[%c181] : memref<288xf32, #tpu.memory_space<smem>>
    %1145 = vector.extract_strided_slice %1017 {offsets = [1, 0, 0], sizes = [1, 16, 16], strides = [1, 1, 1]} : vector<4x16x16xf32> to vector<1x16x16xf32>
    %1146 = vector.shape_cast %1145 : vector<1x16x16xf32> to vector<16x16xf32>
    %1147 = vector.broadcast %1144 : f32 to vector<16x16xf32>
    %1148 = arith.mulf %1147, %1146 : vector<16x16xf32>
    %1149 = arith.addf %1143, %1148 : vector<16x16xf32>
    %c182 = arith.constant 182 : index
    %1150 = memref.load %arg4[%c182] : memref<288xf32, #tpu.memory_space<smem>>
    %1151 = vector.extract_strided_slice %1017 {offsets = [2, 0, 0], sizes = [1, 16, 16], strides = [1, 1, 1]} : vector<4x16x16xf32> to vector<1x16x16xf32>
    %1152 = vector.shape_cast %1151 : vector<1x16x16xf32> to vector<16x16xf32>
    %1153 = vector.broadcast %1150 : f32 to vector<16x16xf32>
    %1154 = arith.mulf %1153, %1152 : vector<16x16xf32>
    %1155 = arith.addf %1149, %1154 : vector<16x16xf32>
    %c183 = arith.constant 183 : index
    %1156 = memref.load %arg4[%c183] : memref<288xf32, #tpu.memory_space<smem>>
    %1157 = vector.extract_strided_slice %1017 {offsets = [3, 0, 0], sizes = [1, 16, 16], strides = [1, 1, 1]} : vector<4x16x16xf32> to vector<1x16x16xf32>
    %1158 = vector.shape_cast %1157 : vector<1x16x16xf32> to vector<16x16xf32>
    %1159 = vector.broadcast %1156 : f32 to vector<16x16xf32>
    %1160 = arith.mulf %1159, %1158 : vector<16x16xf32>
    %1161 = arith.addf %1155, %1160 : vector<16x16xf32>
    %c184 = arith.constant 184 : index
    %1162 = memref.load %arg4[%c184] : memref<288xf32, #tpu.memory_space<smem>>
    %1163 = vector.extract_strided_slice %1017 {offsets = [0, 0, 0], sizes = [1, 16, 16], strides = [1, 1, 1]} : vector<4x16x16xf32> to vector<1x16x16xf32>
    %1164 = vector.shape_cast %1163 : vector<1x16x16xf32> to vector<16x16xf32>
    %1165 = vector.broadcast %1162 : f32 to vector<16x16xf32>
    %1166 = arith.mulf %1165, %1164 : vector<16x16xf32>
    %1167 = arith.addf %987, %1166 : vector<16x16xf32>
    %c185 = arith.constant 185 : index
    %1168 = memref.load %arg4[%c185] : memref<288xf32, #tpu.memory_space<smem>>
    %1169 = vector.extract_strided_slice %1017 {offsets = [1, 0, 0], sizes = [1, 16, 16], strides = [1, 1, 1]} : vector<4x16x16xf32> to vector<1x16x16xf32>
    %1170 = vector.shape_cast %1169 : vector<1x16x16xf32> to vector<16x16xf32>
    %1171 = vector.broadcast %1168 : f32 to vector<16x16xf32>
    %1172 = arith.mulf %1171, %1170 : vector<16x16xf32>
    %1173 = arith.addf %1167, %1172 : vector<16x16xf32>
    %c186 = arith.constant 186 : index
    %1174 = memref.load %arg4[%c186] : memref<288xf32, #tpu.memory_space<smem>>
    %1175 = vector.extract_strided_slice %1017 {offsets = [2, 0, 0], sizes = [1, 16, 16], strides = [1, 1, 1]} : vector<4x16x16xf32> to vector<1x16x16xf32>
    %1176 = vector.shape_cast %1175 : vector<1x16x16xf32> to vector<16x16xf32>
    %1177 = vector.broadcast %1174 : f32 to vector<16x16xf32>
    %1178 = arith.mulf %1177, %1176 : vector<16x16xf32>
    %1179 = arith.addf %1173, %1178 : vector<16x16xf32>
    %c187 = arith.constant 187 : index
    %1180 = memref.load %arg4[%c187] : memref<288xf32, #tpu.memory_space<smem>>
    %1181 = vector.extract_strided_slice %1017 {offsets = [3, 0, 0], sizes = [1, 16, 16], strides = [1, 1, 1]} : vector<4x16x16xf32> to vector<1x16x16xf32>
    %1182 = vector.shape_cast %1181 : vector<1x16x16xf32> to vector<16x16xf32>
    %1183 = vector.broadcast %1180 : f32 to vector<16x16xf32>
    %1184 = arith.mulf %1183, %1182 : vector<16x16xf32>
    %1185 = arith.addf %1179, %1184 : vector<16x16xf32>
    %c188 = arith.constant 188 : index
    %1186 = memref.load %arg4[%c188] : memref<288xf32, #tpu.memory_space<smem>>
    %1187 = vector.extract_strided_slice %1017 {offsets = [0, 0, 0], sizes = [1, 16, 16], strides = [1, 1, 1]} : vector<4x16x16xf32> to vector<1x16x16xf32>
    %1188 = vector.shape_cast %1187 : vector<1x16x16xf32> to vector<16x16xf32>
    %1189 = vector.broadcast %1186 : f32 to vector<16x16xf32>
    %1190 = arith.mulf %1189, %1188 : vector<16x16xf32>
    %1191 = arith.addf %1011, %1190 : vector<16x16xf32>
    %c189 = arith.constant 189 : index
    %1192 = memref.load %arg4[%c189] : memref<288xf32, #tpu.memory_space<smem>>
    %1193 = vector.extract_strided_slice %1017 {offsets = [1, 0, 0], sizes = [1, 16, 16], strides = [1, 1, 1]} : vector<4x16x16xf32> to vector<1x16x16xf32>
    %1194 = vector.shape_cast %1193 : vector<1x16x16xf32> to vector<16x16xf32>
    %1195 = vector.broadcast %1192 : f32 to vector<16x16xf32>
    %1196 = arith.mulf %1195, %1194 : vector<16x16xf32>
    %1197 = arith.addf %1191, %1196 : vector<16x16xf32>
    %c190 = arith.constant 190 : index
    %1198 = memref.load %arg4[%c190] : memref<288xf32, #tpu.memory_space<smem>>
    %1199 = vector.extract_strided_slice %1017 {offsets = [2, 0, 0], sizes = [1, 16, 16], strides = [1, 1, 1]} : vector<4x16x16xf32> to vector<1x16x16xf32>
    %1200 = vector.shape_cast %1199 : vector<1x16x16xf32> to vector<16x16xf32>
    %1201 = vector.broadcast %1198 : f32 to vector<16x16xf32>
    %1202 = arith.mulf %1201, %1200 : vector<16x16xf32>
    %1203 = arith.addf %1197, %1202 : vector<16x16xf32>
    %c191 = arith.constant 191 : index
    %1204 = memref.load %arg4[%c191] : memref<288xf32, #tpu.memory_space<smem>>
    %1205 = vector.extract_strided_slice %1017 {offsets = [3, 0, 0], sizes = [1, 16, 16], strides = [1, 1, 1]} : vector<4x16x16xf32> to vector<1x16x16xf32>
    %1206 = vector.shape_cast %1205 : vector<1x16x16xf32> to vector<16x16xf32>
    %1207 = vector.broadcast %1204 : f32 to vector<16x16xf32>
    %1208 = arith.mulf %1207, %1206 : vector<16x16xf32>
    %1209 = arith.addf %1203, %1208 : vector<16x16xf32>
    %c2_43 = arith.constant 2 : index
    %c0_44 = arith.constant 0 : index
    %c0_45 = arith.constant 0 : index
    %1210 = vector.load %arg2[%c2_43, %c0_44, %c0_45] : memref<3x16x16xf32, #tpu.memory_space<vmem>>, vector<1x16x16xf32>
    %1211 = vector.shape_cast %1210 : vector<1x16x16xf32> to vector<16x16xf32>
    %1212 = vector.shape_cast %1211 : vector<16x16xf32> to vector<1x16x16xf32>
    %1213 = vector.shape_cast %1212 : vector<1x16x16xf32> to vector<1x16x16xf32>
    %1214 = vector.broadcast %1213 : vector<1x16x16xf32> to vector<4x16x16xf32>
    "tpu.trace_start"() <{level = 10 : i32, message = "caw,chw->cah"}> : () -> ()
    %cst_46 = arith.constant dense<0.000000e+00> : vector<4x16x16xf32>
    %1215 = tpu.matmul %1214, %1, %cst_46 {dimension_numbers = #tpu.dot_dimension_numbers<[2], [2], [1], [1], [0, 0, 0, 1, 1, 1], [0], [0]>} : vector<4x16x16xf32>, vector<4x16x16xf32>, vector<4x16x16xf32> -> vector<4x16x16xf32>
    "tpu.trace_stop"() : () -> ()
    %c0_47 = arith.constant 0 : index
    %c0_48 = arith.constant 0 : index
    %c0_49 = arith.constant 0 : index
    %1216 = vector.load %arg3[%c0_47, %c0_48, %c0_49] : memref<3x16x16xf32, #tpu.memory_space<vmem>>, vector<1x16x16xf32>
    %1217 = vector.shape_cast %1216 : vector<1x16x16xf32> to vector<16x16xf32>
    %1218 = vector.shape_cast %1217 : vector<16x16xf32> to vector<1x16x16xf32>
    %1219 = vector.shape_cast %1218 : vector<1x16x16xf32> to vector<1x16x16xf32>
    %1220 = vector.broadcast %1219 : vector<1x16x16xf32> to vector<4x16x16xf32>
    "tpu.trace_start"() <{level = 10 : i32, message = "cah,chw->caw"}> : () -> ()
    %cst_50 = arith.constant dense<0.000000e+00> : vector<4x16x16xf32>
    %1221 = tpu.matmul %1215, %1220, %cst_50 {dimension_numbers = #tpu.dot_dimension_numbers<[2], [1], [1], [2], [0, 0, 0, 1, 1, 2], [0], [0]>} : vector<4x16x16xf32>, vector<4x16x16xf32>, vector<4x16x16xf32> -> vector<4x16x16xf32>
    "tpu.trace_stop"() : () -> ()
    %c192 = arith.constant 192 : index
    %1222 = memref.load %arg4[%c192] : memref<288xf32, #tpu.memory_space<smem>>
    %1223 = vector.extract_strided_slice %1221 {offsets = [0, 0, 0], sizes = [1, 16, 16], strides = [1, 1, 1]} : vector<4x16x16xf32> to vector<1x16x16xf32>
    %1224 = vector.shape_cast %1223 : vector<1x16x16xf32> to vector<16x16xf32>
    %1225 = vector.broadcast %1222 : f32 to vector<16x16xf32>
    %1226 = arith.mulf %1225, %1224 : vector<16x16xf32>
    %1227 = arith.addf %1041, %1226 : vector<16x16xf32>
    %c193 = arith.constant 193 : index
    %1228 = memref.load %arg4[%c193] : memref<288xf32, #tpu.memory_space<smem>>
    %1229 = vector.extract_strided_slice %1221 {offsets = [1, 0, 0], sizes = [1, 16, 16], strides = [1, 1, 1]} : vector<4x16x16xf32> to vector<1x16x16xf32>
    %1230 = vector.shape_cast %1229 : vector<1x16x16xf32> to vector<16x16xf32>
    %1231 = vector.broadcast %1228 : f32 to vector<16x16xf32>
    %1232 = arith.mulf %1231, %1230 : vector<16x16xf32>
    %1233 = arith.addf %1227, %1232 : vector<16x16xf32>
    %c194 = arith.constant 194 : index
    %1234 = memref.load %arg4[%c194] : memref<288xf32, #tpu.memory_space<smem>>
    %1235 = vector.extract_strided_slice %1221 {offsets = [2, 0, 0], sizes = [1, 16, 16], strides = [1, 1, 1]} : vector<4x16x16xf32> to vector<1x16x16xf32>
    %1236 = vector.shape_cast %1235 : vector<1x16x16xf32> to vector<16x16xf32>
    %1237 = vector.broadcast %1234 : f32 to vector<16x16xf32>
    %1238 = arith.mulf %1237, %1236 : vector<16x16xf32>
    %1239 = arith.addf %1233, %1238 : vector<16x16xf32>
    %c195 = arith.constant 195 : index
    %1240 = memref.load %arg4[%c195] : memref<288xf32, #tpu.memory_space<smem>>
    %1241 = vector.extract_strided_slice %1221 {offsets = [3, 0, 0], sizes = [1, 16, 16], strides = [1, 1, 1]} : vector<4x16x16xf32> to vector<1x16x16xf32>
    %1242 = vector.shape_cast %1241 : vector<1x16x16xf32> to vector<16x16xf32>
    %1243 = vector.broadcast %1240 : f32 to vector<16x16xf32>
    %1244 = arith.mulf %1243, %1242 : vector<16x16xf32>
    %1245 = arith.addf %1239, %1244 : vector<16x16xf32>
    %c196 = arith.constant 196 : index
    %1246 = memref.load %arg4[%c196] : memref<288xf32, #tpu.memory_space<smem>>
    %1247 = vector.extract_strided_slice %1221 {offsets = [0, 0, 0], sizes = [1, 16, 16], strides = [1, 1, 1]} : vector<4x16x16xf32> to vector<1x16x16xf32>
    %1248 = vector.shape_cast %1247 : vector<1x16x16xf32> to vector<16x16xf32>
    %1249 = vector.broadcast %1246 : f32 to vector<16x16xf32>
    %1250 = arith.mulf %1249, %1248 : vector<16x16xf32>
    %1251 = arith.addf %1065, %1250 : vector<16x16xf32>
    %c197 = arith.constant 197 : index
    %1252 = memref.load %arg4[%c197] : memref<288xf32, #tpu.memory_space<smem>>
    %1253 = vector.extract_strided_slice %1221 {offsets = [1, 0, 0], sizes = [1, 16, 16], strides = [1, 1, 1]} : vector<4x16x16xf32> to vector<1x16x16xf32>
    %1254 = vector.shape_cast %1253 : vector<1x16x16xf32> to vector<16x16xf32>
    %1255 = vector.broadcast %1252 : f32 to vector<16x16xf32>
    %1256 = arith.mulf %1255, %1254 : vector<16x16xf32>
    %1257 = arith.addf %1251, %1256 : vector<16x16xf32>
    %c198 = arith.constant 198 : index
    %1258 = memref.load %arg4[%c198] : memref<288xf32, #tpu.memory_space<smem>>
    %1259 = vector.extract_strided_slice %1221 {offsets = [2, 0, 0], sizes = [1, 16, 16], strides = [1, 1, 1]} : vector<4x16x16xf32> to vector<1x16x16xf32>
    %1260 = vector.shape_cast %1259 : vector<1x16x16xf32> to vector<16x16xf32>
    %1261 = vector.broadcast %1258 : f32 to vector<16x16xf32>
    %1262 = arith.mulf %1261, %1260 : vector<16x16xf32>
    %1263 = arith.addf %1257, %1262 : vector<16x16xf32>
    %c199 = arith.constant 199 : index
    %1264 = memref.load %arg4[%c199] : memref<288xf32, #tpu.memory_space<smem>>
    %1265 = vector.extract_strided_slice %1221 {offsets = [3, 0, 0], sizes = [1, 16, 16], strides = [1, 1, 1]} : vector<4x16x16xf32> to vector<1x16x16xf32>
    %1266 = vector.shape_cast %1265 : vector<1x16x16xf32> to vector<16x16xf32>
    %1267 = vector.broadcast %1264 : f32 to vector<16x16xf32>
    %1268 = arith.mulf %1267, %1266 : vector<16x16xf32>
    %1269 = arith.addf %1263, %1268 : vector<16x16xf32>
    %c200 = arith.constant 200 : index
    %1270 = memref.load %arg4[%c200] : memref<288xf32, #tpu.memory_space<smem>>
    %1271 = vector.extract_strided_slice %1221 {offsets = [0, 0, 0], sizes = [1, 16, 16], strides = [1, 1, 1]} : vector<4x16x16xf32> to vector<1x16x16xf32>
    %1272 = vector.shape_cast %1271 : vector<1x16x16xf32> to vector<16x16xf32>
    %1273 = vector.broadcast %1270 : f32 to vector<16x16xf32>
    %1274 = arith.mulf %1273, %1272 : vector<16x16xf32>
    %1275 = arith.addf %1089, %1274 : vector<16x16xf32>
    %c201 = arith.constant 201 : index
    %1276 = memref.load %arg4[%c201] : memref<288xf32, #tpu.memory_space<smem>>
    %1277 = vector.extract_strided_slice %1221 {offsets = [1, 0, 0], sizes = [1, 16, 16], strides = [1, 1, 1]} : vector<4x16x16xf32> to vector<1x16x16xf32>
    %1278 = vector.shape_cast %1277 : vector<1x16x16xf32> to vector<16x16xf32>
    %1279 = vector.broadcast %1276 : f32 to vector<16x16xf32>
    %1280 = arith.mulf %1279, %1278 : vector<16x16xf32>
    %1281 = arith.addf %1275, %1280 : vector<16x16xf32>
    %c202 = arith.constant 202 : index
    %1282 = memref.load %arg4[%c202] : memref<288xf32, #tpu.memory_space<smem>>
    %1283 = vector.extract_strided_slice %1221 {offsets = [2, 0, 0], sizes = [1, 16, 16], strides = [1, 1, 1]} : vector<4x16x16xf32> to vector<1x16x16xf32>
    %1284 = vector.shape_cast %1283 : vector<1x16x16xf32> to vector<16x16xf32>
    %1285 = vector.broadcast %1282 : f32 to vector<16x16xf32>
    %1286 = arith.mulf %1285, %1284 : vector<16x16xf32>
    %1287 = arith.addf %1281, %1286 : vector<16x16xf32>
    %c203 = arith.constant 203 : index
    %1288 = memref.load %arg4[%c203] : memref<288xf32, #tpu.memory_space<smem>>
    %1289 = vector.extract_strided_slice %1221 {offsets = [3, 0, 0], sizes = [1, 16, 16], strides = [1, 1, 1]} : vector<4x16x16xf32> to vector<1x16x16xf32>
    %1290 = vector.shape_cast %1289 : vector<1x16x16xf32> to vector<16x16xf32>
    %1291 = vector.broadcast %1288 : f32 to vector<16x16xf32>
    %1292 = arith.mulf %1291, %1290 : vector<16x16xf32>
    %1293 = arith.addf %1287, %1292 : vector<16x16xf32>
    %c204 = arith.constant 204 : index
    %1294 = memref.load %arg4[%c204] : memref<288xf32, #tpu.memory_space<smem>>
    %1295 = vector.extract_strided_slice %1221 {offsets = [0, 0, 0], sizes = [1, 16, 16], strides = [1, 1, 1]} : vector<4x16x16xf32> to vector<1x16x16xf32>
    %1296 = vector.shape_cast %1295 : vector<1x16x16xf32> to vector<16x16xf32>
    %1297 = vector.broadcast %1294 : f32 to vector<16x16xf32>
    %1298 = arith.mulf %1297, %1296 : vector<16x16xf32>
    %1299 = arith.addf %1113, %1298 : vector<16x16xf32>
    %c205 = arith.constant 205 : index
    %1300 = memref.load %arg4[%c205] : memref<288xf32, #tpu.memory_space<smem>>
    %1301 = vector.extract_strided_slice %1221 {offsets = [1, 0, 0], sizes = [1, 16, 16], strides = [1, 1, 1]} : vector<4x16x16xf32> to vector<1x16x16xf32>
    %1302 = vector.shape_cast %1301 : vector<1x16x16xf32> to vector<16x16xf32>
    %1303 = vector.broadcast %1300 : f32 to vector<16x16xf32>
    %1304 = arith.mulf %1303, %1302 : vector<16x16xf32>
    %1305 = arith.addf %1299, %1304 : vector<16x16xf32>
    %c206 = arith.constant 206 : index
    %1306 = memref.load %arg4[%c206] : memref<288xf32, #tpu.memory_space<smem>>
    %1307 = vector.extract_strided_slice %1221 {offsets = [2, 0, 0], sizes = [1, 16, 16], strides = [1, 1, 1]} : vector<4x16x16xf32> to vector<1x16x16xf32>
    %1308 = vector.shape_cast %1307 : vector<1x16x16xf32> to vector<16x16xf32>
    %1309 = vector.broadcast %1306 : f32 to vector<16x16xf32>
    %1310 = arith.mulf %1309, %1308 : vector<16x16xf32>
    %1311 = arith.addf %1305, %1310 : vector<16x16xf32>
    %c207 = arith.constant 207 : index
    %1312 = memref.load %arg4[%c207] : memref<288xf32, #tpu.memory_space<smem>>
    %1313 = vector.extract_strided_slice %1221 {offsets = [3, 0, 0], sizes = [1, 16, 16], strides = [1, 1, 1]} : vector<4x16x16xf32> to vector<1x16x16xf32>
    %1314 = vector.shape_cast %1313 : vector<1x16x16xf32> to vector<16x16xf32>
    %1315 = vector.broadcast %1312 : f32 to vector<16x16xf32>
    %1316 = arith.mulf %1315, %1314 : vector<16x16xf32>
    %1317 = arith.addf %1311, %1316 : vector<16x16xf32>
    %c208 = arith.constant 208 : index
    %1318 = memref.load %arg4[%c208] : memref<288xf32, #tpu.memory_space<smem>>
    %1319 = vector.extract_strided_slice %1221 {offsets = [0, 0, 0], sizes = [1, 16, 16], strides = [1, 1, 1]} : vector<4x16x16xf32> to vector<1x16x16xf32>
    %1320 = vector.shape_cast %1319 : vector<1x16x16xf32> to vector<16x16xf32>
    %1321 = vector.broadcast %1318 : f32 to vector<16x16xf32>
    %1322 = arith.mulf %1321, %1320 : vector<16x16xf32>
    %1323 = arith.addf %1137, %1322 : vector<16x16xf32>
    %c209 = arith.constant 209 : index
    %1324 = memref.load %arg4[%c209] : memref<288xf32, #tpu.memory_space<smem>>
    %1325 = vector.extract_strided_slice %1221 {offsets = [1, 0, 0], sizes = [1, 16, 16], strides = [1, 1, 1]} : vector<4x16x16xf32> to vector<1x16x16xf32>
    %1326 = vector.shape_cast %1325 : vector<1x16x16xf32> to vector<16x16xf32>
    %1327 = vector.broadcast %1324 : f32 to vector<16x16xf32>
    %1328 = arith.mulf %1327, %1326 : vector<16x16xf32>
    %1329 = arith.addf %1323, %1328 : vector<16x16xf32>
    %c210 = arith.constant 210 : index
    %1330 = memref.load %arg4[%c210] : memref<288xf32, #tpu.memory_space<smem>>
    %1331 = vector.extract_strided_slice %1221 {offsets = [2, 0, 0], sizes = [1, 16, 16], strides = [1, 1, 1]} : vector<4x16x16xf32> to vector<1x16x16xf32>
    %1332 = vector.shape_cast %1331 : vector<1x16x16xf32> to vector<16x16xf32>
    %1333 = vector.broadcast %1330 : f32 to vector<16x16xf32>
    %1334 = arith.mulf %1333, %1332 : vector<16x16xf32>
    %1335 = arith.addf %1329, %1334 : vector<16x16xf32>
    %c211 = arith.constant 211 : index
    %1336 = memref.load %arg4[%c211] : memref<288xf32, #tpu.memory_space<smem>>
    %1337 = vector.extract_strided_slice %1221 {offsets = [3, 0, 0], sizes = [1, 16, 16], strides = [1, 1, 1]} : vector<4x16x16xf32> to vector<1x16x16xf32>
    %1338 = vector.shape_cast %1337 : vector<1x16x16xf32> to vector<16x16xf32>
    %1339 = vector.broadcast %1336 : f32 to vector<16x16xf32>
    %1340 = arith.mulf %1339, %1338 : vector<16x16xf32>
    %1341 = arith.addf %1335, %1340 : vector<16x16xf32>
    %c212 = arith.constant 212 : index
    %1342 = memref.load %arg4[%c212] : memref<288xf32, #tpu.memory_space<smem>>
    %1343 = vector.extract_strided_slice %1221 {offsets = [0, 0, 0], sizes = [1, 16, 16], strides = [1, 1, 1]} : vector<4x16x16xf32> to vector<1x16x16xf32>
    %1344 = vector.shape_cast %1343 : vector<1x16x16xf32> to vector<16x16xf32>
    %1345 = vector.broadcast %1342 : f32 to vector<16x16xf32>
    %1346 = arith.mulf %1345, %1344 : vector<16x16xf32>
    %1347 = arith.addf %1161, %1346 : vector<16x16xf32>
    %c213 = arith.constant 213 : index
    %1348 = memref.load %arg4[%c213] : memref<288xf32, #tpu.memory_space<smem>>
    %1349 = vector.extract_strided_slice %1221 {offsets = [1, 0, 0], sizes = [1, 16, 16], strides = [1, 1, 1]} : vector<4x16x16xf32> to vector<1x16x16xf32>
    %1350 = vector.shape_cast %1349 : vector<1x16x16xf32> to vector<16x16xf32>
    %1351 = vector.broadcast %1348 : f32 to vector<16x16xf32>
    %1352 = arith.mulf %1351, %1350 : vector<16x16xf32>
    %1353 = arith.addf %1347, %1352 : vector<16x16xf32>
    %c214 = arith.constant 214 : index
    %1354 = memref.load %arg4[%c214] : memref<288xf32, #tpu.memory_space<smem>>
    %1355 = vector.extract_strided_slice %1221 {offsets = [2, 0, 0], sizes = [1, 16, 16], strides = [1, 1, 1]} : vector<4x16x16xf32> to vector<1x16x16xf32>
    %1356 = vector.shape_cast %1355 : vector<1x16x16xf32> to vector<16x16xf32>
    %1357 = vector.broadcast %1354 : f32 to vector<16x16xf32>
    %1358 = arith.mulf %1357, %1356 : vector<16x16xf32>
    %1359 = arith.addf %1353, %1358 : vector<16x16xf32>
    %c215 = arith.constant 215 : index
    %1360 = memref.load %arg4[%c215] : memref<288xf32, #tpu.memory_space<smem>>
    %1361 = vector.extract_strided_slice %1221 {offsets = [3, 0, 0], sizes = [1, 16, 16], strides = [1, 1, 1]} : vector<4x16x16xf32> to vector<1x16x16xf32>
    %1362 = vector.shape_cast %1361 : vector<1x16x16xf32> to vector<16x16xf32>
    %1363 = vector.broadcast %1360 : f32 to vector<16x16xf32>
    %1364 = arith.mulf %1363, %1362 : vector<16x16xf32>
    %1365 = arith.addf %1359, %1364 : vector<16x16xf32>
    %c216 = arith.constant 216 : index
    %1366 = memref.load %arg4[%c216] : memref<288xf32, #tpu.memory_space<smem>>
    %1367 = vector.extract_strided_slice %1221 {offsets = [0, 0, 0], sizes = [1, 16, 16], strides = [1, 1, 1]} : vector<4x16x16xf32> to vector<1x16x16xf32>
    %1368 = vector.shape_cast %1367 : vector<1x16x16xf32> to vector<16x16xf32>
    %1369 = vector.broadcast %1366 : f32 to vector<16x16xf32>
    %1370 = arith.mulf %1369, %1368 : vector<16x16xf32>
    %1371 = arith.addf %1185, %1370 : vector<16x16xf32>
    %c217 = arith.constant 217 : index
    %1372 = memref.load %arg4[%c217] : memref<288xf32, #tpu.memory_space<smem>>
    %1373 = vector.extract_strided_slice %1221 {offsets = [1, 0, 0], sizes = [1, 16, 16], strides = [1, 1, 1]} : vector<4x16x16xf32> to vector<1x16x16xf32>
    %1374 = vector.shape_cast %1373 : vector<1x16x16xf32> to vector<16x16xf32>
    %1375 = vector.broadcast %1372 : f32 to vector<16x16xf32>
    %1376 = arith.mulf %1375, %1374 : vector<16x16xf32>
    %1377 = arith.addf %1371, %1376 : vector<16x16xf32>
    %c218 = arith.constant 218 : index
    %1378 = memref.load %arg4[%c218] : memref<288xf32, #tpu.memory_space<smem>>
    %1379 = vector.extract_strided_slice %1221 {offsets = [2, 0, 0], sizes = [1, 16, 16], strides = [1, 1, 1]} : vector<4x16x16xf32> to vector<1x16x16xf32>
    %1380 = vector.shape_cast %1379 : vector<1x16x16xf32> to vector<16x16xf32>
    %1381 = vector.broadcast %1378 : f32 to vector<16x16xf32>
    %1382 = arith.mulf %1381, %1380 : vector<16x16xf32>
    %1383 = arith.addf %1377, %1382 : vector<16x16xf32>
    %c219 = arith.constant 219 : index
    %1384 = memref.load %arg4[%c219] : memref<288xf32, #tpu.memory_space<smem>>
    %1385 = vector.extract_strided_slice %1221 {offsets = [3, 0, 0], sizes = [1, 16, 16], strides = [1, 1, 1]} : vector<4x16x16xf32> to vector<1x16x16xf32>
    %1386 = vector.shape_cast %1385 : vector<1x16x16xf32> to vector<16x16xf32>
    %1387 = vector.broadcast %1384 : f32 to vector<16x16xf32>
    %1388 = arith.mulf %1387, %1386 : vector<16x16xf32>
    %1389 = arith.addf %1383, %1388 : vector<16x16xf32>
    %c220 = arith.constant 220 : index
    %1390 = memref.load %arg4[%c220] : memref<288xf32, #tpu.memory_space<smem>>
    %1391 = vector.extract_strided_slice %1221 {offsets = [0, 0, 0], sizes = [1, 16, 16], strides = [1, 1, 1]} : vector<4x16x16xf32> to vector<1x16x16xf32>
    %1392 = vector.shape_cast %1391 : vector<1x16x16xf32> to vector<16x16xf32>
    %1393 = vector.broadcast %1390 : f32 to vector<16x16xf32>
    %1394 = arith.mulf %1393, %1392 : vector<16x16xf32>
    %1395 = arith.addf %1209, %1394 : vector<16x16xf32>
    %c221 = arith.constant 221 : index
    %1396 = memref.load %arg4[%c221] : memref<288xf32, #tpu.memory_space<smem>>
    %1397 = vector.extract_strided_slice %1221 {offsets = [1, 0, 0], sizes = [1, 16, 16], strides = [1, 1, 1]} : vector<4x16x16xf32> to vector<1x16x16xf32>
    %1398 = vector.shape_cast %1397 : vector<1x16x16xf32> to vector<16x16xf32>
    %1399 = vector.broadcast %1396 : f32 to vector<16x16xf32>
    %1400 = arith.mulf %1399, %1398 : vector<16x16xf32>
    %1401 = arith.addf %1395, %1400 : vector<16x16xf32>
    %c222 = arith.constant 222 : index
    %1402 = memref.load %arg4[%c222] : memref<288xf32, #tpu.memory_space<smem>>
    %1403 = vector.extract_strided_slice %1221 {offsets = [2, 0, 0], sizes = [1, 16, 16], strides = [1, 1, 1]} : vector<4x16x16xf32> to vector<1x16x16xf32>
    %1404 = vector.shape_cast %1403 : vector<1x16x16xf32> to vector<16x16xf32>
    %1405 = vector.broadcast %1402 : f32 to vector<16x16xf32>
    %1406 = arith.mulf %1405, %1404 : vector<16x16xf32>
    %1407 = arith.addf %1401, %1406 : vector<16x16xf32>
    %c223 = arith.constant 223 : index
    %1408 = memref.load %arg4[%c223] : memref<288xf32, #tpu.memory_space<smem>>
    %1409 = vector.extract_strided_slice %1221 {offsets = [3, 0, 0], sizes = [1, 16, 16], strides = [1, 1, 1]} : vector<4x16x16xf32> to vector<1x16x16xf32>
    %1410 = vector.shape_cast %1409 : vector<1x16x16xf32> to vector<16x16xf32>
    %1411 = vector.broadcast %1408 : f32 to vector<16x16xf32>
    %1412 = arith.mulf %1411, %1410 : vector<16x16xf32>
    %1413 = arith.addf %1407, %1412 : vector<16x16xf32>
    %c1_51 = arith.constant 1 : index
    %c0_52 = arith.constant 0 : index
    %c0_53 = arith.constant 0 : index
    %1414 = vector.load %arg3[%c1_51, %c0_52, %c0_53] : memref<3x16x16xf32, #tpu.memory_space<vmem>>, vector<1x16x16xf32>
    %1415 = vector.shape_cast %1414 : vector<1x16x16xf32> to vector<16x16xf32>
    %1416 = vector.shape_cast %1415 : vector<16x16xf32> to vector<1x16x16xf32>
    %1417 = vector.shape_cast %1416 : vector<1x16x16xf32> to vector<1x16x16xf32>
    %1418 = vector.broadcast %1417 : vector<1x16x16xf32> to vector<4x16x16xf32>
    "tpu.trace_start"() <{level = 10 : i32, message = "cah,chw->caw"}> : () -> ()
    %cst_54 = arith.constant dense<0.000000e+00> : vector<4x16x16xf32>
    %1419 = tpu.matmul %1215, %1418, %cst_54 {dimension_numbers = #tpu.dot_dimension_numbers<[2], [1], [1], [2], [0, 0, 0, 1, 1, 2], [0], [0]>} : vector<4x16x16xf32>, vector<4x16x16xf32>, vector<4x16x16xf32> -> vector<4x16x16xf32>
    "tpu.trace_stop"() : () -> ()
    %c224 = arith.constant 224 : index
    %1420 = memref.load %arg4[%c224] : memref<288xf32, #tpu.memory_space<smem>>
    %1421 = vector.extract_strided_slice %1419 {offsets = [0, 0, 0], sizes = [1, 16, 16], strides = [1, 1, 1]} : vector<4x16x16xf32> to vector<1x16x16xf32>
    %1422 = vector.shape_cast %1421 : vector<1x16x16xf32> to vector<16x16xf32>
    %1423 = vector.broadcast %1420 : f32 to vector<16x16xf32>
    %1424 = arith.mulf %1423, %1422 : vector<16x16xf32>
    %1425 = arith.addf %1245, %1424 : vector<16x16xf32>
    %c225 = arith.constant 225 : index
    %1426 = memref.load %arg4[%c225] : memref<288xf32, #tpu.memory_space<smem>>
    %1427 = vector.extract_strided_slice %1419 {offsets = [1, 0, 0], sizes = [1, 16, 16], strides = [1, 1, 1]} : vector<4x16x16xf32> to vector<1x16x16xf32>
    %1428 = vector.shape_cast %1427 : vector<1x16x16xf32> to vector<16x16xf32>
    %1429 = vector.broadcast %1426 : f32 to vector<16x16xf32>
    %1430 = arith.mulf %1429, %1428 : vector<16x16xf32>
    %1431 = arith.addf %1425, %1430 : vector<16x16xf32>
    %c226 = arith.constant 226 : index
    %1432 = memref.load %arg4[%c226] : memref<288xf32, #tpu.memory_space<smem>>
    %1433 = vector.extract_strided_slice %1419 {offsets = [2, 0, 0], sizes = [1, 16, 16], strides = [1, 1, 1]} : vector<4x16x16xf32> to vector<1x16x16xf32>
    %1434 = vector.shape_cast %1433 : vector<1x16x16xf32> to vector<16x16xf32>
    %1435 = vector.broadcast %1432 : f32 to vector<16x16xf32>
    %1436 = arith.mulf %1435, %1434 : vector<16x16xf32>
    %1437 = arith.addf %1431, %1436 : vector<16x16xf32>
    %c227 = arith.constant 227 : index
    %1438 = memref.load %arg4[%c227] : memref<288xf32, #tpu.memory_space<smem>>
    %1439 = vector.extract_strided_slice %1419 {offsets = [3, 0, 0], sizes = [1, 16, 16], strides = [1, 1, 1]} : vector<4x16x16xf32> to vector<1x16x16xf32>
    %1440 = vector.shape_cast %1439 : vector<1x16x16xf32> to vector<16x16xf32>
    %1441 = vector.broadcast %1438 : f32 to vector<16x16xf32>
    %1442 = arith.mulf %1441, %1440 : vector<16x16xf32>
    %1443 = arith.addf %1437, %1442 : vector<16x16xf32>
    %c228 = arith.constant 228 : index
    %1444 = memref.load %arg4[%c228] : memref<288xf32, #tpu.memory_space<smem>>
    %1445 = vector.extract_strided_slice %1419 {offsets = [0, 0, 0], sizes = [1, 16, 16], strides = [1, 1, 1]} : vector<4x16x16xf32> to vector<1x16x16xf32>
    %1446 = vector.shape_cast %1445 : vector<1x16x16xf32> to vector<16x16xf32>
    %1447 = vector.broadcast %1444 : f32 to vector<16x16xf32>
    %1448 = arith.mulf %1447, %1446 : vector<16x16xf32>
    %1449 = arith.addf %1269, %1448 : vector<16x16xf32>
    %c229 = arith.constant 229 : index
    %1450 = memref.load %arg4[%c229] : memref<288xf32, #tpu.memory_space<smem>>
    %1451 = vector.extract_strided_slice %1419 {offsets = [1, 0, 0], sizes = [1, 16, 16], strides = [1, 1, 1]} : vector<4x16x16xf32> to vector<1x16x16xf32>
    %1452 = vector.shape_cast %1451 : vector<1x16x16xf32> to vector<16x16xf32>
    %1453 = vector.broadcast %1450 : f32 to vector<16x16xf32>
    %1454 = arith.mulf %1453, %1452 : vector<16x16xf32>
    %1455 = arith.addf %1449, %1454 : vector<16x16xf32>
    %c230 = arith.constant 230 : index
    %1456 = memref.load %arg4[%c230] : memref<288xf32, #tpu.memory_space<smem>>
    %1457 = vector.extract_strided_slice %1419 {offsets = [2, 0, 0], sizes = [1, 16, 16], strides = [1, 1, 1]} : vector<4x16x16xf32> to vector<1x16x16xf32>
    %1458 = vector.shape_cast %1457 : vector<1x16x16xf32> to vector<16x16xf32>
    %1459 = vector.broadcast %1456 : f32 to vector<16x16xf32>
    %1460 = arith.mulf %1459, %1458 : vector<16x16xf32>
    %1461 = arith.addf %1455, %1460 : vector<16x16xf32>
    %c231 = arith.constant 231 : index
    %1462 = memref.load %arg4[%c231] : memref<288xf32, #tpu.memory_space<smem>>
    %1463 = vector.extract_strided_slice %1419 {offsets = [3, 0, 0], sizes = [1, 16, 16], strides = [1, 1, 1]} : vector<4x16x16xf32> to vector<1x16x16xf32>
    %1464 = vector.shape_cast %1463 : vector<1x16x16xf32> to vector<16x16xf32>
    %1465 = vector.broadcast %1462 : f32 to vector<16x16xf32>
    %1466 = arith.mulf %1465, %1464 : vector<16x16xf32>
    %1467 = arith.addf %1461, %1466 : vector<16x16xf32>
    %c232 = arith.constant 232 : index
    %1468 = memref.load %arg4[%c232] : memref<288xf32, #tpu.memory_space<smem>>
    %1469 = vector.extract_strided_slice %1419 {offsets = [0, 0, 0], sizes = [1, 16, 16], strides = [1, 1, 1]} : vector<4x16x16xf32> to vector<1x16x16xf32>
    %1470 = vector.shape_cast %1469 : vector<1x16x16xf32> to vector<16x16xf32>
    %1471 = vector.broadcast %1468 : f32 to vector<16x16xf32>
    %1472 = arith.mulf %1471, %1470 : vector<16x16xf32>
    %1473 = arith.addf %1293, %1472 : vector<16x16xf32>
    %c233 = arith.constant 233 : index
    %1474 = memref.load %arg4[%c233] : memref<288xf32, #tpu.memory_space<smem>>
    %1475 = vector.extract_strided_slice %1419 {offsets = [1, 0, 0], sizes = [1, 16, 16], strides = [1, 1, 1]} : vector<4x16x16xf32> to vector<1x16x16xf32>
    %1476 = vector.shape_cast %1475 : vector<1x16x16xf32> to vector<16x16xf32>
    %1477 = vector.broadcast %1474 : f32 to vector<16x16xf32>
    %1478 = arith.mulf %1477, %1476 : vector<16x16xf32>
    %1479 = arith.addf %1473, %1478 : vector<16x16xf32>
    %c234 = arith.constant 234 : index
    %1480 = memref.load %arg4[%c234] : memref<288xf32, #tpu.memory_space<smem>>
    %1481 = vector.extract_strided_slice %1419 {offsets = [2, 0, 0], sizes = [1, 16, 16], strides = [1, 1, 1]} : vector<4x16x16xf32> to vector<1x16x16xf32>
    %1482 = vector.shape_cast %1481 : vector<1x16x16xf32> to vector<16x16xf32>
    %1483 = vector.broadcast %1480 : f32 to vector<16x16xf32>
    %1484 = arith.mulf %1483, %1482 : vector<16x16xf32>
    %1485 = arith.addf %1479, %1484 : vector<16x16xf32>
    %c235 = arith.constant 235 : index
    %1486 = memref.load %arg4[%c235] : memref<288xf32, #tpu.memory_space<smem>>
    %1487 = vector.extract_strided_slice %1419 {offsets = [3, 0, 0], sizes = [1, 16, 16], strides = [1, 1, 1]} : vector<4x16x16xf32> to vector<1x16x16xf32>
    %1488 = vector.shape_cast %1487 : vector<1x16x16xf32> to vector<16x16xf32>
    %1489 = vector.broadcast %1486 : f32 to vector<16x16xf32>
    %1490 = arith.mulf %1489, %1488 : vector<16x16xf32>
    %1491 = arith.addf %1485, %1490 : vector<16x16xf32>
    %c236 = arith.constant 236 : index
    %1492 = memref.load %arg4[%c236] : memref<288xf32, #tpu.memory_space<smem>>
    %1493 = vector.extract_strided_slice %1419 {offsets = [0, 0, 0], sizes = [1, 16, 16], strides = [1, 1, 1]} : vector<4x16x16xf32> to vector<1x16x16xf32>
    %1494 = vector.shape_cast %1493 : vector<1x16x16xf32> to vector<16x16xf32>
    %1495 = vector.broadcast %1492 : f32 to vector<16x16xf32>
    %1496 = arith.mulf %1495, %1494 : vector<16x16xf32>
    %1497 = arith.addf %1317, %1496 : vector<16x16xf32>
    %c237 = arith.constant 237 : index
    %1498 = memref.load %arg4[%c237] : memref<288xf32, #tpu.memory_space<smem>>
    %1499 = vector.extract_strided_slice %1419 {offsets = [1, 0, 0], sizes = [1, 16, 16], strides = [1, 1, 1]} : vector<4x16x16xf32> to vector<1x16x16xf32>
    %1500 = vector.shape_cast %1499 : vector<1x16x16xf32> to vector<16x16xf32>
    %1501 = vector.broadcast %1498 : f32 to vector<16x16xf32>
    %1502 = arith.mulf %1501, %1500 : vector<16x16xf32>
    %1503 = arith.addf %1497, %1502 : vector<16x16xf32>
    %c238 = arith.constant 238 : index
    %1504 = memref.load %arg4[%c238] : memref<288xf32, #tpu.memory_space<smem>>
    %1505 = vector.extract_strided_slice %1419 {offsets = [2, 0, 0], sizes = [1, 16, 16], strides = [1, 1, 1]} : vector<4x16x16xf32> to vector<1x16x16xf32>
    %1506 = vector.shape_cast %1505 : vector<1x16x16xf32> to vector<16x16xf32>
    %1507 = vector.broadcast %1504 : f32 to vector<16x16xf32>
    %1508 = arith.mulf %1507, %1506 : vector<16x16xf32>
    %1509 = arith.addf %1503, %1508 : vector<16x16xf32>
    %c239 = arith.constant 239 : index
    %1510 = memref.load %arg4[%c239] : memref<288xf32, #tpu.memory_space<smem>>
    %1511 = vector.extract_strided_slice %1419 {offsets = [3, 0, 0], sizes = [1, 16, 16], strides = [1, 1, 1]} : vector<4x16x16xf32> to vector<1x16x16xf32>
    %1512 = vector.shape_cast %1511 : vector<1x16x16xf32> to vector<16x16xf32>
    %1513 = vector.broadcast %1510 : f32 to vector<16x16xf32>
    %1514 = arith.mulf %1513, %1512 : vector<16x16xf32>
    %1515 = arith.addf %1509, %1514 : vector<16x16xf32>
    %c240 = arith.constant 240 : index
    %1516 = memref.load %arg4[%c240] : memref<288xf32, #tpu.memory_space<smem>>
    %1517 = vector.extract_strided_slice %1419 {offsets = [0, 0, 0], sizes = [1, 16, 16], strides = [1, 1, 1]} : vector<4x16x16xf32> to vector<1x16x16xf32>
    %1518 = vector.shape_cast %1517 : vector<1x16x16xf32> to vector<16x16xf32>
    %1519 = vector.broadcast %1516 : f32 to vector<16x16xf32>
    %1520 = arith.mulf %1519, %1518 : vector<16x16xf32>
    %1521 = arith.addf %1341, %1520 : vector<16x16xf32>
    %c241 = arith.constant 241 : index
    %1522 = memref.load %arg4[%c241] : memref<288xf32, #tpu.memory_space<smem>>
    %1523 = vector.extract_strided_slice %1419 {offsets = [1, 0, 0], sizes = [1, 16, 16], strides = [1, 1, 1]} : vector<4x16x16xf32> to vector<1x16x16xf32>
    %1524 = vector.shape_cast %1523 : vector<1x16x16xf32> to vector<16x16xf32>
    %1525 = vector.broadcast %1522 : f32 to vector<16x16xf32>
    %1526 = arith.mulf %1525, %1524 : vector<16x16xf32>
    %1527 = arith.addf %1521, %1526 : vector<16x16xf32>
    %c242 = arith.constant 242 : index
    %1528 = memref.load %arg4[%c242] : memref<288xf32, #tpu.memory_space<smem>>
    %1529 = vector.extract_strided_slice %1419 {offsets = [2, 0, 0], sizes = [1, 16, 16], strides = [1, 1, 1]} : vector<4x16x16xf32> to vector<1x16x16xf32>
    %1530 = vector.shape_cast %1529 : vector<1x16x16xf32> to vector<16x16xf32>
    %1531 = vector.broadcast %1528 : f32 to vector<16x16xf32>
    %1532 = arith.mulf %1531, %1530 : vector<16x16xf32>
    %1533 = arith.addf %1527, %1532 : vector<16x16xf32>
    %c243 = arith.constant 243 : index
    %1534 = memref.load %arg4[%c243] : memref<288xf32, #tpu.memory_space<smem>>
    %1535 = vector.extract_strided_slice %1419 {offsets = [3, 0, 0], sizes = [1, 16, 16], strides = [1, 1, 1]} : vector<4x16x16xf32> to vector<1x16x16xf32>
    %1536 = vector.shape_cast %1535 : vector<1x16x16xf32> to vector<16x16xf32>
    %1537 = vector.broadcast %1534 : f32 to vector<16x16xf32>
    %1538 = arith.mulf %1537, %1536 : vector<16x16xf32>
    %1539 = arith.addf %1533, %1538 : vector<16x16xf32>
    %c244 = arith.constant 244 : index
    %1540 = memref.load %arg4[%c244] : memref<288xf32, #tpu.memory_space<smem>>
    %1541 = vector.extract_strided_slice %1419 {offsets = [0, 0, 0], sizes = [1, 16, 16], strides = [1, 1, 1]} : vector<4x16x16xf32> to vector<1x16x16xf32>
    %1542 = vector.shape_cast %1541 : vector<1x16x16xf32> to vector<16x16xf32>
    %1543 = vector.broadcast %1540 : f32 to vector<16x16xf32>
    %1544 = arith.mulf %1543, %1542 : vector<16x16xf32>
    %1545 = arith.addf %1365, %1544 : vector<16x16xf32>
    %c245 = arith.constant 245 : index
    %1546 = memref.load %arg4[%c245] : memref<288xf32, #tpu.memory_space<smem>>
    %1547 = vector.extract_strided_slice %1419 {offsets = [1, 0, 0], sizes = [1, 16, 16], strides = [1, 1, 1]} : vector<4x16x16xf32> to vector<1x16x16xf32>
    %1548 = vector.shape_cast %1547 : vector<1x16x16xf32> to vector<16x16xf32>
    %1549 = vector.broadcast %1546 : f32 to vector<16x16xf32>
    %1550 = arith.mulf %1549, %1548 : vector<16x16xf32>
    %1551 = arith.addf %1545, %1550 : vector<16x16xf32>
    %c246 = arith.constant 246 : index
    %1552 = memref.load %arg4[%c246] : memref<288xf32, #tpu.memory_space<smem>>
    %1553 = vector.extract_strided_slice %1419 {offsets = [2, 0, 0], sizes = [1, 16, 16], strides = [1, 1, 1]} : vector<4x16x16xf32> to vector<1x16x16xf32>
    %1554 = vector.shape_cast %1553 : vector<1x16x16xf32> to vector<16x16xf32>
    %1555 = vector.broadcast %1552 : f32 to vector<16x16xf32>
    %1556 = arith.mulf %1555, %1554 : vector<16x16xf32>
    %1557 = arith.addf %1551, %1556 : vector<16x16xf32>
    %c247 = arith.constant 247 : index
    %1558 = memref.load %arg4[%c247] : memref<288xf32, #tpu.memory_space<smem>>
    %1559 = vector.extract_strided_slice %1419 {offsets = [3, 0, 0], sizes = [1, 16, 16], strides = [1, 1, 1]} : vector<4x16x16xf32> to vector<1x16x16xf32>
    %1560 = vector.shape_cast %1559 : vector<1x16x16xf32> to vector<16x16xf32>
    %1561 = vector.broadcast %1558 : f32 to vector<16x16xf32>
    %1562 = arith.mulf %1561, %1560 : vector<16x16xf32>
    %1563 = arith.addf %1557, %1562 : vector<16x16xf32>
    %c248 = arith.constant 248 : index
    %1564 = memref.load %arg4[%c248] : memref<288xf32, #tpu.memory_space<smem>>
    %1565 = vector.extract_strided_slice %1419 {offsets = [0, 0, 0], sizes = [1, 16, 16], strides = [1, 1, 1]} : vector<4x16x16xf32> to vector<1x16x16xf32>
    %1566 = vector.shape_cast %1565 : vector<1x16x16xf32> to vector<16x16xf32>
    %1567 = vector.broadcast %1564 : f32 to vector<16x16xf32>
    %1568 = arith.mulf %1567, %1566 : vector<16x16xf32>
    %1569 = arith.addf %1389, %1568 : vector<16x16xf32>
    %c249 = arith.constant 249 : index
    %1570 = memref.load %arg4[%c249] : memref<288xf32, #tpu.memory_space<smem>>
    %1571 = vector.extract_strided_slice %1419 {offsets = [1, 0, 0], sizes = [1, 16, 16], strides = [1, 1, 1]} : vector<4x16x16xf32> to vector<1x16x16xf32>
    %1572 = vector.shape_cast %1571 : vector<1x16x16xf32> to vector<16x16xf32>
    %1573 = vector.broadcast %1570 : f32 to vector<16x16xf32>
    %1574 = arith.mulf %1573, %1572 : vector<16x16xf32>
    %1575 = arith.addf %1569, %1574 : vector<16x16xf32>
    %c250 = arith.constant 250 : index
    %1576 = memref.load %arg4[%c250] : memref<288xf32, #tpu.memory_space<smem>>
    %1577 = vector.extract_strided_slice %1419 {offsets = [2, 0, 0], sizes = [1, 16, 16], strides = [1, 1, 1]} : vector<4x16x16xf32> to vector<1x16x16xf32>
    %1578 = vector.shape_cast %1577 : vector<1x16x16xf32> to vector<16x16xf32>
    %1579 = vector.broadcast %1576 : f32 to vector<16x16xf32>
    %1580 = arith.mulf %1579, %1578 : vector<16x16xf32>
    %1581 = arith.addf %1575, %1580 : vector<16x16xf32>
    %c251 = arith.constant 251 : index
    %1582 = memref.load %arg4[%c251] : memref<288xf32, #tpu.memory_space<smem>>
    %1583 = vector.extract_strided_slice %1419 {offsets = [3, 0, 0], sizes = [1, 16, 16], strides = [1, 1, 1]} : vector<4x16x16xf32> to vector<1x16x16xf32>
    %1584 = vector.shape_cast %1583 : vector<1x16x16xf32> to vector<16x16xf32>
    %1585 = vector.broadcast %1582 : f32 to vector<16x16xf32>
    %1586 = arith.mulf %1585, %1584 : vector<16x16xf32>
    %1587 = arith.addf %1581, %1586 : vector<16x16xf32>
    %c252 = arith.constant 252 : index
    %1588 = memref.load %arg4[%c252] : memref<288xf32, #tpu.memory_space<smem>>
    %1589 = vector.extract_strided_slice %1419 {offsets = [0, 0, 0], sizes = [1, 16, 16], strides = [1, 1, 1]} : vector<4x16x16xf32> to vector<1x16x16xf32>
    %1590 = vector.shape_cast %1589 : vector<1x16x16xf32> to vector<16x16xf32>
    %1591 = vector.broadcast %1588 : f32 to vector<16x16xf32>
    %1592 = arith.mulf %1591, %1590 : vector<16x16xf32>
    %1593 = arith.addf %1413, %1592 : vector<16x16xf32>
    %c253 = arith.constant 253 : index
    %1594 = memref.load %arg4[%c253] : memref<288xf32, #tpu.memory_space<smem>>
    %1595 = vector.extract_strided_slice %1419 {offsets = [1, 0, 0], sizes = [1, 16, 16], strides = [1, 1, 1]} : vector<4x16x16xf32> to vector<1x16x16xf32>
    %1596 = vector.shape_cast %1595 : vector<1x16x16xf32> to vector<16x16xf32>
    %1597 = vector.broadcast %1594 : f32 to vector<16x16xf32>
    %1598 = arith.mulf %1597, %1596 : vector<16x16xf32>
    %1599 = arith.addf %1593, %1598 : vector<16x16xf32>
    %c254 = arith.constant 254 : index
    %1600 = memref.load %arg4[%c254] : memref<288xf32, #tpu.memory_space<smem>>
    %1601 = vector.extract_strided_slice %1419 {offsets = [2, 0, 0], sizes = [1, 16, 16], strides = [1, 1, 1]} : vector<4x16x16xf32> to vector<1x16x16xf32>
    %1602 = vector.shape_cast %1601 : vector<1x16x16xf32> to vector<16x16xf32>
    %1603 = vector.broadcast %1600 : f32 to vector<16x16xf32>
    %1604 = arith.mulf %1603, %1602 : vector<16x16xf32>
    %1605 = arith.addf %1599, %1604 : vector<16x16xf32>
    %c255 = arith.constant 255 : index
    %1606 = memref.load %arg4[%c255] : memref<288xf32, #tpu.memory_space<smem>>
    %1607 = vector.extract_strided_slice %1419 {offsets = [3, 0, 0], sizes = [1, 16, 16], strides = [1, 1, 1]} : vector<4x16x16xf32> to vector<1x16x16xf32>
    %1608 = vector.shape_cast %1607 : vector<1x16x16xf32> to vector<16x16xf32>
    %1609 = vector.broadcast %1606 : f32 to vector<16x16xf32>
    %1610 = arith.mulf %1609, %1608 : vector<16x16xf32>
    %1611 = arith.addf %1605, %1610 : vector<16x16xf32>
    %c2_55 = arith.constant 2 : index
    %c0_56 = arith.constant 0 : index
    %c0_57 = arith.constant 0 : index
    %1612 = vector.load %arg3[%c2_55, %c0_56, %c0_57] : memref<3x16x16xf32, #tpu.memory_space<vmem>>, vector<1x16x16xf32>
    %1613 = vector.shape_cast %1612 : vector<1x16x16xf32> to vector<16x16xf32>
    %1614 = vector.shape_cast %1613 : vector<16x16xf32> to vector<1x16x16xf32>
    %1615 = vector.shape_cast %1614 : vector<1x16x16xf32> to vector<1x16x16xf32>
    %1616 = vector.broadcast %1615 : vector<1x16x16xf32> to vector<4x16x16xf32>
    "tpu.trace_start"() <{level = 10 : i32, message = "cah,chw->caw"}> : () -> ()
    %cst_58 = arith.constant dense<0.000000e+00> : vector<4x16x16xf32>
    %1617 = tpu.matmul %1215, %1616, %cst_58 {dimension_numbers = #tpu.dot_dimension_numbers<[2], [1], [1], [2], [0, 0, 0, 1, 1, 2], [0], [0]>} : vector<4x16x16xf32>, vector<4x16x16xf32>, vector<4x16x16xf32> -> vector<4x16x16xf32>
    "tpu.trace_stop"() : () -> ()
    %c256 = arith.constant 256 : index
    %1618 = memref.load %arg4[%c256] : memref<288xf32, #tpu.memory_space<smem>>
    %1619 = vector.extract_strided_slice %1617 {offsets = [0, 0, 0], sizes = [1, 16, 16], strides = [1, 1, 1]} : vector<4x16x16xf32> to vector<1x16x16xf32>
    %1620 = vector.shape_cast %1619 : vector<1x16x16xf32> to vector<16x16xf32>
    %1621 = vector.broadcast %1618 : f32 to vector<16x16xf32>
    %1622 = arith.mulf %1621, %1620 : vector<16x16xf32>
    %1623 = arith.addf %1443, %1622 : vector<16x16xf32>
    %c257 = arith.constant 257 : index
    %1624 = memref.load %arg4[%c257] : memref<288xf32, #tpu.memory_space<smem>>
    %1625 = vector.extract_strided_slice %1617 {offsets = [1, 0, 0], sizes = [1, 16, 16], strides = [1, 1, 1]} : vector<4x16x16xf32> to vector<1x16x16xf32>
    %1626 = vector.shape_cast %1625 : vector<1x16x16xf32> to vector<16x16xf32>
    %1627 = vector.broadcast %1624 : f32 to vector<16x16xf32>
    %1628 = arith.mulf %1627, %1626 : vector<16x16xf32>
    %1629 = arith.addf %1623, %1628 : vector<16x16xf32>
    %c258 = arith.constant 258 : index
    %1630 = memref.load %arg4[%c258] : memref<288xf32, #tpu.memory_space<smem>>
    %1631 = vector.extract_strided_slice %1617 {offsets = [2, 0, 0], sizes = [1, 16, 16], strides = [1, 1, 1]} : vector<4x16x16xf32> to vector<1x16x16xf32>
    %1632 = vector.shape_cast %1631 : vector<1x16x16xf32> to vector<16x16xf32>
    %1633 = vector.broadcast %1630 : f32 to vector<16x16xf32>
    %1634 = arith.mulf %1633, %1632 : vector<16x16xf32>
    %1635 = arith.addf %1629, %1634 : vector<16x16xf32>
    %c259 = arith.constant 259 : index
    %1636 = memref.load %arg4[%c259] : memref<288xf32, #tpu.memory_space<smem>>
    %1637 = vector.extract_strided_slice %1617 {offsets = [3, 0, 0], sizes = [1, 16, 16], strides = [1, 1, 1]} : vector<4x16x16xf32> to vector<1x16x16xf32>
    %1638 = vector.shape_cast %1637 : vector<1x16x16xf32> to vector<16x16xf32>
    %1639 = vector.broadcast %1636 : f32 to vector<16x16xf32>
    %1640 = arith.mulf %1639, %1638 : vector<16x16xf32>
    %1641 = arith.addf %1635, %1640 : vector<16x16xf32>
    %c260 = arith.constant 260 : index
    %1642 = memref.load %arg4[%c260] : memref<288xf32, #tpu.memory_space<smem>>
    %1643 = vector.extract_strided_slice %1617 {offsets = [0, 0, 0], sizes = [1, 16, 16], strides = [1, 1, 1]} : vector<4x16x16xf32> to vector<1x16x16xf32>
    %1644 = vector.shape_cast %1643 : vector<1x16x16xf32> to vector<16x16xf32>
    %1645 = vector.broadcast %1642 : f32 to vector<16x16xf32>
    %1646 = arith.mulf %1645, %1644 : vector<16x16xf32>
    %1647 = arith.addf %1467, %1646 : vector<16x16xf32>
    %c261 = arith.constant 261 : index
    %1648 = memref.load %arg4[%c261] : memref<288xf32, #tpu.memory_space<smem>>
    %1649 = vector.extract_strided_slice %1617 {offsets = [1, 0, 0], sizes = [1, 16, 16], strides = [1, 1, 1]} : vector<4x16x16xf32> to vector<1x16x16xf32>
    %1650 = vector.shape_cast %1649 : vector<1x16x16xf32> to vector<16x16xf32>
    %1651 = vector.broadcast %1648 : f32 to vector<16x16xf32>
    %1652 = arith.mulf %1651, %1650 : vector<16x16xf32>
    %1653 = arith.addf %1647, %1652 : vector<16x16xf32>
    %c262 = arith.constant 262 : index
    %1654 = memref.load %arg4[%c262] : memref<288xf32, #tpu.memory_space<smem>>
    %1655 = vector.extract_strided_slice %1617 {offsets = [2, 0, 0], sizes = [1, 16, 16], strides = [1, 1, 1]} : vector<4x16x16xf32> to vector<1x16x16xf32>
    %1656 = vector.shape_cast %1655 : vector<1x16x16xf32> to vector<16x16xf32>
    %1657 = vector.broadcast %1654 : f32 to vector<16x16xf32>
    %1658 = arith.mulf %1657, %1656 : vector<16x16xf32>
    %1659 = arith.addf %1653, %1658 : vector<16x16xf32>
    %c263 = arith.constant 263 : index
    %1660 = memref.load %arg4[%c263] : memref<288xf32, #tpu.memory_space<smem>>
    %1661 = vector.extract_strided_slice %1617 {offsets = [3, 0, 0], sizes = [1, 16, 16], strides = [1, 1, 1]} : vector<4x16x16xf32> to vector<1x16x16xf32>
    %1662 = vector.shape_cast %1661 : vector<1x16x16xf32> to vector<16x16xf32>
    %1663 = vector.broadcast %1660 : f32 to vector<16x16xf32>
    %1664 = arith.mulf %1663, %1662 : vector<16x16xf32>
    %1665 = arith.addf %1659, %1664 : vector<16x16xf32>
    %c264 = arith.constant 264 : index
    %1666 = memref.load %arg4[%c264] : memref<288xf32, #tpu.memory_space<smem>>
    %1667 = vector.extract_strided_slice %1617 {offsets = [0, 0, 0], sizes = [1, 16, 16], strides = [1, 1, 1]} : vector<4x16x16xf32> to vector<1x16x16xf32>
    %1668 = vector.shape_cast %1667 : vector<1x16x16xf32> to vector<16x16xf32>
    %1669 = vector.broadcast %1666 : f32 to vector<16x16xf32>
    %1670 = arith.mulf %1669, %1668 : vector<16x16xf32>
    %1671 = arith.addf %1491, %1670 : vector<16x16xf32>
    %c265 = arith.constant 265 : index
    %1672 = memref.load %arg4[%c265] : memref<288xf32, #tpu.memory_space<smem>>
    %1673 = vector.extract_strided_slice %1617 {offsets = [1, 0, 0], sizes = [1, 16, 16], strides = [1, 1, 1]} : vector<4x16x16xf32> to vector<1x16x16xf32>
    %1674 = vector.shape_cast %1673 : vector<1x16x16xf32> to vector<16x16xf32>
    %1675 = vector.broadcast %1672 : f32 to vector<16x16xf32>
    %1676 = arith.mulf %1675, %1674 : vector<16x16xf32>
    %1677 = arith.addf %1671, %1676 : vector<16x16xf32>
    %c266 = arith.constant 266 : index
    %1678 = memref.load %arg4[%c266] : memref<288xf32, #tpu.memory_space<smem>>
    %1679 = vector.extract_strided_slice %1617 {offsets = [2, 0, 0], sizes = [1, 16, 16], strides = [1, 1, 1]} : vector<4x16x16xf32> to vector<1x16x16xf32>
    %1680 = vector.shape_cast %1679 : vector<1x16x16xf32> to vector<16x16xf32>
    %1681 = vector.broadcast %1678 : f32 to vector<16x16xf32>
    %1682 = arith.mulf %1681, %1680 : vector<16x16xf32>
    %1683 = arith.addf %1677, %1682 : vector<16x16xf32>
    %c267 = arith.constant 267 : index
    %1684 = memref.load %arg4[%c267] : memref<288xf32, #tpu.memory_space<smem>>
    %1685 = vector.extract_strided_slice %1617 {offsets = [3, 0, 0], sizes = [1, 16, 16], strides = [1, 1, 1]} : vector<4x16x16xf32> to vector<1x16x16xf32>
    %1686 = vector.shape_cast %1685 : vector<1x16x16xf32> to vector<16x16xf32>
    %1687 = vector.broadcast %1684 : f32 to vector<16x16xf32>
    %1688 = arith.mulf %1687, %1686 : vector<16x16xf32>
    %1689 = arith.addf %1683, %1688 : vector<16x16xf32>
    %c268 = arith.constant 268 : index
    %1690 = memref.load %arg4[%c268] : memref<288xf32, #tpu.memory_space<smem>>
    %1691 = vector.extract_strided_slice %1617 {offsets = [0, 0, 0], sizes = [1, 16, 16], strides = [1, 1, 1]} : vector<4x16x16xf32> to vector<1x16x16xf32>
    %1692 = vector.shape_cast %1691 : vector<1x16x16xf32> to vector<16x16xf32>
    %1693 = vector.broadcast %1690 : f32 to vector<16x16xf32>
    %1694 = arith.mulf %1693, %1692 : vector<16x16xf32>
    %1695 = arith.addf %1515, %1694 : vector<16x16xf32>
    %c269 = arith.constant 269 : index
    %1696 = memref.load %arg4[%c269] : memref<288xf32, #tpu.memory_space<smem>>
    %1697 = vector.extract_strided_slice %1617 {offsets = [1, 0, 0], sizes = [1, 16, 16], strides = [1, 1, 1]} : vector<4x16x16xf32> to vector<1x16x16xf32>
    %1698 = vector.shape_cast %1697 : vector<1x16x16xf32> to vector<16x16xf32>
    %1699 = vector.broadcast %1696 : f32 to vector<16x16xf32>
    %1700 = arith.mulf %1699, %1698 : vector<16x16xf32>
    %1701 = arith.addf %1695, %1700 : vector<16x16xf32>
    %c270 = arith.constant 270 : index
    %1702 = memref.load %arg4[%c270] : memref<288xf32, #tpu.memory_space<smem>>
    %1703 = vector.extract_strided_slice %1617 {offsets = [2, 0, 0], sizes = [1, 16, 16], strides = [1, 1, 1]} : vector<4x16x16xf32> to vector<1x16x16xf32>
    %1704 = vector.shape_cast %1703 : vector<1x16x16xf32> to vector<16x16xf32>
    %1705 = vector.broadcast %1702 : f32 to vector<16x16xf32>
    %1706 = arith.mulf %1705, %1704 : vector<16x16xf32>
    %1707 = arith.addf %1701, %1706 : vector<16x16xf32>
    %c271 = arith.constant 271 : index
    %1708 = memref.load %arg4[%c271] : memref<288xf32, #tpu.memory_space<smem>>
    %1709 = vector.extract_strided_slice %1617 {offsets = [3, 0, 0], sizes = [1, 16, 16], strides = [1, 1, 1]} : vector<4x16x16xf32> to vector<1x16x16xf32>
    %1710 = vector.shape_cast %1709 : vector<1x16x16xf32> to vector<16x16xf32>
    %1711 = vector.broadcast %1708 : f32 to vector<16x16xf32>
    %1712 = arith.mulf %1711, %1710 : vector<16x16xf32>
    %1713 = arith.addf %1707, %1712 : vector<16x16xf32>
    %c272 = arith.constant 272 : index
    %1714 = memref.load %arg4[%c272] : memref<288xf32, #tpu.memory_space<smem>>
    %1715 = vector.extract_strided_slice %1617 {offsets = [0, 0, 0], sizes = [1, 16, 16], strides = [1, 1, 1]} : vector<4x16x16xf32> to vector<1x16x16xf32>
    %1716 = vector.shape_cast %1715 : vector<1x16x16xf32> to vector<16x16xf32>
    %1717 = vector.broadcast %1714 : f32 to vector<16x16xf32>
    %1718 = arith.mulf %1717, %1716 : vector<16x16xf32>
    %1719 = arith.addf %1539, %1718 : vector<16x16xf32>
    %c273 = arith.constant 273 : index
    %1720 = memref.load %arg4[%c273] : memref<288xf32, #tpu.memory_space<smem>>
    %1721 = vector.extract_strided_slice %1617 {offsets = [1, 0, 0], sizes = [1, 16, 16], strides = [1, 1, 1]} : vector<4x16x16xf32> to vector<1x16x16xf32>
    %1722 = vector.shape_cast %1721 : vector<1x16x16xf32> to vector<16x16xf32>
    %1723 = vector.broadcast %1720 : f32 to vector<16x16xf32>
    %1724 = arith.mulf %1723, %1722 : vector<16x16xf32>
    %1725 = arith.addf %1719, %1724 : vector<16x16xf32>
    %c274 = arith.constant 274 : index
    %1726 = memref.load %arg4[%c274] : memref<288xf32, #tpu.memory_space<smem>>
    %1727 = vector.extract_strided_slice %1617 {offsets = [2, 0, 0], sizes = [1, 16, 16], strides = [1, 1, 1]} : vector<4x16x16xf32> to vector<1x16x16xf32>
    %1728 = vector.shape_cast %1727 : vector<1x16x16xf32> to vector<16x16xf32>
    %1729 = vector.broadcast %1726 : f32 to vector<16x16xf32>
    %1730 = arith.mulf %1729, %1728 : vector<16x16xf32>
    %1731 = arith.addf %1725, %1730 : vector<16x16xf32>
    %c275 = arith.constant 275 : index
    %1732 = memref.load %arg4[%c275] : memref<288xf32, #tpu.memory_space<smem>>
    %1733 = vector.extract_strided_slice %1617 {offsets = [3, 0, 0], sizes = [1, 16, 16], strides = [1, 1, 1]} : vector<4x16x16xf32> to vector<1x16x16xf32>
    %1734 = vector.shape_cast %1733 : vector<1x16x16xf32> to vector<16x16xf32>
    %1735 = vector.broadcast %1732 : f32 to vector<16x16xf32>
    %1736 = arith.mulf %1735, %1734 : vector<16x16xf32>
    %1737 = arith.addf %1731, %1736 : vector<16x16xf32>
    %c276 = arith.constant 276 : index
    %1738 = memref.load %arg4[%c276] : memref<288xf32, #tpu.memory_space<smem>>
    %1739 = vector.extract_strided_slice %1617 {offsets = [0, 0, 0], sizes = [1, 16, 16], strides = [1, 1, 1]} : vector<4x16x16xf32> to vector<1x16x16xf32>
    %1740 = vector.shape_cast %1739 : vector<1x16x16xf32> to vector<16x16xf32>
    %1741 = vector.broadcast %1738 : f32 to vector<16x16xf32>
    %1742 = arith.mulf %1741, %1740 : vector<16x16xf32>
    %1743 = arith.addf %1563, %1742 : vector<16x16xf32>
    %c277 = arith.constant 277 : index
    %1744 = memref.load %arg4[%c277] : memref<288xf32, #tpu.memory_space<smem>>
    %1745 = vector.extract_strided_slice %1617 {offsets = [1, 0, 0], sizes = [1, 16, 16], strides = [1, 1, 1]} : vector<4x16x16xf32> to vector<1x16x16xf32>
    %1746 = vector.shape_cast %1745 : vector<1x16x16xf32> to vector<16x16xf32>
    %1747 = vector.broadcast %1744 : f32 to vector<16x16xf32>
    %1748 = arith.mulf %1747, %1746 : vector<16x16xf32>
    %1749 = arith.addf %1743, %1748 : vector<16x16xf32>
    %c278 = arith.constant 278 : index
    %1750 = memref.load %arg4[%c278] : memref<288xf32, #tpu.memory_space<smem>>
    %1751 = vector.extract_strided_slice %1617 {offsets = [2, 0, 0], sizes = [1, 16, 16], strides = [1, 1, 1]} : vector<4x16x16xf32> to vector<1x16x16xf32>
    %1752 = vector.shape_cast %1751 : vector<1x16x16xf32> to vector<16x16xf32>
    %1753 = vector.broadcast %1750 : f32 to vector<16x16xf32>
    %1754 = arith.mulf %1753, %1752 : vector<16x16xf32>
    %1755 = arith.addf %1749, %1754 : vector<16x16xf32>
    %c279 = arith.constant 279 : index
    %1756 = memref.load %arg4[%c279] : memref<288xf32, #tpu.memory_space<smem>>
    %1757 = vector.extract_strided_slice %1617 {offsets = [3, 0, 0], sizes = [1, 16, 16], strides = [1, 1, 1]} : vector<4x16x16xf32> to vector<1x16x16xf32>
    %1758 = vector.shape_cast %1757 : vector<1x16x16xf32> to vector<16x16xf32>
    %1759 = vector.broadcast %1756 : f32 to vector<16x16xf32>
    %1760 = arith.mulf %1759, %1758 : vector<16x16xf32>
    %1761 = arith.addf %1755, %1760 : vector<16x16xf32>
    %c280 = arith.constant 280 : index
    %1762 = memref.load %arg4[%c280] : memref<288xf32, #tpu.memory_space<smem>>
    %1763 = vector.extract_strided_slice %1617 {offsets = [0, 0, 0], sizes = [1, 16, 16], strides = [1, 1, 1]} : vector<4x16x16xf32> to vector<1x16x16xf32>
    %1764 = vector.shape_cast %1763 : vector<1x16x16xf32> to vector<16x16xf32>
    %1765 = vector.broadcast %1762 : f32 to vector<16x16xf32>
    %1766 = arith.mulf %1765, %1764 : vector<16x16xf32>
    %1767 = arith.addf %1587, %1766 : vector<16x16xf32>
    %c281 = arith.constant 281 : index
    %1768 = memref.load %arg4[%c281] : memref<288xf32, #tpu.memory_space<smem>>
    %1769 = vector.extract_strided_slice %1617 {offsets = [1, 0, 0], sizes = [1, 16, 16], strides = [1, 1, 1]} : vector<4x16x16xf32> to vector<1x16x16xf32>
    %1770 = vector.shape_cast %1769 : vector<1x16x16xf32> to vector<16x16xf32>
    %1771 = vector.broadcast %1768 : f32 to vector<16x16xf32>
    %1772 = arith.mulf %1771, %1770 : vector<16x16xf32>
    %1773 = arith.addf %1767, %1772 : vector<16x16xf32>
    %c282 = arith.constant 282 : index
    %1774 = memref.load %arg4[%c282] : memref<288xf32, #tpu.memory_space<smem>>
    %1775 = vector.extract_strided_slice %1617 {offsets = [2, 0, 0], sizes = [1, 16, 16], strides = [1, 1, 1]} : vector<4x16x16xf32> to vector<1x16x16xf32>
    %1776 = vector.shape_cast %1775 : vector<1x16x16xf32> to vector<16x16xf32>
    %1777 = vector.broadcast %1774 : f32 to vector<16x16xf32>
    %1778 = arith.mulf %1777, %1776 : vector<16x16xf32>
    %1779 = arith.addf %1773, %1778 : vector<16x16xf32>
    %c283 = arith.constant 283 : index
    %1780 = memref.load %arg4[%c283] : memref<288xf32, #tpu.memory_space<smem>>
    %1781 = vector.extract_strided_slice %1617 {offsets = [3, 0, 0], sizes = [1, 16, 16], strides = [1, 1, 1]} : vector<4x16x16xf32> to vector<1x16x16xf32>
    %1782 = vector.shape_cast %1781 : vector<1x16x16xf32> to vector<16x16xf32>
    %1783 = vector.broadcast %1780 : f32 to vector<16x16xf32>
    %1784 = arith.mulf %1783, %1782 : vector<16x16xf32>
    %1785 = arith.addf %1779, %1784 : vector<16x16xf32>
    %c284 = arith.constant 284 : index
    %1786 = memref.load %arg4[%c284] : memref<288xf32, #tpu.memory_space<smem>>
    %1787 = vector.extract_strided_slice %1617 {offsets = [0, 0, 0], sizes = [1, 16, 16], strides = [1, 1, 1]} : vector<4x16x16xf32> to vector<1x16x16xf32>
    %1788 = vector.shape_cast %1787 : vector<1x16x16xf32> to vector<16x16xf32>
    %1789 = vector.broadcast %1786 : f32 to vector<16x16xf32>
    %1790 = arith.mulf %1789, %1788 : vector<16x16xf32>
    %1791 = arith.addf %1611, %1790 : vector<16x16xf32>
    %c285 = arith.constant 285 : index
    %1792 = memref.load %arg4[%c285] : memref<288xf32, #tpu.memory_space<smem>>
    %1793 = vector.extract_strided_slice %1617 {offsets = [1, 0, 0], sizes = [1, 16, 16], strides = [1, 1, 1]} : vector<4x16x16xf32> to vector<1x16x16xf32>
    %1794 = vector.shape_cast %1793 : vector<1x16x16xf32> to vector<16x16xf32>
    %1795 = vector.broadcast %1792 : f32 to vector<16x16xf32>
    %1796 = arith.mulf %1795, %1794 : vector<16x16xf32>
    %1797 = arith.addf %1791, %1796 : vector<16x16xf32>
    %c286 = arith.constant 286 : index
    %1798 = memref.load %arg4[%c286] : memref<288xf32, #tpu.memory_space<smem>>
    %1799 = vector.extract_strided_slice %1617 {offsets = [2, 0, 0], sizes = [1, 16, 16], strides = [1, 1, 1]} : vector<4x16x16xf32> to vector<1x16x16xf32>
    %1800 = vector.shape_cast %1799 : vector<1x16x16xf32> to vector<16x16xf32>
    %1801 = vector.broadcast %1798 : f32 to vector<16x16xf32>
    %1802 = arith.mulf %1801, %1800 : vector<16x16xf32>
    %1803 = arith.addf %1797, %1802 : vector<16x16xf32>
    %c287 = arith.constant 287 : index
    %1804 = memref.load %arg4[%c287] : memref<288xf32, #tpu.memory_space<smem>>
    %1805 = vector.extract_strided_slice %1617 {offsets = [3, 0, 0], sizes = [1, 16, 16], strides = [1, 1, 1]} : vector<4x16x16xf32> to vector<1x16x16xf32>
    %1806 = vector.shape_cast %1805 : vector<1x16x16xf32> to vector<16x16xf32>
    %1807 = vector.broadcast %1804 : f32 to vector<16x16xf32>
    %1808 = arith.mulf %1807, %1806 : vector<16x16xf32>
    %1809 = arith.addf %1803, %1808 : vector<16x16xf32>
    %c0_59 = arith.constant 0 : index
    %1810 = memref.load %arg5[%c0_59] : memref<8xf32, #tpu.memory_space<smem>>
    %1811 = vector.broadcast %1810 : f32 to vector<16x16xf32>
    %1812 = arith.addf %1641, %1811 : vector<16x16xf32>
    %c0_60 = arith.constant 0 : index
    %c0_61 = arith.constant 0 : index
    %c0_62 = arith.constant 0 : index
    %c0_63 = arith.constant 0 : index
    %1813 = vector.load %arg6[%c0_60, %c0_61, %c0_62, %c0_63] : memref<1x8x16x16xf32, #tpu.memory_space<vmem>>, vector<1x1x16x16xf32>
    %1814 = vector.shape_cast %1813 : vector<1x1x16x16xf32> to vector<16x16xf32>
    %1815 = vector.shape_cast %1812 : vector<16x16xf32> to vector<1x1x16x16xf32>
    tpu.vector_store %arg6[%c0_60, %c0_61, %c0_62, %c0_63], %1815 {strides = array<i32>} : memref<1x8x16x16xf32, #tpu.memory_space<vmem>>, vector<1x1x16x16xf32>,
    %c1_64 = arith.constant 1 : index
    %1816 = memref.load %arg5[%c1_64] : memref<8xf32, #tpu.memory_space<smem>>
    %1817 = vector.broadcast %1816 : f32 to vector<16x16xf32>
    %1818 = arith.addf %1665, %1817 : vector<16x16xf32>
    %c0_65 = arith.constant 0 : index
    %c1_66 = arith.constant 1 : index
    %c0_67 = arith.constant 0 : index
    %c0_68 = arith.constant 0 : index
    %1819 = vector.load %arg6[%c0_65, %c1_66, %c0_67, %c0_68] : memref<1x8x16x16xf32, #tpu.memory_space<vmem>>, vector<1x1x16x16xf32>
    %1820 = vector.shape_cast %1819 : vector<1x1x16x16xf32> to vector<16x16xf32>
    %1821 = vector.shape_cast %1818 : vector<16x16xf32> to vector<1x1x16x16xf32>
    tpu.vector_store %arg6[%c0_65, %c1_66, %c0_67, %c0_68], %1821 {strides = array<i32>} : memref<1x8x16x16xf32, #tpu.memory_space<vmem>>, vector<1x1x16x16xf32>,
    %c2_69 = arith.constant 2 : index
    %1822 = memref.load %arg5[%c2_69] : memref<8xf32, #tpu.memory_space<smem>>
    %1823 = vector.broadcast %1822 : f32 to vector<16x16xf32>
    %1824 = arith.addf %1689, %1823 : vector<16x16xf32>
    %c0_70 = arith.constant 0 : index
    %c2_71 = arith.constant 2 : index
    %c0_72 = arith.constant 0 : index
    %c0_73 = arith.constant 0 : index
    %1825 = vector.load %arg6[%c0_70, %c2_71, %c0_72, %c0_73] : memref<1x8x16x16xf32, #tpu.memory_space<vmem>>, vector<1x1x16x16xf32>
    %1826 = vector.shape_cast %1825 : vector<1x1x16x16xf32> to vector<16x16xf32>
    %1827 = vector.shape_cast %1824 : vector<16x16xf32> to vector<1x1x16x16xf32>
    tpu.vector_store %arg6[%c0_70, %c2_71, %c0_72, %c0_73], %1827 {strides = array<i32>} : memref<1x8x16x16xf32, #tpu.memory_space<vmem>>, vector<1x1x16x16xf32>,
    %c3_74 = arith.constant 3 : index
    %1828 = memref.load %arg5[%c3_74] : memref<8xf32, #tpu.memory_space<smem>>
    %1829 = vector.broadcast %1828 : f32 to vector<16x16xf32>
    %1830 = arith.addf %1713, %1829 : vector<16x16xf32>
    %c0_75 = arith.constant 0 : index
    %c3_76 = arith.constant 3 : index
    %c0_77 = arith.constant 0 : index
    %c0_78 = arith.constant 0 : index
    %1831 = vector.load %arg6[%c0_75, %c3_76, %c0_77, %c0_78] : memref<1x8x16x16xf32, #tpu.memory_space<vmem>>, vector<1x1x16x16xf32>
    %1832 = vector.shape_cast %1831 : vector<1x1x16x16xf32> to vector<16x16xf32>
    %1833 = vector.shape_cast %1830 : vector<16x16xf32> to vector<1x1x16x16xf32>
    tpu.vector_store %arg6[%c0_75, %c3_76, %c0_77, %c0_78], %1833 {strides = array<i32>} : memref<1x8x16x16xf32, #tpu.memory_space<vmem>>, vector<1x1x16x16xf32>,
    %c4_79 = arith.constant 4 : index
    %1834 = memref.load %arg5[%c4_79] : memref<8xf32, #tpu.memory_space<smem>>
    %1835 = vector.broadcast %1834 : f32 to vector<16x16xf32>
    %1836 = arith.addf %1737, %1835 : vector<16x16xf32>
    %c0_80 = arith.constant 0 : index
    %c4_81 = arith.constant 4 : index
    %c0_82 = arith.constant 0 : index
    %c0_83 = arith.constant 0 : index
    %1837 = vector.load %arg6[%c0_80, %c4_81, %c0_82, %c0_83] : memref<1x8x16x16xf32, #tpu.memory_space<vmem>>, vector<1x1x16x16xf32>
    %1838 = vector.shape_cast %1837 : vector<1x1x16x16xf32> to vector<16x16xf32>
    %1839 = vector.shape_cast %1836 : vector<16x16xf32> to vector<1x1x16x16xf32>
    tpu.vector_store %arg6[%c0_80, %c4_81, %c0_82, %c0_83], %1839 {strides = array<i32>} : memref<1x8x16x16xf32, #tpu.memory_space<vmem>>, vector<1x1x16x16xf32>,
    %c5_84 = arith.constant 5 : index
    %1840 = memref.load %arg5[%c5_84] : memref<8xf32, #tpu.memory_space<smem>>
    %1841 = vector.broadcast %1840 : f32 to vector<16x16xf32>
    %1842 = arith.addf %1761, %1841 : vector<16x16xf32>
    %c0_85 = arith.constant 0 : index
    %c5_86 = arith.constant 5 : index
    %c0_87 = arith.constant 0 : index
    %c0_88 = arith.constant 0 : index
    %1843 = vector.load %arg6[%c0_85, %c5_86, %c0_87, %c0_88] : memref<1x8x16x16xf32, #tpu.memory_space<vmem>>, vector<1x1x16x16xf32>
    %1844 = vector.shape_cast %1843 : vector<1x1x16x16xf32> to vector<16x16xf32>
    %1845 = vector.shape_cast %1842 : vector<16x16xf32> to vector<1x1x16x16xf32>
    tpu.vector_store %arg6[%c0_85, %c5_86, %c0_87, %c0_88], %1845 {strides = array<i32>} : memref<1x8x16x16xf32, #tpu.memory_space<vmem>>, vector<1x1x16x16xf32>,
    %c6_89 = arith.constant 6 : index
    %1846 = memref.load %arg5[%c6_89] : memref<8xf32, #tpu.memory_space<smem>>
    %1847 = vector.broadcast %1846 : f32 to vector<16x16xf32>
    %1848 = arith.addf %1785, %1847 : vector<16x16xf32>
    %c0_90 = arith.constant 0 : index
    %c6_91 = arith.constant 6 : index
    %c0_92 = arith.constant 0 : index
    %c0_93 = arith.constant 0 : index
    %1849 = vector.load %arg6[%c0_90, %c6_91, %c0_92, %c0_93] : memref<1x8x16x16xf32, #tpu.memory_space<vmem>>, vector<1x1x16x16xf32>
    %1850 = vector.shape_cast %1849 : vector<1x1x16x16xf32> to vector<16x16xf32>
    %1851 = vector.shape_cast %1848 : vector<16x16xf32> to vector<1x1x16x16xf32>
    tpu.vector_store %arg6[%c0_90, %c6_91, %c0_92, %c0_93], %1851 {strides = array<i32>} : memref<1x8x16x16xf32, #tpu.memory_space<vmem>>, vector<1x1x16x16xf32>,
    %c7_94 = arith.constant 7 : index
    %1852 = memref.load %arg5[%c7_94] : memref<8xf32, #tpu.memory_space<smem>>
    %1853 = vector.broadcast %1852 : f32 to vector<16x16xf32>
    %1854 = arith.addf %1809, %1853 : vector<16x16xf32>
    %c0_95 = arith.constant 0 : index
    %c7_96 = arith.constant 7 : index
    %c0_97 = arith.constant 0 : index
    %c0_98 = arith.constant 0 : index
    %1855 = vector.load %arg6[%c0_95, %c7_96, %c0_97, %c0_98] : memref<1x8x16x16xf32, #tpu.memory_space<vmem>>, vector<1x1x16x16xf32>
    %1856 = vector.shape_cast %1855 : vector<1x1x16x16xf32> to vector<16x16xf32>
    %1857 = vector.shape_cast %1854 : vector<16x16xf32> to vector<1x1x16x16xf32>
    tpu.vector_store %arg6[%c0_95, %c7_96, %c0_97, %c0_98], %1857 {strides = array<i32>} : memref<1x8x16x16xf32, #tpu.memory_space<vmem>>, vector<1x1x16x16xf32>,
    return
  }
  func.func @transform_0(%arg0: i32) -> (i32, i32, i32, i32) {
    %c0_i32 = arith.constant 0 : i32
    %c0_i32_0 = arith.constant 0 : i32
    %c0_i32_1 = arith.constant 0 : i32
    %c0_i32_2 = arith.constant 0 : i32
    return %arg0, %c0_i32, %c0_i32_0, %c0_i32_1 : i32, i32, i32, i32
  }
  func.func @transform_1(%arg0: i32) -> (i32, i32, i32) {
    %c0_i32 = arith.constant 0 : i32
    %c0_i32_0 = arith.constant 0 : i32
    %c0_i32_1 = arith.constant 0 : i32
    %c0_i32_2 = arith.constant 0 : i32
    return %c0_i32, %c0_i32_0, %c0_i32_1 : i32, i32, i32
  }
  func.func @transform_2(%arg0: i32) -> (i32, i32, i32) {
    %c0_i32 = arith.constant 0 : i32
    %c0_i32_0 = arith.constant 0 : i32
    %c0_i32_1 = arith.constant 0 : i32
    %c0_i32_2 = arith.constant 0 : i32
    return %c0_i32, %c0_i32_0, %c0_i32_1 : i32, i32, i32
  }
  func.func @transform_3(%arg0: i32) -> i32 {
    %c0_i32 = arith.constant 0 : i32
    %c0_i32_0 = arith.constant 0 : i32
    return %c0_i32 : i32
  }
  func.func @transform_4(%arg0: i32) -> i32 {
    %c0_i32 = arith.constant 0 : i32
    %c0_i32_0 = arith.constant 0 : i32
    return %c0_i32 : i32
  }
  func.func @transform_5(%arg0: i32) -> (i32, i32, i32, i32) {
    %c0_i32 = arith.constant 0 : i32
    %c0_i32_0 = arith.constant 0 : i32
    %c0_i32_1 = arith.constant 0 : i32
    %c0_i32_2 = arith.constant 0 : i32
    return %arg0, %c0_i32, %c0_i32_0, %c0_i32_1 : i32, i32, i32, i32
  }
}

</mosaic_0001>

<llo_original>
// kernel: deform_conv_forward.1
$region0: #{deform_conv_forward.1}
  #allocation0 [shape = 'u32[]', space=smem, size = 0x4, offset = 0x4, fixed_abs, tag = 'smem constant byte address 0x4 - core index']
  #allocation1 [shape = 'u32[72,128]{1,0:T(1,128)}', space=vmem, size = 0x9000, scoped, tag = 'internal scratch']
  %s0 = inlined_call_operand.vmem [shape: f32[2,4,16,16], index: 0, kind: input, shape index: {}]
  %s1 = inlined_call_operand.vmem [shape: f32[3,16,16], index: 1, kind: input, shape index: {}]
  %s2 = inlined_call_operand.vmem [shape: f32[3,16,16], index: 2, kind: input, shape index: {}]
  %s3 = inlined_call_operand.vmem [shape: f32[288], index: 3, kind: input, shape index: {}]
  %s4 = inlined_call_operand.vmem [shape: f32[8], index: 4, kind: input, shape index: {}]
  %s5 = inlined_call_operand.hbm [shape: f32[2,8,16,16], index: 5, kind: output, shape index: {}]
  %s6 = sld [smem:[#allocation0]]
  $region61: #{deform_conv_forward.1} parent=0
    _
  %s8 = ssub.s32 1, %s6
  %s9 = scalar_select 0, %s8, %s6
  $region1: #{deform_conv_forward.1} parent=0
    #allocation2 [shape = 'u8[1536]{0}', space=smem, size = 0x600, scoped, tag = 'input window, operand 3, single buffered']
    #allocation3 [shape = 's32[2]{0}', space=sflag, size = 0x8, scoped, tag = 'scoped memory for deform_conv_forward.1']
    #allocation4 [shape = 's32[2]{0}', space=sflag, size = 0x8, scoped, tag = 'scoped memory for deform_conv_forward.1']
    #allocation5 [shape = 'u8[512]{0}', space=smem, size = 0x200, scoped, tag = 'input window, operand 4, single buffered']
    #allocation6 [shape = 's32[1]{0}', space=sflag, size = 0x4, scoped, tag = 'scoped memory for deform_conv_forward.1']
    #allocation7 [shape = 'u8[131072]{0}', space=vmem, size = 0x20000, scoped, tag = 'output window, operand 0']
    %10 = vsyncpa [#allocation4], 0
    %11 = vsyncpa [#allocation6], 0
    %12 = vsyncpa [#allocation3], 0
    %s13 = scalar_lea.sflag [#allocation3], 1
    %14 = vsyncpa %s13, 0
    loop: start=0, step=1, limit=4
    $region2: #{deform_conv_forward.1} parent=1 // loop_pre_header
      _
    $region3: #{deform_conv_forward.1} parent=1 // loop_header
      %s16 = sphi 0, %s20
      %p17 = scmp.ge.s32.totalorder %s16, 4
      %s26 = sphi 0, %s28
      %s29 = sphi 0, %s26
      %s30 = sphi 0, %s29
      %s46 = sphi 0, %s30
      %s50 = sphi 0, %s50
      %s52 = sphi 0, %s50
      %s53 = sphi 0, %s52
      %s67 = sphi 0, %s53
      %s71 = sphi 0, %s71
      %s73 = sphi 0, %s71
      %s74 = sphi 0, %s73
      %s88 = sphi 0, %s74
      %s92 = sphi 0, %s92
      %s94 = sphi 0, %s92
      %s95 = sphi 0, %s94
      %s109 = sphi 0, %s95
      %s113 = sphi 0, %s113
      %s115 = sphi 0, %s113
      %s116 = sphi 0, %s115
      %s130 = sphi 0, %s116
      %s136 = sphi 0, %s138
      %s139 = sphi 0, %s136
      %s140 = sphi 0, %s139
      %s156 = sphi 0, %s140
    $region4: #{deform_conv_forward.1} parent=1 // loop_header_branch
      %19 = sbr.rel (%p17) target = $region8
    $region5: #{deform_conv_forward.1} parent=1 // loop_body
      %s21 = ssub.s32 %s16, 1
      %s22 = ssub.s32 %s16, 2
      %s23 = sadd.s32 %s16, 1
      %s24 = ssub.s32 %s16, %s23
      %p25 = scmp.eq.s32.totalorder %s24, 0
      %s27 = sadd.s32 %s26, 1
      %s28 = scalar_select %p25, %s26, %s27
      %p31 = pneg %p25
      %p32 = scmp.eq.s32.totalorder %s16, 1
      %p33 = por %p31, %p32
      %p34 = scmp.ne.s32.totalorder %s26, %s29
      %p35 = scmp.eq.s32.totalorder %s16, 0
      %p36 = por %p34, %p35
      %p37 = scmp.ne.s32.totalorder %s26, %s29
      %p38 = scmp.eq.s32.totalorder %s21, 1
      %p39 = por %p37, %p38
      %p40 = scmp.ne.s32.totalorder %s29, %s30
      %p41 = scmp.eq.s32.totalorder %s21, 0
      %p42 = por %p40, %p41
      %p43 = scmp.ne.s32.totalorder %s29, %s30
      %p44 = scmp.eq.s32.totalorder %s22, 1
      %p45 = por %p43, %p44
      %p47 = scmp.ne.s32.totalorder %s30, %s46
      %p48 = scmp.eq.s32.totalorder %s22, 0
      %p49 = por %p47, %p48
      %s51 = sadd.s32 %s50, 1
      %p54 = scmp.eq.s32.totalorder %s16, 1
      %p55 = scmp.ne.s32.totalorder %s50, %s52
      %p56 = scmp.eq.s32.totalorder %s16, 0
      %p57 = por %p55, %p56
      %p58 = scmp.ne.s32.totalorder %s50, %s52
      %p59 = scmp.eq.s32.totalorder %s21, 1
      %p60 = por %p58, %p59
      %p61 = scmp.ne.s32.totalorder %s52, %s53
      %p62 = scmp.eq.s32.totalorder %s21, 0
      %p63 = por %p61, %p62
      %p64 = scmp.ne.s32.totalorder %s52, %s53
      %p65 = scmp.eq.s32.totalorder %s22, 1
      %p66 = por %p64, %p65
      %p68 = scmp.ne.s32.totalorder %s53, %s67
      %p69 = scmp.eq.s32.totalorder %s22, 0
      %p70 = por %p68, %p69
      %s72 = sadd.s32 %s71, 1
      %p75 = scmp.eq.s32.totalorder %s16, 1
      %p76 = scmp.ne.s32.totalorder %s71, %s73
      %p77 = scmp.eq.s32.totalorder %s16, 0
      %p78 = por %p76, %p77
      %p79 = scmp.ne.s32.totalorder %s71, %s73
      %p80 = scmp.eq.s32.totalorder %s21, 1
      %p81 = por %p79, %p80
      %p82 = scmp.ne.s32.totalorder %s73, %s74
      %p83 = scmp.eq.s32.totalorder %s21, 0
      %p84 = por %p82, %p83
      %p85 = scmp.ne.s32.totalorder %s73, %s74
      %p86 = scmp.eq.s32.totalorder %s22, 1
      %p87 = por %p85, %p86
      %p89 = scmp.ne.s32.totalorder %s74, %s88
      %p90 = scmp.eq.s32.totalorder %s22, 0
      %p91 = por %p89, %p90
      %s93 = sadd.s32 %s92, 1
      %p96 = scmp.eq.s32.totalorder %s16, 1
      %p97 = scmp.ne.s32.totalorder %s92, %s94
      %p98 = scmp.eq.s32.totalorder %s16, 0
      %p99 = por %p97, %p98
      %p100 = scmp.ne.s32.totalorder %s92, %s94
      %p101 = scmp.eq.s32.totalorder %s21, 1
      %p102 = por %p100, %p101
      %p103 = scmp.ne.s32.totalorder %s94, %s95
      %p104 = scmp.eq.s32.totalorder %s21, 0
      %p105 = por %p103, %p104
      %p106 = scmp.ne.s32.totalorder %s94, %s95
      %p107 = scmp.eq.s32.totalorder %s22, 1
      %p108 = por %p106, %p107
      %p110 = scmp.ne.s32.totalorder %s95, %s109
      %p111 = scmp.eq.s32.totalorder %s22, 0
      %p112 = por %p110, %p111
      %s114 = sadd.s32 %s113, 1
      %p117 = scmp.eq.s32.totalorder %s16, 1
      %p118 = scmp.ne.s32.totalorder %s113, %s115
      %p119 = scmp.eq.s32.totalorder %s16, 0
      %p120 = por %p118, %p119
      %p121 = scmp.ne.s32.totalorder %s113, %s115
      %p122 = scmp.eq.s32.totalorder %s21, 1
      %p123 = por %p121, %p122
      %p124 = scmp.ne.s32.totalorder %s115, %s116
      %p125 = scmp.eq.s32.totalorder %s21, 0
      %p126 = por %p124, %p125
      %p127 = scmp.ne.s32.totalorder %s115, %s116
      %p128 = scmp.eq.s32.totalorder %s22, 1
      %p129 = por %p127, %p128
      %p131 = scmp.ne.s32.totalorder %s116, %s130
      %p132 = scmp.eq.s32.totalorder %s22, 0
      %p133 = por %p131, %p132
      %s134 = ssub.s32 %s16, %s23
      %p135 = scmp.eq.s32.totalorder %s134, 0
      %s137 = sadd.s32 %s136, 1
      %s138 = scalar_select %p135, %s136, %s137
      %p141 = pneg %p135
      %p142 = scmp.eq.s32.totalorder %s16, 1
      %p143 = por %p141, %p142
      %p144 = scmp.ne.s32.totalorder %s136, %s139
      %p145 = scmp.eq.s32.totalorder %s16, 0
      %p146 = por %p144, %p145
      %p147 = scmp.ne.s32.totalorder %s136, %s139
      %p148 = scmp.eq.s32.totalorder %s21, 1
      %p149 = por %p147, %p148
      %p150 = scmp.ne.s32.totalorder %s139, %s140
      %p151 = scmp.eq.s32.totalorder %s21, 0
      %p152 = por %p150, %p151
      %p153 = scmp.ne.s32.totalorder %s139, %s140
      %p154 = scmp.eq.s32.totalorder %s22, 1
      %p155 = por %p153, %p154
      %p157 = scmp.ne.s32.totalorder %s140, %s156
      %p158 = scmp.eq.s32.totalorder %s22, 0
      %p159 = por %p157, %p158
      %p160 = scmp.le.s32.totalorder 1, %s16
      %p161 = scmp.lt.s32.totalorder %s16, 3
      %p162 = pnand %p160, %p161
      %p163 = pneg %p162
      // Predicated region
      $region9: #{deform_conv_forward.1} parent=5 // pred_check
        _
      $region10: #{deform_conv_forward.1} parent=5 // pred_check_branch
        %165 = sbr.rel (%p162) target = $region12
      $region11: #{deform_conv_forward.1} parent=5 // pred_region
        %s166 = ssub.s32 %s16, 1
        // Predicated region
        $region13: #{deform_conv_forward.1} parent=11 // pred_check
          %p167 = pneg %p63
        $region14: #{deform_conv_forward.1} parent=11 // pred_check_branch
          %169 = sbr.rel (%p167) target = $region16
        $region15: #{deform_conv_forward.1} parent=11 // pred_region
          _
        $region16: #{deform_conv_forward.1} parent=11 // pred_fallthru
          _
        // Predicated region
        $region17: #{deform_conv_forward.1} parent=11 // pred_check
          %p170 = pneg %p84
        $region18: #{deform_conv_forward.1} parent=11 // pred_check_branch
          %172 = sbr.rel (%p170) target = $region20
        $region19: #{deform_conv_forward.1} parent=11 // pred_region
          _
        $region20: #{deform_conv_forward.1} parent=11 // pred_fallthru
          _
        // Predicated region
        $region21: #{deform_conv_forward.1} parent=11 // pred_check
          %p173 = pneg %p105
        $region22: #{deform_conv_forward.1} parent=11 // pred_check_branch
          %175 = sbr.rel (%p173) target = $region24
        $region23: #{deform_conv_forward.1} parent=11 // pred_region
          %177 = vsyncadd [#allocation4], 0
          %s179 = sshll.u32 %s3, 4
          %s180 = int_to_ptr.vmem [resolvable:$true] %s179
          %182 = dma.vmem_to_smem %s180, 48, [#allocation2], [#allocation4]
        $region24: #{deform_conv_forward.1} parent=11 // pred_fallthru
          _
        // Predicated region
        $region25: #{deform_conv_forward.1} parent=11 // pred_check
          %p183 = pneg %p126
        $region26: #{deform_conv_forward.1} parent=11 // pred_check_branch
          %185 = sbr.rel (%p183) target = $region28
        $region27: #{deform_conv_forward.1} parent=11 // pred_region
          %187 = vsyncadd [#allocation6], 0
          %s189 = sshll.u32 %s4, 4
          %s190 = int_to_ptr.vmem [resolvable:$true] %s189
          %192 = dma.vmem_to_smem %s190, 16, [#allocation5], [#allocation6]
        $region28: #{deform_conv_forward.1} parent=11 // pred_fallthru
          _
      $region12: #{deform_conv_forward.1} parent=5 // pred_fallthru
        _
      %p193 = scmp.lt.s32.totalorder %s16, 2
      // Predicated region
      $region29: #{deform_conv_forward.1} parent=5 // pred_check
        %p194 = pneg %p193
      $region30: #{deform_conv_forward.1} parent=5 // pred_check_branch
        %196 = sbr.rel (%p194) target = $region32
      $region31: #{deform_conv_forward.1} parent=5 // pred_region
        // Predicated region
        $region33: #{deform_conv_forward.1} parent=31 // pred_check
          %p197 = pneg %p36
        $region34: #{deform_conv_forward.1} parent=31 // pred_check_branch
          %199 = sbr.rel (%p197) target = $region36
        $region35: #{deform_conv_forward.1} parent=31 // pred_region
          %p200 = scmp.lt.s32.totalorder %s16, 1
          %s201 = scalar_select %p200, %s16, 1
          %s202 = smul.addr %s201, 8
          %s203 = smul.addr %s202, 8
          %s204 = scalar_lea.vmem %s0, %s203
        $region36: #{deform_conv_forward.1} parent=31 // pred_fallthru
          _
      $region32: #{deform_conv_forward.1} parent=5 // pred_fallthru
        _
      %p205 = scmp.le.s32.totalorder 1, %s16
      %p206 = scmp.lt.s32.totalorder %s16, 3
      %p207 = pnand %p205, %p206
      %p208 = pneg %p207
      // Predicated region
      $region37: #{deform_conv_forward.1} parent=5 // pred_check
        _
      $region38: #{deform_conv_forward.1} parent=5 // pred_check_branch
        %210 = sbr.rel (%p207) target = $region40
      $region39: #{deform_conv_forward.1} parent=5 // pred_region
        %s211 = ssub.s32 %s16, 1
        // Predicated region
        $region41: #{deform_conv_forward.1} parent=39 // pred_check
          %p212 = pneg %p105
        $region42: #{deform_conv_forward.1} parent=39 // pred_check_branch
          %214 = sbr.rel (%p212) target = $region44
        $region43: #{deform_conv_forward.1} parent=39 // pred_region
          %216 = dma.done [#allocation4], 48
        $region44: #{deform_conv_forward.1} parent=39 // pred_fallthru
          _
        // Predicated region
        $region45: #{deform_conv_forward.1} parent=39 // pred_check
          %p217 = pneg %p126
        $region46: #{deform_conv_forward.1} parent=39 // pred_check_branch
          %219 = sbr.rel (%p217) target = $region48
        $region47: #{deform_conv_forward.1} parent=39 // pred_region
          %221 = dma.done [#allocation6], 16
        $region48: #{deform_conv_forward.1} parent=39 // pred_fallthru
          _
        %222 = sfence
        %p223 = scmp.lt.s32.totalorder %s21, 1
        %s224 = scalar_select %p223, %s21, 1
        %s225 = smul.addr %s224, 8
        %s226 = smul.addr %s225, 8
        %s227 = scalar_lea.vmem %s0, %s226
        %p228 = pneg %p42
        %p229 = pneg %p39
        %p230 = pneg %p63
        %p231 = pneg %p60
        %p232 = pneg %p84
        %p233 = pneg %p81
        %p234 = pneg %p105
        %p235 = pneg %p102
        %p236 = pneg %p126
        %p237 = pneg %p123
        %p238 = pneg %p152
        %p239 = pneg %p149
        %s240 = sand.u32 %s139, 1
        %s241 = scalar_lea.sflag [#allocation3], %s240
        %s242 = sand.u32 %s139, 1
        %s243 = smul.addr %s242, 128
        %s244 = scalar_lea.vmem [#allocation7], %s243
        %p245 = scmp.lt.s32.totalorder %s21, 1
        %s246 = scalar_select %p245, %s21, 1
        %s247 = smul.addr %s246, 8
        %s248 = smul.addr %s247, 8
        %s249 = scalar_lea.vmem %s0, %s248
        %v250 = vld [vmem:[%s249] sm:$0xff]
        %v251 = vld [vmem:[%s249 + $0x8] sm:$0xff]
        %v252 = vld [vmem:[%s249 + $0x10] sm:$0xff]
        %v253 = vld [vmem:[%s249 + $0x18] sm:$0xff]
        %v254 = vld [vmem:[%s249 + $0x20] sm:$0xff]
        %v255 = vld [vmem:[%s249 + $0x28] sm:$0xff]
        %v256 = vld [vmem:[%s249 + $0x30] sm:$0xff]
        %v257 = vld [vmem:[%s249 + $0x38] sm:$0xff]
        %v258 = vld [vmem:[%s1] sm:$0xff]
        %v259 = vld [vmem:[%s1 + $0x8] sm:$0xff]
        %vm260 = vcmask 130048
        %v262 = vsel %vm260, %v258, 0
        %v265 = vsel %vm260, %v259, 0
        %v268 = vsel %vm260, %v250, 0
        %v271 = vsel %vm260, %v251, 0
        %273 = vmatpush.xpose.msra.mxu0 0.0
        %274 = vmatpush.xpose.msra.mxu0 0.0
        %275 = vmatpush.xpose.msra.mxu0 0.0
        %276 = vmatpush.xpose.msra.mxu0 0.0
        %277 = vmatpush.xpose.msra.mxu0 0.0
        %278 = vmatpush.xpose.msra.mxu0 0.0
        %279 = vmatpush.xpose.msra.mxu0 0.0
        %280 = vmatpush.xpose.msra.mxu0 0.0
        %281 = vmatpush.xpose.msra.mxu0 0.0
        %282 = vmatpush.xpose.msra.mxu0 0.0
        %283 = vmatpush.xpose.msra.mxu0 0.0
        %284 = vmatpush.xpose.msra.mxu0 0.0
        %285 = vmatpush.xpose.msra.mxu0 0.0
        %286 = vmatpush.xpose.msra.mxu0 0.0
        %287 = vmatpush.xpose.msra.mxu0 %v271
        %288 = vmatpush.xpose.msra.mxu0 %v268
        %289 = vmatmul.f32.gmra.mxu0 %v262
        %v290 = vpop.f32.mrf.mxu0
        %v291 = vadd.f32 0.0, %v290
        %292 = vmatmul.f32.gmra.mxu0 %v265
        %v293 = vpop.f32.mrf.mxu0
        %v294 = vadd.f32 0.0, %v293
        %295 = vdwg.mxu0
        %v297 = vsel %vm260, %v252, 0
        %v300 = vsel %vm260, %v253, 0
        %302 = vmatpush.xpose.msra.mxu0 0.0
        %303 = vmatpush.xpose.msra.mxu0 0.0
        %304 = vmatpush.xpose.msra.mxu0 0.0
        %305 = vmatpush.xpose.msra.mxu0 0.0
        %306 = vmatpush.xpose.msra.mxu0 0.0
        %307 = vmatpush.xpose.msra.mxu0 0.0
        %308 = vmatpush.xpose.msra.mxu0 0.0
        %309 = vmatpush.xpose.msra.mxu0 0.0
        %310 = vmatpush.xpose.msra.mxu0 0.0
        %311 = vmatpush.xpose.msra.mxu0 0.0
        %312 = vmatpush.xpose.msra.mxu0 0.0
        %313 = vmatpush.xpose.msra.mxu0 0.0
        %314 = vmatpush.xpose.msra.mxu0 0.0
        %315 = vmatpush.xpose.msra.mxu0 0.0
        %316 = vmatpush.xpose.msra.mxu0 %v300
        %317 = vmatpush.xpose.msra.mxu0 %v297
        %318 = vmatmul.f32.gmra.mxu0 %v262
        %v319 = vpop.f32.mrf.mxu0
        %v320 = vadd.f32 0.0, %v319
        %321 = vmatmul.f32.gmra.mxu0 %v265
        %v322 = vpop.f32.mrf.mxu0
        %v323 = vadd.f32 0.0, %v322
        %324 = vdwg.mxu0
        %v326 = vsel %vm260, %v254, 0
        %v329 = vsel %vm260, %v255, 0
        %331 = vmatpush.xpose.msra.mxu0 0.0
        %332 = vmatpush.xpose.msra.mxu0 0.0
        %333 = vmatpush.xpose.msra.mxu0 0.0
        %334 = vmatpush.xpose.msra.mxu0 0.0
        %335 = vmatpush.xpose.msra.mxu0 0.0
        %336 = vmatpush.xpose.msra.mxu0 0.0
        %337 = vmatpush.xpose.msra.mxu0 0.0
        %338 = vmatpush.xpose.msra.mxu0 0.0
        %339 = vmatpush.xpose.msra.mxu0 0.0
        %340 = vmatpush.xpose.msra.mxu0 0.0
        %341 = vmatpush.xpose.msra.mxu0 0.0
        %342 = vmatpush.xpose.msra.mxu0 0.0
        %343 = vmatpush.xpose.msra.mxu0 0.0
        %344 = vmatpush.xpose.msra.mxu0 0.0
        %345 = vmatpush.xpose.msra.mxu0 %v329
        %346 = vmatpush.xpose.msra.mxu0 %v326
        %347 = vmatmul.f32.gmra.mxu0 %v262
        %v348 = vpop.f32.mrf.mxu0
        %v349 = vadd.f32 0.0, %v348
        %350 = vmatmul.f32.gmra.mxu0 %v265
        %v351 = vpop.f32.mrf.mxu0
        %v352 = vadd.f32 0.0, %v351
        %353 = vdwg.mxu0
        %v355 = vsel %vm260, %v256, 0
        %v358 = vsel %vm260, %v257, 0
        %360 = vmatpush.xpose.msra.mxu0 0.0
        %361 = vmatpush.xpose.msra.mxu0 0.0
        %362 = vmatpush.xpose.msra.mxu0 0.0
        %363 = vmatpush.xpose.msra.mxu0 0.0
        %364 = vmatpush.xpose.msra.mxu0 0.0
        %365 = vmatpush.xpose.msra.mxu0 0.0
        %366 = vmatpush.xpose.msra.mxu0 0.0
        %367 = vmatpush.xpose.msra.mxu0 0.0
        %368 = vmatpush.xpose.msra.mxu0 0.0
        %369 = vmatpush.xpose.msra.mxu0 0.0
        %370 = vmatpush.xpose.msra.mxu0 0.0
        %371 = vmatpush.xpose.msra.mxu0 0.0
        %372 = vmatpush.xpose.msra.mxu0 0.0
        %373 = vmatpush.xpose.msra.mxu0 0.0
        %374 = vmatpush.xpose.msra.mxu0 %v358
        %375 = vmatpush.xpose.msra.mxu0 %v355
        %376 = vmatmul.f32.gmra.mxu0 %v262
        %v377 = vpop.f32.mrf.mxu0
        %v378 = vadd.f32 0.0, %v377
        %379 = vmatmul.f32.gmra.mxu0 %v265
        %v380 = vpop.f32.mrf.mxu0
        %v381 = vadd.f32 0.0, %v380
        %382 = vdwg.mxu0
        %v383 = vld [vmem:[%s2] sm:$0xff]
        %v384 = vld [vmem:[%s2 + $0x8] sm:$0xff]
        %v386 = vsel %vm260, %v291, 0
        %v389 = vsel %vm260, %v294, 0
        %391 = vmatpush.msra.mxu0 0.0
        %392 = vmatpush.msra.mxu0 0.0
        %393 = vmatpush.msra.mxu0 0.0
        %394 = vmatpush.msra.mxu0 0.0
        %395 = vmatpush.msra.mxu0 0.0
        %396 = vmatpush.msra.mxu0 0.0
        %397 = vmatpush.msra.mxu0 0.0
        %398 = vmatpush.msra.mxu0 0.0
        %399 = vmatpush.msra.mxu0 0.0
        %400 = vmatpush.msra.mxu0 0.0
        %401 = vmatpush.msra.mxu0 0.0
        %402 = vmatpush.msra.mxu0 0.0
        %403 = vmatpush.msra.mxu0 0.0
        %404 = vmatpush.msra.mxu0 0.0
        %405 = vmatpush.msra.mxu0 %v384
        %406 = vmatpush.msra.mxu0 %v383
        %407 = vmatmul.f32.gmra.mxu0 %v386
        %v408 = vpop.f32.mrf.mxu0
        %v409 = vadd.f32 0.0, %v408
        %410 = vmatmul.f32.gmra.mxu0 %v389
        %v411 = vpop.f32.mrf.mxu0
        %v412 = vadd.f32 0.0, %v411
        %413 = vdwg.mxu0
        %v415 = vsel %vm260, %v320, 0
        %v418 = vsel %vm260, %v323, 0
        %420 = vmatpush.msra.mxu0 0.0
        %421 = vmatpush.msra.mxu0 0.0
        %422 = vmatpush.msra.mxu0 0.0
        %423 = vmatpush.msra.mxu0 0.0
        %424 = vmatpush.msra.mxu0 0.0
        %425 = vmatpush.msra.mxu0 0.0
        %426 = vmatpush.msra.mxu0 0.0
        %427 = vmatpush.msra.mxu0 0.0
        %428 = vmatpush.msra.mxu0 0.0
        %429 = vmatpush.msra.mxu0 0.0
        %430 = vmatpush.msra.mxu0 0.0
        %431 = vmatpush.msra.mxu0 0.0
        %432 = vmatpush.msra.mxu0 0.0
        %433 = vmatpush.msra.mxu0 0.0
        %434 = vmatpush.msra.mxu0 %v384
        %435 = vmatpush.msra.mxu0 %v383
        %436 = vmatmul.f32.gmra.mxu0 %v415
        %v437 = vpop.f32.mrf.mxu0
        %v438 = vadd.f32 0.0, %v437
        %439 = vmatmul.f32.gmra.mxu0 %v418
        %v440 = vpop.f32.mrf.mxu0
        %v441 = vadd.f32 0.0, %v440
        %442 = vdwg.mxu0
        %v444 = vsel %vm260, %v349, 0
        %v447 = vsel %vm260, %v352, 0
        %449 = vmatpush.msra.mxu0 0.0
        %450 = vmatpush.msra.mxu0 0.0
        %451 = vmatpush.msra.mxu0 0.0
        %452 = vmatpush.msra.mxu0 0.0
        %453 = vmatpush.msra.mxu0 0.0
        %454 = vmatpush.msra.mxu0 0.0
        %455 = vmatpush.msra.mxu0 0.0
        %456 = vmatpush.msra.mxu0 0.0
        %457 = vmatpush.msra.mxu0 0.0
        %458 = vmatpush.msra.mxu0 0.0
        %459 = vmatpush.msra.mxu0 0.0
        %460 = vmatpush.msra.mxu0 0.0
        %461 = vmatpush.msra.mxu0 0.0
        %462 = vmatpush.msra.mxu0 0.0
        %463 = vmatpush.msra.mxu0 %v384
        %464 = vmatpush.msra.mxu0 %v383
        %465 = vmatmul.f32.gmra.mxu0 %v444
        %v466 = vpop.f32.mrf.mxu0
        %v467 = vadd.f32 0.0, %v466
        %468 = vmatmul.f32.gmra.mxu0 %v447
        %v469 = vpop.f32.mrf.mxu0
        %v470 = vadd.f32 0.0, %v469
        %471 = vdwg.mxu0
        %v473 = vsel %vm260, %v378, 0
        %v476 = vsel %vm260, %v381, 0
        %478 = vmatpush.msra.mxu0 0.0
        %479 = vmatpush.msra.mxu0 0.0
        %480 = vmatpush.msra.mxu0 0.0
        %481 = vmatpush.msra.mxu0 0.0
        %482 = vmatpush.msra.mxu0 0.0
        %483 = vmatpush.msra.mxu0 0.0
        %484 = vmatpush.msra.mxu0 0.0
        %485 = vmatpush.msra.mxu0 0.0
        %486 = vmatpush.msra.mxu0 0.0
        %487 = vmatpush.msra.mxu0 0.0
        %488 = vmatpush.msra.mxu0 0.0
        %489 = vmatpush.msra.mxu0 0.0
        %490 = vmatpush.msra.mxu0 0.0
        %491 = vmatpush.msra.mxu0 0.0
        %492 = vmatpush.msra.mxu0 %v384
        %493 = vmatpush.msra.mxu0 %v383
        %494 = vmatmul.f32.gmra.mxu0 %v473
        %v495 = vpop.f32.mrf.mxu0
        %v496 = vadd.f32 0.0, %v495
        %497 = vmatmul.f32.gmra.mxu0 %v476
        %v498 = vpop.f32.mrf.mxu0
        %v499 = vadd.f32 0.0, %v498
        %500 = vdwg.mxu0
        %s501 = sld [smem:[#allocation2]]
        %v502 = vstv %s501
        %v503 = vmul.f32 %v502, %v409
        %v504 = vmul.f32 %v502, %v412
        %v505 = vadd.f32 %v503, 0.0
        %v506 = vadd.f32 %v504, 0.0
        %s507 = sld [smem:[#allocation2 + $0x1]]
        %v508 = vstv %s507
        %v509 = vmul.f32 %v508, %v438
        %v510 = vmul.f32 %v508, %v441
        %v511 = vadd.f32 %v505, %v509
        %v512 = vadd.f32 %v506, %v510
        %s513 = sld [smem:[#allocation2 + $0x2]]
        %v514 = vstv %s513
        %v515 = vmul.f32 %v514, %v467
        %v516 = vmul.f32 %v514, %v470
        %v517 = vadd.f32 %v511, %v515
        %v518 = vadd.f32 %v512, %v516
        %s519 = sld [smem:[#allocation2 + $0x3]]
        %v520 = vstv %s519
        %v521 = vmul.f32 %v520, %v496
        %v522 = vmul.f32 %v520, %v499
        %v523 = vadd.f32 %v517, %v521
        %v524 = vadd.f32 %v518, %v522
        %s525 = sld [smem:[#allocation2 + $0x4]]
        %v526 = vstv %s525
        %v527 = vmul.f32 %v526, %v409
        %v528 = vmul.f32 %v526, %v412
        %v529 = vadd.f32 %v527, 0.0
        %v530 = vadd.f32 %v528, 0.0
        %s531 = sld [smem:[#allocation2 + $0x5]]
        %v532 = vstv %s531
        %v533 = vmul.f32 %v532, %v438
        %v534 = vmul.f32 %v532, %v441
        %v535 = vadd.f32 %v529, %v533
        %v536 = vadd.f32 %v530, %v534
        %s537 = sld [smem:[#allocation2 + $0x6]]
        %v538 = vstv %s537
        %v539 = vmul.f32 %v538, %v467
        %v540 = vmul.f32 %v538, %v470
        %v541 = vadd.f32 %v535, %v539
        %v542 = vadd.f32 %v536, %v540
        %s543 = sld [smem:[#allocation2 + $0x7]]
        %v544 = vstv %s543
        %v545 = vmul.f32 %v544, %v496
        %v546 = vmul.f32 %v544, %v499
        %v547 = vadd.f32 %v541, %v545
        %v548 = vadd.f32 %v542, %v546
        %s549 = sld [smem:[#allocation2 + $0x8]]
        %v550 = vstv %s549
        %v551 = vmul.f32 %v550, %v409
        %v552 = vmul.f32 %v550, %v412
        %v553 = vadd.f32 %v551, 0.0
        %v554 = vadd.f32 %v552, 0.0
        %s555 = sld [smem:[#allocation2 + $0x9]]
        %v556 = vstv %s555
        %v557 = vmul.f32 %v556, %v438
        %v558 = vmul.f32 %v556, %v441
        %v559 = vadd.f32 %v553, %v557
        %v560 = vadd.f32 %v554, %v558
        %s561 = sld [smem:[#allocation2 + $0xa]]
        %v562 = vstv %s561
        %v563 = vmul.f32 %v562, %v467
        %v564 = vmul.f32 %v562, %v470
        %v565 = vadd.f32 %v559, %v563
        %v566 = vadd.f32 %v560, %v564
        %s567 = sld [smem:[#allocation2 + $0xb]]
        %v568 = vstv %s567
        %v569 = vmul.f32 %v568, %v496
        %v570 = vmul.f32 %v568, %v499
        %v571 = vadd.f32 %v565, %v569
        %v572 = vadd.f32 %v566, %v570
        %s573 = sld [smem:[#allocation2 + $0xc]]
        %v574 = vstv %s573
        %v575 = vmul.f32 %v574, %v409
        %v576 = vmul.f32 %v574, %v412
        %v577 = vadd.f32 %v575, 0.0
        %v578 = vadd.f32 %v576, 0.0
        %s579 = sld [smem:[#allocation2 + $0xd]]
        %v580 = vstv %s579
        %v581 = vmul.f32 %v580, %v438
        %v582 = vmul.f32 %v580, %v441
        %v583 = vadd.f32 %v577, %v581
        %v584 = vadd.f32 %v578, %v582
        %s585 = sld [smem:[#allocation2 + $0xe]]
        %v586 = vstv %s585
        %v587 = vmul.f32 %v586, %v467
        %v588 = vmul.f32 %v586, %v470
        %v589 = vadd.f32 %v583, %v587
        %v590 = vadd.f32 %v584, %v588
        %s591 = sld [smem:[#allocation2 + $0xf]]
        %v592 = vstv %s591
        %v593 = vmul.f32 %v592, %v496
        %v594 = vmul.f32 %v592, %v499
        %v595 = vadd.f32 %v589, %v593
        %v596 = vadd.f32 %v590, %v594
        %s597 = sld [smem:[#allocation2 + $0x10]]
        %v598 = vstv %s597
        %v599 = vmul.f32 %v598, %v409
        %v600 = vmul.f32 %v598, %v412
        %v601 = vadd.f32 %v599, 0.0
        %v602 = vadd.f32 %v600, 0.0
        %s603 = sld [smem:[#allocation2 + $0x11]]
        %v604 = vstv %s603
        %v605 = vmul.f32 %v604, %v438
        %v606 = vmul.f32 %v604, %v441
        %v607 = vadd.f32 %v601, %v605
        %v608 = vadd.f32 %v602, %v606
        %s609 = sld [smem:[#allocation2 + $0x12]]
        %v610 = vstv %s609
        %v611 = vmul.f32 %v610, %v467
        %v612 = vmul.f32 %v610, %v470
        %v613 = vadd.f32 %v607, %v611
        %v614 = vadd.f32 %v608, %v612
        %s615 = sld [smem:[#allocation2 + $0x13]]
        %v616 = vstv %s615
        %v617 = vmul.f32 %v616, %v496
        %v618 = vmul.f32 %v616, %v499
        %v619 = vadd.f32 %v613, %v617
        %v620 = vadd.f32 %v614, %v618
        %s621 = sld [smem:[#allocation2 + $0x14]]
        %v622 = vstv %s621
        %v623 = vmul.f32 %v622, %v409
        %v624 = vmul.f32 %v622, %v412
        %v625 = vadd.f32 %v623, 0.0
        %v626 = vadd.f32 %v624, 0.0
        %s627 = sld [smem:[#allocation2 + $0x15]]
        %v628 = vstv %s627
        %v629 = vmul.f32 %v628, %v438
        %v630 = vmul.f32 %v628, %v441
        %v631 = vadd.f32 %v625, %v629
        %v632 = vadd.f32 %v626, %v630
        %s633 = sld [smem:[#allocation2 + $0x16]]
        %v634 = vstv %s633
        %v635 = vmul.f32 %v634, %v467
        %v636 = vmul.f32 %v634, %v470
        %v637 = vadd.f32 %v631, %v635
        %v638 = vadd.f32 %v632, %v636
        %s639 = sld [smem:[#allocation2 + $0x17]]
        %v640 = vstv %s639
        %v641 = vmul.f32 %v640, %v496
        %v642 = vmul.f32 %v640, %v499
        %v643 = vadd.f32 %v637, %v641
        %v644 = vadd.f32 %v638, %v642
        %s645 = sld [smem:[#allocation2 + $0x18]]
        %v646 = vstv %s645
        %v647 = vmul.f32 %v646, %v409
        %v648 = vmul.f32 %v646, %v412
        %v649 = vadd.f32 %v647, 0.0
        %v650 = vadd.f32 %v648, 0.0
        %s651 = sld [smem:[#allocation2 + $0x19]]
        %v652 = vstv %s651
        %v653 = vmul.f32 %v652, %v438
        %v654 = vmul.f32 %v652, %v441
        %v655 = vadd.f32 %v649, %v653
        %v656 = vadd.f32 %v650, %v654
        %s657 = sld [smem:[#allocation2 + $0x1a]]
        %v658 = vstv %s657
        %v659 = vmul.f32 %v658, %v467
        %v660 = vmul.f32 %v658, %v470
        %v661 = vadd.f32 %v655, %v659
        %v662 = vadd.f32 %v656, %v660
        %s663 = sld [smem:[#allocation2 + $0x1b]]
        %v664 = vstv %s663
        %v665 = vmul.f32 %v664, %v496
        %v666 = vmul.f32 %v664, %v499
        %v667 = vadd.f32 %v661, %v665
        %v668 = vadd.f32 %v662, %v666
        %s669 = sld [smem:[#allocation2 + $0x1c]]
        %v670 = vstv %s669
        %v671 = vmul.f32 %v670, %v409
        %v672 = vmul.f32 %v670, %v412
        %v673 = vadd.f32 %v671, 0.0
        %v674 = vadd.f32 %v672, 0.0
        %s675 = sld [smem:[#allocation2 + $0x1d]]
        %v676 = vstv %s675
        %v677 = vmul.f32 %v676, %v438
        %v678 = vmul.f32 %v676, %v441
        %v679 = vadd.f32 %v673, %v677
        %v680 = vadd.f32 %v674, %v678
        %s681 = sld [smem:[#allocation2 + $0x1e]]
        %v682 = vstv %s681
        %v683 = vmul.f32 %v682, %v467
        %v684 = vmul.f32 %v682, %v470
        %v685 = vadd.f32 %v679, %v683
        %v686 = vadd.f32 %v680, %v684
        %s687 = sld [smem:[#allocation2 + $0x1f]]
        %v688 = vstv %s687
        %v689 = vmul.f32 %v688, %v496
        %v690 = vmul.f32 %v688, %v499
        %v691 = vadd.f32 %v685, %v689
        %v692 = vadd.f32 %v686, %v690
        %s693 = scalar_lea.vmem %s2, 16
        %v694 = vld [vmem:[%s693] sm:$0xff]
        %v695 = vld [vmem:[%s693 + $0x8] sm:$0xff]
        %696 = vmatpush.msra.mxu0 0.0
        %697 = vmatpush.msra.mxu0 0.0
        %698 = vmatpush.msra.mxu0 0.0
        %699 = vmatpush.msra.mxu0 0.0
        %700 = vmatpush.msra.mxu0 0.0
        %701 = vmatpush.msra.mxu0 0.0
        %702 = vmatpush.msra.mxu0 0.0
        %703 = vmatpush.msra.mxu0 0.0
        %704 = vmatpush.msra.mxu0 0.0
        %705 = vmatpush.msra.mxu0 0.0
        %706 = vmatpush.msra.mxu0 0.0
        %707 = vmatpush.msra.mxu0 0.0
        %708 = vmatpush.msra.mxu0 0.0
        %709 = vmatpush.msra.mxu0 0.0
        %710 = vmatpush.msra.mxu0 %v695
        %711 = vmatpush.msra.mxu0 %v694
        %712 = vmatmul.f32.gmra.mxu0 %v386
        %v713 = vpop.f32.mrf.mxu0
        %v714 = vadd.f32 0.0, %v713
        %715 = vmatmul.f32.gmra.mxu0 %v389
        %v716 = vpop.f32.mrf.mxu0
        %v717 = vadd.f32 0.0, %v716
        %718 = vdwg.mxu0
        %719 = vmatpush.msra.mxu0 0.0
        %720 = vmatpush.msra.mxu0 0.0
        %721 = vmatpush.msra.mxu0 0.0
        %722 = vmatpush.msra.mxu0 0.0
        %723 = vmatpush.msra.mxu0 0.0
        %724 = vmatpush.msra.mxu0 0.0
        %725 = vmatpush.msra.mxu0 0.0
        %726 = vmatpush.msra.mxu0 0.0
        %727 = vmatpush.msra.mxu0 0.0
        %728 = vmatpush.msra.mxu0 0.0
        %729 = vmatpush.msra.mxu0 0.0
        %730 = vmatpush.msra.mxu0 0.0
        %731 = vmatpush.msra.mxu0 0.0
        %732 = vmatpush.msra.mxu0 0.0
        %733 = vmatpush.msra.mxu0 %v695
        %734 = vmatpush.msra.mxu0 %v694
        %735 = vmatmul.f32.gmra.mxu0 %v415
        %v736 = vpop.f32.mrf.mxu0
        %v737 = vadd.f32 0.0, %v736
        %738 = vmatmul.f32.gmra.mxu0 %v418
        %v739 = vpop.f32.mrf.mxu0
        %v740 = vadd.f32 0.0, %v739
        %741 = vdwg.mxu0
        %742 = vmatpush.msra.mxu0 0.0
        %743 = vmatpush.msra.mxu0 0.0
        %744 = vmatpush.msra.mxu0 0.0
        %745 = vmatpush.msra.mxu0 0.0
        %746 = vmatpush.msra.mxu0 0.0
        %747 = vmatpush.msra.mxu0 0.0
        %748 = vmatpush.msra.mxu0 0.0
        %749 = vmatpush.msra.mxu0 0.0
        %750 = vmatpush.msra.mxu0 0.0
        %751 = vmatpush.msra.mxu0 0.0
        %752 = vmatpush.msra.mxu0 0.0
        %753 = vmatpush.msra.mxu0 0.0
        %754 = vmatpush.msra.mxu0 0.0
        %755 = vmatpush.msra.mxu0 0.0
        %756 = vmatpush.msra.mxu0 %v695
        %757 = vmatpush.msra.mxu0 %v694
        %758 = vmatmul.f32.gmra.mxu0 %v444
        %v759 = vpop.f32.mrf.mxu0
        %v760 = vadd.f32 0.0, %v759
        %761 = vmatmul.f32.gmra.mxu0 %v447
        %v762 = vpop.f32.mrf.mxu0
        %v763 = vadd.f32 0.0, %v762
        %764 = vdwg.mxu0
        %765 = vmatpush.msra.mxu0 0.0
        %766 = vmatpush.msra.mxu0 0.0
        %767 = vmatpush.msra.mxu0 0.0
        %768 = vmatpush.msra.mxu0 0.0
        %769 = vmatpush.msra.mxu0 0.0
        %770 = vmatpush.msra.mxu0 0.0
        %771 = vmatpush.msra.mxu0 0.0
        %772 = vmatpush.msra.mxu0 0.0
        %773 = vmatpush.msra.mxu0 0.0
        %774 = vmatpush.msra.mxu0 0.0
        %775 = vmatpush.msra.mxu0 0.0
        %776 = vmatpush.msra.mxu0 0.0
        %777 = vmatpush.msra.mxu0 0.0
        %778 = vmatpush.msra.mxu0 0.0
        %779 = vmatpush.msra.mxu0 %v695
        %780 = vmatpush.msra.mxu0 %v694
        %781 = vmatmul.f32.gmra.mxu0 %v473
        %v782 = vpop.f32.mrf.mxu0
        %v783 = vadd.f32 0.0, %v782
        %784 = vmatmul.f32.gmra.mxu0 %v476
        %v785 = vpop.f32.mrf.mxu0
        %v786 = vadd.f32 0.0, %v785
        %787 = vdwg.mxu0
        %s788 = sld [smem:[#allocation2 + $0x20]]
        %v789 = vstv %s788
        %v790 = vmul.f32 %v789, %v714
        %v791 = vmul.f32 %v789, %v717
        %v792 = vadd.f32 %v523, %v790
        %v793 = vadd.f32 %v524, %v791
        %s794 = sld [smem:[#allocation2 + $0x21]]
        %v795 = vstv %s794
        %v796 = vmul.f32 %v795, %v737
        %v797 = vmul.f32 %v795, %v740
        %v798 = vadd.f32 %v792, %v796
        %v799 = vadd.f32 %v793, %v797
        %s800 = sld [smem:[#allocation2 + $0x22]]
        %v801 = vstv %s800
        %v802 = vmul.f32 %v801, %v760
        %v803 = vmul.f32 %v801, %v763
        %v804 = vadd.f32 %v798, %v802
        %v805 = vadd.f32 %v799, %v803
        %s806 = sld [smem:[#allocation2 + $0x23]]
        %v807 = vstv %s806
        %v808 = vmul.f32 %v807, %v783
        %v809 = vmul.f32 %v807, %v786
        %v810 = vadd.f32 %v804, %v808
        %v811 = vadd.f32 %v805, %v809
        %s812 = sld [smem:[#allocation2 + $0x24]]
        %v813 = vstv %s812
        %v814 = vmul.f32 %v813, %v714
        %v815 = vmul.f32 %v813, %v717
        %v816 = vadd.f32 %v547, %v814
        %v817 = vadd.f32 %v548, %v815
        %s818 = sld [smem:[#allocation2 + $0x25]]
        %v819 = vstv %s818
        %v820 = vmul.f32 %v819, %v737
        %v821 = vmul.f32 %v819, %v740
        %v822 = vadd.f32 %v816, %v820
        %v823 = vadd.f32 %v817, %v821
        %s824 = sld [smem:[#allocation2 + $0x26]]
        %v825 = vstv %s824
        %v826 = vmul.f32 %v825, %v760
        %v827 = vmul.f32 %v825, %v763
        %v828 = vadd.f32 %v822, %v826
        %v829 = vadd.f32 %v823, %v827
        %s830 = sld [smem:[#allocation2 + $0x27]]
        %v831 = vstv %s830
        %v832 = vmul.f32 %v831, %v783
        %v833 = vmul.f32 %v831, %v786
        %v834 = vadd.f32 %v828, %v832
        %v835 = vadd.f32 %v829, %v833
        %s836 = sld [smem:[#allocation2 + $0x28]]
        %v837 = vstv %s836
        %v838 = vmul.f32 %v837, %v714
        %v839 = vmul.f32 %v837, %v717
        %v840 = vadd.f32 %v571, %v838
        %v841 = vadd.f32 %v572, %v839
        %s842 = sld [smem:[#allocation2 + $0x29]]
        %v843 = vstv %s842
        %v844 = vmul.f32 %v843, %v737
        %v845 = vmul.f32 %v843, %v740
        %v846 = vadd.f32 %v840, %v844
        %v847 = vadd.f32 %v841, %v845
        %s848 = sld [smem:[#allocation2 + $0x2a]]
        %v849 = vstv %s848
        %v850 = vmul.f32 %v849, %v760
        %v851 = vmul.f32 %v849, %v763
        %v852 = vadd.f32 %v846, %v850
        %v853 = vadd.f32 %v847, %v851
        %s854 = sld [smem:[#allocation2 + $0x2b]]
        %v855 = vstv %s854
        %v856 = vmul.f32 %v855, %v783
        %v857 = vmul.f32 %v855, %v786
        %v858 = vadd.f32 %v852, %v856
        %v859 = vadd.f32 %v853, %v857
        %s860 = sld [smem:[#allocation2 + $0x2c]]
        %v861 = vstv %s860
        %v862 = vmul.f32 %v861, %v714
        %v863 = vmul.f32 %v861, %v717
        %v864 = vadd.f32 %v595, %v862
        %v865 = vadd.f32 %v596, %v863
        %s866 = sld [smem:[#allocation2 + $0x2d]]
        %v867 = vstv %s866
        %v868 = vmul.f32 %v867, %v737
        %v869 = vmul.f32 %v867, %v740
        %v870 = vadd.f32 %v864, %v868
        %v871 = vadd.f32 %v865, %v869
        %s872 = sld [smem:[#allocation2 + $0x2e]]
        %v873 = vstv %s872
        %v874 = vmul.f32 %v873, %v760
        %v875 = vmul.f32 %v873, %v763
        %v876 = vadd.f32 %v870, %v874
        %v877 = vadd.f32 %v871, %v875
        %s878 = sld [smem:[#allocation2 + $0x2f]]
        %v879 = vstv %s878
        %v880 = vmul.f32 %v879, %v783
        %v881 = vmul.f32 %v879, %v786
        %v882 = vadd.f32 %v876, %v880
        %v883 = vadd.f32 %v877, %v881
        %s884 = sld [smem:[#allocation2 + $0x30]]
        %v885 = vstv %s884
        %v886 = vmul.f32 %v885, %v714
        %v887 = vmul.f32 %v885, %v717
        %v888 = vadd.f32 %v619, %v886
        %v889 = vadd.f32 %v620, %v887
        %s890 = sld [smem:[#allocation2 + $0x31]]
        %v891 = vstv %s890
        %v892 = vmul.f32 %v891, %v737
        %v893 = vmul.f32 %v891, %v740
        %v894 = vadd.f32 %v888, %v892
        %v895 = vadd.f32 %v889, %v893
        %s896 = sld [smem:[#allocation2 + $0x32]]
        %v897 = vstv %s896
        %v898 = vmul.f32 %v897, %v760
        %v899 = vmul.f32 %v897, %v763
        %v900 = vadd.f32 %v894, %v898
        %v901 = vadd.f32 %v895, %v899
        %s902 = sld [smem:[#allocation2 + $0x33]]
        %v903 = vstv %s902
        %v904 = vmul.f32 %v903, %v783
        %v905 = vmul.f32 %v903, %v786
        %v906 = vadd.f32 %v900, %v904
        %v907 = vadd.f32 %v901, %v905
        %s908 = sld [smem:[#allocation2 + $0x34]]
        %v909 = vstv %s908
        %v910 = vmul.f32 %v909, %v714
        %v911 = vmul.f32 %v909, %v717
        %v912 = vadd.f32 %v643, %v910
        %v913 = vadd.f32 %v644, %v911
        %s914 = sld [smem:[#allocation2 + $0x35]]
        %v915 = vstv %s914
        %v916 = vmul.f32 %v915, %v737
        %v917 = vmul.f32 %v915, %v740
        %v918 = vadd.f32 %v912, %v916
        %v919 = vadd.f32 %v913, %v917
        %s920 = sld [smem:[#allocation2 + $0x36]]
        %v921 = vstv %s920
        %v922 = vmul.f32 %v921, %v760
        %v923 = vmul.f32 %v921, %v763
        %v924 = vadd.f32 %v918, %v922
        %v925 = vadd.f32 %v919, %v923
        %s926 = sld [smem:[#allocation2 + $0x37]]
        %v927 = vstv %s926
        %v928 = vmul.f32 %v927, %v783
        %v929 = vmul.f32 %v927, %v786
        %v930 = vadd.f32 %v924, %v928
        %v931 = vadd.f32 %v925, %v929
        %s932 = sld [smem:[#allocation2 + $0x38]]
        %v933 = vstv %s932
        %v934 = vmul.f32 %v933, %v714
        %v935 = vmul.f32 %v933, %v717
        %v936 = vadd.f32 %v667, %v934
        %v937 = vadd.f32 %v668, %v935
        %s938 = sld [smem:[#allocation2 + $0x39]]
        %v939 = vstv %s938
        %v940 = vmul.f32 %v939, %v737
        %v941 = vmul.f32 %v939, %v740
        %v942 = vadd.f32 %v936, %v940
        %v943 = vadd.f32 %v937, %v941
        %s944 = sld [smem:[#allocation2 + $0x3a]]
        %v945 = vstv %s944
        %v946 = vmul.f32 %v945, %v760
        %v947 = vmul.f32 %v945, %v763
        %v948 = vadd.f32 %v942, %v946
        %v949 = vadd.f32 %v943, %v947
        %s950 = sld [smem:[#allocation2 + $0x3b]]
        %v951 = vstv %s950
        %v952 = vmul.f32 %v951, %v783
        %v953 = vmul.f32 %v951, %v786
        %v954 = vadd.f32 %v948, %v952
        %v955 = vadd.f32 %v949, %v953
        %s956 = sld [smem:[#allocation2 + $0x3c]]
        %v957 = vstv %s956
        %v958 = vmul.f32 %v957, %v714
        %v959 = vmul.f32 %v957, %v717
        %v960 = vadd.f32 %v691, %v958
        %v961 = vadd.f32 %v692, %v959
        %s962 = sld [smem:[#allocation2 + $0x3d]]
        %v963 = vstv %s962
        %v964 = vmul.f32 %v963, %v737
        %v965 = vmul.f32 %v963, %v740
        %v966 = vadd.f32 %v960, %v964
        %v967 = vadd.f32 %v961, %v965
        %s968 = sld [smem:[#allocation2 + $0x3e]]
        %v969 = vstv %s968
        %v970 = vmul.f32 %v969, %v760
        %v971 = vmul.f32 %v969, %v763
        %v972 = vadd.f32 %v966, %v970
        %v973 = vadd.f32 %v967, %v971
        %s974 = sld [smem:[#allocation2 + $0x3f]]
        %v975 = vstv %s974
        %v976 = vmul.f32 %v975, %v783
        %v977 = vmul.f32 %v975, %v786
        %v978 = vadd.f32 %v972, %v976
        %v979 = vadd.f32 %v973, %v977
        %s980 = scalar_lea.vmem %s2, 32
        %v981 = vld [vmem:[%s980] sm:$0xff]
        %v982 = vld [vmem:[%s980 + $0x8] sm:$0xff]
        %983 = vmatpush.msra.mxu0 0.0
        %984 = vmatpush.msra.mxu0 0.0
        %985 = vmatpush.msra.mxu0 0.0
        %986 = vmatpush.msra.mxu0 0.0
        %987 = vmatpush.msra.mxu0 0.0
        %988 = vmatpush.msra.mxu0 0.0
        %989 = vmatpush.msra.mxu0 0.0
        %990 = vmatpush.msra.mxu0 0.0
        %991 = vmatpush.msra.mxu0 0.0
        %992 = vmatpush.msra.mxu0 0.0
        %993 = vmatpush.msra.mxu0 0.0
        %994 = vmatpush.msra.mxu0 0.0
        %995 = vmatpush.msra.mxu0 0.0
        %996 = vmatpush.msra.mxu0 0.0
        %997 = vmatpush.msra.mxu0 %v982
        %998 = vmatpush.msra.mxu0 %v981
        %999 = vmatmul.f32.gmra.mxu0 %v386
        %v1000 = vpop.f32.mrf.mxu0
        %v1001 = vadd.f32 0.0, %v1000
        %1002 = vmatmul.f32.gmra.mxu0 %v389
        %v1003 = vpop.f32.mrf.mxu0
        %v1004 = vadd.f32 0.0, %v1003
        %1005 = vdwg.mxu0
        %1006 = vmatpush.msra.mxu0 0.0
        %1007 = vmatpush.msra.mxu0 0.0
        %1008 = vmatpush.msra.mxu0 0.0
        %1009 = vmatpush.msra.mxu0 0.0
        %1010 = vmatpush.msra.mxu0 0.0
        %1011 = vmatpush.msra.mxu0 0.0
        %1012 = vmatpush.msra.mxu0 0.0
        %1013 = vmatpush.msra.mxu0 0.0
        %1014 = vmatpush.msra.mxu0 0.0
        %1015 = vmatpush.msra.mxu0 0.0
        %1016 = vmatpush.msra.mxu0 0.0
        %1017 = vmatpush.msra.mxu0 0.0
        %1018 = vmatpush.msra.mxu0 0.0
        %1019 = vmatpush.msra.mxu0 0.0
        %1020 = vmatpush.msra.mxu0 %v982
        %1021 = vmatpush.msra.mxu0 %v981
        %1022 = vmatmul.f32.gmra.mxu0 %v415
        %v1023 = vpop.f32.mrf.mxu0
        %v1024 = vadd.f32 0.0, %v1023
        %1025 = vmatmul.f32.gmra.mxu0 %v418
        %v1026 = vpop.f32.mrf.mxu0
        %v1027 = vadd.f32 0.0, %v1026
        %1028 = vdwg.mxu0
        %1029 = vmatpush.msra.mxu0 0.0
        %1030 = vmatpush.msra.mxu0 0.0
        %1031 = vmatpush.msra.mxu0 0.0
        %1032 = vmatpush.msra.mxu0 0.0
        %1033 = vmatpush.msra.mxu0 0.0
        %1034 = vmatpush.msra.mxu0 0.0
        %1035 = vmatpush.msra.mxu0 0.0
        %1036 = vmatpush.msra.mxu0 0.0
        %1037 = vmatpush.msra.mxu0 0.0
        %1038 = vmatpush.msra.mxu0 0.0
        %1039 = vmatpush.msra.mxu0 0.0
        %1040 = vmatpush.msra.mxu0 0.0
        %1041 = vmatpush.msra.mxu0 0.0
        %1042 = vmatpush.msra.mxu0 0.0
        %1043 = vmatpush.msra.mxu0 %v982
        %1044 = vmatpush.msra.mxu0 %v981
        %1045 = vmatmul.f32.gmra.mxu0 %v444
        %v1046 = vpop.f32.mrf.mxu0
        %v1047 = vadd.f32 0.0, %v1046
        %1048 = vmatmul.f32.gmra.mxu0 %v447
        %v1049 = vpop.f32.mrf.mxu0
        %v1050 = vadd.f32 0.0, %v1049
        %1051 = vdwg.mxu0
        %1052 = vmatpush.msra.mxu0 0.0
        %1053 = vmatpush.msra.mxu0 0.0
        %1054 = vmatpush.msra.mxu0 0.0
        %1055 = vmatpush.msra.mxu0 0.0
        %1056 = vmatpush.msra.mxu0 0.0
        %1057 = vmatpush.msra.mxu0 0.0
        %1058 = vmatpush.msra.mxu0 0.0
        %1059 = vmatpush.msra.mxu0 0.0
        %1060 = vmatpush.msra.mxu0 0.0
        %1061 = vmatpush.msra.mxu0 0.0
        %1062 = vmatpush.msra.mxu0 0.0
        %1063 = vmatpush.msra.mxu0 0.0
        %1064 = vmatpush.msra.mxu0 0.0
        %1065 = vmatpush.msra.mxu0 0.0
        %1066 = vmatpush.msra.mxu0 %v982
        %1067 = vmatpush.msra.mxu0 %v981
        %1068 = vmatmul.f32.gmra.mxu0 %v473
        %v1069 = vpop.f32.mrf.mxu0
        %v1070 = vadd.f32 0.0, %v1069
        %1071 = vmatmul.f32.gmra.mxu0 %v476
        %v1072 = vpop.f32.mrf.mxu0
        %v1073 = vadd.f32 0.0, %v1072
        %1074 = vdwg.mxu0
        %s1075 = sld [smem:[#allocation2 + $0x40]]
        %v1076 = vstv %s1075
        %v1077 = vmul.f32 %v1076, %v1001
        %v1078 = vmul.f32 %v1076, %v1004
        %v1079 = vadd.f32 %v810, %v1077
        %v1080 = vadd.f32 %v811, %v1078
        %s1081 = sld [smem:[#allocation2 + $0x41]]
        %v1082 = vstv %s1081
        %v1083 = vmul.f32 %v1082, %v1024
        %v1084 = vmul.f32 %v1082, %v1027
        %v1085 = vadd.f32 %v1079, %v1083
        %v1086 = vadd.f32 %v1080, %v1084
        %s1087 = sld [smem:[#allocation2 + $0x42]]
        %v1088 = vstv %s1087
        %v1089 = vmul.f32 %v1088, %v1047
        %v1090 = vmul.f32 %v1088, %v1050
        %v1091 = vadd.f32 %v1085, %v1089
        %v1092 = vadd.f32 %v1086, %v1090
        %s1093 = sld [smem:[#allocation2 + $0x43]]
        %v1094 = vstv %s1093
        %v1095 = vmul.f32 %v1094, %v1070
        %v1096 = vmul.f32 %v1094, %v1073
        %v1097 = vadd.f32 %v1091, %v1095
        %v1098 = vadd.f32 %v1092, %v1096
        %s1099 = sld [smem:[#allocation2 + $0x44]]
        %v1100 = vstv %s1099
        %v1101 = vmul.f32 %v1100, %v1001
        %v1102 = vmul.f32 %v1100, %v1004
        %v1103 = vadd.f32 %v834, %v1101
        %v1104 = vadd.f32 %v835, %v1102
        %s1105 = sld [smem:[#allocation2 + $0x45]]
        %v1106 = vstv %s1105
        %v1107 = vmul.f32 %v1106, %v1024
        %v1108 = vmul.f32 %v1106, %v1027
        %v1109 = vadd.f32 %v1103, %v1107
        %v1110 = vadd.f32 %v1104, %v1108
        %s1111 = sld [smem:[#allocation2 + $0x46]]
        %v1112 = vstv %s1111
        %v1113 = vmul.f32 %v1112, %v1047
        %v1114 = vmul.f32 %v1112, %v1050
        %v1115 = vadd.f32 %v1109, %v1113
        %v1116 = vadd.f32 %v1110, %v1114
        %s1117 = sld [smem:[#allocation2 + $0x47]]
        %v1118 = vstv %s1117
        %v1119 = vmul.f32 %v1118, %v1070
        %v1120 = vmul.f32 %v1118, %v1073
        %v1121 = vadd.f32 %v1115, %v1119
        %v1122 = vadd.f32 %v1116, %v1120
        %s1123 = sld [smem:[#allocation2 + $0x48]]
        %v1124 = vstv %s1123
        %v1125 = vmul.f32 %v1124, %v1001
        %v1126 = vmul.f32 %v1124, %v1004
        %v1127 = vadd.f32 %v858, %v1125
        %v1128 = vadd.f32 %v859, %v1126
        %s1129 = sld [smem:[#allocation2 + $0x49]]
        %v1130 = vstv %s1129
        %v1131 = vmul.f32 %v1130, %v1024
        %v1132 = vmul.f32 %v1130, %v1027
        %v1133 = vadd.f32 %v1127, %v1131
        %v1134 = vadd.f32 %v1128, %v1132
        %s1135 = sld [smem:[#allocation2 + $0x4a]]
        %v1136 = vstv %s1135
        %v1137 = vmul.f32 %v1136, %v1047
        %v1138 = vmul.f32 %v1136, %v1050
        %v1139 = vadd.f32 %v1133, %v1137
        %v1140 = vadd.f32 %v1134, %v1138
        %s1141 = sld [smem:[#allocation2 + $0x4b]]
        %v1142 = vstv %s1141
        %v1143 = vmul.f32 %v1142, %v1070
        %v1144 = vmul.f32 %v1142, %v1073
        %v1145 = vadd.f32 %v1139, %v1143
        %v1146 = vadd.f32 %v1140, %v1144
        %s1147 = sld [smem:[#allocation2 + $0x4c]]
        %v1148 = vstv %s1147
        %v1149 = vmul.f32 %v1148, %v1001
        %v1150 = vmul.f32 %v1148, %v1004
        %v1151 = vadd.f32 %v882, %v1149
        %v1152 = vadd.f32 %v883, %v1150
        %s1153 = sld [smem:[#allocation2 + $0x4d]]
        %v1154 = vstv %s1153
        %v1155 = vmul.f32 %v1154, %v1024
        %v1156 = vmul.f32 %v1154, %v1027
        %v1157 = vadd.f32 %v1151, %v1155
        %v1158 = vadd.f32 %v1152, %v1156
        %s1159 = sld [smem:[#allocation2 + $0x4e]]
        %v1160 = vstv %s1159
        %v1161 = vmul.f32 %v1160, %v1047
        %v1162 = vmul.f32 %v1160, %v1050
        %v1163 = vadd.f32 %v1157, %v1161
        %v1164 = vadd.f32 %v1158, %v1162
        %s1165 = sld [smem:[#allocation2 + $0x4f]]
        %v1166 = vstv %s1165
        %v1167 = vmul.f32 %v1166, %v1070
        %v1168 = vmul.f32 %v1166, %v1073
        %v1169 = vadd.f32 %v1163, %v1167
        %v1170 = vadd.f32 %v1164, %v1168
        %s1171 = sld [smem:[#allocation2 + $0x50]]
        %v1172 = vstv %s1171
        %v1173 = vmul.f32 %v1172, %v1001
        %v1174 = vmul.f32 %v1172, %v1004
        %v1175 = vadd.f32 %v906, %v1173
        %v1176 = vadd.f32 %v907, %v1174
        %s1177 = sld [smem:[#allocation2 + $0x51]]
        %v1178 = vstv %s1177
        %v1179 = vmul.f32 %v1178, %v1024
        %v1180 = vmul.f32 %v1178, %v1027
        %v1181 = vadd.f32 %v1175, %v1179
        %v1182 = vadd.f32 %v1176, %v1180
        %s1183 = sld [smem:[#allocation2 + $0x52]]
        %v1184 = vstv %s1183
        %v1185 = vmul.f32 %v1184, %v1047
        %v1186 = vmul.f32 %v1184, %v1050
        %v1187 = vadd.f32 %v1181, %v1185
        %v1188 = vadd.f32 %v1182, %v1186
        %s1189 = sld [smem:[#allocation2 + $0x53]]
        %v1190 = vstv %s1189
        %v1191 = vmul.f32 %v1190, %v1070
        %v1192 = vmul.f32 %v1190, %v1073
        %v1193 = vadd.f32 %v1187, %v1191
        %v1194 = vadd.f32 %v1188, %v1192
        %s1195 = sld [smem:[#allocation2 + $0x54]]
        %v1196 = vstv %s1195
        %v1197 = vmul.f32 %v1196, %v1001
        %v1198 = vmul.f32 %v1196, %v1004
        %v1199 = vadd.f32 %v930, %v1197
        %v1200 = vadd.f32 %v931, %v1198
        %s1201 = sld [smem:[#allocation2 + $0x55]]
        %v1202 = vstv %s1201
        %v1203 = vmul.f32 %v1202, %v1024
        %v1204 = vmul.f32 %v1202, %v1027
        %v1205 = vadd.f32 %v1199, %v1203
        %v1206 = vadd.f32 %v1200, %v1204
        %s1207 = sld [smem:[#allocation2 + $0x56]]
        %v1208 = vstv %s1207
        %v1209 = vmul.f32 %v1208, %v1047
        %v1210 = vmul.f32 %v1208, %v1050
        %v1211 = vadd.f32 %v1205, %v1209
        %v1212 = vadd.f32 %v1206, %v1210
        %s1213 = sld [smem:[#allocation2 + $0x57]]
        %v1214 = vstv %s1213
        %v1215 = vmul.f32 %v1214, %v1070
        %v1216 = vmul.f32 %v1214, %v1073
        %v1217 = vadd.f32 %v1211, %v1215
        %v1218 = vadd.f32 %v1212, %v1216
        %s1219 = sld [smem:[#allocation2 + $0x58]]
        %v1220 = vstv %s1219
        %v1221 = vmul.f32 %v1220, %v1001
        %v1222 = vmul.f32 %v1220, %v1004
        %v1223 = vadd.f32 %v954, %v1221
        %v1224 = vadd.f32 %v955, %v1222
        %s1225 = sld [smem:[#allocation2 + $0x59]]
        %v1226 = vstv %s1225
        %v1227 = vmul.f32 %v1226, %v1024
        %v1228 = vmul.f32 %v1226, %v1027
        %v1229 = vadd.f32 %v1223, %v1227
        %v1230 = vadd.f32 %v1224, %v1228
        %s1231 = sld [smem:[#allocation2 + $0x5a]]
        %v1232 = vstv %s1231
        %v1233 = vmul.f32 %v1232, %v1047
        %v1234 = vmul.f32 %v1232, %v1050
        %v1235 = vadd.f32 %v1229, %v1233
        %v1236 = vadd.f32 %v1230, %v1234
        %s1237 = sld [smem:[#allocation2 + $0x5b]]
        %v1238 = vstv %s1237
        %v1239 = vmul.f32 %v1238, %v1070
        %v1240 = vmul.f32 %v1238, %v1073
        %v1241 = vadd.f32 %v1235, %v1239
        %v1242 = vadd.f32 %v1236, %v1240
        %s1243 = sld [smem:[#allocation2 + $0x5c]]
        %v1244 = vstv %s1243
        %v1245 = vmul.f32 %v1244, %v1001
        %v1246 = vmul.f32 %v1244, %v1004
        %v1247 = vadd.f32 %v978, %v1245
        %v1248 = vadd.f32 %v979, %v1246
        %s1249 = sld [smem:[#allocation2 + $0x5d]]
        %v1250 = vstv %s1249
        %v1251 = vmul.f32 %v1250, %v1024
        %v1252 = vmul.f32 %v1250, %v1027
        %v1253 = vadd.f32 %v1247, %v1251
        %v1254 = vadd.f32 %v1248, %v1252
        %s1255 = sld [smem:[#allocation2 + $0x5e]]
        %v1256 = vstv %s1255
        %v1257 = vmul.f32 %v1256, %v1047
        %v1258 = vmul.f32 %v1256, %v1050
        %v1259 = vadd.f32 %v1253, %v1257
        %v1260 = vadd.f32 %v1254, %v1258
        %s1261 = sld [smem:[#allocation2 + $0x5f]]
        %v1262 = vstv %s1261
        %v1263 = vmul.f32 %v1262, %v1070
        %v1264 = vmul.f32 %v1262, %v1073
        %v1265 = vadd.f32 %v1259, %v1263
        %v1266 = vadd.f32 %v1260, %v1264
        %s1267 = scalar_lea.vmem %s1, 16
        %v1268 = vld [vmem:[%s1267] sm:$0xff]
        %v1269 = vld [vmem:[%s1267 + $0x8] sm:$0xff]
        %v1271 = vsel %vm260, %v1268, 0
        %v1274 = vsel %vm260, %v1269, 0
        %1276 = vmatpush.xpose.msra.mxu0 0.0
        %1277 = vmatpush.xpose.msra.mxu0 0.0
        %1278 = vmatpush.xpose.msra.mxu0 0.0
        %1279 = vmatpush.xpose.msra.mxu0 0.0
        %1280 = vmatpush.xpose.msra.mxu0 0.0
        %1281 = vmatpush.xpose.msra.mxu0 0.0
        %1282 = vmatpush.xpose.msra.mxu0 0.0
        %1283 = vmatpush.xpose.msra.mxu0 0.0
        %1284 = vmatpush.xpose.msra.mxu0 0.0
        %1285 = vmatpush.xpose.msra.mxu0 0.0
        %1286 = vmatpush.xpose.msra.mxu0 0.0
        %1287 = vmatpush.xpose.msra.mxu0 0.0
        %1288 = vmatpush.xpose.msra.mxu0 0.0
        %1289 = vmatpush.xpose.msra.mxu0 0.0
        %1290 = vmatpush.xpose.msra.mxu0 %v271
        %1291 = vmatpush.xpose.msra.mxu0 %v268
        %1292 = vmatmul.f32.gmra.mxu0 %v1271
        %v1293 = vpop.f32.mrf.mxu0
        %v1294 = vadd.f32 0.0, %v1293
        %1295 = vmatmul.f32.gmra.mxu0 %v1274
        %v1296 = vpop.f32.mrf.mxu0
        %v1297 = vadd.f32 0.0, %v1296
        %1298 = vdwg.mxu0
        %1299 = vmatpush.xpose.msra.mxu0 0.0
        %1300 = vmatpush.xpose.msra.mxu0 0.0
        %1301 = vmatpush.xpose.msra.mxu0 0.0
        %1302 = vmatpush.xpose.msra.mxu0 0.0
        %1303 = vmatpush.xpose.msra.mxu0 0.0
        %1304 = vmatpush.xpose.msra.mxu0 0.0
        %1305 = vmatpush.xpose.msra.mxu0 0.0
        %1306 = vmatpush.xpose.msra.mxu0 0.0
        %1307 = vmatpush.xpose.msra.mxu0 0.0
        %1308 = vmatpush.xpose.msra.mxu0 0.0
        %1309 = vmatpush.xpose.msra.mxu0 0.0
        %1310 = vmatpush.xpose.msra.mxu0 0.0
        %1311 = vmatpush.xpose.msra.mxu0 0.0
        %1312 = vmatpush.xpose.msra.mxu0 0.0
        %1313 = vmatpush.xpose.msra.mxu0 %v300
        %1314 = vmatpush.xpose.msra.mxu0 %v297
        %1315 = vmatmul.f32.gmra.mxu0 %v1271
        %v1316 = vpop.f32.mrf.mxu0
        %v1317 = vadd.f32 0.0, %v1316
        %1318 = vmatmul.f32.gmra.mxu0 %v1274
        %v1319 = vpop.f32.mrf.mxu0
        %v1320 = vadd.f32 0.0, %v1319
        %1321 = vdwg.mxu0
        %1322 = vmatpush.xpose.msra.mxu0 0.0
        %1323 = vmatpush.xpose.msra.mxu0 0.0
        %1324 = vmatpush.xpose.msra.mxu0 0.0
        %1325 = vmatpush.xpose.msra.mxu0 0.0
        %1326 = vmatpush.xpose.msra.mxu0 0.0
        %1327 = vmatpush.xpose.msra.mxu0 0.0
        %1328 = vmatpush.xpose.msra.mxu0 0.0
        %1329 = vmatpush.xpose.msra.mxu0 0.0
        %1330 = vmatpush.xpose.msra.mxu0 0.0
        %1331 = vmatpush.xpose.msra.mxu0 0.0
        %1332 = vmatpush.xpose.msra.mxu0 0.0
        %1333 = vmatpush.xpose.msra.mxu0 0.0
        %1334 = vmatpush.xpose.msra.mxu0 0.0
        %1335 = vmatpush.xpose.msra.mxu0 0.0
        %1336 = vmatpush.xpose.msra.mxu0 %v329
        %1337 = vmatpush.xpose.msra.mxu0 %v326
        %1338 = vmatmul.f32.gmra.mxu0 %v1271
        %v1339 = vpop.f32.mrf.mxu0
        %v1340 = vadd.f32 0.0, %v1339
        %1341 = vmatmul.f32.gmra.mxu0 %v1274
        %v1342 = vpop.f32.mrf.mxu0
        %v1343 = vadd.f32 0.0, %v1342
        %1344 = vdwg.mxu0
        %1345 = vmatpush.xpose.msra.mxu0 0.0
        %1346 = vmatpush.xpose.msra.mxu0 0.0
        %1347 = vmatpush.xpose.msra.mxu0 0.0
        %1348 = vmatpush.xpose.msra.mxu0 0.0
        %1349 = vmatpush.xpose.msra.mxu0 0.0
        %1350 = vmatpush.xpose.msra.mxu0 0.0
        %1351 = vmatpush.xpose.msra.mxu0 0.0
        %1352 = vmatpush.xpose.msra.mxu0 0.0
        %1353 = vmatpush.xpose.msra.mxu0 0.0
        %1354 = vmatpush.xpose.msra.mxu0 0.0
        %1355 = vmatpush.xpose.msra.mxu0 0.0
        %1356 = vmatpush.xpose.msra.mxu0 0.0
        %1357 = vmatpush.xpose.msra.mxu0 0.0
        %1358 = vmatpush.xpose.msra.mxu0 0.0
        %1359 = vmatpush.xpose.msra.mxu0 %v358
        %1360 = vmatpush.xpose.msra.mxu0 %v355
        %1361 = vmatmul.f32.gmra.mxu0 %v1271
        %v1362 = vpop.f32.mrf.mxu0
        %v1363 = vadd.f32 0.0, %v1362
        %1364 = vmatmul.f32.gmra.mxu0 %v1274
        %v1365 = vpop.f32.mrf.mxu0
        %v1366 = vadd.f32 0.0, %v1365
        %1367 = vdwg.mxu0
        %v1368 = vld [vmem:[%s2] sm:$0xff]
        %v1369 = vld [vmem:[%s2 + $0x8] sm:$0xff]
        %v1371 = vsel %vm260, %v1294, 0
        %v1374 = vsel %vm260, %v1297, 0
        %1376 = vmatpush.msra.mxu0 0.0
        %1377 = vmatpush.msra.mxu0 0.0
        %1378 = vmatpush.msra.mxu0 0.0
        %1379 = vmatpush.msra.mxu0 0.0
        %1380 = vmatpush.msra.mxu0 0.0
        %1381 = vmatpush.msra.mxu0 0.0
        %1382 = vmatpush.msra.mxu0 0.0
        %1383 = vmatpush.msra.mxu0 0.0
        %1384 = vmatpush.msra.mxu0 0.0
        %1385 = vmatpush.msra.mxu0 0.0
        %1386 = vmatpush.msra.mxu0 0.0
        %1387 = vmatpush.msra.mxu0 0.0
        %1388 = vmatpush.msra.mxu0 0.0
        %1389 = vmatpush.msra.mxu0 0.0
        %1390 = vmatpush.msra.mxu0 %v1369
        %1391 = vmatpush.msra.mxu0 %v1368
        %1392 = vmatmul.f32.gmra.mxu0 %v1371
        %v1393 = vpop.f32.mrf.mxu0
        %v1394 = vadd.f32 0.0, %v1393
        %1395 = vmatmul.f32.gmra.mxu0 %v1374
        %v1396 = vpop.f32.mrf.mxu0
        %v1397 = vadd.f32 0.0, %v1396
        %1398 = vdwg.mxu0
        %v1400 = vsel %vm260, %v1317, 0
        %v1403 = vsel %vm260, %v1320, 0
        %1405 = vmatpush.msra.mxu0 0.0
        %1406 = vmatpush.msra.mxu0 0.0
        %1407 = vmatpush.msra.mxu0 0.0
        %1408 = vmatpush.msra.mxu0 0.0
        %1409 = vmatpush.msra.mxu0 0.0
        %1410 = vmatpush.msra.mxu0 0.0
        %1411 = vmatpush.msra.mxu0 0.0
        %1412 = vmatpush.msra.mxu0 0.0
        %1413 = vmatpush.msra.mxu0 0.0
        %1414 = vmatpush.msra.mxu0 0.0
        %1415 = vmatpush.msra.mxu0 0.0
        %1416 = vmatpush.msra.mxu0 0.0
        %1417 = vmatpush.msra.mxu0 0.0
        %1418 = vmatpush.msra.mxu0 0.0
        %1419 = vmatpush.msra.mxu0 %v1369
        %1420 = vmatpush.msra.mxu0 %v1368
        %1421 = vmatmul.f32.gmra.mxu0 %v1400
        %v1422 = vpop.f32.mrf.mxu0
        %v1423 = vadd.f32 0.0, %v1422
        %1424 = vmatmul.f32.gmra.mxu0 %v1403
        %v1425 = vpop.f32.mrf.mxu0
        %v1426 = vadd.f32 0.0, %v1425
        %1427 = vdwg.mxu0
        %v1429 = vsel %vm260, %v1340, 0
        %v1432 = vsel %vm260, %v1343, 0
        %1434 = vmatpush.msra.mxu0 0.0
        %1435 = vmatpush.msra.mxu0 0.0
        %1436 = vmatpush.msra.mxu0 0.0
        %1437 = vmatpush.msra.mxu0 0.0
        %1438 = vmatpush.msra.mxu0 0.0
        %1439 = vmatpush.msra.mxu0 0.0
        %1440 = vmatpush.msra.mxu0 0.0
        %1441 = vmatpush.msra.mxu0 0.0
        %1442 = vmatpush.msra.mxu0 0.0
        %1443 = vmatpush.msra.mxu0 0.0
        %1444 = vmatpush.msra.mxu0 0.0
        %1445 = vmatpush.msra.mxu0 0.0
        %1446 = vmatpush.msra.mxu0 0.0
        %1447 = vmatpush.msra.mxu0 0.0
        %1448 = vmatpush.msra.mxu0 %v1369
        %1449 = vmatpush.msra.mxu0 %v1368
        %1450 = vmatmul.f32.gmra.mxu0 %v1429
        %v1451 = vpop.f32.mrf.mxu0
        %v1452 = vadd.f32 0.0, %v1451
        %1453 = vmatmul.f32.gmra.mxu0 %v1432
        %v1454 = vpop.f32.mrf.mxu0
        %v1455 = vadd.f32 0.0, %v1454
        %1456 = vdwg.mxu0
        %v1458 = vsel %vm260, %v1363, 0
        %v1461 = vsel %vm260, %v1366, 0
        %1463 = vmatpush.msra.mxu0 0.0
        %1464 = vmatpush.msra.mxu0 0.0
        %1465 = vmatpush.msra.mxu0 0.0
        %1466 = vmatpush.msra.mxu0 0.0
        %1467 = vmatpush.msra.mxu0 0.0
        %1468 = vmatpush.msra.mxu0 0.0
        %1469 = vmatpush.msra.mxu0 0.0
        %1470 = vmatpush.msra.mxu0 0.0
        %1471 = vmatpush.msra.mxu0 0.0
        %1472 = vmatpush.msra.mxu0 0.0
        %1473 = vmatpush.msra.mxu0 0.0
        %1474 = vmatpush.msra.mxu0 0.0
        %1475 = vmatpush.msra.mxu0 0.0
        %1476 = vmatpush.msra.mxu0 0.0
        %1477 = vmatpush.msra.mxu0 %v1369
        %1478 = vmatpush.msra.mxu0 %v1368
        %1479 = vmatmul.f32.gmra.mxu0 %v1458
        %v1480 = vpop.f32.mrf.mxu0
        %v1481 = vadd.f32 0.0, %v1480
        %1482 = vmatmul.f32.gmra.mxu0 %v1461
        %v1483 = vpop.f32.mrf.mxu0
        %v1484 = vadd.f32 0.0, %v1483
        %1485 = vdwg.mxu0
        %s1486 = sld [smem:[#allocation2 + $0x60]]
        %v1487 = vstv %s1486
        %v1488 = vmul.f32 %v1487, %v1394
        %v1489 = vmul.f32 %v1487, %v1397
        %v1490 = vadd.f32 %v1097, %v1488
        %v1491 = vadd.f32 %v1098, %v1489
        %s1492 = sld [smem:[#allocation2 + $0x61]]
        %v1493 = vstv %s1492
        %v1494 = vmul.f32 %v1493, %v1423
        %v1495 = vmul.f32 %v1493, %v1426
        %v1496 = vadd.f32 %v1490, %v1494
        %v1497 = vadd.f32 %v1491, %v1495
        %s1498 = sld [smem:[#allocation2 + $0x62]]
        %v1499 = vstv %s1498
        %v1500 = vmul.f32 %v1499, %v1452
        %v1501 = vmul.f32 %v1499, %v1455
        %v1502 = vadd.f32 %v1496, %v1500
        %v1503 = vadd.f32 %v1497, %v1501
        %s1504 = sld [smem:[#allocation2 + $0x63]]
        %v1505 = vstv %s1504
        %v1506 = vmul.f32 %v1505, %v1481
        %v1507 = vmul.f32 %v1505, %v1484
        %v1508 = vadd.f32 %v1502, %v1506
        %v1509 = vadd.f32 %v1503, %v1507
        %s1510 = sld [smem:[#allocation2 + $0x64]]
        %v1511 = vstv %s1510
        %v1512 = vmul.f32 %v1511, %v1394
        %v1513 = vmul.f32 %v1511, %v1397
        %v1514 = vadd.f32 %v1121, %v1512
        %v1515 = vadd.f32 %v1122, %v1513
        %s1516 = sld [smem:[#allocation2 + $0x65]]
        %v1517 = vstv %s1516
        %v1518 = vmul.f32 %v1517, %v1423
        %v1519 = vmul.f32 %v1517, %v1426
        %v1520 = vadd.f32 %v1514, %v1518
        %v1521 = vadd.f32 %v1515, %v1519
        %s1522 = sld [smem:[#allocation2 + $0x66]]
        %v1523 = vstv %s1522
        %v1524 = vmul.f32 %v1523, %v1452
        %v1525 = vmul.f32 %v1523, %v1455
        %v1526 = vadd.f32 %v1520, %v1524
        %v1527 = vadd.f32 %v1521, %v1525
        %s1528 = sld [smem:[#allocation2 + $0x67]]
        %v1529 = vstv %s1528
        %v1530 = vmul.f32 %v1529, %v1481
        %v1531 = vmul.f32 %v1529, %v1484
        %v1532 = vadd.f32 %v1526, %v1530
        %v1533 = vadd.f32 %v1527, %v1531
        %s1534 = sld [smem:[#allocation2 + $0x68]]
        %v1535 = vstv %s1534
        %v1536 = vmul.f32 %v1535, %v1394
        %v1537 = vmul.f32 %v1535, %v1397
        %v1538 = vadd.f32 %v1145, %v1536
        %v1539 = vadd.f32 %v1146, %v1537
        %s1540 = sld [smem:[#allocation2 + $0x69]]
        %v1541 = vstv %s1540
        %v1542 = vmul.f32 %v1541, %v1423
        %v1543 = vmul.f32 %v1541, %v1426
        %v1544 = vadd.f32 %v1538, %v1542
        %v1545 = vadd.f32 %v1539, %v1543
        %s1546 = sld [smem:[#allocation2 + $0x6a]]
        %v1547 = vstv %s1546
        %v1548 = vmul.f32 %v1547, %v1452
        %v1549 = vmul.f32 %v1547, %v1455
        %v1550 = vadd.f32 %v1544, %v1548
        %v1551 = vadd.f32 %v1545, %v1549
        %s1552 = sld [smem:[#allocation2 + $0x6b]]
        %v1553 = vstv %s1552
        %v1554 = vmul.f32 %v1553, %v1481
        %v1555 = vmul.f32 %v1553, %v1484
        %v1556 = vadd.f32 %v1550, %v1554
        %v1557 = vadd.f32 %v1551, %v1555
        %s1558 = sld [smem:[#allocation2 + $0x6c]]
        %v1559 = vstv %s1558
        %v1560 = vmul.f32 %v1559, %v1394
        %v1561 = vmul.f32 %v1559, %v1397
        %v1562 = vadd.f32 %v1169, %v1560
        %v1563 = vadd.f32 %v1170, %v1561
        %s1564 = sld [smem:[#allocation2 + $0x6d]]
        %v1565 = vstv %s1564
        %v1566 = vmul.f32 %v1565, %v1423
        %v1567 = vmul.f32 %v1565, %v1426
        %v1568 = vadd.f32 %v1562, %v1566
        %v1569 = vadd.f32 %v1563, %v1567
        %s1570 = sld [smem:[#allocation2 + $0x6e]]
        %v1571 = vstv %s1570
        %v1572 = vmul.f32 %v1571, %v1452
        %v1573 = vmul.f32 %v1571, %v1455
        %v1574 = vadd.f32 %v1568, %v1572
        %v1575 = vadd.f32 %v1569, %v1573
        %s1576 = sld [smem:[#allocation2 + $0x6f]]
        %v1577 = vstv %s1576
        %v1578 = vmul.f32 %v1577, %v1481
        %v1579 = vmul.f32 %v1577, %v1484
        %v1580 = vadd.f32 %v1574, %v1578
        %v1581 = vadd.f32 %v1575, %v1579
        %s1582 = sld [smem:[#allocation2 + $0x70]]
        %v1583 = vstv %s1582
        %v1584 = vmul.f32 %v1583, %v1394
        %v1585 = vmul.f32 %v1583, %v1397
        %v1586 = vadd.f32 %v1193, %v1584
        %v1587 = vadd.f32 %v1194, %v1585
        %s1588 = sld [smem:[#allocation2 + $0x71]]
        %v1589 = vstv %s1588
        %v1590 = vmul.f32 %v1589, %v1423
        %v1591 = vmul.f32 %v1589, %v1426
        %v1592 = vadd.f32 %v1586, %v1590
        %v1593 = vadd.f32 %v1587, %v1591
        %s1594 = sld [smem:[#allocation2 + $0x72]]
        %v1595 = vstv %s1594
        %v1596 = vmul.f32 %v1595, %v1452
        %v1597 = vmul.f32 %v1595, %v1455
        %v1598 = vadd.f32 %v1592, %v1596
        %v1599 = vadd.f32 %v1593, %v1597
        %s1600 = sld [smem:[#allocation2 + $0x73]]
        %v1601 = vstv %s1600
        %v1602 = vmul.f32 %v1601, %v1481
        %v1603 = vmul.f32 %v1601, %v1484
        %v1604 = vadd.f32 %v1598, %v1602
        %v1605 = vadd.f32 %v1599, %v1603
        %s1606 = sld [smem:[#allocation2 + $0x74]]
        %v1607 = vstv %s1606
        %v1608 = vmul.f32 %v1607, %v1394
        %v1609 = vmul.f32 %v1607, %v1397
        %v1610 = vadd.f32 %v1217, %v1608
        %v1611 = vadd.f32 %v1218, %v1609
        %s1612 = sld [smem:[#allocation2 + $0x75]]
        %v1613 = vstv %s1612
        %v1614 = vmul.f32 %v1613, %v1423
        %v1615 = vmul.f32 %v1613, %v1426
        %v1616 = vadd.f32 %v1610, %v1614
        %v1617 = vadd.f32 %v1611, %v1615
        %s1618 = sld [smem:[#allocation2 + $0x76]]
        %v1619 = vstv %s1618
        %v1620 = vmul.f32 %v1619, %v1452
        %v1621 = vmul.f32 %v1619, %v1455
        %v1622 = vadd.f32 %v1616, %v1620
        %v1623 = vadd.f32 %v1617, %v1621
        %s1624 = sld [smem:[#allocation2 + $0x77]]
        %v1625 = vstv %s1624
        %v1626 = vmul.f32 %v1625, %v1481
        %v1627 = vmul.f32 %v1625, %v1484
        %v1628 = vadd.f32 %v1622, %v1626
        %v1629 = vadd.f32 %v1623, %v1627
        %s1630 = sld [smem:[#allocation2 + $0x78]]
        %v1631 = vstv %s1630
        %v1632 = vmul.f32 %v1631, %v1394
        %v1633 = vmul.f32 %v1631, %v1397
        %v1634 = vadd.f32 %v1241, %v1632
        %v1635 = vadd.f32 %v1242, %v1633
        %s1636 = sld [smem:[#allocation2 + $0x79]]
        %v1637 = vstv %s1636
        %v1638 = vmul.f32 %v1637, %v1423
        %v1639 = vmul.f32 %v1637, %v1426
        %v1640 = vadd.f32 %v1634, %v1638
        %v1641 = vadd.f32 %v1635, %v1639
        %s1642 = sld [smem:[#allocation2 + $0x7a]]
        %v1643 = vstv %s1642
        %v1644 = vmul.f32 %v1643, %v1452
        %v1645 = vmul.f32 %v1643, %v1455
        %v1646 = vadd.f32 %v1640, %v1644
        %v1647 = vadd.f32 %v1641, %v1645
        %s1648 = sld [smem:[#allocation2 + $0x7b]]
        %v1649 = vstv %s1648
        %v1650 = vmul.f32 %v1649, %v1481
        %v1651 = vmul.f32 %v1649, %v1484
        %v1652 = vadd.f32 %v1646, %v1650
        %v1653 = vadd.f32 %v1647, %v1651
        %s1654 = sld [smem:[#allocation2 + $0x7c]]
        %v1655 = vstv %s1654
        %v1656 = vmul.f32 %v1655, %v1394
        %v1657 = vmul.f32 %v1655, %v1397
        %v1658 = vadd.f32 %v1265, %v1656
        %v1659 = vadd.f32 %v1266, %v1657
        %s1660 = sld [smem:[#allocation2 + $0x7d]]
        %v1661 = vstv %s1660
        %v1662 = vmul.f32 %v1661, %v1423
        %v1663 = vmul.f32 %v1661, %v1426
        %v1664 = vadd.f32 %v1658, %v1662
        %v1665 = vadd.f32 %v1659, %v1663
        %s1666 = sld [smem:[#allocation2 + $0x7e]]
        %v1667 = vstv %s1666
        %v1668 = vmul.f32 %v1667, %v1452
        %v1669 = vmul.f32 %v1667, %v1455
        %v1670 = vadd.f32 %v1664, %v1668
        %v1671 = vadd.f32 %v1665, %v1669
        %s1672 = sld [smem:[#allocation2 + $0x7f]]
        %v1673 = vstv %s1672
        %v1674 = vmul.f32 %v1673, %v1481
        %v1675 = vmul.f32 %v1673, %v1484
        %v1676 = vadd.f32 %v1670, %v1674
        %v1677 = vadd.f32 %v1671, %v1675
        %v1678 = vld [vmem:[%s693] sm:$0xff]
        %v1679 = vld [vmem:[%s693 + $0x8] sm:$0xff]
        %1680 = vmatpush.msra.mxu0 0.0
        %1681 = vmatpush.msra.mxu0 0.0
        %1682 = vmatpush.msra.mxu0 0.0
        %1683 = vmatpush.msra.mxu0 0.0
        %1684 = vmatpush.msra.mxu0 0.0
        %1685 = vmatpush.msra.mxu0 0.0
        %1686 = vmatpush.msra.mxu0 0.0
        %1687 = vmatpush.msra.mxu0 0.0
        %1688 = vmatpush.msra.mxu0 0.0
        %1689 = vmatpush.msra.mxu0 0.0
        %1690 = vmatpush.msra.mxu0 0.0
        %1691 = vmatpush.msra.mxu0 0.0
        %1692 = vmatpush.msra.mxu0 0.0
        %1693 = vmatpush.msra.mxu0 0.0
        %1694 = vmatpush.msra.mxu0 %v1679
        %1695 = vmatpush.msra.mxu0 %v1678
        %1696 = vmatmul.f32.gmra.mxu0 %v1371
        %v1697 = vpop.f32.mrf.mxu0
        %v1698 = vadd.f32 0.0, %v1697
        %1699 = vmatmul.f32.gmra.mxu0 %v1374
        %v1700 = vpop.f32.mrf.mxu0
        %v1701 = vadd.f32 0.0, %v1700
        %1702 = vdwg.mxu0
        %1703 = vmatpush.msra.mxu0 0.0
        %1704 = vmatpush.msra.mxu0 0.0
        %1705 = vmatpush.msra.mxu0 0.0
        %1706 = vmatpush.msra.mxu0 0.0
        %1707 = vmatpush.msra.mxu0 0.0
        %1708 = vmatpush.msra.mxu0 0.0
        %1709 = vmatpush.msra.mxu0 0.0
        %1710 = vmatpush.msra.mxu0 0.0
        %1711 = vmatpush.msra.mxu0 0.0
        %1712 = vmatpush.msra.mxu0 0.0
        %1713 = vmatpush.msra.mxu0 0.0
        %1714 = vmatpush.msra.mxu0 0.0
        %1715 = vmatpush.msra.mxu0 0.0
        %1716 = vmatpush.msra.mxu0 0.0
        %1717 = vmatpush.msra.mxu0 %v1679
        %1718 = vmatpush.msra.mxu0 %v1678
        %1719 = vmatmul.f32.gmra.mxu0 %v1400
        %v1720 = vpop.f32.mrf.mxu0
        %v1721 = vadd.f32 0.0, %v1720
        %1722 = vmatmul.f32.gmra.mxu0 %v1403
        %v1723 = vpop.f32.mrf.mxu0
        %v1724 = vadd.f32 0.0, %v1723
        %1725 = vdwg.mxu0
        %1726 = vmatpush.msra.mxu0 0.0
        %1727 = vmatpush.msra.mxu0 0.0
        %1728 = vmatpush.msra.mxu0 0.0
        %1729 = vmatpush.msra.mxu0 0.0
        %1730 = vmatpush.msra.mxu0 0.0
        %1731 = vmatpush.msra.mxu0 0.0
        %1732 = vmatpush.msra.mxu0 0.0
        %1733 = vmatpush.msra.mxu0 0.0
        %1734 = vmatpush.msra.mxu0 0.0
        %1735 = vmatpush.msra.mxu0 0.0
        %1736 = vmatpush.msra.mxu0 0.0
        %1737 = vmatpush.msra.mxu0 0.0
        %1738 = vmatpush.msra.mxu0 0.0
        %1739 = vmatpush.msra.mxu0 0.0
        %1740 = vmatpush.msra.mxu0 %v1679
        %1741 = vmatpush.msra.mxu0 %v1678
        %1742 = vmatmul.f32.gmra.mxu0 %v1429
        %v1743 = vpop.f32.mrf.mxu0
        %v1744 = vadd.f32 0.0, %v1743
        %1745 = vmatmul.f32.gmra.mxu0 %v1432
        %v1746 = vpop.f32.mrf.mxu0
        %v1747 = vadd.f32 0.0, %v1746
        %1748 = vdwg.mxu0
        %1749 = vmatpush.msra.mxu0 0.0
        %1750 = vmatpush.msra.mxu0 0.0
        %1751 = vmatpush.msra.mxu0 0.0
        %1752 = vmatpush.msra.mxu0 0.0
        %1753 = vmatpush.msra.mxu0 0.0
        %1754 = vmatpush.msra.mxu0 0.0
        %1755 = vmatpush.msra.mxu0 0.0
        %1756 = vmatpush.msra.mxu0 0.0
        %1757 = vmatpush.msra.mxu0 0.0
        %1758 = vmatpush.msra.mxu0 0.0
        %1759 = vmatpush.msra.mxu0 0.0
        %1760 = vmatpush.msra.mxu0 0.0
        %1761 = vmatpush.msra.mxu0 0.0
        %1762 = vmatpush.msra.mxu0 0.0
        %1763 = vmatpush.msra.mxu0 %v1679
        %1764 = vmatpush.msra.mxu0 %v1678
        %1765 = vmatmul.f32.gmra.mxu0 %v1458
        %v1766 = vpop.f32.mrf.mxu0
        %v1767 = vadd.f32 0.0, %v1766
        %1768 = vmatmul.f32.gmra.mxu0 %v1461
        %v1769 = vpop.f32.mrf.mxu0
        %v1770 = vadd.f32 0.0, %v1769
        %1771 = vdwg.mxu0
        %s1772 = sld [smem:[#allocation2 + $0x80]]
        %v1773 = vstv %s1772
        %v1774 = vmul.f32 %v1773, %v1698
        %v1775 = vmul.f32 %v1773, %v1701
        %v1776 = vadd.f32 %v1508, %v1774
        %v1777 = vadd.f32 %v1509, %v1775
        %s1778 = sld [smem:[#allocation2 + $0x81]]
        %v1779 = vstv %s1778
        %v1780 = vmul.f32 %v1779, %v1721
        %v1781 = vmul.f32 %v1779, %v1724
        %v1782 = vadd.f32 %v1776, %v1780
        %v1783 = vadd.f32 %v1777, %v1781
        %s1784 = sld [smem:[#allocation2 + $0x82]]
        %v1785 = vstv %s1784
        %v1786 = vmul.f32 %v1785, %v1744
        %v1787 = vmul.f32 %v1785, %v1747
        %v1788 = vadd.f32 %v1782, %v1786
        %v1789 = vadd.f32 %v1783, %v1787
        %s1790 = sld [smem:[#allocation2 + $0x83]]
        %v1791 = vstv %s1790
        %v1792 = vmul.f32 %v1791, %v1767
        %v1793 = vmul.f32 %v1791, %v1770
        %v1794 = vadd.f32 %v1788, %v1792
        %v1795 = vadd.f32 %v1789, %v1793
        %s1796 = sld [smem:[#allocation2 + $0x84]]
        %v1797 = vstv %s1796
        %v1798 = vmul.f32 %v1797, %v1698
        %v1799 = vmul.f32 %v1797, %v1701
        %v1800 = vadd.f32 %v1532, %v1798
        %v1801 = vadd.f32 %v1533, %v1799
        %s1802 = sld [smem:[#allocation2 + $0x85]]
        %v1803 = vstv %s1802
        %v1804 = vmul.f32 %v1803, %v1721
        %v1805 = vmul.f32 %v1803, %v1724
        %v1806 = vadd.f32 %v1800, %v1804
        %v1807 = vadd.f32 %v1801, %v1805
        %s1808 = sld [smem:[#allocation2 + $0x86]]
        %v1809 = vstv %s1808
        %v1810 = vmul.f32 %v1809, %v1744
        %v1811 = vmul.f32 %v1809, %v1747
        %v1812 = vadd.f32 %v1806, %v1810
        %v1813 = vadd.f32 %v1807, %v1811
        %s1814 = sld [smem:[#allocation2 + $0x87]]
        %v1815 = vstv %s1814
        %v1816 = vmul.f32 %v1815, %v1767
        %v1817 = vmul.f32 %v1815, %v1770
        %v1818 = vadd.f32 %v1812, %v1816
        %v1819 = vadd.f32 %v1813, %v1817
        %s1820 = sld [smem:[#allocation2 + $0x88]]
        %v1821 = vstv %s1820
        %v1822 = vmul.f32 %v1821, %v1698
        %v1823 = vmul.f32 %v1821, %v1701
        %v1824 = vadd.f32 %v1556, %v1822
        %v1825 = vadd.f32 %v1557, %v1823
        %s1826 = sld [smem:[#allocation2 + $0x89]]
        %v1827 = vstv %s1826
        %v1828 = vmul.f32 %v1827, %v1721
        %v1829 = vmul.f32 %v1827, %v1724
        %v1830 = vadd.f32 %v1824, %v1828
        %v1831 = vadd.f32 %v1825, %v1829
        %s1832 = sld [smem:[#allocation2 + $0x8a]]
        %v1833 = vstv %s1832
        %v1834 = vmul.f32 %v1833, %v1744
        %v1835 = vmul.f32 %v1833, %v1747
        %v1836 = vadd.f32 %v1830, %v1834
        %v1837 = vadd.f32 %v1831, %v1835
        %s1838 = sld [smem:[#allocation2 + $0x8b]]
        %v1839 = vstv %s1838
        %v1840 = vmul.f32 %v1839, %v1767
        %v1841 = vmul.f32 %v1839, %v1770
        %v1842 = vadd.f32 %v1836, %v1840
        %v1843 = vadd.f32 %v1837, %v1841
        %s1844 = sld [smem:[#allocation2 + $0x8c]]
        %v1845 = vstv %s1844
        %v1846 = vmul.f32 %v1845, %v1698
        %v1847 = vmul.f32 %v1845, %v1701
        %v1848 = vadd.f32 %v1580, %v1846
        %v1849 = vadd.f32 %v1581, %v1847
        %s1850 = sld [smem:[#allocation2 + $0x8d]]
        %v1851 = vstv %s1850
        %v1852 = vmul.f32 %v1851, %v1721
        %v1853 = vmul.f32 %v1851, %v1724
        %v1854 = vadd.f32 %v1848, %v1852
        %v1855 = vadd.f32 %v1849, %v1853
        %s1856 = sld [smem:[#allocation2 + $0x8e]]
        %v1857 = vstv %s1856
        %v1858 = vmul.f32 %v1857, %v1744
        %v1859 = vmul.f32 %v1857, %v1747
        %v1860 = vadd.f32 %v1854, %v1858
        %v1861 = vadd.f32 %v1855, %v1859
        %s1862 = sld [smem:[#allocation2 + $0x8f]]
        %v1863 = vstv %s1862
        %v1864 = vmul.f32 %v1863, %v1767
        %v1865 = vmul.f32 %v1863, %v1770
        %v1866 = vadd.f32 %v1860, %v1864
        %v1867 = vadd.f32 %v1861, %v1865
        %s1868 = sld [smem:[#allocation2 + $0x90]]
        %v1869 = vstv %s1868
        %v1870 = vmul.f32 %v1869, %v1698
        %v1871 = vmul.f32 %v1869, %v1701
        %v1872 = vadd.f32 %v1604, %v1870
        %v1873 = vadd.f32 %v1605, %v1871
        %s1874 = sld [smem:[#allocation2 + $0x91]]
        %v1875 = vstv %s1874
        %v1876 = vmul.f32 %v1875, %v1721
        %v1877 = vmul.f32 %v1875, %v1724
        %v1878 = vadd.f32 %v1872, %v1876
        %v1879 = vadd.f32 %v1873, %v1877
        %s1880 = sld [smem:[#allocation2 + $0x92]]
        %v1881 = vstv %s1880
        %v1882 = vmul.f32 %v1881, %v1744
        %v1883 = vmul.f32 %v1881, %v1747
        %v1884 = vadd.f32 %v1878, %v1882
        %v1885 = vadd.f32 %v1879, %v1883
        %s1886 = sld [smem:[#allocation2 + $0x93]]
        %v1887 = vstv %s1886
        %v1888 = vmul.f32 %v1887, %v1767
        %v1889 = vmul.f32 %v1887, %v1770
        %v1890 = vadd.f32 %v1884, %v1888
        %v1891 = vadd.f32 %v1885, %v1889
        %s1892 = sld [smem:[#allocation2 + $0x94]]
        %v1893 = vstv %s1892
        %v1894 = vmul.f32 %v1893, %v1698
        %v1895 = vmul.f32 %v1893, %v1701
        %v1896 = vadd.f32 %v1628, %v1894
        %v1897 = vadd.f32 %v1629, %v1895
        %s1898 = sld [smem:[#allocation2 + $0x95]]
        %v1899 = vstv %s1898
        %v1900 = vmul.f32 %v1899, %v1721
        %v1901 = vmul.f32 %v1899, %v1724
        %v1902 = vadd.f32 %v1896, %v1900
        %v1903 = vadd.f32 %v1897, %v1901
        %s1904 = sld [smem:[#allocation2 + $0x96]]
        %v1905 = vstv %s1904
        %v1906 = vmul.f32 %v1905, %v1744
        %v1907 = vmul.f32 %v1905, %v1747
        %v1908 = vadd.f32 %v1902, %v1906
        %v1909 = vadd.f32 %v1903, %v1907
        %s1910 = sld [smem:[#allocation2 + $0x97]]
        %v1911 = vstv %s1910
        %v1912 = vmul.f32 %v1911, %v1767
        %v1913 = vmul.f32 %v1911, %v1770
        %v1914 = vadd.f32 %v1908, %v1912
        %v1915 = vadd.f32 %v1909, %v1913
        %s1916 = sld [smem:[#allocation2 + $0x98]]
        %v1917 = vstv %s1916
        %v1918 = vmul.f32 %v1917, %v1698
        %v1919 = vmul.f32 %v1917, %v1701
        %v1920 = vadd.f32 %v1652, %v1918
        %v1921 = vadd.f32 %v1653, %v1919
        %s1922 = sld [smem:[#allocation2 + $0x99]]
        %v1923 = vstv %s1922
        %v1924 = vmul.f32 %v1923, %v1721
        %v1925 = vmul.f32 %v1923, %v1724
        %v1926 = vadd.f32 %v1920, %v1924
        %v1927 = vadd.f32 %v1921, %v1925
        %s1928 = sld [smem:[#allocation2 + $0x9a]]
        %v1929 = vstv %s1928
        %v1930 = vmul.f32 %v1929, %v1744
        %v1931 = vmul.f32 %v1929, %v1747
        %v1932 = vadd.f32 %v1926, %v1930
        %v1933 = vadd.f32 %v1927, %v1931
        %s1934 = sld [smem:[#allocation2 + $0x9b]]
        %v1935 = vstv %s1934
        %v1936 = vmul.f32 %v1935, %v1767
        %v1937 = vmul.f32 %v1935, %v1770
        %v1938 = vadd.f32 %v1932, %v1936
        %v1939 = vadd.f32 %v1933, %v1937
        %s1940 = sld [smem:[#allocation2 + $0x9c]]
        %v1941 = vstv %s1940
        %v1942 = vmul.f32 %v1941, %v1698
        %v1943 = vmul.f32 %v1941, %v1701
        %v1944 = vadd.f32 %v1676, %v1942
        %v1945 = vadd.f32 %v1677, %v1943
        %s1946 = sld [smem:[#allocation2 + $0x9d]]
        %v1947 = vstv %s1946
        %v1948 = vmul.f32 %v1947, %v1721
        %v1949 = vmul.f32 %v1947, %v1724
        %v1950 = vadd.f32 %v1944, %v1948
        %v1951 = vadd.f32 %v1945, %v1949
        %s1952 = sld [smem:[#allocation2 + $0x9e]]
        %v1953 = vstv %s1952
        %v1954 = vmul.f32 %v1953, %v1744
        %v1955 = vmul.f32 %v1953, %v1747
        %v1956 = vadd.f32 %v1950, %v1954
        %v1957 = vadd.f32 %v1951, %v1955
        %s1958 = sld [smem:[#allocation2 + $0x9f]]
        %v1959 = vstv %s1958
        %v1960 = vmul.f32 %v1959, %v1767
        %v1961 = vmul.f32 %v1959, %v1770
        %v1962 = vadd.f32 %v1956, %v1960
        %v1963 = vadd.f32 %v1957, %v1961
        %v1964 = vld [vmem:[%s980] sm:$0xff]
        %v1965 = vld [vmem:[%s980 + $0x8] sm:$0xff]
        %1966 = vmatpush.msra.mxu0 0.0
        %1967 = vmatpush.msra.mxu0 0.0
        %1968 = vmatpush.msra.mxu0 0.0
        %1969 = vmatpush.msra.mxu0 0.0
        %1970 = vmatpush.msra.mxu0 0.0
        %1971 = vmatpush.msra.mxu0 0.0
        %1972 = vmatpush.msra.mxu0 0.0
        %1973 = vmatpush.msra.mxu0 0.0
        %1974 = vmatpush.msra.mxu0 0.0
        %1975 = vmatpush.msra.mxu0 0.0
        %1976 = vmatpush.msra.mxu0 0.0
        %1977 = vmatpush.msra.mxu0 0.0
        %1978 = vmatpush.msra.mxu0 0.0
        %1979 = vmatpush.msra.mxu0 0.0
        %1980 = vmatpush.msra.mxu0 %v1965
        %1981 = vmatpush.msra.mxu0 %v1964
        %1982 = vmatmul.f32.gmra.mxu0 %v1371
        %v1983 = vpop.f32.mrf.mxu0
        %v1984 = vadd.f32 0.0, %v1983
        %1985 = vmatmul.f32.gmra.mxu0 %v1374
        %v1986 = vpop.f32.mrf.mxu0
        %v1987 = vadd.f32 0.0, %v1986
        %1988 = vdwg.mxu0
        %1989 = vmatpush.msra.mxu0 0.0
        %1990 = vmatpush.msra.mxu0 0.0
        %1991 = vmatpush.msra.mxu0 0.0
        %1992 = vmatpush.msra.mxu0 0.0
        %1993 = vmatpush.msra.mxu0 0.0
        %1994 = vmatpush.msra.mxu0 0.0
        %1995 = vmatpush.msra.mxu0 0.0
        %1996 = vmatpush.msra.mxu0 0.0
        %1997 = vmatpush.msra.mxu0 0.0
        %1998 = vmatpush.msra.mxu0 0.0
        %1999 = vmatpush.msra.mxu0 0.0
        %2000 = vmatpush.msra.mxu0 0.0
        %2001 = vmatpush.msra.mxu0 0.0
        %2002 = vmatpush.msra.mxu0 0.0
        %2003 = vmatpush.msra.mxu0 %v1965
        %2004 = vmatpush.msra.mxu0 %v1964
        %2005 = vmatmul.f32.gmra.mxu0 %v1400
        %v2006 = vpop.f32.mrf.mxu0
        %v2007 = vadd.f32 0.0, %v2006
        %2008 = vmatmul.f32.gmra.mxu0 %v1403
        %v2009 = vpop.f32.mrf.mxu0
        %v2010 = vadd.f32 0.0, %v2009
        %2011 = vdwg.mxu0
        %2012 = vmatpush.msra.mxu0 0.0
        %2013 = vmatpush.msra.mxu0 0.0
        %2014 = vmatpush.msra.mxu0 0.0
        %2015 = vmatpush.msra.mxu0 0.0
        %2016 = vmatpush.msra.mxu0 0.0
        %2017 = vmatpush.msra.mxu0 0.0
        %2018 = vmatpush.msra.mxu0 0.0
        %2019 = vmatpush.msra.mxu0 0.0
        %2020 = vmatpush.msra.mxu0 0.0
        %2021 = vmatpush.msra.mxu0 0.0
        %2022 = vmatpush.msra.mxu0 0.0
        %2023 = vmatpush.msra.mxu0 0.0
        %2024 = vmatpush.msra.mxu0 0.0
        %2025 = vmatpush.msra.mxu0 0.0
        %2026 = vmatpush.msra.mxu0 %v1965
        %2027 = vmatpush.msra.mxu0 %v1964
        %2028 = vmatmul.f32.gmra.mxu0 %v1429
        %v2029 = vpop.f32.mrf.mxu0
        %v2030 = vadd.f32 0.0, %v2029
        %2031 = vmatmul.f32.gmra.mxu0 %v1432
        %v2032 = vpop.f32.mrf.mxu0
        %v2033 = vadd.f32 0.0, %v2032
        %2034 = vdwg.mxu0
        %2035 = vmatpush.msra.mxu0 0.0
        %2036 = vmatpush.msra.mxu0 0.0
        %2037 = vmatpush.msra.mxu0 0.0
        %2038 = vmatpush.msra.mxu0 0.0
        %2039 = vmatpush.msra.mxu0 0.0
        %2040 = vmatpush.msra.mxu0 0.0
        %2041 = vmatpush.msra.mxu0 0.0
        %2042 = vmatpush.msra.mxu0 0.0
        %2043 = vmatpush.msra.mxu0 0.0
        %2044 = vmatpush.msra.mxu0 0.0
        %2045 = vmatpush.msra.mxu0 0.0
        %2046 = vmatpush.msra.mxu0 0.0
        %2047 = vmatpush.msra.mxu0 0.0
        %2048 = vmatpush.msra.mxu0 0.0
        %2049 = vmatpush.msra.mxu0 %v1965
        %2050 = vmatpush.msra.mxu0 %v1964
        %2051 = vmatmul.f32.gmra.mxu0 %v1458
        %v2052 = vpop.f32.mrf.mxu0
        %v2053 = vadd.f32 0.0, %v2052
        %2054 = vmatmul.f32.gmra.mxu0 %v1461
        %v2055 = vpop.f32.mrf.mxu0
        %v2056 = vadd.f32 0.0, %v2055
        %2057 = vdwg.mxu0
        %s2058 = sld [smem:[#allocation2 + $0xa0]]
        %v2059 = vstv %s2058
        %v2060 = vmul.f32 %v2059, %v1984
        %v2061 = vmul.f32 %v2059, %v1987
        %v2062 = vadd.f32 %v1794, %v2060
        %v2063 = vadd.f32 %v1795, %v2061
        %s2064 = sld [smem:[#allocation2 + $0xa1]]
        %v2065 = vstv %s2064
        %v2066 = vmul.f32 %v2065, %v2007
        %v2067 = vmul.f32 %v2065, %v2010
        %v2068 = vadd.f32 %v2062, %v2066
        %v2069 = vadd.f32 %v2063, %v2067
        %s2070 = sld [smem:[#allocation2 + $0xa2]]
        %v2071 = vstv %s2070
        %v2072 = vmul.f32 %v2071, %v2030
        %v2073 = vmul.f32 %v2071, %v2033
        %v2074 = vadd.f32 %v2068, %v2072
        %v2075 = vadd.f32 %v2069, %v2073
        %s2076 = sld [smem:[#allocation2 + $0xa3]]
        %v2077 = vstv %s2076
        %v2078 = vmul.f32 %v2077, %v2053
        %v2079 = vmul.f32 %v2077, %v2056
        %v2080 = vadd.f32 %v2074, %v2078
        %v2081 = vadd.f32 %v2075, %v2079
        %s2082 = sld [smem:[#allocation2 + $0xa4]]
        %v2083 = vstv %s2082
        %v2084 = vmul.f32 %v2083, %v1984
        %v2085 = vmul.f32 %v2083, %v1987
        %v2086 = vadd.f32 %v1818, %v2084
        %v2087 = vadd.f32 %v1819, %v2085
        %s2088 = sld [smem:[#allocation2 + $0xa5]]
        %v2089 = vstv %s2088
        %v2090 = vmul.f32 %v2089, %v2007
        %v2091 = vmul.f32 %v2089, %v2010
        %v2092 = vadd.f32 %v2086, %v2090
        %v2093 = vadd.f32 %v2087, %v2091
        %s2094 = sld [smem:[#allocation2 + $0xa6]]
        %v2095 = vstv %s2094
        %v2096 = vmul.f32 %v2095, %v2030
        %v2097 = vmul.f32 %v2095, %v2033
        %v2098 = vadd.f32 %v2092, %v2096
        %v2099 = vadd.f32 %v2093, %v2097
        %s2100 = sld [smem:[#allocation2 + $0xa7]]
        %v2101 = vstv %s2100
        %v2102 = vmul.f32 %v2101, %v2053
        %v2103 = vmul.f32 %v2101, %v2056
        %v2104 = vadd.f32 %v2098, %v2102
        %v2105 = vadd.f32 %v2099, %v2103
        %s2106 = sld [smem:[#allocation2 + $0xa8]]
        %v2107 = vstv %s2106
        %v2108 = vmul.f32 %v2107, %v1984
        %v2109 = vmul.f32 %v2107, %v1987
        %v2110 = vadd.f32 %v1842, %v2108
        %v2111 = vadd.f32 %v1843, %v2109
        %s2112 = sld [smem:[#allocation2 + $0xa9]]
        %v2113 = vstv %s2112
        %v2114 = vmul.f32 %v2113, %v2007
        %v2115 = vmul.f32 %v2113, %v2010
        %v2116 = vadd.f32 %v2110, %v2114
        %v2117 = vadd.f32 %v2111, %v2115
        %s2118 = sld [smem:[#allocation2 + $0xaa]]
        %v2119 = vstv %s2118
        %v2120 = vmul.f32 %v2119, %v2030
        %v2121 = vmul.f32 %v2119, %v2033
        %v2122 = vadd.f32 %v2116, %v2120
        %v2123 = vadd.f32 %v2117, %v2121
        %s2124 = sld [smem:[#allocation2 + $0xab]]
        %v2125 = vstv %s2124
        %v2126 = vmul.f32 %v2125, %v2053
        %v2127 = vmul.f32 %v2125, %v2056
        %v2128 = vadd.f32 %v2122, %v2126
        %v2129 = vadd.f32 %v2123, %v2127
        %s2130 = sld [smem:[#allocation2 + $0xac]]
        %v2131 = vstv %s2130
        %v2132 = vmul.f32 %v2131, %v1984
        %v2133 = vmul.f32 %v2131, %v1987
        %v2134 = vadd.f32 %v1866, %v2132
        %v2135 = vadd.f32 %v1867, %v2133
        %s2136 = sld [smem:[#allocation2 + $0xad]]
        %v2137 = vstv %s2136
        %v2138 = vmul.f32 %v2137, %v2007
        %v2139 = vmul.f32 %v2137, %v2010
        %v2140 = vadd.f32 %v2134, %v2138
        %v2141 = vadd.f32 %v2135, %v2139
        %s2142 = sld [smem:[#allocation2 + $0xae]]
        %v2143 = vstv %s2142
        %v2144 = vmul.f32 %v2143, %v2030
        %v2145 = vmul.f32 %v2143, %v2033
        %v2146 = vadd.f32 %v2140, %v2144
        %v2147 = vadd.f32 %v2141, %v2145
        %s2148 = sld [smem:[#allocation2 + $0xaf]]
        %v2149 = vstv %s2148
        %v2150 = vmul.f32 %v2149, %v2053
        %v2151 = vmul.f32 %v2149, %v2056
        %v2152 = vadd.f32 %v2146, %v2150
        %v2153 = vadd.f32 %v2147, %v2151
        %s2154 = sld [smem:[#allocation2 + $0xb0]]
        %v2155 = vstv %s2154
        %v2156 = vmul.f32 %v2155, %v1984
        %v2157 = vmul.f32 %v2155, %v1987
        %v2158 = vadd.f32 %v1890, %v2156
        %v2159 = vadd.f32 %v1891, %v2157
        %s2160 = sld [smem:[#allocation2 + $0xb1]]
        %v2161 = vstv %s2160
        %v2162 = vmul.f32 %v2161, %v2007
        %v2163 = vmul.f32 %v2161, %v2010
        %v2164 = vadd.f32 %v2158, %v2162
        %v2165 = vadd.f32 %v2159, %v2163
        %s2166 = sld [smem:[#allocation2 + $0xb2]]
        %v2167 = vstv %s2166
        %v2168 = vmul.f32 %v2167, %v2030
        %v2169 = vmul.f32 %v2167, %v2033
        %v2170 = vadd.f32 %v2164, %v2168
        %v2171 = vadd.f32 %v2165, %v2169
        %s2172 = sld [smem:[#allocation2 + $0xb3]]
        %v2173 = vstv %s2172
        %v2174 = vmul.f32 %v2173, %v2053
        %v2175 = vmul.f32 %v2173, %v2056
        %v2176 = vadd.f32 %v2170, %v2174
        %v2177 = vadd.f32 %v2171, %v2175
        %s2178 = sld [smem:[#allocation2 + $0xb4]]
        %v2179 = vstv %s2178
        %v2180 = vmul.f32 %v2179, %v1984
        %v2181 = vmul.f32 %v2179, %v1987
        %v2182 = vadd.f32 %v1914, %v2180
        %v2183 = vadd.f32 %v1915, %v2181
        %s2184 = sld [smem:[#allocation2 + $0xb5]]
        %v2185 = vstv %s2184
        %v2186 = vmul.f32 %v2185, %v2007
        %v2187 = vmul.f32 %v2185, %v2010
        %v2188 = vadd.f32 %v2182, %v2186
        %v2189 = vadd.f32 %v2183, %v2187
        %s2190 = sld [smem:[#allocation2 + $0xb6]]
        %v2191 = vstv %s2190
        %v2192 = vmul.f32 %v2191, %v2030
        %v2193 = vmul.f32 %v2191, %v2033
        %v2194 = vadd.f32 %v2188, %v2192
        %v2195 = vadd.f32 %v2189, %v2193
        %s2196 = sld [smem:[#allocation2 + $0xb7]]
        %v2197 = vstv %s2196
        %v2198 = vmul.f32 %v2197, %v2053
        %v2199 = vmul.f32 %v2197, %v2056
        %v2200 = vadd.f32 %v2194, %v2198
        %v2201 = vadd.f32 %v2195, %v2199
        %s2202 = sld [smem:[#allocation2 + $0xb8]]
        %v2203 = vstv %s2202
        %v2204 = vmul.f32 %v2203, %v1984
        %v2205 = vmul.f32 %v2203, %v1987
        %v2206 = vadd.f32 %v1938, %v2204
        %v2207 = vadd.f32 %v1939, %v2205
        %s2208 = sld [smem:[#allocation2 + $0xb9]]
        %v2209 = vstv %s2208
        %v2210 = vmul.f32 %v2209, %v2007
        %v2211 = vmul.f32 %v2209, %v2010
        %v2212 = vadd.f32 %v2206, %v2210
        %v2213 = vadd.f32 %v2207, %v2211
        %s2214 = sld [smem:[#allocation2 + $0xba]]
        %v2215 = vstv %s2214
        %v2216 = vmul.f32 %v2215, %v2030
        %v2217 = vmul.f32 %v2215, %v2033
        %v2218 = vadd.f32 %v2212, %v2216
        %v2219 = vadd.f32 %v2213, %v2217
        %s2220 = sld [smem:[#allocation2 + $0xbb]]
        %v2221 = vstv %s2220
        %v2222 = vmul.f32 %v2221, %v2053
        %v2223 = vmul.f32 %v2221, %v2056
        %v2224 = vadd.f32 %v2218, %v2222
        %v2225 = vadd.f32 %v2219, %v2223
        %s2226 = sld [smem:[#allocation2 + $0xbc]]
        %v2227 = vstv %s2226
        %v2228 = vmul.f32 %v2227, %v1984
        %v2229 = vmul.f32 %v2227, %v1987
        %v2230 = vadd.f32 %v1962, %v2228
        %v2231 = vadd.f32 %v1963, %v2229
        %s2232 = sld [smem:[#allocation2 + $0xbd]]
        %v2233 = vstv %s2232
        %v2234 = vmul.f32 %v2233, %v2007
        %v2235 = vmul.f32 %v2233, %v2010
        %v2236 = vadd.f32 %v2230, %v2234
        %v2237 = vadd.f32 %v2231, %v2235
        %s2238 = sld [smem:[#allocation2 + $0xbe]]
        %v2239 = vstv %s2238
        %v2240 = vmul.f32 %v2239, %v2030
        %v2241 = vmul.f32 %v2239, %v2033
        %v2242 = vadd.f32 %v2236, %v2240
        %v2243 = vadd.f32 %v2237, %v2241
        %s2244 = sld [smem:[#allocation2 + $0xbf]]
        %v2245 = vstv %s2244
        %v2246 = vmul.f32 %v2245, %v2053
        %v2247 = vmul.f32 %v2245, %v2056
        %v2248 = vadd.f32 %v2242, %v2246
        %v2249 = vadd.f32 %v2243, %v2247
        %s2250 = scalar_lea.vmem %s1, 32
        %v2251 = vld [vmem:[%s2250] sm:$0xff]
        %v2252 = vld [vmem:[%s2250 + $0x8] sm:$0xff]
        %v2254 = vsel %vm260, %v2251, 0
        %v2257 = vsel %vm260, %v2252, 0
        %2259 = vmatpush.xpose.msra.mxu0 0.0
        %2260 = vmatpush.xpose.msra.mxu0 0.0
        %2261 = vmatpush.xpose.msra.mxu0 0.0
        %2262 = vmatpush.xpose.msra.mxu0 0.0
        %2263 = vmatpush.xpose.msra.mxu0 0.0
        %2264 = vmatpush.xpose.msra.mxu0 0.0
        %2265 = vmatpush.xpose.msra.mxu0 0.0
        %2266 = vmatpush.xpose.msra.mxu0 0.0
        %2267 = vmatpush.xpose.msra.mxu0 0.0
        %2268 = vmatpush.xpose.msra.mxu0 0.0
        %2269 = vmatpush.xpose.msra.mxu0 0.0
        %2270 = vmatpush.xpose.msra.mxu0 0.0
        %2271 = vmatpush.xpose.msra.mxu0 0.0
        %2272 = vmatpush.xpose.msra.mxu0 0.0
        %2273 = vmatpush.xpose.msra.mxu0 %v271
        %2274 = vmatpush.xpose.msra.mxu0 %v268
        %2275 = vmatmul.f32.gmra.mxu0 %v2254
        %v2276 = vpop.f32.mrf.mxu0
        %v2277 = vadd.f32 0.0, %v2276
        %2278 = vmatmul.f32.gmra.mxu0 %v2257
        %v2279 = vpop.f32.mrf.mxu0
        %v2280 = vadd.f32 0.0, %v2279
        %2281 = vdwg.mxu0
        %2282 = vmatpush.xpose.msra.mxu0 0.0
        %2283 = vmatpush.xpose.msra.mxu0 0.0
        %2284 = vmatpush.xpose.msra.mxu0 0.0
        %2285 = vmatpush.xpose.msra.mxu0 0.0
        %2286 = vmatpush.xpose.msra.mxu0 0.0
        %2287 = vmatpush.xpose.msra.mxu0 0.0
        %2288 = vmatpush.xpose.msra.mxu0 0.0
        %2289 = vmatpush.xpose.msra.mxu0 0.0
        %2290 = vmatpush.xpose.msra.mxu0 0.0
        %2291 = vmatpush.xpose.msra.mxu0 0.0
        %2292 = vmatpush.xpose.msra.mxu0 0.0
        %2293 = vmatpush.xpose.msra.mxu0 0.0
        %2294 = vmatpush.xpose.msra.mxu0 0.0
        %2295 = vmatpush.xpose.msra.mxu0 0.0
        %2296 = vmatpush.xpose.msra.mxu0 %v300
        %2297 = vmatpush.xpose.msra.mxu0 %v297
        %2298 = vmatmul.f32.gmra.mxu0 %v2254
        %v2299 = vpop.f32.mrf.mxu0
        %v2300 = vadd.f32 0.0, %v2299
        %2301 = vmatmul.f32.gmra.mxu0 %v2257
        %v2302 = vpop.f32.mrf.mxu0
        %v2303 = vadd.f32 0.0, %v2302
        %2304 = vdwg.mxu0
        %2305 = vmatpush.xpose.msra.mxu0 0.0
        %2306 = vmatpush.xpose.msra.mxu0 0.0
        %2307 = vmatpush.xpose.msra.mxu0 0.0
        %2308 = vmatpush.xpose.msra.mxu0 0.0
        %2309 = vmatpush.xpose.msra.mxu0 0.0
        %2310 = vmatpush.xpose.msra.mxu0 0.0
        %2311 = vmatpush.xpose.msra.mxu0 0.0
        %2312 = vmatpush.xpose.msra.mxu0 0.0
        %2313 = vmatpush.xpose.msra.mxu0 0.0
        %2314 = vmatpush.xpose.msra.mxu0 0.0
        %2315 = vmatpush.xpose.msra.mxu0 0.0
        %2316 = vmatpush.xpose.msra.mxu0 0.0
        %2317 = vmatpush.xpose.msra.mxu0 0.0
        %2318 = vmatpush.xpose.msra.mxu0 0.0
        %2319 = vmatpush.xpose.msra.mxu0 %v329
        %2320 = vmatpush.xpose.msra.mxu0 %v326
        %2321 = vmatmul.f32.gmra.mxu0 %v2254
        %v2322 = vpop.f32.mrf.mxu0
        %v2323 = vadd.f32 0.0, %v2322
        %2324 = vmatmul.f32.gmra.mxu0 %v2257
        %v2325 = vpop.f32.mrf.mxu0
        %v2326 = vadd.f32 0.0, %v2325
        %2327 = vdwg.mxu0
        %2328 = vmatpush.xpose.msra.mxu0 0.0
        %2329 = vmatpush.xpose.msra.mxu0 0.0
        %2330 = vmatpush.xpose.msra.mxu0 0.0
        %2331 = vmatpush.xpose.msra.mxu0 0.0
        %2332 = vmatpush.xpose.msra.mxu0 0.0
        %2333 = vmatpush.xpose.msra.mxu0 0.0
        %2334 = vmatpush.xpose.msra.mxu0 0.0
        %2335 = vmatpush.xpose.msra.mxu0 0.0
        %2336 = vmatpush.xpose.msra.mxu0 0.0
        %2337 = vmatpush.xpose.msra.mxu0 0.0
        %2338 = vmatpush.xpose.msra.mxu0 0.0
        %2339 = vmatpush.xpose.msra.mxu0 0.0
        %2340 = vmatpush.xpose.msra.mxu0 0.0
        %2341 = vmatpush.xpose.msra.mxu0 0.0
        %2342 = vmatpush.xpose.msra.mxu0 %v358
        %2343 = vmatpush.xpose.msra.mxu0 %v355
        %2344 = vmatmul.f32.gmra.mxu0 %v2254
        %v2345 = vpop.f32.mrf.mxu0
        %v2346 = vadd.f32 0.0, %v2345
        %2347 = vmatmul.f32.gmra.mxu0 %v2257
        %v2348 = vpop.f32.mrf.mxu0
        %v2349 = vadd.f32 0.0, %v2348
        %2350 = vdwg.mxu0
        %v2351 = vld [vmem:[%s2] sm:$0xff]
        %v2352 = vld [vmem:[%s2 + $0x8] sm:$0xff]
        %v2354 = vsel %vm260, %v2277, 0
        %v2357 = vsel %vm260, %v2280, 0
        %2359 = vmatpush.msra.mxu0 0.0
        %2360 = vmatpush.msra.mxu0 0.0
        %2361 = vmatpush.msra.mxu0 0.0
        %2362 = vmatpush.msra.mxu0 0.0
        %2363 = vmatpush.msra.mxu0 0.0
        %2364 = vmatpush.msra.mxu0 0.0
        %2365 = vmatpush.msra.mxu0 0.0
        %2366 = vmatpush.msra.mxu0 0.0
        %2367 = vmatpush.msra.mxu0 0.0
        %2368 = vmatpush.msra.mxu0 0.0
        %2369 = vmatpush.msra.mxu0 0.0
        %2370 = vmatpush.msra.mxu0 0.0
        %2371 = vmatpush.msra.mxu0 0.0
        %2372 = vmatpush.msra.mxu0 0.0
        %2373 = vmatpush.msra.mxu0 %v2352
        %2374 = vmatpush.msra.mxu0 %v2351
        %2375 = vmatmul.f32.gmra.mxu0 %v2354
        %v2376 = vpop.f32.mrf.mxu0
        %v2377 = vadd.f32 0.0, %v2376
        %2378 = vmatmul.f32.gmra.mxu0 %v2357
        %v2379 = vpop.f32.mrf.mxu0
        %v2380 = vadd.f32 0.0, %v2379
        %2381 = vdwg.mxu0
        %v2383 = vsel %vm260, %v2300, 0
        %v2386 = vsel %vm260, %v2303, 0
        %2388 = vmatpush.msra.mxu0 0.0
        %2389 = vmatpush.msra.mxu0 0.0
        %2390 = vmatpush.msra.mxu0 0.0
        %2391 = vmatpush.msra.mxu0 0.0
        %2392 = vmatpush.msra.mxu0 0.0
        %2393 = vmatpush.msra.mxu0 0.0
        %2394 = vmatpush.msra.mxu0 0.0
        %2395 = vmatpush.msra.mxu0 0.0
        %2396 = vmatpush.msra.mxu0 0.0
        %2397 = vmatpush.msra.mxu0 0.0
        %2398 = vmatpush.msra.mxu0 0.0
        %2399 = vmatpush.msra.mxu0 0.0
        %2400 = vmatpush.msra.mxu0 0.0
        %2401 = vmatpush.msra.mxu0 0.0
        %2402 = vmatpush.msra.mxu0 %v2352
        %2403 = vmatpush.msra.mxu0 %v2351
        %2404 = vmatmul.f32.gmra.mxu0 %v2383
        %v2405 = vpop.f32.mrf.mxu0
        %v2406 = vadd.f32 0.0, %v2405
        %2407 = vmatmul.f32.gmra.mxu0 %v2386
        %v2408 = vpop.f32.mrf.mxu0
        %v2409 = vadd.f32 0.0, %v2408
        %2410 = vdwg.mxu0
        %v2412 = vsel %vm260, %v2323, 0
        %v2415 = vsel %vm260, %v2326, 0
        %2417 = vmatpush.msra.mxu0 0.0
        %2418 = vmatpush.msra.mxu0 0.0
        %2419 = vmatpush.msra.mxu0 0.0
        %2420 = vmatpush.msra.mxu0 0.0
        %2421 = vmatpush.msra.mxu0 0.0
        %2422 = vmatpush.msra.mxu0 0.0
        %2423 = vmatpush.msra.mxu0 0.0
        %2424 = vmatpush.msra.mxu0 0.0
        %2425 = vmatpush.msra.mxu0 0.0
        %2426 = vmatpush.msra.mxu0 0.0
        %2427 = vmatpush.msra.mxu0 0.0
        %2428 = vmatpush.msra.mxu0 0.0
        %2429 = vmatpush.msra.mxu0 0.0
        %2430 = vmatpush.msra.mxu0 0.0
        %2431 = vmatpush.msra.mxu0 %v2352
        %2432 = vmatpush.msra.mxu0 %v2351
        %2433 = vmatmul.f32.gmra.mxu0 %v2412
        %v2434 = vpop.f32.mrf.mxu0
        %v2435 = vadd.f32 0.0, %v2434
        %2436 = vmatmul.f32.gmra.mxu0 %v2415
        %v2437 = vpop.f32.mrf.mxu0
        %v2438 = vadd.f32 0.0, %v2437
        %2439 = vdwg.mxu0
        %v2441 = vsel %vm260, %v2346, 0
        %v2444 = vsel %vm260, %v2349, 0
        %2446 = vmatpush.msra.mxu0 0.0
        %2447 = vmatpush.msra.mxu0 0.0
        %2448 = vmatpush.msra.mxu0 0.0
        %2449 = vmatpush.msra.mxu0 0.0
        %2450 = vmatpush.msra.mxu0 0.0
        %2451 = vmatpush.msra.mxu0 0.0
        %2452 = vmatpush.msra.mxu0 0.0
        %2453 = vmatpush.msra.mxu0 0.0
        %2454 = vmatpush.msra.mxu0 0.0
        %2455 = vmatpush.msra.mxu0 0.0
        %2456 = vmatpush.msra.mxu0 0.0
        %2457 = vmatpush.msra.mxu0 0.0
        %2458 = vmatpush.msra.mxu0 0.0
        %2459 = vmatpush.msra.mxu0 0.0
        %2460 = vmatpush.msra.mxu0 %v2352
        %2461 = vmatpush.msra.mxu0 %v2351
        %2462 = vmatmul.f32.gmra.mxu0 %v2441
        %v2463 = vpop.f32.mrf.mxu0
        %v2464 = vadd.f32 0.0, %v2463
        %2465 = vmatmul.f32.gmra.mxu0 %v2444
        %v2466 = vpop.f32.mrf.mxu0
        %v2467 = vadd.f32 0.0, %v2466
        %2468 = vdwg.mxu0
        %s2469 = sld [smem:[#allocation2 + $0xc0]]
        %v2470 = vstv %s2469
        %v2471 = vmul.f32 %v2470, %v2377
        %v2472 = vmul.f32 %v2470, %v2380
        %v2473 = vadd.f32 %v2080, %v2471
        %v2474 = vadd.f32 %v2081, %v2472
        %s2475 = sld [smem:[#allocation2 + $0xc1]]
        %v2476 = vstv %s2475
        %v2477 = vmul.f32 %v2476, %v2406
        %v2478 = vmul.f32 %v2476, %v2409
        %v2479 = vadd.f32 %v2473, %v2477
        %v2480 = vadd.f32 %v2474, %v2478
        %s2481 = sld [smem:[#allocation2 + $0xc2]]
        %v2482 = vstv %s2481
        %v2483 = vmul.f32 %v2482, %v2435
        %v2484 = vmul.f32 %v2482, %v2438
        %v2485 = vadd.f32 %v2479, %v2483
        %v2486 = vadd.f32 %v2480, %v2484
        %s2487 = sld [smem:[#allocation2 + $0xc3]]
        %v2488 = vstv %s2487
        %v2489 = vmul.f32 %v2488, %v2464
        %v2490 = vmul.f32 %v2488, %v2467
        %v2491 = vadd.f32 %v2485, %v2489
        %v2492 = vadd.f32 %v2486, %v2490
        %s2493 = sld [smem:[#allocation2 + $0xc4]]
        %v2494 = vstv %s2493
        %v2495 = vmul.f32 %v2494, %v2377
        %v2496 = vmul.f32 %v2494, %v2380
        %v2497 = vadd.f32 %v2104, %v2495
        %v2498 = vadd.f32 %v2105, %v2496
        %s2499 = sld [smem:[#allocation2 + $0xc5]]
        %v2500 = vstv %s2499
        %v2501 = vmul.f32 %v2500, %v2406
        %v2502 = vmul.f32 %v2500, %v2409
        %v2503 = vadd.f32 %v2497, %v2501
        %v2504 = vadd.f32 %v2498, %v2502
        %s2505 = sld [smem:[#allocation2 + $0xc6]]
        %v2506 = vstv %s2505
        %v2507 = vmul.f32 %v2506, %v2435
        %v2508 = vmul.f32 %v2506, %v2438
        %v2509 = vadd.f32 %v2503, %v2507
        %v2510 = vadd.f32 %v2504, %v2508
        %s2511 = sld [smem:[#allocation2 + $0xc7]]
        %v2512 = vstv %s2511
        %v2513 = vmul.f32 %v2512, %v2464
        %v2514 = vmul.f32 %v2512, %v2467
        %v2515 = vadd.f32 %v2509, %v2513
        %v2516 = vadd.f32 %v2510, %v2514
        %s2517 = sld [smem:[#allocation2 + $0xc8]]
        %v2518 = vstv %s2517
        %v2519 = vmul.f32 %v2518, %v2377
        %v2520 = vmul.f32 %v2518, %v2380
        %v2521 = vadd.f32 %v2128, %v2519
        %v2522 = vadd.f32 %v2129, %v2520
        %s2523 = sld [smem:[#allocation2 + $0xc9]]
        %v2524 = vstv %s2523
        %v2525 = vmul.f32 %v2524, %v2406
        %v2526 = vmul.f32 %v2524, %v2409
        %v2527 = vadd.f32 %v2521, %v2525
        %v2528 = vadd.f32 %v2522, %v2526
        %s2529 = sld [smem:[#allocation2 + $0xca]]
        %v2530 = vstv %s2529
        %v2531 = vmul.f32 %v2530, %v2435
        %v2532 = vmul.f32 %v2530, %v2438
        %v2533 = vadd.f32 %v2527, %v2531
        %v2534 = vadd.f32 %v2528, %v2532
        %s2535 = sld [smem:[#allocation2 + $0xcb]]
        %v2536 = vstv %s2535
        %v2537 = vmul.f32 %v2536, %v2464
        %v2538 = vmul.f32 %v2536, %v2467
        %v2539 = vadd.f32 %v2533, %v2537
        %v2540 = vadd.f32 %v2534, %v2538
        %s2541 = sld [smem:[#allocation2 + $0xcc]]
        %v2542 = vstv %s2541
        %v2543 = vmul.f32 %v2542, %v2377
        %v2544 = vmul.f32 %v2542, %v2380
        %v2545 = vadd.f32 %v2152, %v2543
        %v2546 = vadd.f32 %v2153, %v2544
        %s2547 = sld [smem:[#allocation2 + $0xcd]]
        %v2548 = vstv %s2547
        %v2549 = vmul.f32 %v2548, %v2406
        %v2550 = vmul.f32 %v2548, %v2409
        %v2551 = vadd.f32 %v2545, %v2549
        %v2552 = vadd.f32 %v2546, %v2550
        %s2553 = sld [smem:[#allocation2 + $0xce]]
        %v2554 = vstv %s2553
        %v2555 = vmul.f32 %v2554, %v2435
        %v2556 = vmul.f32 %v2554, %v2438
        %v2557 = vadd.f32 %v2551, %v2555
        %v2558 = vadd.f32 %v2552, %v2556
        %s2559 = sld [smem:[#allocation2 + $0xcf]]
        %v2560 = vstv %s2559
        %v2561 = vmul.f32 %v2560, %v2464
        %v2562 = vmul.f32 %v2560, %v2467
        %v2563 = vadd.f32 %v2557, %v2561
        %v2564 = vadd.f32 %v2558, %v2562
        %s2565 = sld [smem:[#allocation2 + $0xd0]]
        %v2566 = vstv %s2565
        %v2567 = vmul.f32 %v2566, %v2377
        %v2568 = vmul.f32 %v2566, %v2380
        %v2569 = vadd.f32 %v2176, %v2567
        %v2570 = vadd.f32 %v2177, %v2568
        %s2571 = sld [smem:[#allocation2 + $0xd1]]
        %v2572 = vstv %s2571
        %v2573 = vmul.f32 %v2572, %v2406
        %v2574 = vmul.f32 %v2572, %v2409
        %v2575 = vadd.f32 %v2569, %v2573
        %v2576 = vadd.f32 %v2570, %v2574
        %s2577 = sld [smem:[#allocation2 + $0xd2]]
        %v2578 = vstv %s2577
        %v2579 = vmul.f32 %v2578, %v2435
        %v2580 = vmul.f32 %v2578, %v2438
        %v2581 = vadd.f32 %v2575, %v2579
        %v2582 = vadd.f32 %v2576, %v2580
        %s2583 = sld [smem:[#allocation2 + $0xd3]]
        %v2584 = vstv %s2583
        %v2585 = vmul.f32 %v2584, %v2464
        %v2586 = vmul.f32 %v2584, %v2467
        %v2587 = vadd.f32 %v2581, %v2585
        %v2588 = vadd.f32 %v2582, %v2586
        %s2589 = sld [smem:[#allocation2 + $0xd4]]
        %v2590 = vstv %s2589
        %v2591 = vmul.f32 %v2590, %v2377
        %v2592 = vmul.f32 %v2590, %v2380
        %v2593 = vadd.f32 %v2200, %v2591
        %v2594 = vadd.f32 %v2201, %v2592
        %s2595 = sld [smem:[#allocation2 + $0xd5]]
        %v2596 = vstv %s2595
        %v2597 = vmul.f32 %v2596, %v2406
        %v2598 = vmul.f32 %v2596, %v2409
        %v2599 = vadd.f32 %v2593, %v2597
        %v2600 = vadd.f32 %v2594, %v2598
        %s2601 = sld [smem:[#allocation2 + $0xd6]]
        %v2602 = vstv %s2601
        %v2603 = vmul.f32 %v2602, %v2435
        %v2604 = vmul.f32 %v2602, %v2438
        %v2605 = vadd.f32 %v2599, %v2603
        %v2606 = vadd.f32 %v2600, %v2604
        %s2607 = sld [smem:[#allocation2 + $0xd7]]
        %v2608 = vstv %s2607
        %v2609 = vmul.f32 %v2608, %v2464
        %v2610 = vmul.f32 %v2608, %v2467
        %v2611 = vadd.f32 %v2605, %v2609
        %v2612 = vadd.f32 %v2606, %v2610
        %s2613 = sld [smem:[#allocation2 + $0xd8]]
        %v2614 = vstv %s2613
        %v2615 = vmul.f32 %v2614, %v2377
        %v2616 = vmul.f32 %v2614, %v2380
        %v2617 = vadd.f32 %v2224, %v2615
        %v2618 = vadd.f32 %v2225, %v2616
        %s2619 = sld [smem:[#allocation2 + $0xd9]]
        %v2620 = vstv %s2619
        %v2621 = vmul.f32 %v2620, %v2406
        %v2622 = vmul.f32 %v2620, %v2409
        %v2623 = vadd.f32 %v2617, %v2621
        %v2624 = vadd.f32 %v2618, %v2622
        %s2625 = sld [smem:[#allocation2 + $0xda]]
        %v2626 = vstv %s2625
        %v2627 = vmul.f32 %v2626, %v2435
        %v2628 = vmul.f32 %v2626, %v2438
        %v2629 = vadd.f32 %v2623, %v2627
        %v2630 = vadd.f32 %v2624, %v2628
        %s2631 = sld [smem:[#allocation2 + $0xdb]]
        %v2632 = vstv %s2631
        %v2633 = vmul.f32 %v2632, %v2464
        %v2634 = vmul.f32 %v2632, %v2467
        %v2635 = vadd.f32 %v2629, %v2633
        %v2636 = vadd.f32 %v2630, %v2634
        %s2637 = sld [smem:[#allocation2 + $0xdc]]
        %v2638 = vstv %s2637
        %v2639 = vmul.f32 %v2638, %v2377
        %v2640 = vmul.f32 %v2638, %v2380
        %v2641 = vadd.f32 %v2248, %v2639
        %v2642 = vadd.f32 %v2249, %v2640
        %s2643 = sld [smem:[#allocation2 + $0xdd]]
        %v2644 = vstv %s2643
        %v2645 = vmul.f32 %v2644, %v2406
        %v2646 = vmul.f32 %v2644, %v2409
        %v2647 = vadd.f32 %v2641, %v2645
        %v2648 = vadd.f32 %v2642, %v2646
        %s2649 = sld [smem:[#allocation2 + $0xde]]
        %v2650 = vstv %s2649
        %v2651 = vmul.f32 %v2650, %v2435
        %v2652 = vmul.f32 %v2650, %v2438
        %v2653 = vadd.f32 %v2647, %v2651
        %v2654 = vadd.f32 %v2648, %v2652
        %s2655 = sld [smem:[#allocation2 + $0xdf]]
        %v2656 = vstv %s2655
        %v2657 = vmul.f32 %v2656, %v2464
        %v2658 = vmul.f32 %v2656, %v2467
        %v2659 = vadd.f32 %v2653, %v2657
        %v2660 = vadd.f32 %v2654, %v2658
        %v2661 = vld [vmem:[%s693] sm:$0xff]
        %v2662 = vld [vmem:[%s693 + $0x8] sm:$0xff]
        %2663 = vmatpush.msra.mxu0 0.0
        %2664 = vmatpush.msra.mxu0 0.0
        %2665 = vmatpush.msra.mxu0 0.0
        %2666 = vmatpush.msra.mxu0 0.0
        %2667 = vmatpush.msra.mxu0 0.0
        %2668 = vmatpush.msra.mxu0 0.0
        %2669 = vmatpush.msra.mxu0 0.0
        %2670 = vmatpush.msra.mxu0 0.0
        %2671 = vmatpush.msra.mxu0 0.0
        %2672 = vmatpush.msra.mxu0 0.0
        %2673 = vmatpush.msra.mxu0 0.0
        %2674 = vmatpush.msra.mxu0 0.0
        %2675 = vmatpush.msra.mxu0 0.0
        %2676 = vmatpush.msra.mxu0 0.0
        %2677 = vmatpush.msra.mxu0 %v2662
        %2678 = vmatpush.msra.mxu0 %v2661
        %2679 = vmatmul.f32.gmra.mxu0 %v2354
        %v2680 = vpop.f32.mrf.mxu0
        %v2681 = vadd.f32 0.0, %v2680
        %2682 = vmatmul.f32.gmra.mxu0 %v2357
        %v2683 = vpop.f32.mrf.mxu0
        %v2684 = vadd.f32 0.0, %v2683
        %2685 = vdwg.mxu0
        %2686 = vmatpush.msra.mxu0 0.0
        %2687 = vmatpush.msra.mxu0 0.0
        %2688 = vmatpush.msra.mxu0 0.0
        %2689 = vmatpush.msra.mxu0 0.0
        %2690 = vmatpush.msra.mxu0 0.0
        %2691 = vmatpush.msra.mxu0 0.0
        %2692 = vmatpush.msra.mxu0 0.0
        %2693 = vmatpush.msra.mxu0 0.0
        %2694 = vmatpush.msra.mxu0 0.0
        %2695 = vmatpush.msra.mxu0 0.0
        %2696 = vmatpush.msra.mxu0 0.0
        %2697 = vmatpush.msra.mxu0 0.0
        %2698 = vmatpush.msra.mxu0 0.0
        %2699 = vmatpush.msra.mxu0 0.0
        %2700 = vmatpush.msra.mxu0 %v2662
        %2701 = vmatpush.msra.mxu0 %v2661
        %2702 = vmatmul.f32.gmra.mxu0 %v2383
        %v2703 = vpop.f32.mrf.mxu0
        %v2704 = vadd.f32 0.0, %v2703
        %2705 = vmatmul.f32.gmra.mxu0 %v2386
        %v2706 = vpop.f32.mrf.mxu0
        %v2707 = vadd.f32 0.0, %v2706
        %2708 = vdwg.mxu0
        %2709 = vmatpush.msra.mxu0 0.0
        %2710 = vmatpush.msra.mxu0 0.0
        %2711 = vmatpush.msra.mxu0 0.0
        %2712 = vmatpush.msra.mxu0 0.0
        %2713 = vmatpush.msra.mxu0 0.0
        %2714 = vmatpush.msra.mxu0 0.0
        %2715 = vmatpush.msra.mxu0 0.0
        %2716 = vmatpush.msra.mxu0 0.0
        %2717 = vmatpush.msra.mxu0 0.0
        %2718 = vmatpush.msra.mxu0 0.0
        %2719 = vmatpush.msra.mxu0 0.0
        %2720 = vmatpush.msra.mxu0 0.0
        %2721 = vmatpush.msra.mxu0 0.0
        %2722 = vmatpush.msra.mxu0 0.0
        %2723 = vmatpush.msra.mxu0 %v2662
        %2724 = vmatpush.msra.mxu0 %v2661
        %2725 = vmatmul.f32.gmra.mxu0 %v2412
        %v2726 = vpop.f32.mrf.mxu0
        %v2727 = vadd.f32 0.0, %v2726
        %2728 = vmatmul.f32.gmra.mxu0 %v2415
        %v2729 = vpop.f32.mrf.mxu0
        %v2730 = vadd.f32 0.0, %v2729
        %2731 = vdwg.mxu0
        %2732 = vmatpush.msra.mxu0 0.0
        %2733 = vmatpush.msra.mxu0 0.0
        %2734 = vmatpush.msra.mxu0 0.0
        %2735 = vmatpush.msra.mxu0 0.0
        %2736 = vmatpush.msra.mxu0 0.0
        %2737 = vmatpush.msra.mxu0 0.0
        %2738 = vmatpush.msra.mxu0 0.0
        %2739 = vmatpush.msra.mxu0 0.0
        %2740 = vmatpush.msra.mxu0 0.0
        %2741 = vmatpush.msra.mxu0 0.0
        %2742 = vmatpush.msra.mxu0 0.0
        %2743 = vmatpush.msra.mxu0 0.0
        %2744 = vmatpush.msra.mxu0 0.0
        %2745 = vmatpush.msra.mxu0 0.0
        %2746 = vmatpush.msra.mxu0 %v2662
        %2747 = vmatpush.msra.mxu0 %v2661
        %2748 = vmatmul.f32.gmra.mxu0 %v2441
        %v2749 = vpop.f32.mrf.mxu0
        %v2750 = vadd.f32 0.0, %v2749
        %2751 = vmatmul.f32.gmra.mxu0 %v2444
        %v2752 = vpop.f32.mrf.mxu0
        %v2753 = vadd.f32 0.0, %v2752
        %2754 = vdwg.mxu0
        %s2755 = sld [smem:[#allocation2 + $0xe0]]
        %v2756 = vstv %s2755
        %v2757 = vmul.f32 %v2756, %v2681
        %v2758 = vmul.f32 %v2756, %v2684
        %v2759 = vadd.f32 %v2491, %v2757
        %v2760 = vadd.f32 %v2492, %v2758
        %s2761 = sld [smem:[#allocation2 + $0xe1]]
        %v2762 = vstv %s2761
        %v2763 = vmul.f32 %v2762, %v2704
        %v2764 = vmul.f32 %v2762, %v2707
        %v2765 = vadd.f32 %v2759, %v2763
        %v2766 = vadd.f32 %v2760, %v2764
        %s2767 = sld [smem:[#allocation2 + $0xe2]]
        %v2768 = vstv %s2767
        %v2769 = vmul.f32 %v2768, %v2727
        %v2770 = vmul.f32 %v2768, %v2730
        %v2771 = vadd.f32 %v2765, %v2769
        %v2772 = vadd.f32 %v2766, %v2770
        %s2773 = sld [smem:[#allocation2 + $0xe3]]
        %v2774 = vstv %s2773
        %v2775 = vmul.f32 %v2774, %v2750
        %v2776 = vmul.f32 %v2774, %v2753
        %v2777 = vadd.f32 %v2771, %v2775
        %v2778 = vadd.f32 %v2772, %v2776
        %s2779 = sld [smem:[#allocation2 + $0xe4]]
        %v2780 = vstv %s2779
        %v2781 = vmul.f32 %v2780, %v2681
        %v2782 = vmul.f32 %v2780, %v2684
        %v2783 = vadd.f32 %v2515, %v2781
        %v2784 = vadd.f32 %v2516, %v2782
        %s2785 = sld [smem:[#allocation2 + $0xe5]]
        %v2786 = vstv %s2785
        %v2787 = vmul.f32 %v2786, %v2704
        %v2788 = vmul.f32 %v2786, %v2707
        %v2789 = vadd.f32 %v2783, %v2787
        %v2790 = vadd.f32 %v2784, %v2788
        %s2791 = sld [smem:[#allocation2 + $0xe6]]
        %v2792 = vstv %s2791
        %v2793 = vmul.f32 %v2792, %v2727
        %v2794 = vmul.f32 %v2792, %v2730
        %v2795 = vadd.f32 %v2789, %v2793
        %v2796 = vadd.f32 %v2790, %v2794
        %s2797 = sld [smem:[#allocation2 + $0xe7]]
        %v2798 = vstv %s2797
        %v2799 = vmul.f32 %v2798, %v2750
        %v2800 = vmul.f32 %v2798, %v2753
        %v2801 = vadd.f32 %v2795, %v2799
        %v2802 = vadd.f32 %v2796, %v2800
        %s2803 = sld [smem:[#allocation2 + $0xe8]]
        %v2804 = vstv %s2803
        %v2805 = vmul.f32 %v2804, %v2681
        %v2806 = vmul.f32 %v2804, %v2684
        %v2807 = vadd.f32 %v2539, %v2805
        %v2808 = vadd.f32 %v2540, %v2806
        %s2809 = sld [smem:[#allocation2 + $0xe9]]
        %v2810 = vstv %s2809
        %v2811 = vmul.f32 %v2810, %v2704
        %v2812 = vmul.f32 %v2810, %v2707
        %v2813 = vadd.f32 %v2807, %v2811
        %v2814 = vadd.f32 %v2808, %v2812
        %s2815 = sld [smem:[#allocation2 + $0xea]]
        %v2816 = vstv %s2815
        %v2817 = vmul.f32 %v2816, %v2727
        %v2818 = vmul.f32 %v2816, %v2730
        %v2819 = vadd.f32 %v2813, %v2817
        %v2820 = vadd.f32 %v2814, %v2818
        %s2821 = sld [smem:[#allocation2 + $0xeb]]
        %v2822 = vstv %s2821
        %v2823 = vmul.f32 %v2822, %v2750
        %v2824 = vmul.f32 %v2822, %v2753
        %v2825 = vadd.f32 %v2819, %v2823
        %v2826 = vadd.f32 %v2820, %v2824
        %s2827 = sld [smem:[#allocation2 + $0xec]]
        %v2828 = vstv %s2827
        %v2829 = vmul.f32 %v2828, %v2681
        %v2830 = vmul.f32 %v2828, %v2684
        %v2831 = vadd.f32 %v2563, %v2829
        %v2832 = vadd.f32 %v2564, %v2830
        %s2833 = sld [smem:[#allocation2 + $0xed]]
        %v2834 = vstv %s2833
        %v2835 = vmul.f32 %v2834, %v2704
        %v2836 = vmul.f32 %v2834, %v2707
        %v2837 = vadd.f32 %v2831, %v2835
        %v2838 = vadd.f32 %v2832, %v2836
        %s2839 = sld [smem:[#allocation2 + $0xee]]
        %v2840 = vstv %s2839
        %v2841 = vmul.f32 %v2840, %v2727
        %v2842 = vmul.f32 %v2840, %v2730
        %v2843 = vadd.f32 %v2837, %v2841
        %v2844 = vadd.f32 %v2838, %v2842
        %s2845 = sld [smem:[#allocation2 + $0xef]]
        %v2846 = vstv %s2845
        %v2847 = vmul.f32 %v2846, %v2750
        %v2848 = vmul.f32 %v2846, %v2753
        %v2849 = vadd.f32 %v2843, %v2847
        %v2850 = vadd.f32 %v2844, %v2848
        %s2851 = sld [smem:[#allocation2 + $0xf0]]
        %v2852 = vstv %s2851
        %v2853 = vmul.f32 %v2852, %v2681
        %v2854 = vmul.f32 %v2852, %v2684
        %v2855 = vadd.f32 %v2587, %v2853
        %v2856 = vadd.f32 %v2588, %v2854
        %s2857 = sld [smem:[#allocation2 + $0xf1]]
        %v2858 = vstv %s2857
        %v2859 = vmul.f32 %v2858, %v2704
        %v2860 = vmul.f32 %v2858, %v2707
        %v2861 = vadd.f32 %v2855, %v2859
        %v2862 = vadd.f32 %v2856, %v2860
        %s2863 = sld [smem:[#allocation2 + $0xf2]]
        %v2864 = vstv %s2863
        %v2865 = vmul.f32 %v2864, %v2727
        %v2866 = vmul.f32 %v2864, %v2730
        %v2867 = vadd.f32 %v2861, %v2865
        %v2868 = vadd.f32 %v2862, %v2866
        %s2869 = sld [smem:[#allocation2 + $0xf3]]
        %v2870 = vstv %s2869
        %v2871 = vmul.f32 %v2870, %v2750
        %v2872 = vmul.f32 %v2870, %v2753
        %v2873 = vadd.f32 %v2867, %v2871
        %v2874 = vadd.f32 %v2868, %v2872
        %s2875 = sld [smem:[#allocation2 + $0xf4]]
        %v2876 = vstv %s2875
        %v2877 = vmul.f32 %v2876, %v2681
        %v2878 = vmul.f32 %v2876, %v2684
        %v2879 = vadd.f32 %v2611, %v2877
        %v2880 = vadd.f32 %v2612, %v2878
        %s2881 = sld [smem:[#allocation2 + $0xf5]]
        %v2882 = vstv %s2881
        %v2883 = vmul.f32 %v2882, %v2704
        %v2884 = vmul.f32 %v2882, %v2707
        %v2885 = vadd.f32 %v2879, %v2883
        %v2886 = vadd.f32 %v2880, %v2884
        %s2887 = sld [smem:[#allocation2 + $0xf6]]
        %v2888 = vstv %s2887
        %v2889 = vmul.f32 %v2888, %v2727
        %v2890 = vmul.f32 %v2888, %v2730
        %v2891 = vadd.f32 %v2885, %v2889
        %v2892 = vadd.f32 %v2886, %v2890
        %s2893 = sld [smem:[#allocation2 + $0xf7]]
        %v2894 = vstv %s2893
        %v2895 = vmul.f32 %v2894, %v2750
        %v2896 = vmul.f32 %v2894, %v2753
        %v2897 = vadd.f32 %v2891, %v2895
        %v2898 = vadd.f32 %v2892, %v2896
        %s2899 = sld [smem:[#allocation2 + $0xf8]]
        %v2900 = vstv %s2899
        %v2901 = vmul.f32 %v2900, %v2681
        %v2902 = vmul.f32 %v2900, %v2684
        %v2903 = vadd.f32 %v2635, %v2901
        %v2904 = vadd.f32 %v2636, %v2902
        %s2905 = sld [smem:[#allocation2 + $0xf9]]
        %v2906 = vstv %s2905
        %v2907 = vmul.f32 %v2906, %v2704
        %v2908 = vmul.f32 %v2906, %v2707
        %v2909 = vadd.f32 %v2903, %v2907
        %v2910 = vadd.f32 %v2904, %v2908
        %s2911 = sld [smem:[#allocation2 + $0xfa]]
        %v2912 = vstv %s2911
        %v2913 = vmul.f32 %v2912, %v2727
        %v2914 = vmul.f32 %v2912, %v2730
        %v2915 = vadd.f32 %v2909, %v2913
        %v2916 = vadd.f32 %v2910, %v2914
        %s2917 = sld [smem:[#allocation2 + $0xfb]]
        %v2918 = vstv %s2917
        %v2919 = vmul.f32 %v2918, %v2750
        %v2920 = vmul.f32 %v2918, %v2753
        %v2921 = vadd.f32 %v2915, %v2919
        %v2922 = vadd.f32 %v2916, %v2920
        %s2923 = sld [smem:[#allocation2 + $0xfc]]
        %v2924 = vstv %s2923
        %v2925 = vmul.f32 %v2924, %v2681
        %v2926 = vmul.f32 %v2924, %v2684
        %v2927 = vadd.f32 %v2659, %v2925
        %v2928 = vadd.f32 %v2660, %v2926
        %s2929 = sld [smem:[#allocation2 + $0xfd]]
        %v2930 = vstv %s2929
        %v2931 = vmul.f32 %v2930, %v2704
        %v2932 = vmul.f32 %v2930, %v2707
        %v2933 = vadd.f32 %v2927, %v2931
        %v2934 = vadd.f32 %v2928, %v2932
        %s2935 = sld [smem:[#allocation2 + $0xfe]]
        %v2936 = vstv %s2935
        %v2937 = vmul.f32 %v2936, %v2727
        %v2938 = vmul.f32 %v2936, %v2730
        %v2939 = vadd.f32 %v2933, %v2937
        %v2940 = vadd.f32 %v2934, %v2938
        %s2941 = sld [smem:[#allocation2 + $0xff]]
        %v2942 = vstv %s2941
        %v2943 = vmul.f32 %v2942, %v2750
        %v2944 = vmul.f32 %v2942, %v2753
        %v2945 = vadd.f32 %v2939, %v2943
        %v2946 = vadd.f32 %v2940, %v2944
        %v2947 = vld [vmem:[%s980] sm:$0xff]
        %v2948 = vld [vmem:[%s980 + $0x8] sm:$0xff]
        %2949 = vmatpush.msra.mxu0 0.0
        %2950 = vmatpush.msra.mxu0 0.0
        %2951 = vmatpush.msra.mxu0 0.0
        %2952 = vmatpush.msra.mxu0 0.0
        %2953 = vmatpush.msra.mxu0 0.0
        %2954 = vmatpush.msra.mxu0 0.0
        %2955 = vmatpush.msra.mxu0 0.0
        %2956 = vmatpush.msra.mxu0 0.0
        %2957 = vmatpush.msra.mxu0 0.0
        %2958 = vmatpush.msra.mxu0 0.0
        %2959 = vmatpush.msra.mxu0 0.0
        %2960 = vmatpush.msra.mxu0 0.0
        %2961 = vmatpush.msra.mxu0 0.0
        %2962 = vmatpush.msra.mxu0 0.0
        %2963 = vmatpush.msra.mxu0 %v2948
        %2964 = vmatpush.msra.mxu0 %v2947
        %2965 = vmatmul.f32.gmra.mxu0 %v2354
        %v2966 = vpop.f32.mrf.mxu0
        %v2967 = vadd.f32 0.0, %v2966
        %2968 = vmatmul.f32.gmra.mxu0 %v2357
        %v2969 = vpop.f32.mrf.mxu0
        %v2970 = vadd.f32 0.0, %v2969
        %2971 = vdwg.mxu0
        %2972 = vmatpush.msra.mxu0 0.0
        %2973 = vmatpush.msra.mxu0 0.0
        %2974 = vmatpush.msra.mxu0 0.0
        %2975 = vmatpush.msra.mxu0 0.0
        %2976 = vmatpush.msra.mxu0 0.0
        %2977 = vmatpush.msra.mxu0 0.0
        %2978 = vmatpush.msra.mxu0 0.0
        %2979 = vmatpush.msra.mxu0 0.0
        %2980 = vmatpush.msra.mxu0 0.0
        %2981 = vmatpush.msra.mxu0 0.0
        %2982 = vmatpush.msra.mxu0 0.0
        %2983 = vmatpush.msra.mxu0 0.0
        %2984 = vmatpush.msra.mxu0 0.0
        %2985 = vmatpush.msra.mxu0 0.0
        %2986 = vmatpush.msra.mxu0 %v2948
        %2987 = vmatpush.msra.mxu0 %v2947
        %2988 = vmatmul.f32.gmra.mxu0 %v2383
        %v2989 = vpop.f32.mrf.mxu0
        %v2990 = vadd.f32 0.0, %v2989
        %2991 = vmatmul.f32.gmra.mxu0 %v2386
        %v2992 = vpop.f32.mrf.mxu0
        %v2993 = vadd.f32 0.0, %v2992
        %2994 = vdwg.mxu0
        %2995 = vmatpush.msra.mxu0 0.0
        %2996 = vmatpush.msra.mxu0 0.0
        %2997 = vmatpush.msra.mxu0 0.0
        %2998 = vmatpush.msra.mxu0 0.0
        %2999 = vmatpush.msra.mxu0 0.0
        %3000 = vmatpush.msra.mxu0 0.0
        %3001 = vmatpush.msra.mxu0 0.0
        %3002 = vmatpush.msra.mxu0 0.0
        %3003 = vmatpush.msra.mxu0 0.0
        %3004 = vmatpush.msra.mxu0 0.0
        %3005 = vmatpush.msra.mxu0 0.0
        %3006 = vmatpush.msra.mxu0 0.0
        %3007 = vmatpush.msra.mxu0 0.0
        %3008 = vmatpush.msra.mxu0 0.0
        %3009 = vmatpush.msra.mxu0 %v2948
        %3010 = vmatpush.msra.mxu0 %v2947
        %3011 = vmatmul.f32.gmra.mxu0 %v2412
        %v3012 = vpop.f32.mrf.mxu0
        %v3013 = vadd.f32 0.0, %v3012
        %3014 = vmatmul.f32.gmra.mxu0 %v2415
        %v3015 = vpop.f32.mrf.mxu0
        %v3016 = vadd.f32 0.0, %v3015
        %3017 = vdwg.mxu0
        %3018 = vmatpush.msra.mxu0 0.0
        %3019 = vmatpush.msra.mxu0 0.0
        %3020 = vmatpush.msra.mxu0 0.0
        %3021 = vmatpush.msra.mxu0 0.0
        %3022 = vmatpush.msra.mxu0 0.0
        %3023 = vmatpush.msra.mxu0 0.0
        %3024 = vmatpush.msra.mxu0 0.0
        %3025 = vmatpush.msra.mxu0 0.0
        %3026 = vmatpush.msra.mxu0 0.0
        %3027 = vmatpush.msra.mxu0 0.0
        %3028 = vmatpush.msra.mxu0 0.0
        %3029 = vmatpush.msra.mxu0 0.0
        %3030 = vmatpush.msra.mxu0 0.0
        %3031 = vmatpush.msra.mxu0 0.0
        %3032 = vmatpush.msra.mxu0 %v2948
        %3033 = vmatpush.msra.mxu0 %v2947
        %3034 = vmatmul.f32.gmra.mxu0 %v2441
        %v3035 = vpop.f32.mrf.mxu0
        %v3036 = vadd.f32 0.0, %v3035
        %3037 = vmatmul.f32.gmra.mxu0 %v2444
        %v3038 = vpop.f32.mrf.mxu0
        %v3039 = vadd.f32 0.0, %v3038
        %3040 = vdwg.mxu0
        %s3041 = sld [smem:[#allocation2 + $0x100]]
        %v3042 = vstv %s3041
        %v3043 = vmul.f32 %v3042, %v2967
        %v3044 = vmul.f32 %v3042, %v2970
        %v3045 = vadd.f32 %v2777, %v3043
        %v3046 = vadd.f32 %v2778, %v3044
        %s3047 = sld [smem:[#allocation2 + $0x101]]
        %v3048 = vstv %s3047
        %v3049 = vmul.f32 %v3048, %v2990
        %v3050 = vmul.f32 %v3048, %v2993
        %v3051 = vadd.f32 %v3045, %v3049
        %v3052 = vadd.f32 %v3046, %v3050
        %s3053 = sld [smem:[#allocation2 + $0x102]]
        %v3054 = vstv %s3053
        %v3055 = vmul.f32 %v3054, %v3013
        %v3056 = vmul.f32 %v3054, %v3016
        %v3057 = vadd.f32 %v3051, %v3055
        %v3058 = vadd.f32 %v3052, %v3056
        %s3059 = sld [smem:[#allocation2 + $0x103]]
        %v3060 = vstv %s3059
        %v3061 = vmul.f32 %v3060, %v3036
        %v3062 = vmul.f32 %v3060, %v3039
        %v3063 = vadd.f32 %v3057, %v3061
        %v3064 = vadd.f32 %v3058, %v3062
        %s3065 = sld [smem:[#allocation2 + $0x104]]
        %v3066 = vstv %s3065
        %v3067 = vmul.f32 %v3066, %v2967
        %v3068 = vmul.f32 %v3066, %v2970
        %v3069 = vadd.f32 %v2801, %v3067
        %v3070 = vadd.f32 %v2802, %v3068
        %s3071 = sld [smem:[#allocation2 + $0x105]]
        %v3072 = vstv %s3071
        %v3073 = vmul.f32 %v3072, %v2990
        %v3074 = vmul.f32 %v3072, %v2993
        %v3075 = vadd.f32 %v3069, %v3073
        %v3076 = vadd.f32 %v3070, %v3074
        %s3077 = sld [smem:[#allocation2 + $0x106]]
        %v3078 = vstv %s3077
        %v3079 = vmul.f32 %v3078, %v3013
        %v3080 = vmul.f32 %v3078, %v3016
        %v3081 = vadd.f32 %v3075, %v3079
        %v3082 = vadd.f32 %v3076, %v3080
        %s3083 = sld [smem:[#allocation2 + $0x107]]
        %v3084 = vstv %s3083
        %v3085 = vmul.f32 %v3084, %v3036
        %v3086 = vmul.f32 %v3084, %v3039
        %v3087 = vadd.f32 %v3081, %v3085
        %v3088 = vadd.f32 %v3082, %v3086
        %s3089 = sld [smem:[#allocation2 + $0x108]]
        %v3090 = vstv %s3089
        %v3091 = vmul.f32 %v3090, %v2967
        %v3092 = vmul.f32 %v3090, %v2970
        %v3093 = vadd.f32 %v2825, %v3091
        %v3094 = vadd.f32 %v2826, %v3092
        %s3095 = sld [smem:[#allocation2 + $0x109]]
        %v3096 = vstv %s3095
        %v3097 = vmul.f32 %v3096, %v2990
        %v3098 = vmul.f32 %v3096, %v2993
        %v3099 = vadd.f32 %v3093, %v3097
        %v3100 = vadd.f32 %v3094, %v3098
        %s3101 = sld [smem:[#allocation2 + $0x10a]]
        %v3102 = vstv %s3101
        %v3103 = vmul.f32 %v3102, %v3013
        %v3104 = vmul.f32 %v3102, %v3016
        %v3105 = vadd.f32 %v3099, %v3103
        %v3106 = vadd.f32 %v3100, %v3104
        %s3107 = sld [smem:[#allocation2 + $0x10b]]
        %v3108 = vstv %s3107
        %v3109 = vmul.f32 %v3108, %v3036
        %v3110 = vmul.f32 %v3108, %v3039
        %v3111 = vadd.f32 %v3105, %v3109
        %v3112 = vadd.f32 %v3106, %v3110
        %s3113 = sld [smem:[#allocation2 + $0x10c]]
        %v3114 = vstv %s3113
        %v3115 = vmul.f32 %v3114, %v2967
        %v3116 = vmul.f32 %v3114, %v2970
        %v3117 = vadd.f32 %v2849, %v3115
        %v3118 = vadd.f32 %v2850, %v3116
        %s3119 = sld [smem:[#allocation2 + $0x10d]]
        %v3120 = vstv %s3119
        %v3121 = vmul.f32 %v3120, %v2990
        %v3122 = vmul.f32 %v3120, %v2993
        %v3123 = vadd.f32 %v3117, %v3121
        %v3124 = vadd.f32 %v3118, %v3122
        %s3125 = sld [smem:[#allocation2 + $0x10e]]
        %v3126 = vstv %s3125
        %v3127 = vmul.f32 %v3126, %v3013
        %v3128 = vmul.f32 %v3126, %v3016
        %v3129 = vadd.f32 %v3123, %v3127
        %v3130 = vadd.f32 %v3124, %v3128
        %s3131 = sld [smem:[#allocation2 + $0x10f]]
        %v3132 = vstv %s3131
        %v3133 = vmul.f32 %v3132, %v3036
        %v3134 = vmul.f32 %v3132, %v3039
        %v3135 = vadd.f32 %v3129, %v3133
        %v3136 = vadd.f32 %v3130, %v3134
        %s3137 = sld [smem:[#allocation2 + $0x110]]
        %v3138 = vstv %s3137
        %v3139 = vmul.f32 %v3138, %v2967
        %v3140 = vmul.f32 %v3138, %v2970
        %v3141 = vadd.f32 %v2873, %v3139
        %v3142 = vadd.f32 %v2874, %v3140
        %s3143 = sld [smem:[#allocation2 + $0x111]]
        %v3144 = vstv %s3143
        %v3145 = vmul.f32 %v3144, %v2990
        %v3146 = vmul.f32 %v3144, %v2993
        %v3147 = vadd.f32 %v3141, %v3145
        %v3148 = vadd.f32 %v3142, %v3146
        %s3149 = sld [smem:[#allocation2 + $0x112]]
        %v3150 = vstv %s3149
        %v3151 = vmul.f32 %v3150, %v3013
        %v3152 = vmul.f32 %v3150, %v3016
        %v3153 = vadd.f32 %v3147, %v3151
        %v3154 = vadd.f32 %v3148, %v3152
        %s3155 = sld [smem:[#allocation2 + $0x113]]
        %v3156 = vstv %s3155
        %v3157 = vmul.f32 %v3156, %v3036
        %v3158 = vmul.f32 %v3156, %v3039
        %v3159 = vadd.f32 %v3153, %v3157
        %v3160 = vadd.f32 %v3154, %v3158
        %s3161 = sld [smem:[#allocation2 + $0x114]]
        %v3162 = vstv %s3161
        %v3163 = vmul.f32 %v3162, %v2967
        %v3164 = vmul.f32 %v3162, %v2970
        %v3165 = vadd.f32 %v2897, %v3163
        %v3166 = vadd.f32 %v2898, %v3164
        %s3167 = sld [smem:[#allocation2 + $0x115]]
        %v3168 = vstv %s3167
        %v3169 = vmul.f32 %v3168, %v2990
        %v3170 = vmul.f32 %v3168, %v2993
        %v3171 = vadd.f32 %v3165, %v3169
        %v3172 = vadd.f32 %v3166, %v3170
        %s3173 = sld [smem:[#allocation2 + $0x116]]
        %v3174 = vstv %s3173
        %v3175 = vmul.f32 %v3174, %v3013
        %v3176 = vmul.f32 %v3174, %v3016
        %v3177 = vadd.f32 %v3171, %v3175
        %v3178 = vadd.f32 %v3172, %v3176
        %s3179 = sld [smem:[#allocation2 + $0x117]]
        %v3180 = vstv %s3179
        %v3181 = vmul.f32 %v3180, %v3036
        %v3182 = vmul.f32 %v3180, %v3039
        %v3183 = vadd.f32 %v3177, %v3181
        %v3184 = vadd.f32 %v3178, %v3182
        %s3185 = sld [smem:[#allocation2 + $0x118]]
        %v3186 = vstv %s3185
        %v3187 = vmul.f32 %v3186, %v2967
        %v3188 = vmul.f32 %v3186, %v2970
        %v3189 = vadd.f32 %v2921, %v3187
        %v3190 = vadd.f32 %v2922, %v3188
        %s3191 = sld [smem:[#allocation2 + $0x119]]
        %v3192 = vstv %s3191
        %v3193 = vmul.f32 %v3192, %v2990
        %v3194 = vmul.f32 %v3192, %v2993
        %v3195 = vadd.f32 %v3189, %v3193
        %v3196 = vadd.f32 %v3190, %v3194
        %s3197 = sld [smem:[#allocation2 + $0x11a]]
        %v3198 = vstv %s3197
        %v3199 = vmul.f32 %v3198, %v3013
        %v3200 = vmul.f32 %v3198, %v3016
        %v3201 = vadd.f32 %v3195, %v3199
        %v3202 = vadd.f32 %v3196, %v3200
        %s3203 = sld [smem:[#allocation2 + $0x11b]]
        %v3204 = vstv %s3203
        %v3205 = vmul.f32 %v3204, %v3036
        %v3206 = vmul.f32 %v3204, %v3039
        %v3207 = vadd.f32 %v3201, %v3205
        %v3208 = vadd.f32 %v3202, %v3206
        %s3209 = sld [smem:[#allocation2 + $0x11c]]
        %v3210 = vstv %s3209
        %v3211 = vmul.f32 %v3210, %v2967
        %v3212 = vmul.f32 %v3210, %v2970
        %v3213 = vadd.f32 %v2945, %v3211
        %v3214 = vadd.f32 %v2946, %v3212
        %s3215 = sld [smem:[#allocation2 + $0x11d]]
        %v3216 = vstv %s3215
        %v3217 = vmul.f32 %v3216, %v2990
        %v3218 = vmul.f32 %v3216, %v2993
        %v3219 = vadd.f32 %v3213, %v3217
        %v3220 = vadd.f32 %v3214, %v3218
        %s3221 = sld [smem:[#allocation2 + $0x11e]]
        %v3222 = vstv %s3221
        %v3223 = vmul.f32 %v3222, %v3013
        %v3224 = vmul.f32 %v3222, %v3016
        %v3225 = vadd.f32 %v3219, %v3223
        %v3226 = vadd.f32 %v3220, %v3224
        %s3227 = sld [smem:[#allocation2 + $0x11f]]
        %v3228 = vstv %s3227
        %v3229 = vmul.f32 %v3228, %v3036
        %v3230 = vmul.f32 %v3228, %v3039
        %v3231 = vadd.f32 %v3225, %v3229
        %v3232 = vadd.f32 %v3226, %v3230
        %s3233 = sld [smem:[#allocation5]]
        %v3234 = vstv %s3233
        %v3235 = vadd.f32 %v3063, %v3234
        %v3236 = vadd.f32 %v3064, %v3234
        %3237 = vst.msk [vmem:[%s244] sm:$0xff] %vm260, %v3235
        %3238 = vst.msk [vmem:[%s244 + $0x8] sm:$0xff] %vm260, %v3236
        %s3239 = sld [smem:[#allocation5 + $0x1]]
        %v3240 = vstv %s3239
        %v3241 = vadd.f32 %v3087, %v3240
        %v3242 = vadd.f32 %v3088, %v3240
        %s3243 = scalar_lea.vmem %s244, 16 [#allocation7]
        %3244 = vst.msk [vmem:[%s3243] sm:$0xff] %vm260, %v3241
        %3245 = vst.msk [vmem:[%s3243 + $0x8] sm:$0xff] %vm260, %v3242
        %s3246 = sld [smem:[#allocation5 + $0x2]]
        %v3247 = vstv %s3246
        %v3248 = vadd.f32 %v3111, %v3247
        %v3249 = vadd.f32 %v3112, %v3247
        %s3250 = scalar_lea.vmem %s244, 32 [#allocation7]
        %3251 = vst.msk [vmem:[%s3250] sm:$0xff] %vm260, %v3248
        %3252 = vst.msk [vmem:[%s3250 + $0x8] sm:$0xff] %vm260, %v3249
        %s3253 = sld [smem:[#allocation5 + $0x3]]
        %v3254 = vstv %s3253
        %v3255 = vadd.f32 %v3135, %v3254
        %v3256 = vadd.f32 %v3136, %v3254
        %s3257 = scalar_lea.vmem %s244, 48 [#allocation7]
        %3258 = vst.msk [vmem:[%s3257] sm:$0xff] %vm260, %v3255
        %3259 = vst.msk [vmem:[%s3257 + $0x8] sm:$0xff] %vm260, %v3256
        %s3260 = sld [smem:[#allocation5 + $0x4]]
        %v3261 = vstv %s3260
        %v3262 = vadd.f32 %v3159, %v3261
        %v3263 = vadd.f32 %v3160, %v3261
        %s3264 = scalar_lea.vmem %s244, 64 [#allocation7]
        %3265 = vst.msk [vmem:[%s3264] sm:$0xff] %vm260, %v3262
        %3266 = vst.msk [vmem:[%s3264 + $0x8] sm:$0xff] %vm260, %v3263
        %s3267 = sld [smem:[#allocation5 + $0x5]]
        %v3268 = vstv %s3267
        %v3269 = vadd.f32 %v3183, %v3268
        %v3270 = vadd.f32 %v3184, %v3268
        %s3271 = scalar_lea.vmem %s244, 80 [#allocation7]
        %3272 = vst.msk [vmem:[%s3271] sm:$0xff] %vm260, %v3269
        %3273 = vst.msk [vmem:[%s3271 + $0x8] sm:$0xff] %vm260, %v3270
        %s3274 = sld [smem:[#allocation5 + $0x6]]
        %v3275 = vstv %s3274
        %v3276 = vadd.f32 %v3207, %v3275
        %v3277 = vadd.f32 %v3208, %v3275
        %s3278 = scalar_lea.vmem %s244, 96 [#allocation7]
        %3279 = vst.msk [vmem:[%s3278] sm:$0xff] %vm260, %v3276
        %3280 = vst.msk [vmem:[%s3278 + $0x8] sm:$0xff] %vm260, %v3277
        %s3281 = sld [smem:[#allocation5 + $0x7]]
        %v3282 = vstv %s3281
        %v3283 = vadd.f32 %v3231, %v3282
        %v3284 = vadd.f32 %v3232, %v3282
        %s3285 = scalar_lea.vmem %s244, 112 [#allocation7]
        %3286 = vst.msk [vmem:[%s3285] sm:$0xff] %vm260, %v3283
        %3287 = vst.msk [vmem:[%s3285 + $0x8] sm:$0xff] %vm260, %v3284
        %s3288 = sand.u32 %s139, 1
        %s3289 = scalar_lea.sflag [#allocation3], %s3288
        %s3290 = sand.u32 %s139, 1
        %s3291 = smul.addr %s3290, 128
        %s3292 = scalar_lea.vmem [#allocation7], %s3291
        // Predicated region
        $region49: #{deform_conv_forward.1} parent=39 // pred_check
          %p3293 = pneg %p149
        $region50: #{deform_conv_forward.1} parent=39 // pred_check_branch
          %3295 = sbr.rel (%p3293) target = $region52
        $region51: #{deform_conv_forward.1} parent=39 // pred_region
          %3297 = vsyncadd %s3289, 0
          %s3298 = smul.addr %s21, 16
          %s3299 = smul.addr %s3298, 8
          %s3300 = scalar_lea.hbm %s5, %s3299
          %s3301 = sshll.u32 %s3292, 4
          %s3302 = int_to_ptr.vmem [resolvable:$true] %s3301
          %s3303 = sshll.u32 %s3300, 4
          %s3304 = int_to_ptr.hbm [resolvable:$true] %s3303
          %3309 = dma.vmem_to_hbm [thread:$0]  %s3302, 2048, %s3304, %s3289, 128, 128, 8
        $region52: #{deform_conv_forward.1} parent=39 // pred_fallthru
          _
      $region40: #{deform_conv_forward.1} parent=5 // pred_fallthru
        _
      %p3310 = scmp.le.s32.totalorder 2, %s16
      // Predicated region
      $region53: #{deform_conv_forward.1} parent=5 // pred_check
        %p3311 = pneg %p3310
      $region54: #{deform_conv_forward.1} parent=5 // pred_check_branch
        %3313 = sbr.rel (%p3311) target = $region56
      $region55: #{deform_conv_forward.1} parent=5 // pred_region
        %s3314 = ssub.s32 %s16, 2
        // Predicated region
        $region57: #{deform_conv_forward.1} parent=55 // pred_check
          %p3315 = pneg %p155
        $region58: #{deform_conv_forward.1} parent=55 // pred_check_branch
          %3317 = sbr.rel (%p3315) target = $region60
        $region59: #{deform_conv_forward.1} parent=55 // pred_region
          %s3318 = sand.u32 %s140, 1
          %s3319 = scalar_lea.sflag [#allocation3], %s3318
          %s3320 = sand.u32 %s140, 1
          %s3321 = smul.addr %s3320, 128
          %s3322 = scalar_lea.vmem [#allocation7], %s3321
          %3324 = dma.done %s3319, 2048
        $region60: #{deform_conv_forward.1} parent=55 // pred_fallthru
          _
      $region56: #{deform_conv_forward.1} parent=5 // pred_fallthru
        _
    $region6: #{deform_conv_forward.1} parent=1 // loop_footer
      %s20 = sadd.s32 1, %s16
    $region7: #{deform_conv_forward.1} parent=1 // loop_footer_branch
      %15 = sbr.rel target = $region3
    $region8: #{deform_conv_forward.1} parent=1 // loop_exit
      _
    %3325 = vsyncpa [#allocation3], 1
    %s3326 = scalar_lea.sflag [#allocation3], 1
    %3327 = vsyncpa %s3326, 1
    %3328 = vsyncpa [#allocation4], 1
    %s3329 = scalar_lea.sflag [#allocation4], 1
    %3330 = vsyncpa %s3329, 1
    %3331 = vsyncpa [#allocation6], 1

</llo_original>
